<compile_context>
chip_gen: v6e
topology: v6e:2x2x1
jax: 0.10.0
libtpu: 0.0.40
codegen_flags: <defaults>
</compile_context>

<pallas_src>
import math
import jax
import jax.numpy as jnp
from jax import lax
from jax.experimental import pallas as pl
from jax.experimental.pallas import tpu as pltpu


# --------------------------------------------------------------------------
# Fused kernel: all layers, both directions, time loop, and final Linear.
# --------------------------------------------------------------------------
def fused_lstm_kernel(x_ref, w_ref, b_ref, wlin_ref, blin_ref,
                      out_ref, hn_ref, cn_ref, buf0, buf1):
    # x_ref   : (S, B, 2H)  input, zero-padded to 2H features
    # w_ref   : (L, 6H, 8H) packed weights, rows = [x_fwd | x_bwd | h_fwd | h_bwd]
    #           cols (per gate, dir-interleaved) = [i_f,i_b,f_f,f_b,g_f,g_b,o_f,o_b]
    # b_ref   : (L, 1, 8H)  packed biases (bih + bhh), same column layout
    # wlin_ref: (2H, O), blin_ref: (1, O)
    # out_ref : (S, B, O); hn_ref/cn_ref: (2L, B, H)
    # buf0/1  : (S, B, 2H) ping-pong activation scratch ([:, :, :H]=fwd, [:, :, H:]=bwd)
    S, B, twoH = x_ref.shape
    H = twoH // 2
    L = w_ref.shape[0]

    bufs = (buf0, buf1)
    cur = x_ref
    for l in range(L):                       # static layer loop (L=4)
        nxt = bufs[l % 2]

        def step(s, carry, cur=cur, nxt=nxt, l=l):
            h_cat, c_cat = carry             # (B, 2H): [:, :H]=fwd, [:, H:]=bwd
            x_f = cur[s]                     # layer input at time s      (fwd)
            x_b = cur[S - 1 - s]             # layer input at time S-1-s  (bwd)
            z = jnp.concatenate([x_f, x_b, h_cat], axis=-1)          # (B, 6H)
            gates = (jnp.dot(z, w_ref[l],
                             preferred_element_type=jnp.float32)
                     + b_ref[l])                                      # (B, 8H)
            sig = jax.nn.sigmoid(gates)      # one pass over packed gates
            tnh = jnp.tanh(gates)
            i_g = sig[:, 0 * twoH:1 * twoH]  # [i_fwd | i_bwd]
            f_g = sig[:, 1 * twoH:2 * twoH]
            g_g = tnh[:, 2 * twoH:3 * twoH]
            o_g = sig[:, 3 * twoH:4 * twoH]
            c_new = f_g * c_cat + i_g * g_g
            h_new = o_g * jnp.tanh(c_new)
            nxt[s, :, :H] = h_new[:, :H]             # fwd output at time s
            nxt[S - 1 - s, :, H:] = h_new[:, H:]     # bwd output at time S-1-s
            return h_new, c_new

        init = (jnp.zeros((B, twoH), jnp.float32),
                jnp.zeros((B, twoH), jnp.float32))
        h_fin, c_fin = lax.fori_loop(0, S, step, init, unroll=True)

        hn_ref[2 * l] = h_fin[:, :H]
        hn_ref[2 * l + 1] = h_fin[:, H:]
        cn_ref[2 * l] = c_fin[:, :H]
        cn_ref[2 * l + 1] = c_fin[:, H:]
        cur = nxt

    # fused Linear epilogue on the last layer's (S, B, 2H) output
    wl = wlin_ref[...]                       # (2H, O)
    bl = blin_ref[...]                       # (1, O)
    for s in range(S):                       # static, S=8
        out_ref[s] = (jnp.dot(cur[s], wl, preferred_element_type=jnp.float32)
                      + bl).astype(out_ref.dtype)


# --------------------------------------------------------------------------
# Host-side weight packing (plain JAX, done once).
# --------------------------------------------------------------------------
def _interleave_gate_cols(m_f, m_b, H):
    """m_f/m_b: (K, 4H) with gate column order i,f,g,o.
    Returns (K, 8H) with columns [i_f,i_b,f_f,f_b,g_f,g_b,o_f,o_b]."""
    K = m_f.shape[0]
    stacked = jnp.stack([m_f.reshape(K, 4, H), m_b.reshape(K, 4, H)], axis=2)
    return stacked.reshape(K, 8 * H)


def build_packed_params(lstm_params, H):
    twoH = 2 * H
    Ws, Bs = [], []
    for (wih_f, whh_f, bih_f, bhh_f), (wih_b, whh_b, bih_b, bhh_b) in lstm_params:
        wih_f_t = wih_f.T                    # (in_f, 4H)
        wih_b_t = wih_b.T
        in_f = wih_f_t.shape[0]
        if in_f < twoH:                      # zero-pad layer-0 input rows to 2H
            pad = twoH - in_f
            wih_f_t = jnp.pad(wih_f_t, ((0, pad), (0, 0)))
            wih_b_t = jnp.pad(wih_b_t, ((0, pad), (0, 0)))
        whh_f_t = whh_f.T                    # (H, 4H)
        whh_b_t = whh_b.T
        z2H = jnp.zeros_like(wih_f_t)
        zH = jnp.zeros_like(whh_f_t)
        W = jnp.concatenate([
            _interleave_gate_cols(wih_f_t, z2H, H),   # x_fwd rows -> fwd gate cols
            _interleave_gate_cols(z2H, wih_b_t, H),   # x_bwd rows -> bwd gate cols
            _interleave_gate_cols(whh_f_t, zH, H),    # h_fwd rows -> fwd gate cols
            _interleave_gate_cols(zH, whh_b_t, H),    # h_bwd rows -> bwd gate cols
        ], axis=0)                                    # (6H, 8H)
        bias = _interleave_gate_cols((bih_f + bhh_f)[None, :],
                                     (bih_b + bhh_b)[None, :], H)   # (1, 8H)
        Ws.append(W)
        Bs.append(bias)
    return jnp.stack(Ws, axis=0), jnp.stack(Bs, axis=0)


# --------------------------------------------------------------------------
# Model wrapper: one pallas_call for the whole forward pass.
# --------------------------------------------------------------------------
def model_forward(x, lstm_params, lin_w, lin_b):
    S, B, F = x.shape
    H = lstm_params[0][0][1].shape[1]        # whh: (4H, H)
    L = len(lstm_params)
    O = lin_w.shape[0]
    twoH = 2 * H
    assert F <= twoH, "packed layout assumes input_dim <= 2*hidden_dim"

    W_big, B_big = build_packed_params(lstm_params, H)
    x_pad = jnp.pad(x, ((0, 0), (0, 0), (0, twoH - F)))
    wlin_t = lin_w.T                          # (2H, O)
    blin = lin_b.reshape(1, O)

    vmem = pl.BlockSpec(memory_space=pltpu.MemorySpace.VMEM)
    out, h_n, c_n = pl.pallas_call(
        fused_lstm_kernel,
        out_shape=(jax.ShapeDtypeStruct((S, B, O), jnp.float32),
                   jax.ShapeDtypeStruct((2 * L, B, H), jnp.float32),
                   jax.ShapeDtypeStruct((2 * L, B, H), jnp.float32)),
        in_specs=[vmem] * 5,
        out_specs=(vmem, vmem, vmem),
        scratch_shapes=[pltpu.VMEM((S, B, twoH), jnp.float32),
                        pltpu.VMEM((S, B, twoH), jnp.float32)],
    )(x_pad, W_big, B_big, wlin_t, blin)
    return out, (h_n, c_n)


# --------------------------------------------------------------------------
# Pure-JAX reference (for correctness check only).
# --------------------------------------------------------------------------
def ref_lstm_dir(x, wih, whh, bih, bhh):
    S, B, _ = x.shape
    H = whh.shape[1]
    h = jnp.zeros((B, H), jnp.float32)
    c = jnp.zeros((B, H), jnp.float32)

    def step(carry, x_t):
        h, c = carry
        gates = x_t @ wih.T + h @ whh.T + bih + bhh
        i = jax.nn.sigmoid(gates[:, 0 * H:1 * H])
        f = jax.nn.sigmoid(gates[:, 1 * H:2 * H])
        g = jnp.tanh(gates[:, 2 * H:3 * H])
        o = jax.nn.sigmoid(gates[:, 3 * H:4 * H])
        c_new = f * c + i * g
        h_new = o * jnp.tanh(c_new)
        return (h_new, c_new), h_new

    (hn, cn), ys = lax.scan(step, (h, c), x)
    return ys, hn, cn


def ref_forward(x, lstm_params, lin_w, lin_b):
    h_list, c_list = [], []
    layer_in = x
    for layer_params in lstm_params:
        outs = []
        for direction, (wih, whh, bih, bhh) in enumerate(layer_params):
            xd = layer_in if direction == 0 else jnp.flip(layer_in, axis=0)
            y, hn, cn = ref_lstm_dir(xd, wih, whh, bih, bhh)
            if direction == 1:
                y = jnp.flip(y, axis=0)
            outs.append(y)
            h_list.append(hn)
            c_list.append(cn)
        layer_in = jnp.concatenate(outs, axis=-1)
    out = layer_in @ lin_w.T + lin_b
    return out, (jnp.stack(h_list, 0), jnp.stack(c_list, 0))


# --------------------------------------------------------------------------
# Deterministic parameter init (PyTorch-style uniform(-1/sqrt(H), 1/sqrt(H))).
# --------------------------------------------------------------------------
def init_params(key, input_dim, hidden_dim, output_dim, num_layers):
    k = 1.0 / math.sqrt(hidden_dim)
    lstm_params = []
    for layer in range(num_layers):
        in_f = input_dim if layer == 0 else 2 * hidden_dim
        layer_params = []
        for _ in range(2):  # forward, backward
            key, k1, k2, k3, k4 = jax.random.split(key, 5)
            wih = jax.random.uniform(k1, (4 * hidden_dim, in_f), jnp.float32, -k, k)
            whh = jax.random.uniform(k2, (4 * hidden_dim, hidden_dim), jnp.float32, -k, k)
            bih = jax.random.uniform(k3, (4 * hidden_dim,), jnp.float32, -k, k)
            bhh = jax.random.uniform(k4, (4 * hidden_dim,), jnp.float32, -k, k)
            layer_params.append((wih, whh, bih, bhh))
        lstm_params.append(layer_params)
    key, k1, k2 = jax.random.split(key, 3)
    lin_in = 2 * hidden_dim
    kl = 1.0 / math.sqrt(lin_in)
    lin_w = jax.random.uniform(k1, (output_dim, lin_in), jnp.float32, -kl, kl)
    lin_b = jax.random.uniform(k2, (output_dim,), jnp.float32, -kl, kl)
    return lstm_params, lin_w, lin_b


if __name__ == "__main__":
    seq_len, batch, input_dim, hidden_dim, output_dim, num_layers = 8, 2, 16, 32, 4, 4

    key = jax.random.PRNGKey(0)
    key, kx = jax.random.split(key)
    x = jax.random.normal(kx, (seq_len, batch, input_dim), jnp.float32)

    lstm_params, lin_w, lin_b = init_params(
        key, input_dim, hidden_dim, output_dim, num_layers)

    fwd = jax.jit(model_forward)
    out, (h_n, c_n) = fwd(x, lstm_params, lin_w, lin_b)
    jax.block_until_ready((out, h_n, c_n))

    assert out.shape == (seq_len, batch, output_dim)
    assert h_n.shape == (num_layers * 2, batch, hidden_dim)
    assert c_n.shape == (num_layers * 2, batch, hidden_dim)

    # correctness vs pure-JAX reference
    out_r, (h_r, c_r) = ref_forward(x, lstm_params, lin_w, lin_b)
    assert jnp.allclose(out, out_r, atol=2e-4, rtol=2e-4)
    assert jnp.allclose(h_n, h_r, atol=2e-4, rtol=2e-4)
    assert jnp.allclose(c_n, c_r, atol=2e-4, rtol=2e-4)

    print("KERNEL_OK")
</pallas_src>

<mosaic_0001>
module attributes {stable_mosaic.version = 11 : i64} {
  func.func @fused_lstm_kernel(%arg0: memref<8x2x64xf32, #tpu.memory_space<vmem>>, %arg1: memref<4x192x256xf32, #tpu.memory_space<vmem>>, %arg2: memref<4x1x256xf32, #tpu.memory_space<vmem>>, %arg3: memref<64x4xf32, #tpu.memory_space<vmem>>, %arg4: memref<1x4xf32, #tpu.memory_space<vmem>>, %arg5: memref<8x2x4xf32, #tpu.memory_space<vmem>>, %arg6: memref<8x2x32xf32, #tpu.memory_space<vmem>>, %arg7: memref<8x2x32xf32, #tpu.memory_space<vmem>>, %arg8: memref<8x2x64xf32, #tpu.memory_space<vmem>>, %arg9: memref<8x2x64xf32, #tpu.memory_space<vmem>>) attributes {dimension_semantics = [], scalar_prefetch = 0 : i64, scratch_operands = 2 : i64, tpu.core_type = #tpu.core_type<tc>} {
    %cst = arith.constant 0.000000e+00 : f32
    %0 = vector.broadcast %cst : f32 to vector<2x64xf32>
    %cst_0 = arith.constant 0.000000e+00 : f32
    %1 = vector.broadcast %cst_0 : f32 to vector<2x64xf32>
    %c0_i32 = arith.constant 0 : i32
    %2 = arith.index_cast %c0_i32 : i32 to index
    %c0 = arith.constant 0 : index
    %c0_1 = arith.constant 0 : index
    %3 = vector.load %arg0[%2, %c0, %c0_1] : memref<8x2x64xf32, #tpu.memory_space<vmem>>, vector<1x2x64xf32>
    %4 = vector.shape_cast %3 : vector<1x2x64xf32> to vector<2x64xf32>
    %c7_i32 = arith.constant 7 : i32
    %5 = arith.subi %c7_i32, %c0_i32 : i32
    %6 = arith.index_cast %5 : i32 to index
    %c0_2 = arith.constant 0 : index
    %c0_3 = arith.constant 0 : index
    %7 = vector.load %arg0[%6, %c0_2, %c0_3] : memref<8x2x64xf32, #tpu.memory_space<vmem>>, vector<1x2x64xf32>
    %8 = vector.shape_cast %7 : vector<1x2x64xf32> to vector<2x64xf32>
    %9 = tpu.concatenate %4, %8, %0 in 1 : vector<2x64xf32>, vector<2x64xf32>, vector<2x64xf32> -> vector<2x192xf32>
    %c0_4 = arith.constant 0 : index
    %c0_5 = arith.constant 0 : index
    %c0_6 = arith.constant 0 : index
    %10 = vector.load %arg1[%c0_4, %c0_5, %c0_6] : memref<4x192x256xf32, #tpu.memory_space<vmem>>, vector<1x192x256xf32>
    %11 = vector.shape_cast %10 : vector<1x192x256xf32> to vector<192x256xf32>
    %cst_7 = arith.constant dense<0.000000e+00> : vector<2x256xf32>
    %12 = tpu.matmul %9, %11, %cst_7 {dimension_numbers = #tpu.dot_dimension_numbers<[1], [0], [0], [1], [0, 0, 1, 1], [], []>} : vector<2x192xf32>, vector<192x256xf32>, vector<2x256xf32> -> vector<2x256xf32>
    %c0_8 = arith.constant 0 : index
    %c0_9 = arith.constant 0 : index
    %c0_10 = arith.constant 0 : index
    %13 = vector.load %arg2[%c0_8, %c0_9, %c0_10] : memref<4x1x256xf32, #tpu.memory_space<vmem>>, vector<1x1x256xf32>
    %14 = vector.shape_cast %13 : vector<1x1x256xf32> to vector<1x256xf32>
    %15 = vector.broadcast %14 : vector<1x256xf32> to vector<2x256xf32>
    %16 = arith.addf %12, %15 : vector<2x256xf32>
    %17 = arith.negf %16 : vector<2x256xf32>
    %18 = math.exp %17 : vector<2x256xf32>
    %cst_11 = arith.constant 1.000000e+00 : f32
    %19 = vector.broadcast %cst_11 : f32 to vector<2x256xf32>
    %20 = arith.addf %19, %18 : vector<2x256xf32>
    %21 = arith.divf %19, %20 : vector<2x256xf32>
    %22 = math.tanh %16 : vector<2x256xf32>
    %23 = vector.extract_strided_slice %21 {offsets = [0, 0], sizes = [2, 64], strides = [1, 1]} : vector<2x256xf32> to vector<2x64xf32>
    %24 = vector.extract_strided_slice %21 {offsets = [0, 64], sizes = [2, 64], strides = [1, 1]} : vector<2x256xf32> to vector<2x64xf32>
    %25 = vector.extract_strided_slice %22 {offsets = [0, 128], sizes = [2, 64], strides = [1, 1]} : vector<2x256xf32> to vector<2x64xf32>
    %26 = vector.extract_strided_slice %21 {offsets = [0, 192], sizes = [2, 64], strides = [1, 1]} : vector<2x256xf32> to vector<2x64xf32>
    %27 = arith.mulf %24, %1 : vector<2x64xf32>
    %28 = arith.mulf %23, %25 : vector<2x64xf32>
    %29 = arith.addf %27, %28 : vector<2x64xf32>
    %30 = math.tanh %29 : vector<2x64xf32>
    %31 = arith.mulf %26, %30 : vector<2x64xf32>
    %32 = vector.extract_strided_slice %31 {offsets = [0, 0], sizes = [2, 32], strides = [1, 1]} : vector<2x64xf32> to vector<2x32xf32>
    %33 = arith.index_cast %c0_i32 : i32 to index
    %c0_12 = arith.constant 0 : index
    %c0_13 = arith.constant 0 : index
    %34 = vector.load %arg8[%33, %c0_12, %c0_13] : memref<8x2x64xf32, #tpu.memory_space<vmem>>, vector<1x2x32xf32>
    %35 = vector.shape_cast %34 : vector<1x2x32xf32> to vector<2x32xf32>
    %36 = vector.shape_cast %32 : vector<2x32xf32> to vector<1x2x32xf32>
    tpu.vector_store %arg8[%33, %c0_12, %c0_13], %36 {strides = array<i32>} : memref<8x2x64xf32, #tpu.memory_space<vmem>>, vector<1x2x32xf32>,
    %37 = vector.extract_strided_slice %31 {offsets = [0, 32], sizes = [2, 32], strides = [1, 1]} : vector<2x64xf32> to vector<2x32xf32>
    %c7_i32_14 = arith.constant 7 : i32
    %38 = arith.subi %c7_i32_14, %c0_i32 : i32
    %39 = arith.index_cast %38 : i32 to index
    %c0_15 = arith.constant 0 : index
    %c32 = arith.constant 32 : index
    %40 = vector.load %arg8[%39, %c0_15, %c32] : memref<8x2x64xf32, #tpu.memory_space<vmem>>, vector<1x2x32xf32>
    %41 = vector.shape_cast %40 : vector<1x2x32xf32> to vector<2x32xf32>
    %42 = vector.shape_cast %37 : vector<2x32xf32> to vector<1x2x32xf32>
    tpu.vector_store %arg8[%39, %c0_15, %c32], %42 {strides = array<i32>} : memref<8x2x64xf32, #tpu.memory_space<vmem>>, vector<1x2x32xf32>,
    %c1_i32 = arith.constant 1 : i32
    %43 = arith.index_cast %c1_i32 : i32 to index
    %c0_16 = arith.constant 0 : index
    %c0_17 = arith.constant 0 : index
    %44 = vector.load %arg0[%43, %c0_16, %c0_17] : memref<8x2x64xf32, #tpu.memory_space<vmem>>, vector<1x2x64xf32>
    %45 = vector.shape_cast %44 : vector<1x2x64xf32> to vector<2x64xf32>
    %c7_i32_18 = arith.constant 7 : i32
    %46 = arith.subi %c7_i32_18, %c1_i32 : i32
    %47 = arith.index_cast %46 : i32 to index
    %c0_19 = arith.constant 0 : index
    %c0_20 = arith.constant 0 : index
    %48 = vector.load %arg0[%47, %c0_19, %c0_20] : memref<8x2x64xf32, #tpu.memory_space<vmem>>, vector<1x2x64xf32>
    %49 = vector.shape_cast %48 : vector<1x2x64xf32> to vector<2x64xf32>
    %50 = tpu.concatenate %45, %49, %31 in 1 : vector<2x64xf32>, vector<2x64xf32>, vector<2x64xf32> -> vector<2x192xf32>
    %c0_21 = arith.constant 0 : index
    %c0_22 = arith.constant 0 : index
    %c0_23 = arith.constant 0 : index
    %51 = vector.load %arg1[%c0_21, %c0_22, %c0_23] : memref<4x192x256xf32, #tpu.memory_space<vmem>>, vector<1x192x256xf32>
    %52 = vector.shape_cast %51 : vector<1x192x256xf32> to vector<192x256xf32>
    %cst_24 = arith.constant dense<0.000000e+00> : vector<2x256xf32>
    %53 = tpu.matmul %50, %52, %cst_24 {dimension_numbers = #tpu.dot_dimension_numbers<[1], [0], [0], [1], [0, 0, 1, 1], [], []>} : vector<2x192xf32>, vector<192x256xf32>, vector<2x256xf32> -> vector<2x256xf32>
    %c0_25 = arith.constant 0 : index
    %c0_26 = arith.constant 0 : index
    %c0_27 = arith.constant 0 : index
    %54 = vector.load %arg2[%c0_25, %c0_26, %c0_27] : memref<4x1x256xf32, #tpu.memory_space<vmem>>, vector<1x1x256xf32>
    %55 = vector.shape_cast %54 : vector<1x1x256xf32> to vector<1x256xf32>
    %56 = vector.broadcast %55 : vector<1x256xf32> to vector<2x256xf32>
    %57 = arith.addf %53, %56 : vector<2x256xf32>
    %58 = arith.negf %57 : vector<2x256xf32>
    %59 = math.exp %58 : vector<2x256xf32>
    %cst_28 = arith.constant 1.000000e+00 : f32
    %60 = vector.broadcast %cst_28 : f32 to vector<2x256xf32>
    %61 = arith.addf %60, %59 : vector<2x256xf32>
    %62 = arith.divf %60, %61 : vector<2x256xf32>
    %63 = math.tanh %57 : vector<2x256xf32>
    %64 = vector.extract_strided_slice %62 {offsets = [0, 0], sizes = [2, 64], strides = [1, 1]} : vector<2x256xf32> to vector<2x64xf32>
    %65 = vector.extract_strided_slice %62 {offsets = [0, 64], sizes = [2, 64], strides = [1, 1]} : vector<2x256xf32> to vector<2x64xf32>
    %66 = vector.extract_strided_slice %63 {offsets = [0, 128], sizes = [2, 64], strides = [1, 1]} : vector<2x256xf32> to vector<2x64xf32>
    %67 = vector.extract_strided_slice %62 {offsets = [0, 192], sizes = [2, 64], strides = [1, 1]} : vector<2x256xf32> to vector<2x64xf32>
    %68 = arith.mulf %65, %29 : vector<2x64xf32>
    %69 = arith.mulf %64, %66 : vector<2x64xf32>
    %70 = arith.addf %68, %69 : vector<2x64xf32>
    %71 = math.tanh %70 : vector<2x64xf32>
    %72 = arith.mulf %67, %71 : vector<2x64xf32>
    %73 = vector.extract_strided_slice %72 {offsets = [0, 0], sizes = [2, 32], strides = [1, 1]} : vector<2x64xf32> to vector<2x32xf32>
    %74 = arith.index_cast %c1_i32 : i32 to index
    %c0_29 = arith.constant 0 : index
    %c0_30 = arith.constant 0 : index
    %75 = vector.load %arg8[%74, %c0_29, %c0_30] : memref<8x2x64xf32, #tpu.memory_space<vmem>>, vector<1x2x32xf32>
    %76 = vector.shape_cast %75 : vector<1x2x32xf32> to vector<2x32xf32>
    %77 = vector.shape_cast %73 : vector<2x32xf32> to vector<1x2x32xf32>
    tpu.vector_store %arg8[%74, %c0_29, %c0_30], %77 {strides = array<i32>} : memref<8x2x64xf32, #tpu.memory_space<vmem>>, vector<1x2x32xf32>,
    %78 = vector.extract_strided_slice %72 {offsets = [0, 32], sizes = [2, 32], strides = [1, 1]} : vector<2x64xf32> to vector<2x32xf32>
    %c7_i32_31 = arith.constant 7 : i32
    %79 = arith.subi %c7_i32_31, %c1_i32 : i32
    %80 = arith.index_cast %79 : i32 to index
    %c0_32 = arith.constant 0 : index
    %c32_33 = arith.constant 32 : index
    %81 = vector.load %arg8[%80, %c0_32, %c32_33] : memref<8x2x64xf32, #tpu.memory_space<vmem>>, vector<1x2x32xf32>
    %82 = vector.shape_cast %81 : vector<1x2x32xf32> to vector<2x32xf32>
    %83 = vector.shape_cast %78 : vector<2x32xf32> to vector<1x2x32xf32>
    tpu.vector_store %arg8[%80, %c0_32, %c32_33], %83 {strides = array<i32>} : memref<8x2x64xf32, #tpu.memory_space<vmem>>, vector<1x2x32xf32>,
    %c2_i32 = arith.constant 2 : i32
    %84 = arith.index_cast %c2_i32 : i32 to index
    %c0_34 = arith.constant 0 : index
    %c0_35 = arith.constant 0 : index
    %85 = vector.load %arg0[%84, %c0_34, %c0_35] : memref<8x2x64xf32, #tpu.memory_space<vmem>>, vector<1x2x64xf32>
    %86 = vector.shape_cast %85 : vector<1x2x64xf32> to vector<2x64xf32>
    %c7_i32_36 = arith.constant 7 : i32
    %87 = arith.subi %c7_i32_36, %c2_i32 : i32
    %88 = arith.index_cast %87 : i32 to index
    %c0_37 = arith.constant 0 : index
    %c0_38 = arith.constant 0 : index
    %89 = vector.load %arg0[%88, %c0_37, %c0_38] : memref<8x2x64xf32, #tpu.memory_space<vmem>>, vector<1x2x64xf32>
    %90 = vector.shape_cast %89 : vector<1x2x64xf32> to vector<2x64xf32>
    %91 = tpu.concatenate %86, %90, %72 in 1 : vector<2x64xf32>, vector<2x64xf32>, vector<2x64xf32> -> vector<2x192xf32>
    %c0_39 = arith.constant 0 : index
    %c0_40 = arith.constant 0 : index
    %c0_41 = arith.constant 0 : index
    %92 = vector.load %arg1[%c0_39, %c0_40, %c0_41] : memref<4x192x256xf32, #tpu.memory_space<vmem>>, vector<1x192x256xf32>
    %93 = vector.shape_cast %92 : vector<1x192x256xf32> to vector<192x256xf32>
    %cst_42 = arith.constant dense<0.000000e+00> : vector<2x256xf32>
    %94 = tpu.matmul %91, %93, %cst_42 {dimension_numbers = #tpu.dot_dimension_numbers<[1], [0], [0], [1], [0, 0, 1, 1], [], []>} : vector<2x192xf32>, vector<192x256xf32>, vector<2x256xf32> -> vector<2x256xf32>
    %c0_43 = arith.constant 0 : index
    %c0_44 = arith.constant 0 : index
    %c0_45 = arith.constant 0 : index
    %95 = vector.load %arg2[%c0_43, %c0_44, %c0_45] : memref<4x1x256xf32, #tpu.memory_space<vmem>>, vector<1x1x256xf32>
    %96 = vector.shape_cast %95 : vector<1x1x256xf32> to vector<1x256xf32>
    %97 = vector.broadcast %96 : vector<1x256xf32> to vector<2x256xf32>
    %98 = arith.addf %94, %97 : vector<2x256xf32>
    %99 = arith.negf %98 : vector<2x256xf32>
    %100 = math.exp %99 : vector<2x256xf32>
    %cst_46 = arith.constant 1.000000e+00 : f32
    %101 = vector.broadcast %cst_46 : f32 to vector<2x256xf32>
    %102 = arith.addf %101, %100 : vector<2x256xf32>
    %103 = arith.divf %101, %102 : vector<2x256xf32>
    %104 = math.tanh %98 : vector<2x256xf32>
    %105 = vector.extract_strided_slice %103 {offsets = [0, 0], sizes = [2, 64], strides = [1, 1]} : vector<2x256xf32> to vector<2x64xf32>
    %106 = vector.extract_strided_slice %103 {offsets = [0, 64], sizes = [2, 64], strides = [1, 1]} : vector<2x256xf32> to vector<2x64xf32>
    %107 = vector.extract_strided_slice %104 {offsets = [0, 128], sizes = [2, 64], strides = [1, 1]} : vector<2x256xf32> to vector<2x64xf32>
    %108 = vector.extract_strided_slice %103 {offsets = [0, 192], sizes = [2, 64], strides = [1, 1]} : vector<2x256xf32> to vector<2x64xf32>
    %109 = arith.mulf %106, %70 : vector<2x64xf32>
    %110 = arith.mulf %105, %107 : vector<2x64xf32>
    %111 = arith.addf %109, %110 : vector<2x64xf32>
    %112 = math.tanh %111 : vector<2x64xf32>
    %113 = arith.mulf %108, %112 : vector<2x64xf32>
    %114 = vector.extract_strided_slice %113 {offsets = [0, 0], sizes = [2, 32], strides = [1, 1]} : vector<2x64xf32> to vector<2x32xf32>
    %115 = arith.index_cast %c2_i32 : i32 to index
    %c0_47 = arith.constant 0 : index
    %c0_48 = arith.constant 0 : index
    %116 = vector.load %arg8[%115, %c0_47, %c0_48] : memref<8x2x64xf32, #tpu.memory_space<vmem>>, vector<1x2x32xf32>
    %117 = vector.shape_cast %116 : vector<1x2x32xf32> to vector<2x32xf32>
    %118 = vector.shape_cast %114 : vector<2x32xf32> to vector<1x2x32xf32>
    tpu.vector_store %arg8[%115, %c0_47, %c0_48], %118 {strides = array<i32>} : memref<8x2x64xf32, #tpu.memory_space<vmem>>, vector<1x2x32xf32>,
    %119 = vector.extract_strided_slice %113 {offsets = [0, 32], sizes = [2, 32], strides = [1, 1]} : vector<2x64xf32> to vector<2x32xf32>
    %c7_i32_49 = arith.constant 7 : i32
    %120 = arith.subi %c7_i32_49, %c2_i32 : i32
    %121 = arith.index_cast %120 : i32 to index
    %c0_50 = arith.constant 0 : index
    %c32_51 = arith.constant 32 : index
    %122 = vector.load %arg8[%121, %c0_50, %c32_51] : memref<8x2x64xf32, #tpu.memory_space<vmem>>, vector<1x2x32xf32>
    %123 = vector.shape_cast %122 : vector<1x2x32xf32> to vector<2x32xf32>
    %124 = vector.shape_cast %119 : vector<2x32xf32> to vector<1x2x32xf32>
    tpu.vector_store %arg8[%121, %c0_50, %c32_51], %124 {strides = array<i32>} : memref<8x2x64xf32, #tpu.memory_space<vmem>>, vector<1x2x32xf32>,
    %c3_i32 = arith.constant 3 : i32
    %125 = arith.index_cast %c3_i32 : i32 to index
    %c0_52 = arith.constant 0 : index
    %c0_53 = arith.constant 0 : index
    %126 = vector.load %arg0[%125, %c0_52, %c0_53] : memref<8x2x64xf32, #tpu.memory_space<vmem>>, vector<1x2x64xf32>
    %127 = vector.shape_cast %126 : vector<1x2x64xf32> to vector<2x64xf32>
    %c7_i32_54 = arith.constant 7 : i32
    %128 = arith.subi %c7_i32_54, %c3_i32 : i32
    %129 = arith.index_cast %128 : i32 to index
    %c0_55 = arith.constant 0 : index
    %c0_56 = arith.constant 0 : index
    %130 = vector.load %arg0[%129, %c0_55, %c0_56] : memref<8x2x64xf32, #tpu.memory_space<vmem>>, vector<1x2x64xf32>
    %131 = vector.shape_cast %130 : vector<1x2x64xf32> to vector<2x64xf32>
    %132 = tpu.concatenate %127, %131, %113 in 1 : vector<2x64xf32>, vector<2x64xf32>, vector<2x64xf32> -> vector<2x192xf32>
    %c0_57 = arith.constant 0 : index
    %c0_58 = arith.constant 0 : index
    %c0_59 = arith.constant 0 : index
    %133 = vector.load %arg1[%c0_57, %c0_58, %c0_59] : memref<4x192x256xf32, #tpu.memory_space<vmem>>, vector<1x192x256xf32>
    %134 = vector.shape_cast %133 : vector<1x192x256xf32> to vector<192x256xf32>
    %cst_60 = arith.constant dense<0.000000e+00> : vector<2x256xf32>
    %135 = tpu.matmul %132, %134, %cst_60 {dimension_numbers = #tpu.dot_dimension_numbers<[1], [0], [0], [1], [0, 0, 1, 1], [], []>} : vector<2x192xf32>, vector<192x256xf32>, vector<2x256xf32> -> vector<2x256xf32>
    %c0_61 = arith.constant 0 : index
    %c0_62 = arith.constant 0 : index
    %c0_63 = arith.constant 0 : index
    %136 = vector.load %arg2[%c0_61, %c0_62, %c0_63] : memref<4x1x256xf32, #tpu.memory_space<vmem>>, vector<1x1x256xf32>
    %137 = vector.shape_cast %136 : vector<1x1x256xf32> to vector<1x256xf32>
    %138 = vector.broadcast %137 : vector<1x256xf32> to vector<2x256xf32>
    %139 = arith.addf %135, %138 : vector<2x256xf32>
    %140 = arith.negf %139 : vector<2x256xf32>
    %141 = math.exp %140 : vector<2x256xf32>
    %cst_64 = arith.constant 1.000000e+00 : f32
    %142 = vector.broadcast %cst_64 : f32 to vector<2x256xf32>
    %143 = arith.addf %142, %141 : vector<2x256xf32>
    %144 = arith.divf %142, %143 : vector<2x256xf32>
    %145 = math.tanh %139 : vector<2x256xf32>
    %146 = vector.extract_strided_slice %144 {offsets = [0, 0], sizes = [2, 64], strides = [1, 1]} : vector<2x256xf32> to vector<2x64xf32>
    %147 = vector.extract_strided_slice %144 {offsets = [0, 64], sizes = [2, 64], strides = [1, 1]} : vector<2x256xf32> to vector<2x64xf32>
    %148 = vector.extract_strided_slice %145 {offsets = [0, 128], sizes = [2, 64], strides = [1, 1]} : vector<2x256xf32> to vector<2x64xf32>
    %149 = vector.extract_strided_slice %144 {offsets = [0, 192], sizes = [2, 64], strides = [1, 1]} : vector<2x256xf32> to vector<2x64xf32>
    %150 = arith.mulf %147, %111 : vector<2x64xf32>
    %151 = arith.mulf %146, %148 : vector<2x64xf32>
    %152 = arith.addf %150, %151 : vector<2x64xf32>
    %153 = math.tanh %152 : vector<2x64xf32>
    %154 = arith.mulf %149, %153 : vector<2x64xf32>
    %155 = vector.extract_strided_slice %154 {offsets = [0, 0], sizes = [2, 32], strides = [1, 1]} : vector<2x64xf32> to vector<2x32xf32>
    %156 = arith.index_cast %c3_i32 : i32 to index
    %c0_65 = arith.constant 0 : index
    %c0_66 = arith.constant 0 : index
    %157 = vector.load %arg8[%156, %c0_65, %c0_66] : memref<8x2x64xf32, #tpu.memory_space<vmem>>, vector<1x2x32xf32>
    %158 = vector.shape_cast %157 : vector<1x2x32xf32> to vector<2x32xf32>
    %159 = vector.shape_cast %155 : vector<2x32xf32> to vector<1x2x32xf32>
    tpu.vector_store %arg8[%156, %c0_65, %c0_66], %159 {strides = array<i32>} : memref<8x2x64xf32, #tpu.memory_space<vmem>>, vector<1x2x32xf32>,
    %160 = vector.extract_strided_slice %154 {offsets = [0, 32], sizes = [2, 32], strides = [1, 1]} : vector<2x64xf32> to vector<2x32xf32>
    %c7_i32_67 = arith.constant 7 : i32
    %161 = arith.subi %c7_i32_67, %c3_i32 : i32
    %162 = arith.index_cast %161 : i32 to index
    %c0_68 = arith.constant 0 : index
    %c32_69 = arith.constant 32 : index
    %163 = vector.load %arg8[%162, %c0_68, %c32_69] : memref<8x2x64xf32, #tpu.memory_space<vmem>>, vector<1x2x32xf32>
    %164 = vector.shape_cast %163 : vector<1x2x32xf32> to vector<2x32xf32>
    %165 = vector.shape_cast %160 : vector<2x32xf32> to vector<1x2x32xf32>
    tpu.vector_store %arg8[%162, %c0_68, %c32_69], %165 {strides = array<i32>} : memref<8x2x64xf32, #tpu.memory_space<vmem>>, vector<1x2x32xf32>,
    %c4_i32 = arith.constant 4 : i32
    %166 = arith.index_cast %c4_i32 : i32 to index
    %c0_70 = arith.constant 0 : index
    %c0_71 = arith.constant 0 : index
    %167 = vector.load %arg0[%166, %c0_70, %c0_71] : memref<8x2x64xf32, #tpu.memory_space<vmem>>, vector<1x2x64xf32>
    %168 = vector.shape_cast %167 : vector<1x2x64xf32> to vector<2x64xf32>
    %c7_i32_72 = arith.constant 7 : i32
    %169 = arith.subi %c7_i32_72, %c4_i32 : i32
    %170 = arith.index_cast %169 : i32 to index
    %c0_73 = arith.constant 0 : index
    %c0_74 = arith.constant 0 : index
    %171 = vector.load %arg0[%170, %c0_73, %c0_74] : memref<8x2x64xf32, #tpu.memory_space<vmem>>, vector<1x2x64xf32>
    %172 = vector.shape_cast %171 : vector<1x2x64xf32> to vector<2x64xf32>
    %173 = tpu.concatenate %168, %172, %154 in 1 : vector<2x64xf32>, vector<2x64xf32>, vector<2x64xf32> -> vector<2x192xf32>
    %c0_75 = arith.constant 0 : index
    %c0_76 = arith.constant 0 : index
    %c0_77 = arith.constant 0 : index
    %174 = vector.load %arg1[%c0_75, %c0_76, %c0_77] : memref<4x192x256xf32, #tpu.memory_space<vmem>>, vector<1x192x256xf32>
    %175 = vector.shape_cast %174 : vector<1x192x256xf32> to vector<192x256xf32>
    %cst_78 = arith.constant dense<0.000000e+00> : vector<2x256xf32>
    %176 = tpu.matmul %173, %175, %cst_78 {dimension_numbers = #tpu.dot_dimension_numbers<[1], [0], [0], [1], [0, 0, 1, 1], [], []>} : vector<2x192xf32>, vector<192x256xf32>, vector<2x256xf32> -> vector<2x256xf32>
    %c0_79 = arith.constant 0 : index
    %c0_80 = arith.constant 0 : index
    %c0_81 = arith.constant 0 : index
    %177 = vector.load %arg2[%c0_79, %c0_80, %c0_81] : memref<4x1x256xf32, #tpu.memory_space<vmem>>, vector<1x1x256xf32>
    %178 = vector.shape_cast %177 : vector<1x1x256xf32> to vector<1x256xf32>
    %179 = vector.broadcast %178 : vector<1x256xf32> to vector<2x256xf32>
    %180 = arith.addf %176, %179 : vector<2x256xf32>
    %181 = arith.negf %180 : vector<2x256xf32>
    %182 = math.exp %181 : vector<2x256xf32>
    %cst_82 = arith.constant 1.000000e+00 : f32
    %183 = vector.broadcast %cst_82 : f32 to vector<2x256xf32>
    %184 = arith.addf %183, %182 : vector<2x256xf32>
    %185 = arith.divf %183, %184 : vector<2x256xf32>
    %186 = math.tanh %180 : vector<2x256xf32>
    %187 = vector.extract_strided_slice %185 {offsets = [0, 0], sizes = [2, 64], strides = [1, 1]} : vector<2x256xf32> to vector<2x64xf32>
    %188 = vector.extract_strided_slice %185 {offsets = [0, 64], sizes = [2, 64], strides = [1, 1]} : vector<2x256xf32> to vector<2x64xf32>
    %189 = vector.extract_strided_slice %186 {offsets = [0, 128], sizes = [2, 64], strides = [1, 1]} : vector<2x256xf32> to vector<2x64xf32>
    %190 = vector.extract_strided_slice %185 {offsets = [0, 192], sizes = [2, 64], strides = [1, 1]} : vector<2x256xf32> to vector<2x64xf32>
    %191 = arith.mulf %188, %152 : vector<2x64xf32>
    %192 = arith.mulf %187, %189 : vector<2x64xf32>
    %193 = arith.addf %191, %192 : vector<2x64xf32>
    %194 = math.tanh %193 : vector<2x64xf32>
    %195 = arith.mulf %190, %194 : vector<2x64xf32>
    %196 = vector.extract_strided_slice %195 {offsets = [0, 0], sizes = [2, 32], strides = [1, 1]} : vector<2x64xf32> to vector<2x32xf32>
    %197 = arith.index_cast %c4_i32 : i32 to index
    %c0_83 = arith.constant 0 : index
    %c0_84 = arith.constant 0 : index
    %198 = vector.load %arg8[%197, %c0_83, %c0_84] : memref<8x2x64xf32, #tpu.memory_space<vmem>>, vector<1x2x32xf32>
    %199 = vector.shape_cast %198 : vector<1x2x32xf32> to vector<2x32xf32>
    %200 = vector.shape_cast %196 : vector<2x32xf32> to vector<1x2x32xf32>
    tpu.vector_store %arg8[%197, %c0_83, %c0_84], %200 {strides = array<i32>} : memref<8x2x64xf32, #tpu.memory_space<vmem>>, vector<1x2x32xf32>,
    %201 = vector.extract_strided_slice %195 {offsets = [0, 32], sizes = [2, 32], strides = [1, 1]} : vector<2x64xf32> to vector<2x32xf32>
    %c7_i32_85 = arith.constant 7 : i32
    %202 = arith.subi %c7_i32_85, %c4_i32 : i32
    %203 = arith.index_cast %202 : i32 to index
    %c0_86 = arith.constant 0 : index
    %c32_87 = arith.constant 32 : index
    %204 = vector.load %arg8[%203, %c0_86, %c32_87] : memref<8x2x64xf32, #tpu.memory_space<vmem>>, vector<1x2x32xf32>
    %205 = vector.shape_cast %204 : vector<1x2x32xf32> to vector<2x32xf32>
    %206 = vector.shape_cast %201 : vector<2x32xf32> to vector<1x2x32xf32>
    tpu.vector_store %arg8[%203, %c0_86, %c32_87], %206 {strides = array<i32>} : memref<8x2x64xf32, #tpu.memory_space<vmem>>, vector<1x2x32xf32>,
    %c5_i32 = arith.constant 5 : i32
    %207 = arith.index_cast %c5_i32 : i32 to index
    %c0_88 = arith.constant 0 : index
    %c0_89 = arith.constant 0 : index
    %208 = vector.load %arg0[%207, %c0_88, %c0_89] : memref<8x2x64xf32, #tpu.memory_space<vmem>>, vector<1x2x64xf32>
    %209 = vector.shape_cast %208 : vector<1x2x64xf32> to vector<2x64xf32>
    %c7_i32_90 = arith.constant 7 : i32
    %210 = arith.subi %c7_i32_90, %c5_i32 : i32
    %211 = arith.index_cast %210 : i32 to index
    %c0_91 = arith.constant 0 : index
    %c0_92 = arith.constant 0 : index
    %212 = vector.load %arg0[%211, %c0_91, %c0_92] : memref<8x2x64xf32, #tpu.memory_space<vmem>>, vector<1x2x64xf32>
    %213 = vector.shape_cast %212 : vector<1x2x64xf32> to vector<2x64xf32>
    %214 = tpu.concatenate %209, %213, %195 in 1 : vector<2x64xf32>, vector<2x64xf32>, vector<2x64xf32> -> vector<2x192xf32>
    %c0_93 = arith.constant 0 : index
    %c0_94 = arith.constant 0 : index
    %c0_95 = arith.constant 0 : index
    %215 = vector.load %arg1[%c0_93, %c0_94, %c0_95] : memref<4x192x256xf32, #tpu.memory_space<vmem>>, vector<1x192x256xf32>
    %216 = vector.shape_cast %215 : vector<1x192x256xf32> to vector<192x256xf32>
    %cst_96 = arith.constant dense<0.000000e+00> : vector<2x256xf32>
    %217 = tpu.matmul %214, %216, %cst_96 {dimension_numbers = #tpu.dot_dimension_numbers<[1], [0], [0], [1], [0, 0, 1, 1], [], []>} : vector<2x192xf32>, vector<192x256xf32>, vector<2x256xf32> -> vector<2x256xf32>
    %c0_97 = arith.constant 0 : index
    %c0_98 = arith.constant 0 : index
    %c0_99 = arith.constant 0 : index
    %218 = vector.load %arg2[%c0_97, %c0_98, %c0_99] : memref<4x1x256xf32, #tpu.memory_space<vmem>>, vector<1x1x256xf32>
    %219 = vector.shape_cast %218 : vector<1x1x256xf32> to vector<1x256xf32>
    %220 = vector.broadcast %219 : vector<1x256xf32> to vector<2x256xf32>
    %221 = arith.addf %217, %220 : vector<2x256xf32>
    %222 = arith.negf %221 : vector<2x256xf32>
    %223 = math.exp %222 : vector<2x256xf32>
    %cst_100 = arith.constant 1.000000e+00 : f32
    %224 = vector.broadcast %cst_100 : f32 to vector<2x256xf32>
    %225 = arith.addf %224, %223 : vector<2x256xf32>
    %226 = arith.divf %224, %225 : vector<2x256xf32>
    %227 = math.tanh %221 : vector<2x256xf32>
    %228 = vector.extract_strided_slice %226 {offsets = [0, 0], sizes = [2, 64], strides = [1, 1]} : vector<2x256xf32> to vector<2x64xf32>
    %229 = vector.extract_strided_slice %226 {offsets = [0, 64], sizes = [2, 64], strides = [1, 1]} : vector<2x256xf32> to vector<2x64xf32>
    %230 = vector.extract_strided_slice %227 {offsets = [0, 128], sizes = [2, 64], strides = [1, 1]} : vector<2x256xf32> to vector<2x64xf32>
    %231 = vector.extract_strided_slice %226 {offsets = [0, 192], sizes = [2, 64], strides = [1, 1]} : vector<2x256xf32> to vector<2x64xf32>
    %232 = arith.mulf %229, %193 : vector<2x64xf32>
    %233 = arith.mulf %228, %230 : vector<2x64xf32>
    %234 = arith.addf %232, %233 : vector<2x64xf32>
    %235 = math.tanh %234 : vector<2x64xf32>
    %236 = arith.mulf %231, %235 : vector<2x64xf32>
    %237 = vector.extract_strided_slice %236 {offsets = [0, 0], sizes = [2, 32], strides = [1, 1]} : vector<2x64xf32> to vector<2x32xf32>
    %238 = arith.index_cast %c5_i32 : i32 to index
    %c0_101 = arith.constant 0 : index
    %c0_102 = arith.constant 0 : index
    %239 = vector.load %arg8[%238, %c0_101, %c0_102] : memref<8x2x64xf32, #tpu.memory_space<vmem>>, vector<1x2x32xf32>
    %240 = vector.shape_cast %239 : vector<1x2x32xf32> to vector<2x32xf32>
    %241 = vector.shape_cast %237 : vector<2x32xf32> to vector<1x2x32xf32>
    tpu.vector_store %arg8[%238, %c0_101, %c0_102], %241 {strides = array<i32>} : memref<8x2x64xf32, #tpu.memory_space<vmem>>, vector<1x2x32xf32>,
    %242 = vector.extract_strided_slice %236 {offsets = [0, 32], sizes = [2, 32], strides = [1, 1]} : vector<2x64xf32> to vector<2x32xf32>
    %c7_i32_103 = arith.constant 7 : i32
    %243 = arith.subi %c7_i32_103, %c5_i32 : i32
    %244 = arith.index_cast %243 : i32 to index
    %c0_104 = arith.constant 0 : index
    %c32_105 = arith.constant 32 : index
    %245 = vector.load %arg8[%244, %c0_104, %c32_105] : memref<8x2x64xf32, #tpu.memory_space<vmem>>, vector<1x2x32xf32>
    %246 = vector.shape_cast %245 : vector<1x2x32xf32> to vector<2x32xf32>
    %247 = vector.shape_cast %242 : vector<2x32xf32> to vector<1x2x32xf32>
    tpu.vector_store %arg8[%244, %c0_104, %c32_105], %247 {strides = array<i32>} : memref<8x2x64xf32, #tpu.memory_space<vmem>>, vector<1x2x32xf32>,
    %c6_i32 = arith.constant 6 : i32
    %248 = arith.index_cast %c6_i32 : i32 to index
    %c0_106 = arith.constant 0 : index
    %c0_107 = arith.constant 0 : index
    %249 = vector.load %arg0[%248, %c0_106, %c0_107] : memref<8x2x64xf32, #tpu.memory_space<vmem>>, vector<1x2x64xf32>
    %250 = vector.shape_cast %249 : vector<1x2x64xf32> to vector<2x64xf32>
    %c7_i32_108 = arith.constant 7 : i32
    %251 = arith.subi %c7_i32_108, %c6_i32 : i32
    %252 = arith.index_cast %251 : i32 to index
    %c0_109 = arith.constant 0 : index
    %c0_110 = arith.constant 0 : index
    %253 = vector.load %arg0[%252, %c0_109, %c0_110] : memref<8x2x64xf32, #tpu.memory_space<vmem>>, vector<1x2x64xf32>
    %254 = vector.shape_cast %253 : vector<1x2x64xf32> to vector<2x64xf32>
    %255 = tpu.concatenate %250, %254, %236 in 1 : vector<2x64xf32>, vector<2x64xf32>, vector<2x64xf32> -> vector<2x192xf32>
    %c0_111 = arith.constant 0 : index
    %c0_112 = arith.constant 0 : index
    %c0_113 = arith.constant 0 : index
    %256 = vector.load %arg1[%c0_111, %c0_112, %c0_113] : memref<4x192x256xf32, #tpu.memory_space<vmem>>, vector<1x192x256xf32>
    %257 = vector.shape_cast %256 : vector<1x192x256xf32> to vector<192x256xf32>
    %cst_114 = arith.constant dense<0.000000e+00> : vector<2x256xf32>
    %258 = tpu.matmul %255, %257, %cst_114 {dimension_numbers = #tpu.dot_dimension_numbers<[1], [0], [0], [1], [0, 0, 1, 1], [], []>} : vector<2x192xf32>, vector<192x256xf32>, vector<2x256xf32> -> vector<2x256xf32>
    %c0_115 = arith.constant 0 : index
    %c0_116 = arith.constant 0 : index
    %c0_117 = arith.constant 0 : index
    %259 = vector.load %arg2[%c0_115, %c0_116, %c0_117] : memref<4x1x256xf32, #tpu.memory_space<vmem>>, vector<1x1x256xf32>
    %260 = vector.shape_cast %259 : vector<1x1x256xf32> to vector<1x256xf32>
    %261 = vector.broadcast %260 : vector<1x256xf32> to vector<2x256xf32>
    %262 = arith.addf %258, %261 : vector<2x256xf32>
    %263 = arith.negf %262 : vector<2x256xf32>
    %264 = math.exp %263 : vector<2x256xf32>
    %cst_118 = arith.constant 1.000000e+00 : f32
    %265 = vector.broadcast %cst_118 : f32 to vector<2x256xf32>
    %266 = arith.addf %265, %264 : vector<2x256xf32>
    %267 = arith.divf %265, %266 : vector<2x256xf32>
    %268 = math.tanh %262 : vector<2x256xf32>
    %269 = vector.extract_strided_slice %267 {offsets = [0, 0], sizes = [2, 64], strides = [1, 1]} : vector<2x256xf32> to vector<2x64xf32>
    %270 = vector.extract_strided_slice %267 {offsets = [0, 64], sizes = [2, 64], strides = [1, 1]} : vector<2x256xf32> to vector<2x64xf32>
    %271 = vector.extract_strided_slice %268 {offsets = [0, 128], sizes = [2, 64], strides = [1, 1]} : vector<2x256xf32> to vector<2x64xf32>
    %272 = vector.extract_strided_slice %267 {offsets = [0, 192], sizes = [2, 64], strides = [1, 1]} : vector<2x256xf32> to vector<2x64xf32>
    %273 = arith.mulf %270, %234 : vector<2x64xf32>
    %274 = arith.mulf %269, %271 : vector<2x64xf32>
    %275 = arith.addf %273, %274 : vector<2x64xf32>
    %276 = math.tanh %275 : vector<2x64xf32>
    %277 = arith.mulf %272, %276 : vector<2x64xf32>
    %278 = vector.extract_strided_slice %277 {offsets = [0, 0], sizes = [2, 32], strides = [1, 1]} : vector<2x64xf32> to vector<2x32xf32>
    %279 = arith.index_cast %c6_i32 : i32 to index
    %c0_119 = arith.constant 0 : index
    %c0_120 = arith.constant 0 : index
    %280 = vector.load %arg8[%279, %c0_119, %c0_120] : memref<8x2x64xf32, #tpu.memory_space<vmem>>, vector<1x2x32xf32>
    %281 = vector.shape_cast %280 : vector<1x2x32xf32> to vector<2x32xf32>
    %282 = vector.shape_cast %278 : vector<2x32xf32> to vector<1x2x32xf32>
    tpu.vector_store %arg8[%279, %c0_119, %c0_120], %282 {strides = array<i32>} : memref<8x2x64xf32, #tpu.memory_space<vmem>>, vector<1x2x32xf32>,
    %283 = vector.extract_strided_slice %277 {offsets = [0, 32], sizes = [2, 32], strides = [1, 1]} : vector<2x64xf32> to vector<2x32xf32>
    %c7_i32_121 = arith.constant 7 : i32
    %284 = arith.subi %c7_i32_121, %c6_i32 : i32
    %285 = arith.index_cast %284 : i32 to index
    %c0_122 = arith.constant 0 : index
    %c32_123 = arith.constant 32 : index
    %286 = vector.load %arg8[%285, %c0_122, %c32_123] : memref<8x2x64xf32, #tpu.memory_space<vmem>>, vector<1x2x32xf32>
    %287 = vector.shape_cast %286 : vector<1x2x32xf32> to vector<2x32xf32>
    %288 = vector.shape_cast %283 : vector<2x32xf32> to vector<1x2x32xf32>
    tpu.vector_store %arg8[%285, %c0_122, %c32_123], %288 {strides = array<i32>} : memref<8x2x64xf32, #tpu.memory_space<vmem>>, vector<1x2x32xf32>,
    %c7_i32_124 = arith.constant 7 : i32
    %289 = arith.index_cast %c7_i32_124 : i32 to index
    %c0_125 = arith.constant 0 : index
    %c0_126 = arith.constant 0 : index
    %290 = vector.load %arg0[%289, %c0_125, %c0_126] : memref<8x2x64xf32, #tpu.memory_space<vmem>>, vector<1x2x64xf32>
    %291 = vector.shape_cast %290 : vector<1x2x64xf32> to vector<2x64xf32>
    %c7_i32_127 = arith.constant 7 : i32
    %292 = arith.subi %c7_i32_127, %c7_i32_124 : i32
    %293 = arith.index_cast %292 : i32 to index
    %c0_128 = arith.constant 0 : index
    %c0_129 = arith.constant 0 : index
    %294 = vector.load %arg0[%293, %c0_128, %c0_129] : memref<8x2x64xf32, #tpu.memory_space<vmem>>, vector<1x2x64xf32>
    %295 = vector.shape_cast %294 : vector<1x2x64xf32> to vector<2x64xf32>
    %296 = tpu.concatenate %291, %295, %277 in 1 : vector<2x64xf32>, vector<2x64xf32>, vector<2x64xf32> -> vector<2x192xf32>
    %c0_130 = arith.constant 0 : index
    %c0_131 = arith.constant 0 : index
    %c0_132 = arith.constant 0 : index
    %297 = vector.load %arg1[%c0_130, %c0_131, %c0_132] : memref<4x192x256xf32, #tpu.memory_space<vmem>>, vector<1x192x256xf32>
    %298 = vector.shape_cast %297 : vector<1x192x256xf32> to vector<192x256xf32>
    %cst_133 = arith.constant dense<0.000000e+00> : vector<2x256xf32>
    %299 = tpu.matmul %296, %298, %cst_133 {dimension_numbers = #tpu.dot_dimension_numbers<[1], [0], [0], [1], [0, 0, 1, 1], [], []>} : vector<2x192xf32>, vector<192x256xf32>, vector<2x256xf32> -> vector<2x256xf32>
    %c0_134 = arith.constant 0 : index
    %c0_135 = arith.constant 0 : index
    %c0_136 = arith.constant 0 : index
    %300 = vector.load %arg2[%c0_134, %c0_135, %c0_136] : memref<4x1x256xf32, #tpu.memory_space<vmem>>, vector<1x1x256xf32>
    %301 = vector.shape_cast %300 : vector<1x1x256xf32> to vector<1x256xf32>
    %302 = vector.broadcast %301 : vector<1x256xf32> to vector<2x256xf32>
    %303 = arith.addf %299, %302 : vector<2x256xf32>
    %304 = arith.negf %303 : vector<2x256xf32>
    %305 = math.exp %304 : vector<2x256xf32>
    %cst_137 = arith.constant 1.000000e+00 : f32
    %306 = vector.broadcast %cst_137 : f32 to vector<2x256xf32>
    %307 = arith.addf %306, %305 : vector<2x256xf32>
    %308 = arith.divf %306, %307 : vector<2x256xf32>
    %309 = math.tanh %303 : vector<2x256xf32>
    %310 = vector.extract_strided_slice %308 {offsets = [0, 0], sizes = [2, 64], strides = [1, 1]} : vector<2x256xf32> to vector<2x64xf32>
    %311 = vector.extract_strided_slice %308 {offsets = [0, 64], sizes = [2, 64], strides = [1, 1]} : vector<2x256xf32> to vector<2x64xf32>
    %312 = vector.extract_strided_slice %309 {offsets = [0, 128], sizes = [2, 64], strides = [1, 1]} : vector<2x256xf32> to vector<2x64xf32>
    %313 = vector.extract_strided_slice %308 {offsets = [0, 192], sizes = [2, 64], strides = [1, 1]} : vector<2x256xf32> to vector<2x64xf32>
    %314 = arith.mulf %311, %275 : vector<2x64xf32>
    %315 = arith.mulf %310, %312 : vector<2x64xf32>
    %316 = arith.addf %314, %315 : vector<2x64xf32>
    %317 = math.tanh %316 : vector<2x64xf32>
    %318 = arith.mulf %313, %317 : vector<2x64xf32>
    %319 = vector.extract_strided_slice %318 {offsets = [0, 0], sizes = [2, 32], strides = [1, 1]} : vector<2x64xf32> to vector<2x32xf32>
    %320 = arith.index_cast %c7_i32_124 : i32 to index
    %c0_138 = arith.constant 0 : index
    %c0_139 = arith.constant 0 : index
    %321 = vector.load %arg8[%320, %c0_138, %c0_139] : memref<8x2x64xf32, #tpu.memory_space<vmem>>, vector<1x2x32xf32>
    %322 = vector.shape_cast %321 : vector<1x2x32xf32> to vector<2x32xf32>
    %323 = vector.shape_cast %319 : vector<2x32xf32> to vector<1x2x32xf32>
    tpu.vector_store %arg8[%320, %c0_138, %c0_139], %323 {strides = array<i32>} : memref<8x2x64xf32, #tpu.memory_space<vmem>>, vector<1x2x32xf32>,
    %324 = vector.extract_strided_slice %318 {offsets = [0, 32], sizes = [2, 32], strides = [1, 1]} : vector<2x64xf32> to vector<2x32xf32>
    %c7_i32_140 = arith.constant 7 : i32
    %325 = arith.subi %c7_i32_140, %c7_i32_124 : i32
    %326 = arith.index_cast %325 : i32 to index
    %c0_141 = arith.constant 0 : index
    %c32_142 = arith.constant 32 : index
    %327 = vector.load %arg8[%326, %c0_141, %c32_142] : memref<8x2x64xf32, #tpu.memory_space<vmem>>, vector<1x2x32xf32>
    %328 = vector.shape_cast %327 : vector<1x2x32xf32> to vector<2x32xf32>
    %329 = vector.shape_cast %324 : vector<2x32xf32> to vector<1x2x32xf32>
    tpu.vector_store %arg8[%326, %c0_141, %c32_142], %329 {strides = array<i32>} : memref<8x2x64xf32, #tpu.memory_space<vmem>>, vector<1x2x32xf32>,
    %c8_i32 = arith.constant 8 : i32
    %330 = vector.extract_strided_slice %318 {offsets = [0, 0], sizes = [2, 32], strides = [1, 1]} : vector<2x64xf32> to vector<2x32xf32>
    %c0_143 = arith.constant 0 : index
    %c0_144 = arith.constant 0 : index
    %c0_145 = arith.constant 0 : index
    %331 = vector.load %arg6[%c0_143, %c0_144, %c0_145] : memref<8x2x32xf32, #tpu.memory_space<vmem>>, vector<1x2x32xf32>
    %332 = vector.shape_cast %331 : vector<1x2x32xf32> to vector<2x32xf32>
    %333 = vector.shape_cast %330 : vector<2x32xf32> to vector<1x2x32xf32>
    tpu.vector_store %arg6[%c0_143, %c0_144, %c0_145], %333 {strides = array<i32>} : memref<8x2x32xf32, #tpu.memory_space<vmem>>, vector<1x2x32xf32>,
    %334 = vector.extract_strided_slice %318 {offsets = [0, 32], sizes = [2, 32], strides = [1, 1]} : vector<2x64xf32> to vector<2x32xf32>
    %c1 = arith.constant 1 : index
    %c0_146 = arith.constant 0 : index
    %c0_147 = arith.constant 0 : index
    %335 = vector.load %arg6[%c1, %c0_146, %c0_147] : memref<8x2x32xf32, #tpu.memory_space<vmem>>, vector<1x2x32xf32>
    %336 = vector.shape_cast %335 : vector<1x2x32xf32> to vector<2x32xf32>
    %337 = vector.shape_cast %334 : vector<2x32xf32> to vector<1x2x32xf32>
    tpu.vector_store %arg6[%c1, %c0_146, %c0_147], %337 {strides = array<i32>} : memref<8x2x32xf32, #tpu.memory_space<vmem>>, vector<1x2x32xf32>,
    %338 = vector.extract_strided_slice %316 {offsets = [0, 0], sizes = [2, 32], strides = [1, 1]} : vector<2x64xf32> to vector<2x32xf32>
    %c0_148 = arith.constant 0 : index
    %c0_149 = arith.constant 0 : index
    %c0_150 = arith.constant 0 : index
    %339 = vector.load %arg7[%c0_148, %c0_149, %c0_150] : memref<8x2x32xf32, #tpu.memory_space<vmem>>, vector<1x2x32xf32>
    %340 = vector.shape_cast %339 : vector<1x2x32xf32> to vector<2x32xf32>
    %341 = vector.shape_cast %338 : vector<2x32xf32> to vector<1x2x32xf32>
    tpu.vector_store %arg7[%c0_148, %c0_149, %c0_150], %341 {strides = array<i32>} : memref<8x2x32xf32, #tpu.memory_space<vmem>>, vector<1x2x32xf32>,
    %342 = vector.extract_strided_slice %316 {offsets = [0, 32], sizes = [2, 32], strides = [1, 1]} : vector<2x64xf32> to vector<2x32xf32>
    %c1_151 = arith.constant 1 : index
    %c0_152 = arith.constant 0 : index
    %c0_153 = arith.constant 0 : index
    %343 = vector.load %arg7[%c1_151, %c0_152, %c0_153] : memref<8x2x32xf32, #tpu.memory_space<vmem>>, vector<1x2x32xf32>
    %344 = vector.shape_cast %343 : vector<1x2x32xf32> to vector<2x32xf32>
    %345 = vector.shape_cast %342 : vector<2x32xf32> to vector<1x2x32xf32>
    tpu.vector_store %arg7[%c1_151, %c0_152, %c0_153], %345 {strides = array<i32>} : memref<8x2x32xf32, #tpu.memory_space<vmem>>, vector<1x2x32xf32>,
    %cst_154 = arith.constant 0.000000e+00 : f32
    %346 = vector.broadcast %cst_154 : f32 to vector<2x64xf32>
    %cst_155 = arith.constant 0.000000e+00 : f32
    %347 = vector.broadcast %cst_155 : f32 to vector<2x64xf32>
    %c0_i32_156 = arith.constant 0 : i32
    %348 = arith.index_cast %c0_i32_156 : i32 to index
    %c0_157 = arith.constant 0 : index
    %c0_158 = arith.constant 0 : index
    %349 = vector.load %arg8[%348, %c0_157, %c0_158] : memref<8x2x64xf32, #tpu.memory_space<vmem>>, vector<1x2x64xf32>
    %350 = vector.shape_cast %349 : vector<1x2x64xf32> to vector<2x64xf32>
    %c7_i32_159 = arith.constant 7 : i32
    %351 = arith.subi %c7_i32_159, %c0_i32_156 : i32
    %352 = arith.index_cast %351 : i32 to index
    %c0_160 = arith.constant 0 : index
    %c0_161 = arith.constant 0 : index
    %353 = vector.load %arg8[%352, %c0_160, %c0_161] : memref<8x2x64xf32, #tpu.memory_space<vmem>>, vector<1x2x64xf32>
    %354 = vector.shape_cast %353 : vector<1x2x64xf32> to vector<2x64xf32>
    %355 = tpu.concatenate %350, %354, %346 in 1 : vector<2x64xf32>, vector<2x64xf32>, vector<2x64xf32> -> vector<2x192xf32>
    %c1_162 = arith.constant 1 : index
    %c0_163 = arith.constant 0 : index
    %c0_164 = arith.constant 0 : index
    %356 = vector.load %arg1[%c1_162, %c0_163, %c0_164] : memref<4x192x256xf32, #tpu.memory_space<vmem>>, vector<1x192x256xf32>
    %357 = vector.shape_cast %356 : vector<1x192x256xf32> to vector<192x256xf32>
    %cst_165 = arith.constant dense<0.000000e+00> : vector<2x256xf32>
    %358 = tpu.matmul %355, %357, %cst_165 {dimension_numbers = #tpu.dot_dimension_numbers<[1], [0], [0], [1], [0, 0, 1, 1], [], []>} : vector<2x192xf32>, vector<192x256xf32>, vector<2x256xf32> -> vector<2x256xf32>
    %c1_166 = arith.constant 1 : index
    %c0_167 = arith.constant 0 : index
    %c0_168 = arith.constant 0 : index
    %359 = vector.load %arg2[%c1_166, %c0_167, %c0_168] : memref<4x1x256xf32, #tpu.memory_space<vmem>>, vector<1x1x256xf32>
    %360 = vector.shape_cast %359 : vector<1x1x256xf32> to vector<1x256xf32>
    %361 = vector.broadcast %360 : vector<1x256xf32> to vector<2x256xf32>
    %362 = arith.addf %358, %361 : vector<2x256xf32>
    %363 = arith.negf %362 : vector<2x256xf32>
    %364 = math.exp %363 : vector<2x256xf32>
    %cst_169 = arith.constant 1.000000e+00 : f32
    %365 = vector.broadcast %cst_169 : f32 to vector<2x256xf32>
    %366 = arith.addf %365, %364 : vector<2x256xf32>
    %367 = arith.divf %365, %366 : vector<2x256xf32>
    %368 = math.tanh %362 : vector<2x256xf32>
    %369 = vector.extract_strided_slice %367 {offsets = [0, 0], sizes = [2, 64], strides = [1, 1]} : vector<2x256xf32> to vector<2x64xf32>
    %370 = vector.extract_strided_slice %367 {offsets = [0, 64], sizes = [2, 64], strides = [1, 1]} : vector<2x256xf32> to vector<2x64xf32>
    %371 = vector.extract_strided_slice %368 {offsets = [0, 128], sizes = [2, 64], strides = [1, 1]} : vector<2x256xf32> to vector<2x64xf32>
    %372 = vector.extract_strided_slice %367 {offsets = [0, 192], sizes = [2, 64], strides = [1, 1]} : vector<2x256xf32> to vector<2x64xf32>
    %373 = arith.mulf %370, %347 : vector<2x64xf32>
    %374 = arith.mulf %369, %371 : vector<2x64xf32>
    %375 = arith.addf %373, %374 : vector<2x64xf32>
    %376 = math.tanh %375 : vector<2x64xf32>
    %377 = arith.mulf %372, %376 : vector<2x64xf32>
    %378 = vector.extract_strided_slice %377 {offsets = [0, 0], sizes = [2, 32], strides = [1, 1]} : vector<2x64xf32> to vector<2x32xf32>
    %379 = arith.index_cast %c0_i32_156 : i32 to index
    %c0_170 = arith.constant 0 : index
    %c0_171 = arith.constant 0 : index
    %380 = vector.load %arg9[%379, %c0_170, %c0_171] : memref<8x2x64xf32, #tpu.memory_space<vmem>>, vector<1x2x32xf32>
    %381 = vector.shape_cast %380 : vector<1x2x32xf32> to vector<2x32xf32>
    %382 = vector.shape_cast %378 : vector<2x32xf32> to vector<1x2x32xf32>
    tpu.vector_store %arg9[%379, %c0_170, %c0_171], %382 {strides = array<i32>} : memref<8x2x64xf32, #tpu.memory_space<vmem>>, vector<1x2x32xf32>,
    %383 = vector.extract_strided_slice %377 {offsets = [0, 32], sizes = [2, 32], strides = [1, 1]} : vector<2x64xf32> to vector<2x32xf32>
    %c7_i32_172 = arith.constant 7 : i32
    %384 = arith.subi %c7_i32_172, %c0_i32_156 : i32
    %385 = arith.index_cast %384 : i32 to index
    %c0_173 = arith.constant 0 : index
    %c32_174 = arith.constant 32 : index
    %386 = vector.load %arg9[%385, %c0_173, %c32_174] : memref<8x2x64xf32, #tpu.memory_space<vmem>>, vector<1x2x32xf32>
    %387 = vector.shape_cast %386 : vector<1x2x32xf32> to vector<2x32xf32>
    %388 = vector.shape_cast %383 : vector<2x32xf32> to vector<1x2x32xf32>
    tpu.vector_store %arg9[%385, %c0_173, %c32_174], %388 {strides = array<i32>} : memref<8x2x64xf32, #tpu.memory_space<vmem>>, vector<1x2x32xf32>,
    %c1_i32_175 = arith.constant 1 : i32
    %389 = arith.index_cast %c1_i32_175 : i32 to index
    %c0_176 = arith.constant 0 : index
    %c0_177 = arith.constant 0 : index
    %390 = vector.load %arg8[%389, %c0_176, %c0_177] : memref<8x2x64xf32, #tpu.memory_space<vmem>>, vector<1x2x64xf32>
    %391 = vector.shape_cast %390 : vector<1x2x64xf32> to vector<2x64xf32>
    %c7_i32_178 = arith.constant 7 : i32
    %392 = arith.subi %c7_i32_178, %c1_i32_175 : i32
    %393 = arith.index_cast %392 : i32 to index
    %c0_179 = arith.constant 0 : index
    %c0_180 = arith.constant 0 : index
    %394 = vector.load %arg8[%393, %c0_179, %c0_180] : memref<8x2x64xf32, #tpu.memory_space<vmem>>, vector<1x2x64xf32>
    %395 = vector.shape_cast %394 : vector<1x2x64xf32> to vector<2x64xf32>
    %396 = tpu.concatenate %391, %395, %377 in 1 : vector<2x64xf32>, vector<2x64xf32>, vector<2x64xf32> -> vector<2x192xf32>
    %c1_181 = arith.constant 1 : index
    %c0_182 = arith.constant 0 : index
    %c0_183 = arith.constant 0 : index
    %397 = vector.load %arg1[%c1_181, %c0_182, %c0_183] : memref<4x192x256xf32, #tpu.memory_space<vmem>>, vector<1x192x256xf32>
    %398 = vector.shape_cast %397 : vector<1x192x256xf32> to vector<192x256xf32>
    %cst_184 = arith.constant dense<0.000000e+00> : vector<2x256xf32>
    %399 = tpu.matmul %396, %398, %cst_184 {dimension_numbers = #tpu.dot_dimension_numbers<[1], [0], [0], [1], [0, 0, 1, 1], [], []>} : vector<2x192xf32>, vector<192x256xf32>, vector<2x256xf32> -> vector<2x256xf32>
    %c1_185 = arith.constant 1 : index
    %c0_186 = arith.constant 0 : index
    %c0_187 = arith.constant 0 : index
    %400 = vector.load %arg2[%c1_185, %c0_186, %c0_187] : memref<4x1x256xf32, #tpu.memory_space<vmem>>, vector<1x1x256xf32>
    %401 = vector.shape_cast %400 : vector<1x1x256xf32> to vector<1x256xf32>
    %402 = vector.broadcast %401 : vector<1x256xf32> to vector<2x256xf32>
    %403 = arith.addf %399, %402 : vector<2x256xf32>
    %404 = arith.negf %403 : vector<2x256xf32>
    %405 = math.exp %404 : vector<2x256xf32>
    %cst_188 = arith.constant 1.000000e+00 : f32
    %406 = vector.broadcast %cst_188 : f32 to vector<2x256xf32>
    %407 = arith.addf %406, %405 : vector<2x256xf32>
    %408 = arith.divf %406, %407 : vector<2x256xf32>
    %409 = math.tanh %403 : vector<2x256xf32>
    %410 = vector.extract_strided_slice %408 {offsets = [0, 0], sizes = [2, 64], strides = [1, 1]} : vector<2x256xf32> to vector<2x64xf32>
    %411 = vector.extract_strided_slice %408 {offsets = [0, 64], sizes = [2, 64], strides = [1, 1]} : vector<2x256xf32> to vector<2x64xf32>
    %412 = vector.extract_strided_slice %409 {offsets = [0, 128], sizes = [2, 64], strides = [1, 1]} : vector<2x256xf32> to vector<2x64xf32>
    %413 = vector.extract_strided_slice %408 {offsets = [0, 192], sizes = [2, 64], strides = [1, 1]} : vector<2x256xf32> to vector<2x64xf32>
    %414 = arith.mulf %411, %375 : vector<2x64xf32>
    %415 = arith.mulf %410, %412 : vector<2x64xf32>
    %416 = arith.addf %414, %415 : vector<2x64xf32>
    %417 = math.tanh %416 : vector<2x64xf32>
    %418 = arith.mulf %413, %417 : vector<2x64xf32>
    %419 = vector.extract_strided_slice %418 {offsets = [0, 0], sizes = [2, 32], strides = [1, 1]} : vector<2x64xf32> to vector<2x32xf32>
    %420 = arith.index_cast %c1_i32_175 : i32 to index
    %c0_189 = arith.constant 0 : index
    %c0_190 = arith.constant 0 : index
    %421 = vector.load %arg9[%420, %c0_189, %c0_190] : memref<8x2x64xf32, #tpu.memory_space<vmem>>, vector<1x2x32xf32>
    %422 = vector.shape_cast %421 : vector<1x2x32xf32> to vector<2x32xf32>
    %423 = vector.shape_cast %419 : vector<2x32xf32> to vector<1x2x32xf32>
    tpu.vector_store %arg9[%420, %c0_189, %c0_190], %423 {strides = array<i32>} : memref<8x2x64xf32, #tpu.memory_space<vmem>>, vector<1x2x32xf32>,
    %424 = vector.extract_strided_slice %418 {offsets = [0, 32], sizes = [2, 32], strides = [1, 1]} : vector<2x64xf32> to vector<2x32xf32>
    %c7_i32_191 = arith.constant 7 : i32
    %425 = arith.subi %c7_i32_191, %c1_i32_175 : i32
    %426 = arith.index_cast %425 : i32 to index
    %c0_192 = arith.constant 0 : index
    %c32_193 = arith.constant 32 : index
    %427 = vector.load %arg9[%426, %c0_192, %c32_193] : memref<8x2x64xf32, #tpu.memory_space<vmem>>, vector<1x2x32xf32>
    %428 = vector.shape_cast %427 : vector<1x2x32xf32> to vector<2x32xf32>
    %429 = vector.shape_cast %424 : vector<2x32xf32> to vector<1x2x32xf32>
    tpu.vector_store %arg9[%426, %c0_192, %c32_193], %429 {strides = array<i32>} : memref<8x2x64xf32, #tpu.memory_space<vmem>>, vector<1x2x32xf32>,
    %c2_i32_194 = arith.constant 2 : i32
    %430 = arith.index_cast %c2_i32_194 : i32 to index
    %c0_195 = arith.constant 0 : index
    %c0_196 = arith.constant 0 : index
    %431 = vector.load %arg8[%430, %c0_195, %c0_196] : memref<8x2x64xf32, #tpu.memory_space<vmem>>, vector<1x2x64xf32>
    %432 = vector.shape_cast %431 : vector<1x2x64xf32> to vector<2x64xf32>
    %c7_i32_197 = arith.constant 7 : i32
    %433 = arith.subi %c7_i32_197, %c2_i32_194 : i32
    %434 = arith.index_cast %433 : i32 to index
    %c0_198 = arith.constant 0 : index
    %c0_199 = arith.constant 0 : index
    %435 = vector.load %arg8[%434, %c0_198, %c0_199] : memref<8x2x64xf32, #tpu.memory_space<vmem>>, vector<1x2x64xf32>
    %436 = vector.shape_cast %435 : vector<1x2x64xf32> to vector<2x64xf32>
    %437 = tpu.concatenate %432, %436, %418 in 1 : vector<2x64xf32>, vector<2x64xf32>, vector<2x64xf32> -> vector<2x192xf32>
    %c1_200 = arith.constant 1 : index
    %c0_201 = arith.constant 0 : index
    %c0_202 = arith.constant 0 : index
    %438 = vector.load %arg1[%c1_200, %c0_201, %c0_202] : memref<4x192x256xf32, #tpu.memory_space<vmem>>, vector<1x192x256xf32>
    %439 = vector.shape_cast %438 : vector<1x192x256xf32> to vector<192x256xf32>
    %cst_203 = arith.constant dense<0.000000e+00> : vector<2x256xf32>
    %440 = tpu.matmul %437, %439, %cst_203 {dimension_numbers = #tpu.dot_dimension_numbers<[1], [0], [0], [1], [0, 0, 1, 1], [], []>} : vector<2x192xf32>, vector<192x256xf32>, vector<2x256xf32> -> vector<2x256xf32>
    %c1_204 = arith.constant 1 : index
    %c0_205 = arith.constant 0 : index
    %c0_206 = arith.constant 0 : index
    %441 = vector.load %arg2[%c1_204, %c0_205, %c0_206] : memref<4x1x256xf32, #tpu.memory_space<vmem>>, vector<1x1x256xf32>
    %442 = vector.shape_cast %441 : vector<1x1x256xf32> to vector<1x256xf32>
    %443 = vector.broadcast %442 : vector<1x256xf32> to vector<2x256xf32>
    %444 = arith.addf %440, %443 : vector<2x256xf32>
    %445 = arith.negf %444 : vector<2x256xf32>
    %446 = math.exp %445 : vector<2x256xf32>
    %cst_207 = arith.constant 1.000000e+00 : f32
    %447 = vector.broadcast %cst_207 : f32 to vector<2x256xf32>
    %448 = arith.addf %447, %446 : vector<2x256xf32>
    %449 = arith.divf %447, %448 : vector<2x256xf32>
    %450 = math.tanh %444 : vector<2x256xf32>
    %451 = vector.extract_strided_slice %449 {offsets = [0, 0], sizes = [2, 64], strides = [1, 1]} : vector<2x256xf32> to vector<2x64xf32>
    %452 = vector.extract_strided_slice %449 {offsets = [0, 64], sizes = [2, 64], strides = [1, 1]} : vector<2x256xf32> to vector<2x64xf32>
    %453 = vector.extract_strided_slice %450 {offsets = [0, 128], sizes = [2, 64], strides = [1, 1]} : vector<2x256xf32> to vector<2x64xf32>
    %454 = vector.extract_strided_slice %449 {offsets = [0, 192], sizes = [2, 64], strides = [1, 1]} : vector<2x256xf32> to vector<2x64xf32>
    %455 = arith.mulf %452, %416 : vector<2x64xf32>
    %456 = arith.mulf %451, %453 : vector<2x64xf32>
    %457 = arith.addf %455, %456 : vector<2x64xf32>
    %458 = math.tanh %457 : vector<2x64xf32>
    %459 = arith.mulf %454, %458 : vector<2x64xf32>
    %460 = vector.extract_strided_slice %459 {offsets = [0, 0], sizes = [2, 32], strides = [1, 1]} : vector<2x64xf32> to vector<2x32xf32>
    %461 = arith.index_cast %c2_i32_194 : i32 to index
    %c0_208 = arith.constant 0 : index
    %c0_209 = arith.constant 0 : index
    %462 = vector.load %arg9[%461, %c0_208, %c0_209] : memref<8x2x64xf32, #tpu.memory_space<vmem>>, vector<1x2x32xf32>
    %463 = vector.shape_cast %462 : vector<1x2x32xf32> to vector<2x32xf32>
    %464 = vector.shape_cast %460 : vector<2x32xf32> to vector<1x2x32xf32>
    tpu.vector_store %arg9[%461, %c0_208, %c0_209], %464 {strides = array<i32>} : memref<8x2x64xf32, #tpu.memory_space<vmem>>, vector<1x2x32xf32>,
    %465 = vector.extract_strided_slice %459 {offsets = [0, 32], sizes = [2, 32], strides = [1, 1]} : vector<2x64xf32> to vector<2x32xf32>
    %c7_i32_210 = arith.constant 7 : i32
    %466 = arith.subi %c7_i32_210, %c2_i32_194 : i32
    %467 = arith.index_cast %466 : i32 to index
    %c0_211 = arith.constant 0 : index
    %c32_212 = arith.constant 32 : index
    %468 = vector.load %arg9[%467, %c0_211, %c32_212] : memref<8x2x64xf32, #tpu.memory_space<vmem>>, vector<1x2x32xf32>
    %469 = vector.shape_cast %468 : vector<1x2x32xf32> to vector<2x32xf32>
    %470 = vector.shape_cast %465 : vector<2x32xf32> to vector<1x2x32xf32>
    tpu.vector_store %arg9[%467, %c0_211, %c32_212], %470 {strides = array<i32>} : memref<8x2x64xf32, #tpu.memory_space<vmem>>, vector<1x2x32xf32>,
    %c3_i32_213 = arith.constant 3 : i32
    %471 = arith.index_cast %c3_i32_213 : i32 to index
    %c0_214 = arith.constant 0 : index
    %c0_215 = arith.constant 0 : index
    %472 = vector.load %arg8[%471, %c0_214, %c0_215] : memref<8x2x64xf32, #tpu.memory_space<vmem>>, vector<1x2x64xf32>
    %473 = vector.shape_cast %472 : vector<1x2x64xf32> to vector<2x64xf32>
    %c7_i32_216 = arith.constant 7 : i32
    %474 = arith.subi %c7_i32_216, %c3_i32_213 : i32
    %475 = arith.index_cast %474 : i32 to index
    %c0_217 = arith.constant 0 : index
    %c0_218 = arith.constant 0 : index
    %476 = vector.load %arg8[%475, %c0_217, %c0_218] : memref<8x2x64xf32, #tpu.memory_space<vmem>>, vector<1x2x64xf32>
    %477 = vector.shape_cast %476 : vector<1x2x64xf32> to vector<2x64xf32>
    %478 = tpu.concatenate %473, %477, %459 in 1 : vector<2x64xf32>, vector<2x64xf32>, vector<2x64xf32> -> vector<2x192xf32>
    %c1_219 = arith.constant 1 : index
    %c0_220 = arith.constant 0 : index
    %c0_221 = arith.constant 0 : index
    %479 = vector.load %arg1[%c1_219, %c0_220, %c0_221] : memref<4x192x256xf32, #tpu.memory_space<vmem>>, vector<1x192x256xf32>
    %480 = vector.shape_cast %479 : vector<1x192x256xf32> to vector<192x256xf32>
    %cst_222 = arith.constant dense<0.000000e+00> : vector<2x256xf32>
    %481 = tpu.matmul %478, %480, %cst_222 {dimension_numbers = #tpu.dot_dimension_numbers<[1], [0], [0], [1], [0, 0, 1, 1], [], []>} : vector<2x192xf32>, vector<192x256xf32>, vector<2x256xf32> -> vector<2x256xf32>
    %c1_223 = arith.constant 1 : index
    %c0_224 = arith.constant 0 : index
    %c0_225 = arith.constant 0 : index
    %482 = vector.load %arg2[%c1_223, %c0_224, %c0_225] : memref<4x1x256xf32, #tpu.memory_space<vmem>>, vector<1x1x256xf32>
    %483 = vector.shape_cast %482 : vector<1x1x256xf32> to vector<1x256xf32>
    %484 = vector.broadcast %483 : vector<1x256xf32> to vector<2x256xf32>
    %485 = arith.addf %481, %484 : vector<2x256xf32>
    %486 = arith.negf %485 : vector<2x256xf32>
    %487 = math.exp %486 : vector<2x256xf32>
    %cst_226 = arith.constant 1.000000e+00 : f32
    %488 = vector.broadcast %cst_226 : f32 to vector<2x256xf32>
    %489 = arith.addf %488, %487 : vector<2x256xf32>
    %490 = arith.divf %488, %489 : vector<2x256xf32>
    %491 = math.tanh %485 : vector<2x256xf32>
    %492 = vector.extract_strided_slice %490 {offsets = [0, 0], sizes = [2, 64], strides = [1, 1]} : vector<2x256xf32> to vector<2x64xf32>
    %493 = vector.extract_strided_slice %490 {offsets = [0, 64], sizes = [2, 64], strides = [1, 1]} : vector<2x256xf32> to vector<2x64xf32>
    %494 = vector.extract_strided_slice %491 {offsets = [0, 128], sizes = [2, 64], strides = [1, 1]} : vector<2x256xf32> to vector<2x64xf32>
    %495 = vector.extract_strided_slice %490 {offsets = [0, 192], sizes = [2, 64], strides = [1, 1]} : vector<2x256xf32> to vector<2x64xf32>
    %496 = arith.mulf %493, %457 : vector<2x64xf32>
    %497 = arith.mulf %492, %494 : vector<2x64xf32>
    %498 = arith.addf %496, %497 : vector<2x64xf32>
    %499 = math.tanh %498 : vector<2x64xf32>
    %500 = arith.mulf %495, %499 : vector<2x64xf32>
    %501 = vector.extract_strided_slice %500 {offsets = [0, 0], sizes = [2, 32], strides = [1, 1]} : vector<2x64xf32> to vector<2x32xf32>
    %502 = arith.index_cast %c3_i32_213 : i32 to index
    %c0_227 = arith.constant 0 : index
    %c0_228 = arith.constant 0 : index
    %503 = vector.load %arg9[%502, %c0_227, %c0_228] : memref<8x2x64xf32, #tpu.memory_space<vmem>>, vector<1x2x32xf32>
    %504 = vector.shape_cast %503 : vector<1x2x32xf32> to vector<2x32xf32>
    %505 = vector.shape_cast %501 : vector<2x32xf32> to vector<1x2x32xf32>
    tpu.vector_store %arg9[%502, %c0_227, %c0_228], %505 {strides = array<i32>} : memref<8x2x64xf32, #tpu.memory_space<vmem>>, vector<1x2x32xf32>,
    %506 = vector.extract_strided_slice %500 {offsets = [0, 32], sizes = [2, 32], strides = [1, 1]} : vector<2x64xf32> to vector<2x32xf32>
    %c7_i32_229 = arith.constant 7 : i32
    %507 = arith.subi %c7_i32_229, %c3_i32_213 : i32
    %508 = arith.index_cast %507 : i32 to index
    %c0_230 = arith.constant 0 : index
    %c32_231 = arith.constant 32 : index
    %509 = vector.load %arg9[%508, %c0_230, %c32_231] : memref<8x2x64xf32, #tpu.memory_space<vmem>>, vector<1x2x32xf32>
    %510 = vector.shape_cast %509 : vector<1x2x32xf32> to vector<2x32xf32>
    %511 = vector.shape_cast %506 : vector<2x32xf32> to vector<1x2x32xf32>
    tpu.vector_store %arg9[%508, %c0_230, %c32_231], %511 {strides = array<i32>} : memref<8x2x64xf32, #tpu.memory_space<vmem>>, vector<1x2x32xf32>,
    %c4_i32_232 = arith.constant 4 : i32
    %512 = arith.index_cast %c4_i32_232 : i32 to index
    %c0_233 = arith.constant 0 : index
    %c0_234 = arith.constant 0 : index
    %513 = vector.load %arg8[%512, %c0_233, %c0_234] : memref<8x2x64xf32, #tpu.memory_space<vmem>>, vector<1x2x64xf32>
    %514 = vector.shape_cast %513 : vector<1x2x64xf32> to vector<2x64xf32>
    %c7_i32_235 = arith.constant 7 : i32
    %515 = arith.subi %c7_i32_235, %c4_i32_232 : i32
    %516 = arith.index_cast %515 : i32 to index
    %c0_236 = arith.constant 0 : index
    %c0_237 = arith.constant 0 : index
    %517 = vector.load %arg8[%516, %c0_236, %c0_237] : memref<8x2x64xf32, #tpu.memory_space<vmem>>, vector<1x2x64xf32>
    %518 = vector.shape_cast %517 : vector<1x2x64xf32> to vector<2x64xf32>
    %519 = tpu.concatenate %514, %518, %500 in 1 : vector<2x64xf32>, vector<2x64xf32>, vector<2x64xf32> -> vector<2x192xf32>
    %c1_238 = arith.constant 1 : index
    %c0_239 = arith.constant 0 : index
    %c0_240 = arith.constant 0 : index
    %520 = vector.load %arg1[%c1_238, %c0_239, %c0_240] : memref<4x192x256xf32, #tpu.memory_space<vmem>>, vector<1x192x256xf32>
    %521 = vector.shape_cast %520 : vector<1x192x256xf32> to vector<192x256xf32>
    %cst_241 = arith.constant dense<0.000000e+00> : vector<2x256xf32>
    %522 = tpu.matmul %519, %521, %cst_241 {dimension_numbers = #tpu.dot_dimension_numbers<[1], [0], [0], [1], [0, 0, 1, 1], [], []>} : vector<2x192xf32>, vector<192x256xf32>, vector<2x256xf32> -> vector<2x256xf32>
    %c1_242 = arith.constant 1 : index
    %c0_243 = arith.constant 0 : index
    %c0_244 = arith.constant 0 : index
    %523 = vector.load %arg2[%c1_242, %c0_243, %c0_244] : memref<4x1x256xf32, #tpu.memory_space<vmem>>, vector<1x1x256xf32>
    %524 = vector.shape_cast %523 : vector<1x1x256xf32> to vector<1x256xf32>
    %525 = vector.broadcast %524 : vector<1x256xf32> to vector<2x256xf32>
    %526 = arith.addf %522, %525 : vector<2x256xf32>
    %527 = arith.negf %526 : vector<2x256xf32>
    %528 = math.exp %527 : vector<2x256xf32>
    %cst_245 = arith.constant 1.000000e+00 : f32
    %529 = vector.broadcast %cst_245 : f32 to vector<2x256xf32>
    %530 = arith.addf %529, %528 : vector<2x256xf32>
    %531 = arith.divf %529, %530 : vector<2x256xf32>
    %532 = math.tanh %526 : vector<2x256xf32>
    %533 = vector.extract_strided_slice %531 {offsets = [0, 0], sizes = [2, 64], strides = [1, 1]} : vector<2x256xf32> to vector<2x64xf32>
    %534 = vector.extract_strided_slice %531 {offsets = [0, 64], sizes = [2, 64], strides = [1, 1]} : vector<2x256xf32> to vector<2x64xf32>
    %535 = vector.extract_strided_slice %532 {offsets = [0, 128], sizes = [2, 64], strides = [1, 1]} : vector<2x256xf32> to vector<2x64xf32>
    %536 = vector.extract_strided_slice %531 {offsets = [0, 192], sizes = [2, 64], strides = [1, 1]} : vector<2x256xf32> to vector<2x64xf32>
    %537 = arith.mulf %534, %498 : vector<2x64xf32>
    %538 = arith.mulf %533, %535 : vector<2x64xf32>
    %539 = arith.addf %537, %538 : vector<2x64xf32>
    %540 = math.tanh %539 : vector<2x64xf32>
    %541 = arith.mulf %536, %540 : vector<2x64xf32>
    %542 = vector.extract_strided_slice %541 {offsets = [0, 0], sizes = [2, 32], strides = [1, 1]} : vector<2x64xf32> to vector<2x32xf32>
    %543 = arith.index_cast %c4_i32_232 : i32 to index
    %c0_246 = arith.constant 0 : index
    %c0_247 = arith.constant 0 : index
    %544 = vector.load %arg9[%543, %c0_246, %c0_247] : memref<8x2x64xf32, #tpu.memory_space<vmem>>, vector<1x2x32xf32>
    %545 = vector.shape_cast %544 : vector<1x2x32xf32> to vector<2x32xf32>
    %546 = vector.shape_cast %542 : vector<2x32xf32> to vector<1x2x32xf32>
    tpu.vector_store %arg9[%543, %c0_246, %c0_247], %546 {strides = array<i32>} : memref<8x2x64xf32, #tpu.memory_space<vmem>>, vector<1x2x32xf32>,
    %547 = vector.extract_strided_slice %541 {offsets = [0, 32], sizes = [2, 32], strides = [1, 1]} : vector<2x64xf32> to vector<2x32xf32>
    %c7_i32_248 = arith.constant 7 : i32
    %548 = arith.subi %c7_i32_248, %c4_i32_232 : i32
    %549 = arith.index_cast %548 : i32 to index
    %c0_249 = arith.constant 0 : index
    %c32_250 = arith.constant 32 : index
    %550 = vector.load %arg9[%549, %c0_249, %c32_250] : memref<8x2x64xf32, #tpu.memory_space<vmem>>, vector<1x2x32xf32>
    %551 = vector.shape_cast %550 : vector<1x2x32xf32> to vector<2x32xf32>
    %552 = vector.shape_cast %547 : vector<2x32xf32> to vector<1x2x32xf32>
    tpu.vector_store %arg9[%549, %c0_249, %c32_250], %552 {strides = array<i32>} : memref<8x2x64xf32, #tpu.memory_space<vmem>>, vector<1x2x32xf32>,
    %c5_i32_251 = arith.constant 5 : i32
    %553 = arith.index_cast %c5_i32_251 : i32 to index
    %c0_252 = arith.constant 0 : index
    %c0_253 = arith.constant 0 : index
    %554 = vector.load %arg8[%553, %c0_252, %c0_253] : memref<8x2x64xf32, #tpu.memory_space<vmem>>, vector<1x2x64xf32>
    %555 = vector.shape_cast %554 : vector<1x2x64xf32> to vector<2x64xf32>
    %c7_i32_254 = arith.constant 7 : i32
    %556 = arith.subi %c7_i32_254, %c5_i32_251 : i32
    %557 = arith.index_cast %556 : i32 to index
    %c0_255 = arith.constant 0 : index
    %c0_256 = arith.constant 0 : index
    %558 = vector.load %arg8[%557, %c0_255, %c0_256] : memref<8x2x64xf32, #tpu.memory_space<vmem>>, vector<1x2x64xf32>
    %559 = vector.shape_cast %558 : vector<1x2x64xf32> to vector<2x64xf32>
    %560 = tpu.concatenate %555, %559, %541 in 1 : vector<2x64xf32>, vector<2x64xf32>, vector<2x64xf32> -> vector<2x192xf32>
    %c1_257 = arith.constant 1 : index
    %c0_258 = arith.constant 0 : index
    %c0_259 = arith.constant 0 : index
    %561 = vector.load %arg1[%c1_257, %c0_258, %c0_259] : memref<4x192x256xf32, #tpu.memory_space<vmem>>, vector<1x192x256xf32>
    %562 = vector.shape_cast %561 : vector<1x192x256xf32> to vector<192x256xf32>
    %cst_260 = arith.constant dense<0.000000e+00> : vector<2x256xf32>
    %563 = tpu.matmul %560, %562, %cst_260 {dimension_numbers = #tpu.dot_dimension_numbers<[1], [0], [0], [1], [0, 0, 1, 1], [], []>} : vector<2x192xf32>, vector<192x256xf32>, vector<2x256xf32> -> vector<2x256xf32>
    %c1_261 = arith.constant 1 : index
    %c0_262 = arith.constant 0 : index
    %c0_263 = arith.constant 0 : index
    %564 = vector.load %arg2[%c1_261, %c0_262, %c0_263] : memref<4x1x256xf32, #tpu.memory_space<vmem>>, vector<1x1x256xf32>
    %565 = vector.shape_cast %564 : vector<1x1x256xf32> to vector<1x256xf32>
    %566 = vector.broadcast %565 : vector<1x256xf32> to vector<2x256xf32>
    %567 = arith.addf %563, %566 : vector<2x256xf32>
    %568 = arith.negf %567 : vector<2x256xf32>
    %569 = math.exp %568 : vector<2x256xf32>
    %cst_264 = arith.constant 1.000000e+00 : f32
    %570 = vector.broadcast %cst_264 : f32 to vector<2x256xf32>
    %571 = arith.addf %570, %569 : vector<2x256xf32>
    %572 = arith.divf %570, %571 : vector<2x256xf32>
    %573 = math.tanh %567 : vector<2x256xf32>
    %574 = vector.extract_strided_slice %572 {offsets = [0, 0], sizes = [2, 64], strides = [1, 1]} : vector<2x256xf32> to vector<2x64xf32>
    %575 = vector.extract_strided_slice %572 {offsets = [0, 64], sizes = [2, 64], strides = [1, 1]} : vector<2x256xf32> to vector<2x64xf32>
    %576 = vector.extract_strided_slice %573 {offsets = [0, 128], sizes = [2, 64], strides = [1, 1]} : vector<2x256xf32> to vector<2x64xf32>
    %577 = vector.extract_strided_slice %572 {offsets = [0, 192], sizes = [2, 64], strides = [1, 1]} : vector<2x256xf32> to vector<2x64xf32>
    %578 = arith.mulf %575, %539 : vector<2x64xf32>
    %579 = arith.mulf %574, %576 : vector<2x64xf32>
    %580 = arith.addf %578, %579 : vector<2x64xf32>
    %581 = math.tanh %580 : vector<2x64xf32>
    %582 = arith.mulf %577, %581 : vector<2x64xf32>
    %583 = vector.extract_strided_slice %582 {offsets = [0, 0], sizes = [2, 32], strides = [1, 1]} : vector<2x64xf32> to vector<2x32xf32>
    %584 = arith.index_cast %c5_i32_251 : i32 to index
    %c0_265 = arith.constant 0 : index
    %c0_266 = arith.constant 0 : index
    %585 = vector.load %arg9[%584, %c0_265, %c0_266] : memref<8x2x64xf32, #tpu.memory_space<vmem>>, vector<1x2x32xf32>
    %586 = vector.shape_cast %585 : vector<1x2x32xf32> to vector<2x32xf32>
    %587 = vector.shape_cast %583 : vector<2x32xf32> to vector<1x2x32xf32>
    tpu.vector_store %arg9[%584, %c0_265, %c0_266], %587 {strides = array<i32>} : memref<8x2x64xf32, #tpu.memory_space<vmem>>, vector<1x2x32xf32>,
    %588 = vector.extract_strided_slice %582 {offsets = [0, 32], sizes = [2, 32], strides = [1, 1]} : vector<2x64xf32> to vector<2x32xf32>
    %c7_i32_267 = arith.constant 7 : i32
    %589 = arith.subi %c7_i32_267, %c5_i32_251 : i32
    %590 = arith.index_cast %589 : i32 to index
    %c0_268 = arith.constant 0 : index
    %c32_269 = arith.constant 32 : index
    %591 = vector.load %arg9[%590, %c0_268, %c32_269] : memref<8x2x64xf32, #tpu.memory_space<vmem>>, vector<1x2x32xf32>
    %592 = vector.shape_cast %591 : vector<1x2x32xf32> to vector<2x32xf32>
    %593 = vector.shape_cast %588 : vector<2x32xf32> to vector<1x2x32xf32>
    tpu.vector_store %arg9[%590, %c0_268, %c32_269], %593 {strides = array<i32>} : memref<8x2x64xf32, #tpu.memory_space<vmem>>, vector<1x2x32xf32>,
    %c6_i32_270 = arith.constant 6 : i32
    %594 = arith.index_cast %c6_i32_270 : i32 to index
    %c0_271 = arith.constant 0 : index
    %c0_272 = arith.constant 0 : index
    %595 = vector.load %arg8[%594, %c0_271, %c0_272] : memref<8x2x64xf32, #tpu.memory_space<vmem>>, vector<1x2x64xf32>
    %596 = vector.shape_cast %595 : vector<1x2x64xf32> to vector<2x64xf32>
    %c7_i32_273 = arith.constant 7 : i32
    %597 = arith.subi %c7_i32_273, %c6_i32_270 : i32
    %598 = arith.index_cast %597 : i32 to index
    %c0_274 = arith.constant 0 : index
    %c0_275 = arith.constant 0 : index
    %599 = vector.load %arg8[%598, %c0_274, %c0_275] : memref<8x2x64xf32, #tpu.memory_space<vmem>>, vector<1x2x64xf32>
    %600 = vector.shape_cast %599 : vector<1x2x64xf32> to vector<2x64xf32>
    %601 = tpu.concatenate %596, %600, %582 in 1 : vector<2x64xf32>, vector<2x64xf32>, vector<2x64xf32> -> vector<2x192xf32>
    %c1_276 = arith.constant 1 : index
    %c0_277 = arith.constant 0 : index
    %c0_278 = arith.constant 0 : index
    %602 = vector.load %arg1[%c1_276, %c0_277, %c0_278] : memref<4x192x256xf32, #tpu.memory_space<vmem>>, vector<1x192x256xf32>
    %603 = vector.shape_cast %602 : vector<1x192x256xf32> to vector<192x256xf32>
    %cst_279 = arith.constant dense<0.000000e+00> : vector<2x256xf32>
    %604 = tpu.matmul %601, %603, %cst_279 {dimension_numbers = #tpu.dot_dimension_numbers<[1], [0], [0], [1], [0, 0, 1, 1], [], []>} : vector<2x192xf32>, vector<192x256xf32>, vector<2x256xf32> -> vector<2x256xf32>
    %c1_280 = arith.constant 1 : index
    %c0_281 = arith.constant 0 : index
    %c0_282 = arith.constant 0 : index
    %605 = vector.load %arg2[%c1_280, %c0_281, %c0_282] : memref<4x1x256xf32, #tpu.memory_space<vmem>>, vector<1x1x256xf32>
    %606 = vector.shape_cast %605 : vector<1x1x256xf32> to vector<1x256xf32>
    %607 = vector.broadcast %606 : vector<1x256xf32> to vector<2x256xf32>
    %608 = arith.addf %604, %607 : vector<2x256xf32>
    %609 = arith.negf %608 : vector<2x256xf32>
    %610 = math.exp %609 : vector<2x256xf32>
    %cst_283 = arith.constant 1.000000e+00 : f32
    %611 = vector.broadcast %cst_283 : f32 to vector<2x256xf32>
    %612 = arith.addf %611, %610 : vector<2x256xf32>
    %613 = arith.divf %611, %612 : vector<2x256xf32>
    %614 = math.tanh %608 : vector<2x256xf32>
    %615 = vector.extract_strided_slice %613 {offsets = [0, 0], sizes = [2, 64], strides = [1, 1]} : vector<2x256xf32> to vector<2x64xf32>
    %616 = vector.extract_strided_slice %613 {offsets = [0, 64], sizes = [2, 64], strides = [1, 1]} : vector<2x256xf32> to vector<2x64xf32>
    %617 = vector.extract_strided_slice %614 {offsets = [0, 128], sizes = [2, 64], strides = [1, 1]} : vector<2x256xf32> to vector<2x64xf32>
    %618 = vector.extract_strided_slice %613 {offsets = [0, 192], sizes = [2, 64], strides = [1, 1]} : vector<2x256xf32> to vector<2x64xf32>
    %619 = arith.mulf %616, %580 : vector<2x64xf32>
    %620 = arith.mulf %615, %617 : vector<2x64xf32>
    %621 = arith.addf %619, %620 : vector<2x64xf32>
    %622 = math.tanh %621 : vector<2x64xf32>
    %623 = arith.mulf %618, %622 : vector<2x64xf32>
    %624 = vector.extract_strided_slice %623 {offsets = [0, 0], sizes = [2, 32], strides = [1, 1]} : vector<2x64xf32> to vector<2x32xf32>
    %625 = arith.index_cast %c6_i32_270 : i32 to index
    %c0_284 = arith.constant 0 : index
    %c0_285 = arith.constant 0 : index
    %626 = vector.load %arg9[%625, %c0_284, %c0_285] : memref<8x2x64xf32, #tpu.memory_space<vmem>>, vector<1x2x32xf32>
    %627 = vector.shape_cast %626 : vector<1x2x32xf32> to vector<2x32xf32>
    %628 = vector.shape_cast %624 : vector<2x32xf32> to vector<1x2x32xf32>
    tpu.vector_store %arg9[%625, %c0_284, %c0_285], %628 {strides = array<i32>} : memref<8x2x64xf32, #tpu.memory_space<vmem>>, vector<1x2x32xf32>,
    %629 = vector.extract_strided_slice %623 {offsets = [0, 32], sizes = [2, 32], strides = [1, 1]} : vector<2x64xf32> to vector<2x32xf32>
    %c7_i32_286 = arith.constant 7 : i32
    %630 = arith.subi %c7_i32_286, %c6_i32_270 : i32
    %631 = arith.index_cast %630 : i32 to index
    %c0_287 = arith.constant 0 : index
    %c32_288 = arith.constant 32 : index
    %632 = vector.load %arg9[%631, %c0_287, %c32_288] : memref<8x2x64xf32, #tpu.memory_space<vmem>>, vector<1x2x32xf32>
    %633 = vector.shape_cast %632 : vector<1x2x32xf32> to vector<2x32xf32>
    %634 = vector.shape_cast %629 : vector<2x32xf32> to vector<1x2x32xf32>
    tpu.vector_store %arg9[%631, %c0_287, %c32_288], %634 {strides = array<i32>} : memref<8x2x64xf32, #tpu.memory_space<vmem>>, vector<1x2x32xf32>,
    %c7_i32_289 = arith.constant 7 : i32
    %635 = arith.index_cast %c7_i32_289 : i32 to index
    %c0_290 = arith.constant 0 : index
    %c0_291 = arith.constant 0 : index
    %636 = vector.load %arg8[%635, %c0_290, %c0_291] : memref<8x2x64xf32, #tpu.memory_space<vmem>>, vector<1x2x64xf32>
    %637 = vector.shape_cast %636 : vector<1x2x64xf32> to vector<2x64xf32>
    %c7_i32_292 = arith.constant 7 : i32
    %638 = arith.subi %c7_i32_292, %c7_i32_289 : i32
    %639 = arith.index_cast %638 : i32 to index
    %c0_293 = arith.constant 0 : index
    %c0_294 = arith.constant 0 : index
    %640 = vector.load %arg8[%639, %c0_293, %c0_294] : memref<8x2x64xf32, #tpu.memory_space<vmem>>, vector<1x2x64xf32>
    %641 = vector.shape_cast %640 : vector<1x2x64xf32> to vector<2x64xf32>
    %642 = tpu.concatenate %637, %641, %623 in 1 : vector<2x64xf32>, vector<2x64xf32>, vector<2x64xf32> -> vector<2x192xf32>
    %c1_295 = arith.constant 1 : index
    %c0_296 = arith.constant 0 : index
    %c0_297 = arith.constant 0 : index
    %643 = vector.load %arg1[%c1_295, %c0_296, %c0_297] : memref<4x192x256xf32, #tpu.memory_space<vmem>>, vector<1x192x256xf32>
    %644 = vector.shape_cast %643 : vector<1x192x256xf32> to vector<192x256xf32>
    %cst_298 = arith.constant dense<0.000000e+00> : vector<2x256xf32>
    %645 = tpu.matmul %642, %644, %cst_298 {dimension_numbers = #tpu.dot_dimension_numbers<[1], [0], [0], [1], [0, 0, 1, 1], [], []>} : vector<2x192xf32>, vector<192x256xf32>, vector<2x256xf32> -> vector<2x256xf32>
    %c1_299 = arith.constant 1 : index
    %c0_300 = arith.constant 0 : index
    %c0_301 = arith.constant 0 : index
    %646 = vector.load %arg2[%c1_299, %c0_300, %c0_301] : memref<4x1x256xf32, #tpu.memory_space<vmem>>, vector<1x1x256xf32>
    %647 = vector.shape_cast %646 : vector<1x1x256xf32> to vector<1x256xf32>
    %648 = vector.broadcast %647 : vector<1x256xf32> to vector<2x256xf32>
    %649 = arith.addf %645, %648 : vector<2x256xf32>
    %650 = arith.negf %649 : vector<2x256xf32>
    %651 = math.exp %650 : vector<2x256xf32>
    %cst_302 = arith.constant 1.000000e+00 : f32
    %652 = vector.broadcast %cst_302 : f32 to vector<2x256xf32>
    %653 = arith.addf %652, %651 : vector<2x256xf32>
    %654 = arith.divf %652, %653 : vector<2x256xf32>
    %655 = math.tanh %649 : vector<2x256xf32>
    %656 = vector.extract_strided_slice %654 {offsets = [0, 0], sizes = [2, 64], strides = [1, 1]} : vector<2x256xf32> to vector<2x64xf32>
    %657 = vector.extract_strided_slice %654 {offsets = [0, 64], sizes = [2, 64], strides = [1, 1]} : vector<2x256xf32> to vector<2x64xf32>
    %658 = vector.extract_strided_slice %655 {offsets = [0, 128], sizes = [2, 64], strides = [1, 1]} : vector<2x256xf32> to vector<2x64xf32>
    %659 = vector.extract_strided_slice %654 {offsets = [0, 192], sizes = [2, 64], strides = [1, 1]} : vector<2x256xf32> to vector<2x64xf32>
    %660 = arith.mulf %657, %621 : vector<2x64xf32>
    %661 = arith.mulf %656, %658 : vector<2x64xf32>
    %662 = arith.addf %660, %661 : vector<2x64xf32>
    %663 = math.tanh %662 : vector<2x64xf32>
    %664 = arith.mulf %659, %663 : vector<2x64xf32>
    %665 = vector.extract_strided_slice %664 {offsets = [0, 0], sizes = [2, 32], strides = [1, 1]} : vector<2x64xf32> to vector<2x32xf32>
    %666 = arith.index_cast %c7_i32_289 : i32 to index
    %c0_303 = arith.constant 0 : index
    %c0_304 = arith.constant 0 : index
    %667 = vector.load %arg9[%666, %c0_303, %c0_304] : memref<8x2x64xf32, #tpu.memory_space<vmem>>, vector<1x2x32xf32>
    %668 = vector.shape_cast %667 : vector<1x2x32xf32> to vector<2x32xf32>
    %669 = vector.shape_cast %665 : vector<2x32xf32> to vector<1x2x32xf32>
    tpu.vector_store %arg9[%666, %c0_303, %c0_304], %669 {strides = array<i32>} : memref<8x2x64xf32, #tpu.memory_space<vmem>>, vector<1x2x32xf32>,
    %670 = vector.extract_strided_slice %664 {offsets = [0, 32], sizes = [2, 32], strides = [1, 1]} : vector<2x64xf32> to vector<2x32xf32>
    %c7_i32_305 = arith.constant 7 : i32
    %671 = arith.subi %c7_i32_305, %c7_i32_289 : i32
    %672 = arith.index_cast %671 : i32 to index
    %c0_306 = arith.constant 0 : index
    %c32_307 = arith.constant 32 : index
    %673 = vector.load %arg9[%672, %c0_306, %c32_307] : memref<8x2x64xf32, #tpu.memory_space<vmem>>, vector<1x2x32xf32>
    %674 = vector.shape_cast %673 : vector<1x2x32xf32> to vector<2x32xf32>
    %675 = vector.shape_cast %670 : vector<2x32xf32> to vector<1x2x32xf32>
    tpu.vector_store %arg9[%672, %c0_306, %c32_307], %675 {strides = array<i32>} : memref<8x2x64xf32, #tpu.memory_space<vmem>>, vector<1x2x32xf32>,
    %c8_i32_308 = arith.constant 8 : i32
    %676 = vector.extract_strided_slice %664 {offsets = [0, 0], sizes = [2, 32], strides = [1, 1]} : vector<2x64xf32> to vector<2x32xf32>
    %c2 = arith.constant 2 : index
    %c0_309 = arith.constant 0 : index
    %c0_310 = arith.constant 0 : index
    %677 = vector.load %arg6[%c2, %c0_309, %c0_310] : memref<8x2x32xf32, #tpu.memory_space<vmem>>, vector<1x2x32xf32>
    %678 = vector.shape_cast %677 : vector<1x2x32xf32> to vector<2x32xf32>
    %679 = vector.shape_cast %676 : vector<2x32xf32> to vector<1x2x32xf32>
    tpu.vector_store %arg6[%c2, %c0_309, %c0_310], %679 {strides = array<i32>} : memref<8x2x32xf32, #tpu.memory_space<vmem>>, vector<1x2x32xf32>,
    %680 = vector.extract_strided_slice %664 {offsets = [0, 32], sizes = [2, 32], strides = [1, 1]} : vector<2x64xf32> to vector<2x32xf32>
    %c3 = arith.constant 3 : index
    %c0_311 = arith.constant 0 : index
    %c0_312 = arith.constant 0 : index
    %681 = vector.load %arg6[%c3, %c0_311, %c0_312] : memref<8x2x32xf32, #tpu.memory_space<vmem>>, vector<1x2x32xf32>
    %682 = vector.shape_cast %681 : vector<1x2x32xf32> to vector<2x32xf32>
    %683 = vector.shape_cast %680 : vector<2x32xf32> to vector<1x2x32xf32>
    tpu.vector_store %arg6[%c3, %c0_311, %c0_312], %683 {strides = array<i32>} : memref<8x2x32xf32, #tpu.memory_space<vmem>>, vector<1x2x32xf32>,
    %684 = vector.extract_strided_slice %662 {offsets = [0, 0], sizes = [2, 32], strides = [1, 1]} : vector<2x64xf32> to vector<2x32xf32>
    %c2_313 = arith.constant 2 : index
    %c0_314 = arith.constant 0 : index
    %c0_315 = arith.constant 0 : index
    %685 = vector.load %arg7[%c2_313, %c0_314, %c0_315] : memref<8x2x32xf32, #tpu.memory_space<vmem>>, vector<1x2x32xf32>
    %686 = vector.shape_cast %685 : vector<1x2x32xf32> to vector<2x32xf32>
    %687 = vector.shape_cast %684 : vector<2x32xf32> to vector<1x2x32xf32>
    tpu.vector_store %arg7[%c2_313, %c0_314, %c0_315], %687 {strides = array<i32>} : memref<8x2x32xf32, #tpu.memory_space<vmem>>, vector<1x2x32xf32>,
    %688 = vector.extract_strided_slice %662 {offsets = [0, 32], sizes = [2, 32], strides = [1, 1]} : vector<2x64xf32> to vector<2x32xf32>
    %c3_316 = arith.constant 3 : index
    %c0_317 = arith.constant 0 : index
    %c0_318 = arith.constant 0 : index
    %689 = vector.load %arg7[%c3_316, %c0_317, %c0_318] : memref<8x2x32xf32, #tpu.memory_space<vmem>>, vector<1x2x32xf32>
    %690 = vector.shape_cast %689 : vector<1x2x32xf32> to vector<2x32xf32>
    %691 = vector.shape_cast %688 : vector<2x32xf32> to vector<1x2x32xf32>
    tpu.vector_store %arg7[%c3_316, %c0_317, %c0_318], %691 {strides = array<i32>} : memref<8x2x32xf32, #tpu.memory_space<vmem>>, vector<1x2x32xf32>,
    %cst_319 = arith.constant 0.000000e+00 : f32
    %692 = vector.broadcast %cst_319 : f32 to vector<2x64xf32>
    %cst_320 = arith.constant 0.000000e+00 : f32
    %693 = vector.broadcast %cst_320 : f32 to vector<2x64xf32>
    %c0_i32_321 = arith.constant 0 : i32
    %694 = arith.index_cast %c0_i32_321 : i32 to index
    %c0_322 = arith.constant 0 : index
    %c0_323 = arith.constant 0 : index
    %695 = vector.load %arg9[%694, %c0_322, %c0_323] : memref<8x2x64xf32, #tpu.memory_space<vmem>>, vector<1x2x64xf32>
    %696 = vector.shape_cast %695 : vector<1x2x64xf32> to vector<2x64xf32>
    %c7_i32_324 = arith.constant 7 : i32
    %697 = arith.subi %c7_i32_324, %c0_i32_321 : i32
    %698 = arith.index_cast %697 : i32 to index
    %c0_325 = arith.constant 0 : index
    %c0_326 = arith.constant 0 : index
    %699 = vector.load %arg9[%698, %c0_325, %c0_326] : memref<8x2x64xf32, #tpu.memory_space<vmem>>, vector<1x2x64xf32>
    %700 = vector.shape_cast %699 : vector<1x2x64xf32> to vector<2x64xf32>
    %701 = tpu.concatenate %696, %700, %692 in 1 : vector<2x64xf32>, vector<2x64xf32>, vector<2x64xf32> -> vector<2x192xf32>
    %c2_327 = arith.constant 2 : index
    %c0_328 = arith.constant 0 : index
    %c0_329 = arith.constant 0 : index
    %702 = vector.load %arg1[%c2_327, %c0_328, %c0_329] : memref<4x192x256xf32, #tpu.memory_space<vmem>>, vector<1x192x256xf32>
    %703 = vector.shape_cast %702 : vector<1x192x256xf32> to vector<192x256xf32>
    %cst_330 = arith.constant dense<0.000000e+00> : vector<2x256xf32>
    %704 = tpu.matmul %701, %703, %cst_330 {dimension_numbers = #tpu.dot_dimension_numbers<[1], [0], [0], [1], [0, 0, 1, 1], [], []>} : vector<2x192xf32>, vector<192x256xf32>, vector<2x256xf32> -> vector<2x256xf32>
    %c2_331 = arith.constant 2 : index
    %c0_332 = arith.constant 0 : index
    %c0_333 = arith.constant 0 : index
    %705 = vector.load %arg2[%c2_331, %c0_332, %c0_333] : memref<4x1x256xf32, #tpu.memory_space<vmem>>, vector<1x1x256xf32>
    %706 = vector.shape_cast %705 : vector<1x1x256xf32> to vector<1x256xf32>
    %707 = vector.broadcast %706 : vector<1x256xf32> to vector<2x256xf32>
    %708 = arith.addf %704, %707 : vector<2x256xf32>
    %709 = arith.negf %708 : vector<2x256xf32>
    %710 = math.exp %709 : vector<2x256xf32>
    %cst_334 = arith.constant 1.000000e+00 : f32
    %711 = vector.broadcast %cst_334 : f32 to vector<2x256xf32>
    %712 = arith.addf %711, %710 : vector<2x256xf32>
    %713 = arith.divf %711, %712 : vector<2x256xf32>
    %714 = math.tanh %708 : vector<2x256xf32>
    %715 = vector.extract_strided_slice %713 {offsets = [0, 0], sizes = [2, 64], strides = [1, 1]} : vector<2x256xf32> to vector<2x64xf32>
    %716 = vector.extract_strided_slice %713 {offsets = [0, 64], sizes = [2, 64], strides = [1, 1]} : vector<2x256xf32> to vector<2x64xf32>
    %717 = vector.extract_strided_slice %714 {offsets = [0, 128], sizes = [2, 64], strides = [1, 1]} : vector<2x256xf32> to vector<2x64xf32>
    %718 = vector.extract_strided_slice %713 {offsets = [0, 192], sizes = [2, 64], strides = [1, 1]} : vector<2x256xf32> to vector<2x64xf32>
    %719 = arith.mulf %716, %693 : vector<2x64xf32>
    %720 = arith.mulf %715, %717 : vector<2x64xf32>
    %721 = arith.addf %719, %720 : vector<2x64xf32>
    %722 = math.tanh %721 : vector<2x64xf32>
    %723 = arith.mulf %718, %722 : vector<2x64xf32>
    %724 = vector.extract_strided_slice %723 {offsets = [0, 0], sizes = [2, 32], strides = [1, 1]} : vector<2x64xf32> to vector<2x32xf32>
    %725 = arith.index_cast %c0_i32_321 : i32 to index
    %c0_335 = arith.constant 0 : index
    %c0_336 = arith.constant 0 : index
    %726 = vector.load %arg8[%725, %c0_335, %c0_336] : memref<8x2x64xf32, #tpu.memory_space<vmem>>, vector<1x2x32xf32>
    %727 = vector.shape_cast %726 : vector<1x2x32xf32> to vector<2x32xf32>
    %728 = vector.shape_cast %724 : vector<2x32xf32> to vector<1x2x32xf32>
    tpu.vector_store %arg8[%725, %c0_335, %c0_336], %728 {strides = array<i32>} : memref<8x2x64xf32, #tpu.memory_space<vmem>>, vector<1x2x32xf32>,
    %729 = vector.extract_strided_slice %723 {offsets = [0, 32], sizes = [2, 32], strides = [1, 1]} : vector<2x64xf32> to vector<2x32xf32>
    %c7_i32_337 = arith.constant 7 : i32
    %730 = arith.subi %c7_i32_337, %c0_i32_321 : i32
    %731 = arith.index_cast %730 : i32 to index
    %c0_338 = arith.constant 0 : index
    %c32_339 = arith.constant 32 : index
    %732 = vector.load %arg8[%731, %c0_338, %c32_339] : memref<8x2x64xf32, #tpu.memory_space<vmem>>, vector<1x2x32xf32>
    %733 = vector.shape_cast %732 : vector<1x2x32xf32> to vector<2x32xf32>
    %734 = vector.shape_cast %729 : vector<2x32xf32> to vector<1x2x32xf32>
    tpu.vector_store %arg8[%731, %c0_338, %c32_339], %734 {strides = array<i32>} : memref<8x2x64xf32, #tpu.memory_space<vmem>>, vector<1x2x32xf32>,
    %c1_i32_340 = arith.constant 1 : i32
    %735 = arith.index_cast %c1_i32_340 : i32 to index
    %c0_341 = arith.constant 0 : index
    %c0_342 = arith.constant 0 : index
    %736 = vector.load %arg9[%735, %c0_341, %c0_342] : memref<8x2x64xf32, #tpu.memory_space<vmem>>, vector<1x2x64xf32>
    %737 = vector.shape_cast %736 : vector<1x2x64xf32> to vector<2x64xf32>
    %c7_i32_343 = arith.constant 7 : i32
    %738 = arith.subi %c7_i32_343, %c1_i32_340 : i32
    %739 = arith.index_cast %738 : i32 to index
    %c0_344 = arith.constant 0 : index
    %c0_345 = arith.constant 0 : index
    %740 = vector.load %arg9[%739, %c0_344, %c0_345] : memref<8x2x64xf32, #tpu.memory_space<vmem>>, vector<1x2x64xf32>
    %741 = vector.shape_cast %740 : vector<1x2x64xf32> to vector<2x64xf32>
    %742 = tpu.concatenate %737, %741, %723 in 1 : vector<2x64xf32>, vector<2x64xf32>, vector<2x64xf32> -> vector<2x192xf32>
    %c2_346 = arith.constant 2 : index
    %c0_347 = arith.constant 0 : index
    %c0_348 = arith.constant 0 : index
    %743 = vector.load %arg1[%c2_346, %c0_347, %c0_348] : memref<4x192x256xf32, #tpu.memory_space<vmem>>, vector<1x192x256xf32>
    %744 = vector.shape_cast %743 : vector<1x192x256xf32> to vector<192x256xf32>
    %cst_349 = arith.constant dense<0.000000e+00> : vector<2x256xf32>
    %745 = tpu.matmul %742, %744, %cst_349 {dimension_numbers = #tpu.dot_dimension_numbers<[1], [0], [0], [1], [0, 0, 1, 1], [], []>} : vector<2x192xf32>, vector<192x256xf32>, vector<2x256xf32> -> vector<2x256xf32>
    %c2_350 = arith.constant 2 : index
    %c0_351 = arith.constant 0 : index
    %c0_352 = arith.constant 0 : index
    %746 = vector.load %arg2[%c2_350, %c0_351, %c0_352] : memref<4x1x256xf32, #tpu.memory_space<vmem>>, vector<1x1x256xf32>
    %747 = vector.shape_cast %746 : vector<1x1x256xf32> to vector<1x256xf32>
    %748 = vector.broadcast %747 : vector<1x256xf32> to vector<2x256xf32>
    %749 = arith.addf %745, %748 : vector<2x256xf32>
    %750 = arith.negf %749 : vector<2x256xf32>
    %751 = math.exp %750 : vector<2x256xf32>
    %cst_353 = arith.constant 1.000000e+00 : f32
    %752 = vector.broadcast %cst_353 : f32 to vector<2x256xf32>
    %753 = arith.addf %752, %751 : vector<2x256xf32>
    %754 = arith.divf %752, %753 : vector<2x256xf32>
    %755 = math.tanh %749 : vector<2x256xf32>
    %756 = vector.extract_strided_slice %754 {offsets = [0, 0], sizes = [2, 64], strides = [1, 1]} : vector<2x256xf32> to vector<2x64xf32>
    %757 = vector.extract_strided_slice %754 {offsets = [0, 64], sizes = [2, 64], strides = [1, 1]} : vector<2x256xf32> to vector<2x64xf32>
    %758 = vector.extract_strided_slice %755 {offsets = [0, 128], sizes = [2, 64], strides = [1, 1]} : vector<2x256xf32> to vector<2x64xf32>
    %759 = vector.extract_strided_slice %754 {offsets = [0, 192], sizes = [2, 64], strides = [1, 1]} : vector<2x256xf32> to vector<2x64xf32>
    %760 = arith.mulf %757, %721 : vector<2x64xf32>
    %761 = arith.mulf %756, %758 : vector<2x64xf32>
    %762 = arith.addf %760, %761 : vector<2x64xf32>
    %763 = math.tanh %762 : vector<2x64xf32>
    %764 = arith.mulf %759, %763 : vector<2x64xf32>
    %765 = vector.extract_strided_slice %764 {offsets = [0, 0], sizes = [2, 32], strides = [1, 1]} : vector<2x64xf32> to vector<2x32xf32>
    %766 = arith.index_cast %c1_i32_340 : i32 to index
    %c0_354 = arith.constant 0 : index
    %c0_355 = arith.constant 0 : index
    %767 = vector.load %arg8[%766, %c0_354, %c0_355] : memref<8x2x64xf32, #tpu.memory_space<vmem>>, vector<1x2x32xf32>
    %768 = vector.shape_cast %767 : vector<1x2x32xf32> to vector<2x32xf32>
    %769 = vector.shape_cast %765 : vector<2x32xf32> to vector<1x2x32xf32>
    tpu.vector_store %arg8[%766, %c0_354, %c0_355], %769 {strides = array<i32>} : memref<8x2x64xf32, #tpu.memory_space<vmem>>, vector<1x2x32xf32>,
    %770 = vector.extract_strided_slice %764 {offsets = [0, 32], sizes = [2, 32], strides = [1, 1]} : vector<2x64xf32> to vector<2x32xf32>
    %c7_i32_356 = arith.constant 7 : i32
    %771 = arith.subi %c7_i32_356, %c1_i32_340 : i32
    %772 = arith.index_cast %771 : i32 to index
    %c0_357 = arith.constant 0 : index
    %c32_358 = arith.constant 32 : index
    %773 = vector.load %arg8[%772, %c0_357, %c32_358] : memref<8x2x64xf32, #tpu.memory_space<vmem>>, vector<1x2x32xf32>
    %774 = vector.shape_cast %773 : vector<1x2x32xf32> to vector<2x32xf32>
    %775 = vector.shape_cast %770 : vector<2x32xf32> to vector<1x2x32xf32>
    tpu.vector_store %arg8[%772, %c0_357, %c32_358], %775 {strides = array<i32>} : memref<8x2x64xf32, #tpu.memory_space<vmem>>, vector<1x2x32xf32>,
    %c2_i32_359 = arith.constant 2 : i32
    %776 = arith.index_cast %c2_i32_359 : i32 to index
    %c0_360 = arith.constant 0 : index
    %c0_361 = arith.constant 0 : index
    %777 = vector.load %arg9[%776, %c0_360, %c0_361] : memref<8x2x64xf32, #tpu.memory_space<vmem>>, vector<1x2x64xf32>
    %778 = vector.shape_cast %777 : vector<1x2x64xf32> to vector<2x64xf32>
    %c7_i32_362 = arith.constant 7 : i32
    %779 = arith.subi %c7_i32_362, %c2_i32_359 : i32
    %780 = arith.index_cast %779 : i32 to index
    %c0_363 = arith.constant 0 : index
    %c0_364 = arith.constant 0 : index
    %781 = vector.load %arg9[%780, %c0_363, %c0_364] : memref<8x2x64xf32, #tpu.memory_space<vmem>>, vector<1x2x64xf32>
    %782 = vector.shape_cast %781 : vector<1x2x64xf32> to vector<2x64xf32>
    %783 = tpu.concatenate %778, %782, %764 in 1 : vector<2x64xf32>, vector<2x64xf32>, vector<2x64xf32> -> vector<2x192xf32>
    %c2_365 = arith.constant 2 : index
    %c0_366 = arith.constant 0 : index
    %c0_367 = arith.constant 0 : index
    %784 = vector.load %arg1[%c2_365, %c0_366, %c0_367] : memref<4x192x256xf32, #tpu.memory_space<vmem>>, vector<1x192x256xf32>
    %785 = vector.shape_cast %784 : vector<1x192x256xf32> to vector<192x256xf32>
    %cst_368 = arith.constant dense<0.000000e+00> : vector<2x256xf32>
    %786 = tpu.matmul %783, %785, %cst_368 {dimension_numbers = #tpu.dot_dimension_numbers<[1], [0], [0], [1], [0, 0, 1, 1], [], []>} : vector<2x192xf32>, vector<192x256xf32>, vector<2x256xf32> -> vector<2x256xf32>
    %c2_369 = arith.constant 2 : index
    %c0_370 = arith.constant 0 : index
    %c0_371 = arith.constant 0 : index
    %787 = vector.load %arg2[%c2_369, %c0_370, %c0_371] : memref<4x1x256xf32, #tpu.memory_space<vmem>>, vector<1x1x256xf32>
    %788 = vector.shape_cast %787 : vector<1x1x256xf32> to vector<1x256xf32>
    %789 = vector.broadcast %788 : vector<1x256xf32> to vector<2x256xf32>
    %790 = arith.addf %786, %789 : vector<2x256xf32>
    %791 = arith.negf %790 : vector<2x256xf32>
    %792 = math.exp %791 : vector<2x256xf32>
    %cst_372 = arith.constant 1.000000e+00 : f32
    %793 = vector.broadcast %cst_372 : f32 to vector<2x256xf32>
    %794 = arith.addf %793, %792 : vector<2x256xf32>
    %795 = arith.divf %793, %794 : vector<2x256xf32>
    %796 = math.tanh %790 : vector<2x256xf32>
    %797 = vector.extract_strided_slice %795 {offsets = [0, 0], sizes = [2, 64], strides = [1, 1]} : vector<2x256xf32> to vector<2x64xf32>
    %798 = vector.extract_strided_slice %795 {offsets = [0, 64], sizes = [2, 64], strides = [1, 1]} : vector<2x256xf32> to vector<2x64xf32>
    %799 = vector.extract_strided_slice %796 {offsets = [0, 128], sizes = [2, 64], strides = [1, 1]} : vector<2x256xf32> to vector<2x64xf32>
    %800 = vector.extract_strided_slice %795 {offsets = [0, 192], sizes = [2, 64], strides = [1, 1]} : vector<2x256xf32> to vector<2x64xf32>
    %801 = arith.mulf %798, %762 : vector<2x64xf32>
    %802 = arith.mulf %797, %799 : vector<2x64xf32>
    %803 = arith.addf %801, %802 : vector<2x64xf32>
    %804 = math.tanh %803 : vector<2x64xf32>
    %805 = arith.mulf %800, %804 : vector<2x64xf32>
    %806 = vector.extract_strided_slice %805 {offsets = [0, 0], sizes = [2, 32], strides = [1, 1]} : vector<2x64xf32> to vector<2x32xf32>
    %807 = arith.index_cast %c2_i32_359 : i32 to index
    %c0_373 = arith.constant 0 : index
    %c0_374 = arith.constant 0 : index
    %808 = vector.load %arg8[%807, %c0_373, %c0_374] : memref<8x2x64xf32, #tpu.memory_space<vmem>>, vector<1x2x32xf32>
    %809 = vector.shape_cast %808 : vector<1x2x32xf32> to vector<2x32xf32>
    %810 = vector.shape_cast %806 : vector<2x32xf32> to vector<1x2x32xf32>
    tpu.vector_store %arg8[%807, %c0_373, %c0_374], %810 {strides = array<i32>} : memref<8x2x64xf32, #tpu.memory_space<vmem>>, vector<1x2x32xf32>,
    %811 = vector.extract_strided_slice %805 {offsets = [0, 32], sizes = [2, 32], strides = [1, 1]} : vector<2x64xf32> to vector<2x32xf32>
    %c7_i32_375 = arith.constant 7 : i32
    %812 = arith.subi %c7_i32_375, %c2_i32_359 : i32
    %813 = arith.index_cast %812 : i32 to index
    %c0_376 = arith.constant 0 : index
    %c32_377 = arith.constant 32 : index
    %814 = vector.load %arg8[%813, %c0_376, %c32_377] : memref<8x2x64xf32, #tpu.memory_space<vmem>>, vector<1x2x32xf32>
    %815 = vector.shape_cast %814 : vector<1x2x32xf32> to vector<2x32xf32>
    %816 = vector.shape_cast %811 : vector<2x32xf32> to vector<1x2x32xf32>
    tpu.vector_store %arg8[%813, %c0_376, %c32_377], %816 {strides = array<i32>} : memref<8x2x64xf32, #tpu.memory_space<vmem>>, vector<1x2x32xf32>,
    %c3_i32_378 = arith.constant 3 : i32
    %817 = arith.index_cast %c3_i32_378 : i32 to index
    %c0_379 = arith.constant 0 : index
    %c0_380 = arith.constant 0 : index
    %818 = vector.load %arg9[%817, %c0_379, %c0_380] : memref<8x2x64xf32, #tpu.memory_space<vmem>>, vector<1x2x64xf32>
    %819 = vector.shape_cast %818 : vector<1x2x64xf32> to vector<2x64xf32>
    %c7_i32_381 = arith.constant 7 : i32
    %820 = arith.subi %c7_i32_381, %c3_i32_378 : i32
    %821 = arith.index_cast %820 : i32 to index
    %c0_382 = arith.constant 0 : index
    %c0_383 = arith.constant 0 : index
    %822 = vector.load %arg9[%821, %c0_382, %c0_383] : memref<8x2x64xf32, #tpu.memory_space<vmem>>, vector<1x2x64xf32>
    %823 = vector.shape_cast %822 : vector<1x2x64xf32> to vector<2x64xf32>
    %824 = tpu.concatenate %819, %823, %805 in 1 : vector<2x64xf32>, vector<2x64xf32>, vector<2x64xf32> -> vector<2x192xf32>
    %c2_384 = arith.constant 2 : index
    %c0_385 = arith.constant 0 : index
    %c0_386 = arith.constant 0 : index
    %825 = vector.load %arg1[%c2_384, %c0_385, %c0_386] : memref<4x192x256xf32, #tpu.memory_space<vmem>>, vector<1x192x256xf32>
    %826 = vector.shape_cast %825 : vector<1x192x256xf32> to vector<192x256xf32>
    %cst_387 = arith.constant dense<0.000000e+00> : vector<2x256xf32>
    %827 = tpu.matmul %824, %826, %cst_387 {dimension_numbers = #tpu.dot_dimension_numbers<[1], [0], [0], [1], [0, 0, 1, 1], [], []>} : vector<2x192xf32>, vector<192x256xf32>, vector<2x256xf32> -> vector<2x256xf32>
    %c2_388 = arith.constant 2 : index
    %c0_389 = arith.constant 0 : index
    %c0_390 = arith.constant 0 : index
    %828 = vector.load %arg2[%c2_388, %c0_389, %c0_390] : memref<4x1x256xf32, #tpu.memory_space<vmem>>, vector<1x1x256xf32>
    %829 = vector.shape_cast %828 : vector<1x1x256xf32> to vector<1x256xf32>
    %830 = vector.broadcast %829 : vector<1x256xf32> to vector<2x256xf32>
    %831 = arith.addf %827, %830 : vector<2x256xf32>
    %832 = arith.negf %831 : vector<2x256xf32>
    %833 = math.exp %832 : vector<2x256xf32>
    %cst_391 = arith.constant 1.000000e+00 : f32
    %834 = vector.broadcast %cst_391 : f32 to vector<2x256xf32>
    %835 = arith.addf %834, %833 : vector<2x256xf32>
    %836 = arith.divf %834, %835 : vector<2x256xf32>
    %837 = math.tanh %831 : vector<2x256xf32>
    %838 = vector.extract_strided_slice %836 {offsets = [0, 0], sizes = [2, 64], strides = [1, 1]} : vector<2x256xf32> to vector<2x64xf32>
    %839 = vector.extract_strided_slice %836 {offsets = [0, 64], sizes = [2, 64], strides = [1, 1]} : vector<2x256xf32> to vector<2x64xf32>
    %840 = vector.extract_strided_slice %837 {offsets = [0, 128], sizes = [2, 64], strides = [1, 1]} : vector<2x256xf32> to vector<2x64xf32>
    %841 = vector.extract_strided_slice %836 {offsets = [0, 192], sizes = [2, 64], strides = [1, 1]} : vector<2x256xf32> to vector<2x64xf32>
    %842 = arith.mulf %839, %803 : vector<2x64xf32>
    %843 = arith.mulf %838, %840 : vector<2x64xf32>
    %844 = arith.addf %842, %843 : vector<2x64xf32>
    %845 = math.tanh %844 : vector<2x64xf32>
    %846 = arith.mulf %841, %845 : vector<2x64xf32>
    %847 = vector.extract_strided_slice %846 {offsets = [0, 0], sizes = [2, 32], strides = [1, 1]} : vector<2x64xf32> to vector<2x32xf32>
    %848 = arith.index_cast %c3_i32_378 : i32 to index
    %c0_392 = arith.constant 0 : index
    %c0_393 = arith.constant 0 : index
    %849 = vector.load %arg8[%848, %c0_392, %c0_393] : memref<8x2x64xf32, #tpu.memory_space<vmem>>, vector<1x2x32xf32>
    %850 = vector.shape_cast %849 : vector<1x2x32xf32> to vector<2x32xf32>
    %851 = vector.shape_cast %847 : vector<2x32xf32> to vector<1x2x32xf32>
    tpu.vector_store %arg8[%848, %c0_392, %c0_393], %851 {strides = array<i32>} : memref<8x2x64xf32, #tpu.memory_space<vmem>>, vector<1x2x32xf32>,
    %852 = vector.extract_strided_slice %846 {offsets = [0, 32], sizes = [2, 32], strides = [1, 1]} : vector<2x64xf32> to vector<2x32xf32>
    %c7_i32_394 = arith.constant 7 : i32
    %853 = arith.subi %c7_i32_394, %c3_i32_378 : i32
    %854 = arith.index_cast %853 : i32 to index
    %c0_395 = arith.constant 0 : index
    %c32_396 = arith.constant 32 : index
    %855 = vector.load %arg8[%854, %c0_395, %c32_396] : memref<8x2x64xf32, #tpu.memory_space<vmem>>, vector<1x2x32xf32>
    %856 = vector.shape_cast %855 : vector<1x2x32xf32> to vector<2x32xf32>
    %857 = vector.shape_cast %852 : vector<2x32xf32> to vector<1x2x32xf32>
    tpu.vector_store %arg8[%854, %c0_395, %c32_396], %857 {strides = array<i32>} : memref<8x2x64xf32, #tpu.memory_space<vmem>>, vector<1x2x32xf32>,
    %c4_i32_397 = arith.constant 4 : i32
    %858 = arith.index_cast %c4_i32_397 : i32 to index
    %c0_398 = arith.constant 0 : index
    %c0_399 = arith.constant 0 : index
    %859 = vector.load %arg9[%858, %c0_398, %c0_399] : memref<8x2x64xf32, #tpu.memory_space<vmem>>, vector<1x2x64xf32>
    %860 = vector.shape_cast %859 : vector<1x2x64xf32> to vector<2x64xf32>
    %c7_i32_400 = arith.constant 7 : i32
    %861 = arith.subi %c7_i32_400, %c4_i32_397 : i32
    %862 = arith.index_cast %861 : i32 to index
    %c0_401 = arith.constant 0 : index
    %c0_402 = arith.constant 0 : index
    %863 = vector.load %arg9[%862, %c0_401, %c0_402] : memref<8x2x64xf32, #tpu.memory_space<vmem>>, vector<1x2x64xf32>
    %864 = vector.shape_cast %863 : vector<1x2x64xf32> to vector<2x64xf32>
    %865 = tpu.concatenate %860, %864, %846 in 1 : vector<2x64xf32>, vector<2x64xf32>, vector<2x64xf32> -> vector<2x192xf32>
    %c2_403 = arith.constant 2 : index
    %c0_404 = arith.constant 0 : index
    %c0_405 = arith.constant 0 : index
    %866 = vector.load %arg1[%c2_403, %c0_404, %c0_405] : memref<4x192x256xf32, #tpu.memory_space<vmem>>, vector<1x192x256xf32>
    %867 = vector.shape_cast %866 : vector<1x192x256xf32> to vector<192x256xf32>
    %cst_406 = arith.constant dense<0.000000e+00> : vector<2x256xf32>
    %868 = tpu.matmul %865, %867, %cst_406 {dimension_numbers = #tpu.dot_dimension_numbers<[1], [0], [0], [1], [0, 0, 1, 1], [], []>} : vector<2x192xf32>, vector<192x256xf32>, vector<2x256xf32> -> vector<2x256xf32>
    %c2_407 = arith.constant 2 : index
    %c0_408 = arith.constant 0 : index
    %c0_409 = arith.constant 0 : index
    %869 = vector.load %arg2[%c2_407, %c0_408, %c0_409] : memref<4x1x256xf32, #tpu.memory_space<vmem>>, vector<1x1x256xf32>
    %870 = vector.shape_cast %869 : vector<1x1x256xf32> to vector<1x256xf32>
    %871 = vector.broadcast %870 : vector<1x256xf32> to vector<2x256xf32>
    %872 = arith.addf %868, %871 : vector<2x256xf32>
    %873 = arith.negf %872 : vector<2x256xf32>
    %874 = math.exp %873 : vector<2x256xf32>
    %cst_410 = arith.constant 1.000000e+00 : f32
    %875 = vector.broadcast %cst_410 : f32 to vector<2x256xf32>
    %876 = arith.addf %875, %874 : vector<2x256xf32>
    %877 = arith.divf %875, %876 : vector<2x256xf32>
    %878 = math.tanh %872 : vector<2x256xf32>
    %879 = vector.extract_strided_slice %877 {offsets = [0, 0], sizes = [2, 64], strides = [1, 1]} : vector<2x256xf32> to vector<2x64xf32>
    %880 = vector.extract_strided_slice %877 {offsets = [0, 64], sizes = [2, 64], strides = [1, 1]} : vector<2x256xf32> to vector<2x64xf32>
    %881 = vector.extract_strided_slice %878 {offsets = [0, 128], sizes = [2, 64], strides = [1, 1]} : vector<2x256xf32> to vector<2x64xf32>
    %882 = vector.extract_strided_slice %877 {offsets = [0, 192], sizes = [2, 64], strides = [1, 1]} : vector<2x256xf32> to vector<2x64xf32>
    %883 = arith.mulf %880, %844 : vector<2x64xf32>
    %884 = arith.mulf %879, %881 : vector<2x64xf32>
    %885 = arith.addf %883, %884 : vector<2x64xf32>
    %886 = math.tanh %885 : vector<2x64xf32>
    %887 = arith.mulf %882, %886 : vector<2x64xf32>
    %888 = vector.extract_strided_slice %887 {offsets = [0, 0], sizes = [2, 32], strides = [1, 1]} : vector<2x64xf32> to vector<2x32xf32>
    %889 = arith.index_cast %c4_i32_397 : i32 to index
    %c0_411 = arith.constant 0 : index
    %c0_412 = arith.constant 0 : index
    %890 = vector.load %arg8[%889, %c0_411, %c0_412] : memref<8x2x64xf32, #tpu.memory_space<vmem>>, vector<1x2x32xf32>
    %891 = vector.shape_cast %890 : vector<1x2x32xf32> to vector<2x32xf32>
    %892 = vector.shape_cast %888 : vector<2x32xf32> to vector<1x2x32xf32>
    tpu.vector_store %arg8[%889, %c0_411, %c0_412], %892 {strides = array<i32>} : memref<8x2x64xf32, #tpu.memory_space<vmem>>, vector<1x2x32xf32>,
    %893 = vector.extract_strided_slice %887 {offsets = [0, 32], sizes = [2, 32], strides = [1, 1]} : vector<2x64xf32> to vector<2x32xf32>
    %c7_i32_413 = arith.constant 7 : i32
    %894 = arith.subi %c7_i32_413, %c4_i32_397 : i32
    %895 = arith.index_cast %894 : i32 to index
    %c0_414 = arith.constant 0 : index
    %c32_415 = arith.constant 32 : index
    %896 = vector.load %arg8[%895, %c0_414, %c32_415] : memref<8x2x64xf32, #tpu.memory_space<vmem>>, vector<1x2x32xf32>
    %897 = vector.shape_cast %896 : vector<1x2x32xf32> to vector<2x32xf32>
    %898 = vector.shape_cast %893 : vector<2x32xf32> to vector<1x2x32xf32>
    tpu.vector_store %arg8[%895, %c0_414, %c32_415], %898 {strides = array<i32>} : memref<8x2x64xf32, #tpu.memory_space<vmem>>, vector<1x2x32xf32>,
    %c5_i32_416 = arith.constant 5 : i32
    %899 = arith.index_cast %c5_i32_416 : i32 to index
    %c0_417 = arith.constant 0 : index
    %c0_418 = arith.constant 0 : index
    %900 = vector.load %arg9[%899, %c0_417, %c0_418] : memref<8x2x64xf32, #tpu.memory_space<vmem>>, vector<1x2x64xf32>
    %901 = vector.shape_cast %900 : vector<1x2x64xf32> to vector<2x64xf32>
    %c7_i32_419 = arith.constant 7 : i32
    %902 = arith.subi %c7_i32_419, %c5_i32_416 : i32
    %903 = arith.index_cast %902 : i32 to index
    %c0_420 = arith.constant 0 : index
    %c0_421 = arith.constant 0 : index
    %904 = vector.load %arg9[%903, %c0_420, %c0_421] : memref<8x2x64xf32, #tpu.memory_space<vmem>>, vector<1x2x64xf32>
    %905 = vector.shape_cast %904 : vector<1x2x64xf32> to vector<2x64xf32>
    %906 = tpu.concatenate %901, %905, %887 in 1 : vector<2x64xf32>, vector<2x64xf32>, vector<2x64xf32> -> vector<2x192xf32>
    %c2_422 = arith.constant 2 : index
    %c0_423 = arith.constant 0 : index
    %c0_424 = arith.constant 0 : index
    %907 = vector.load %arg1[%c2_422, %c0_423, %c0_424] : memref<4x192x256xf32, #tpu.memory_space<vmem>>, vector<1x192x256xf32>
    %908 = vector.shape_cast %907 : vector<1x192x256xf32> to vector<192x256xf32>
    %cst_425 = arith.constant dense<0.000000e+00> : vector<2x256xf32>
    %909 = tpu.matmul %906, %908, %cst_425 {dimension_numbers = #tpu.dot_dimension_numbers<[1], [0], [0], [1], [0, 0, 1, 1], [], []>} : vector<2x192xf32>, vector<192x256xf32>, vector<2x256xf32> -> vector<2x256xf32>
    %c2_426 = arith.constant 2 : index
    %c0_427 = arith.constant 0 : index
    %c0_428 = arith.constant 0 : index
    %910 = vector.load %arg2[%c2_426, %c0_427, %c0_428] : memref<4x1x256xf32, #tpu.memory_space<vmem>>, vector<1x1x256xf32>
    %911 = vector.shape_cast %910 : vector<1x1x256xf32> to vector<1x256xf32>
    %912 = vector.broadcast %911 : vector<1x256xf32> to vector<2x256xf32>
    %913 = arith.addf %909, %912 : vector<2x256xf32>
    %914 = arith.negf %913 : vector<2x256xf32>
    %915 = math.exp %914 : vector<2x256xf32>
    %cst_429 = arith.constant 1.000000e+00 : f32
    %916 = vector.broadcast %cst_429 : f32 to vector<2x256xf32>
    %917 = arith.addf %916, %915 : vector<2x256xf32>
    %918 = arith.divf %916, %917 : vector<2x256xf32>
    %919 = math.tanh %913 : vector<2x256xf32>
    %920 = vector.extract_strided_slice %918 {offsets = [0, 0], sizes = [2, 64], strides = [1, 1]} : vector<2x256xf32> to vector<2x64xf32>
    %921 = vector.extract_strided_slice %918 {offsets = [0, 64], sizes = [2, 64], strides = [1, 1]} : vector<2x256xf32> to vector<2x64xf32>
    %922 = vector.extract_strided_slice %919 {offsets = [0, 128], sizes = [2, 64], strides = [1, 1]} : vector<2x256xf32> to vector<2x64xf32>
    %923 = vector.extract_strided_slice %918 {offsets = [0, 192], sizes = [2, 64], strides = [1, 1]} : vector<2x256xf32> to vector<2x64xf32>
    %924 = arith.mulf %921, %885 : vector<2x64xf32>
    %925 = arith.mulf %920, %922 : vector<2x64xf32>
    %926 = arith.addf %924, %925 : vector<2x64xf32>
    %927 = math.tanh %926 : vector<2x64xf32>
    %928 = arith.mulf %923, %927 : vector<2x64xf32>
    %929 = vector.extract_strided_slice %928 {offsets = [0, 0], sizes = [2, 32], strides = [1, 1]} : vector<2x64xf32> to vector<2x32xf32>
    %930 = arith.index_cast %c5_i32_416 : i32 to index
    %c0_430 = arith.constant 0 : index
    %c0_431 = arith.constant 0 : index
    %931 = vector.load %arg8[%930, %c0_430, %c0_431] : memref<8x2x64xf32, #tpu.memory_space<vmem>>, vector<1x2x32xf32>
    %932 = vector.shape_cast %931 : vector<1x2x32xf32> to vector<2x32xf32>
    %933 = vector.shape_cast %929 : vector<2x32xf32> to vector<1x2x32xf32>
    tpu.vector_store %arg8[%930, %c0_430, %c0_431], %933 {strides = array<i32>} : memref<8x2x64xf32, #tpu.memory_space<vmem>>, vector<1x2x32xf32>,
    %934 = vector.extract_strided_slice %928 {offsets = [0, 32], sizes = [2, 32], strides = [1, 1]} : vector<2x64xf32> to vector<2x32xf32>
    %c7_i32_432 = arith.constant 7 : i32
    %935 = arith.subi %c7_i32_432, %c5_i32_416 : i32
    %936 = arith.index_cast %935 : i32 to index
    %c0_433 = arith.constant 0 : index
    %c32_434 = arith.constant 32 : index
    %937 = vector.load %arg8[%936, %c0_433, %c32_434] : memref<8x2x64xf32, #tpu.memory_space<vmem>>, vector<1x2x32xf32>
    %938 = vector.shape_cast %937 : vector<1x2x32xf32> to vector<2x32xf32>
    %939 = vector.shape_cast %934 : vector<2x32xf32> to vector<1x2x32xf32>
    tpu.vector_store %arg8[%936, %c0_433, %c32_434], %939 {strides = array<i32>} : memref<8x2x64xf32, #tpu.memory_space<vmem>>, vector<1x2x32xf32>,
    %c6_i32_435 = arith.constant 6 : i32
    %940 = arith.index_cast %c6_i32_435 : i32 to index
    %c0_436 = arith.constant 0 : index
    %c0_437 = arith.constant 0 : index
    %941 = vector.load %arg9[%940, %c0_436, %c0_437] : memref<8x2x64xf32, #tpu.memory_space<vmem>>, vector<1x2x64xf32>
    %942 = vector.shape_cast %941 : vector<1x2x64xf32> to vector<2x64xf32>
    %c7_i32_438 = arith.constant 7 : i32
    %943 = arith.subi %c7_i32_438, %c6_i32_435 : i32
    %944 = arith.index_cast %943 : i32 to index
    %c0_439 = arith.constant 0 : index
    %c0_440 = arith.constant 0 : index
    %945 = vector.load %arg9[%944, %c0_439, %c0_440] : memref<8x2x64xf32, #tpu.memory_space<vmem>>, vector<1x2x64xf32>
    %946 = vector.shape_cast %945 : vector<1x2x64xf32> to vector<2x64xf32>
    %947 = tpu.concatenate %942, %946, %928 in 1 : vector<2x64xf32>, vector<2x64xf32>, vector<2x64xf32> -> vector<2x192xf32>
    %c2_441 = arith.constant 2 : index
    %c0_442 = arith.constant 0 : index
    %c0_443 = arith.constant 0 : index
    %948 = vector.load %arg1[%c2_441, %c0_442, %c0_443] : memref<4x192x256xf32, #tpu.memory_space<vmem>>, vector<1x192x256xf32>
    %949 = vector.shape_cast %948 : vector<1x192x256xf32> to vector<192x256xf32>
    %cst_444 = arith.constant dense<0.000000e+00> : vector<2x256xf32>
    %950 = tpu.matmul %947, %949, %cst_444 {dimension_numbers = #tpu.dot_dimension_numbers<[1], [0], [0], [1], [0, 0, 1, 1], [], []>} : vector<2x192xf32>, vector<192x256xf32>, vector<2x256xf32> -> vector<2x256xf32>
    %c2_445 = arith.constant 2 : index
    %c0_446 = arith.constant 0 : index
    %c0_447 = arith.constant 0 : index
    %951 = vector.load %arg2[%c2_445, %c0_446, %c0_447] : memref<4x1x256xf32, #tpu.memory_space<vmem>>, vector<1x1x256xf32>
    %952 = vector.shape_cast %951 : vector<1x1x256xf32> to vector<1x256xf32>
    %953 = vector.broadcast %952 : vector<1x256xf32> to vector<2x256xf32>
    %954 = arith.addf %950, %953 : vector<2x256xf32>
    %955 = arith.negf %954 : vector<2x256xf32>
    %956 = math.exp %955 : vector<2x256xf32>
    %cst_448 = arith.constant 1.000000e+00 : f32
    %957 = vector.broadcast %cst_448 : f32 to vector<2x256xf32>
    %958 = arith.addf %957, %956 : vector<2x256xf32>
    %959 = arith.divf %957, %958 : vector<2x256xf32>
    %960 = math.tanh %954 : vector<2x256xf32>
    %961 = vector.extract_strided_slice %959 {offsets = [0, 0], sizes = [2, 64], strides = [1, 1]} : vector<2x256xf32> to vector<2x64xf32>
    %962 = vector.extract_strided_slice %959 {offsets = [0, 64], sizes = [2, 64], strides = [1, 1]} : vector<2x256xf32> to vector<2x64xf32>
    %963 = vector.extract_strided_slice %960 {offsets = [0, 128], sizes = [2, 64], strides = [1, 1]} : vector<2x256xf32> to vector<2x64xf32>
    %964 = vector.extract_strided_slice %959 {offsets = [0, 192], sizes = [2, 64], strides = [1, 1]} : vector<2x256xf32> to vector<2x64xf32>
    %965 = arith.mulf %962, %926 : vector<2x64xf32>
    %966 = arith.mulf %961, %963 : vector<2x64xf32>
    %967 = arith.addf %965, %966 : vector<2x64xf32>
    %968 = math.tanh %967 : vector<2x64xf32>
    %969 = arith.mulf %964, %968 : vector<2x64xf32>
    %970 = vector.extract_strided_slice %969 {offsets = [0, 0], sizes = [2, 32], strides = [1, 1]} : vector<2x64xf32> to vector<2x32xf32>
    %971 = arith.index_cast %c6_i32_435 : i32 to index
    %c0_449 = arith.constant 0 : index
    %c0_450 = arith.constant 0 : index
    %972 = vector.load %arg8[%971, %c0_449, %c0_450] : memref<8x2x64xf32, #tpu.memory_space<vmem>>, vector<1x2x32xf32>
    %973 = vector.shape_cast %972 : vector<1x2x32xf32> to vector<2x32xf32>
    %974 = vector.shape_cast %970 : vector<2x32xf32> to vector<1x2x32xf32>
    tpu.vector_store %arg8[%971, %c0_449, %c0_450], %974 {strides = array<i32>} : memref<8x2x64xf32, #tpu.memory_space<vmem>>, vector<1x2x32xf32>,
    %975 = vector.extract_strided_slice %969 {offsets = [0, 32], sizes = [2, 32], strides = [1, 1]} : vector<2x64xf32> to vector<2x32xf32>
    %c7_i32_451 = arith.constant 7 : i32
    %976 = arith.subi %c7_i32_451, %c6_i32_435 : i32
    %977 = arith.index_cast %976 : i32 to index
    %c0_452 = arith.constant 0 : index
    %c32_453 = arith.constant 32 : index
    %978 = vector.load %arg8[%977, %c0_452, %c32_453] : memref<8x2x64xf32, #tpu.memory_space<vmem>>, vector<1x2x32xf32>
    %979 = vector.shape_cast %978 : vector<1x2x32xf32> to vector<2x32xf32>
    %980 = vector.shape_cast %975 : vector<2x32xf32> to vector<1x2x32xf32>
    tpu.vector_store %arg8[%977, %c0_452, %c32_453], %980 {strides = array<i32>} : memref<8x2x64xf32, #tpu.memory_space<vmem>>, vector<1x2x32xf32>,
    %c7_i32_454 = arith.constant 7 : i32
    %981 = arith.index_cast %c7_i32_454 : i32 to index
    %c0_455 = arith.constant 0 : index
    %c0_456 = arith.constant 0 : index
    %982 = vector.load %arg9[%981, %c0_455, %c0_456] : memref<8x2x64xf32, #tpu.memory_space<vmem>>, vector<1x2x64xf32>
    %983 = vector.shape_cast %982 : vector<1x2x64xf32> to vector<2x64xf32>
    %c7_i32_457 = arith.constant 7 : i32
    %984 = arith.subi %c7_i32_457, %c7_i32_454 : i32
    %985 = arith.index_cast %984 : i32 to index
    %c0_458 = arith.constant 0 : index
    %c0_459 = arith.constant 0 : index
    %986 = vector.load %arg9[%985, %c0_458, %c0_459] : memref<8x2x64xf32, #tpu.memory_space<vmem>>, vector<1x2x64xf32>
    %987 = vector.shape_cast %986 : vector<1x2x64xf32> to vector<2x64xf32>
    %988 = tpu.concatenate %983, %987, %969 in 1 : vector<2x64xf32>, vector<2x64xf32>, vector<2x64xf32> -> vector<2x192xf32>
    %c2_460 = arith.constant 2 : index
    %c0_461 = arith.constant 0 : index
    %c0_462 = arith.constant 0 : index
    %989 = vector.load %arg1[%c2_460, %c0_461, %c0_462] : memref<4x192x256xf32, #tpu.memory_space<vmem>>, vector<1x192x256xf32>
    %990 = vector.shape_cast %989 : vector<1x192x256xf32> to vector<192x256xf32>
    %cst_463 = arith.constant dense<0.000000e+00> : vector<2x256xf32>
    %991 = tpu.matmul %988, %990, %cst_463 {dimension_numbers = #tpu.dot_dimension_numbers<[1], [0], [0], [1], [0, 0, 1, 1], [], []>} : vector<2x192xf32>, vector<192x256xf32>, vector<2x256xf32> -> vector<2x256xf32>
    %c2_464 = arith.constant 2 : index
    %c0_465 = arith.constant 0 : index
    %c0_466 = arith.constant 0 : index
    %992 = vector.load %arg2[%c2_464, %c0_465, %c0_466] : memref<4x1x256xf32, #tpu.memory_space<vmem>>, vector<1x1x256xf32>
    %993 = vector.shape_cast %992 : vector<1x1x256xf32> to vector<1x256xf32>
    %994 = vector.broadcast %993 : vector<1x256xf32> to vector<2x256xf32>
    %995 = arith.addf %991, %994 : vector<2x256xf32>
    %996 = arith.negf %995 : vector<2x256xf32>
    %997 = math.exp %996 : vector<2x256xf32>
    %cst_467 = arith.constant 1.000000e+00 : f32
    %998 = vector.broadcast %cst_467 : f32 to vector<2x256xf32>
    %999 = arith.addf %998, %997 : vector<2x256xf32>
    %1000 = arith.divf %998, %999 : vector<2x256xf32>
    %1001 = math.tanh %995 : vector<2x256xf32>
    %1002 = vector.extract_strided_slice %1000 {offsets = [0, 0], sizes = [2, 64], strides = [1, 1]} : vector<2x256xf32> to vector<2x64xf32>
    %1003 = vector.extract_strided_slice %1000 {offsets = [0, 64], sizes = [2, 64], strides = [1, 1]} : vector<2x256xf32> to vector<2x64xf32>
    %1004 = vector.extract_strided_slice %1001 {offsets = [0, 128], sizes = [2, 64], strides = [1, 1]} : vector<2x256xf32> to vector<2x64xf32>
    %1005 = vector.extract_strided_slice %1000 {offsets = [0, 192], sizes = [2, 64], strides = [1, 1]} : vector<2x256xf32> to vector<2x64xf32>
    %1006 = arith.mulf %1003, %967 : vector<2x64xf32>
    %1007 = arith.mulf %1002, %1004 : vector<2x64xf32>
    %1008 = arith.addf %1006, %1007 : vector<2x64xf32>
    %1009 = math.tanh %1008 : vector<2x64xf32>
    %1010 = arith.mulf %1005, %1009 : vector<2x64xf32>
    %1011 = vector.extract_strided_slice %1010 {offsets = [0, 0], sizes = [2, 32], strides = [1, 1]} : vector<2x64xf32> to vector<2x32xf32>
    %1012 = arith.index_cast %c7_i32_454 : i32 to index
    %c0_468 = arith.constant 0 : index
    %c0_469 = arith.constant 0 : index
    %1013 = vector.load %arg8[%1012, %c0_468, %c0_469] : memref<8x2x64xf32, #tpu.memory_space<vmem>>, vector<1x2x32xf32>
    %1014 = vector.shape_cast %1013 : vector<1x2x32xf32> to vector<2x32xf32>
    %1015 = vector.shape_cast %1011 : vector<2x32xf32> to vector<1x2x32xf32>
    tpu.vector_store %arg8[%1012, %c0_468, %c0_469], %1015 {strides = array<i32>} : memref<8x2x64xf32, #tpu.memory_space<vmem>>, vector<1x2x32xf32>,
    %1016 = vector.extract_strided_slice %1010 {offsets = [0, 32], sizes = [2, 32], strides = [1, 1]} : vector<2x64xf32> to vector<2x32xf32>
    %c7_i32_470 = arith.constant 7 : i32
    %1017 = arith.subi %c7_i32_470, %c7_i32_454 : i32
    %1018 = arith.index_cast %1017 : i32 to index
    %c0_471 = arith.constant 0 : index
    %c32_472 = arith.constant 32 : index
    %1019 = vector.load %arg8[%1018, %c0_471, %c32_472] : memref<8x2x64xf32, #tpu.memory_space<vmem>>, vector<1x2x32xf32>
    %1020 = vector.shape_cast %1019 : vector<1x2x32xf32> to vector<2x32xf32>
    %1021 = vector.shape_cast %1016 : vector<2x32xf32> to vector<1x2x32xf32>
    tpu.vector_store %arg8[%1018, %c0_471, %c32_472], %1021 {strides = array<i32>} : memref<8x2x64xf32, #tpu.memory_space<vmem>>, vector<1x2x32xf32>,
    %c8_i32_473 = arith.constant 8 : i32
    %1022 = vector.extract_strided_slice %1010 {offsets = [0, 0], sizes = [2, 32], strides = [1, 1]} : vector<2x64xf32> to vector<2x32xf32>
    %c4 = arith.constant 4 : index
    %c0_474 = arith.constant 0 : index
    %c0_475 = arith.constant 0 : index
    %1023 = vector.load %arg6[%c4, %c0_474, %c0_475] : memref<8x2x32xf32, #tpu.memory_space<vmem>>, vector<1x2x32xf32>
    %1024 = vector.shape_cast %1023 : vector<1x2x32xf32> to vector<2x32xf32>
    %1025 = vector.shape_cast %1022 : vector<2x32xf32> to vector<1x2x32xf32>
    tpu.vector_store %arg6[%c4, %c0_474, %c0_475], %1025 {strides = array<i32>} : memref<8x2x32xf32, #tpu.memory_space<vmem>>, vector<1x2x32xf32>,
    %1026 = vector.extract_strided_slice %1010 {offsets = [0, 32], sizes = [2, 32], strides = [1, 1]} : vector<2x64xf32> to vector<2x32xf32>
    %c5 = arith.constant 5 : index
    %c0_476 = arith.constant 0 : index
    %c0_477 = arith.constant 0 : index
    %1027 = vector.load %arg6[%c5, %c0_476, %c0_477] : memref<8x2x32xf32, #tpu.memory_space<vmem>>, vector<1x2x32xf32>
    %1028 = vector.shape_cast %1027 : vector<1x2x32xf32> to vector<2x32xf32>
    %1029 = vector.shape_cast %1026 : vector<2x32xf32> to vector<1x2x32xf32>
    tpu.vector_store %arg6[%c5, %c0_476, %c0_477], %1029 {strides = array<i32>} : memref<8x2x32xf32, #tpu.memory_space<vmem>>, vector<1x2x32xf32>,
    %1030 = vector.extract_strided_slice %1008 {offsets = [0, 0], sizes = [2, 32], strides = [1, 1]} : vector<2x64xf32> to vector<2x32xf32>
    %c4_478 = arith.constant 4 : index
    %c0_479 = arith.constant 0 : index
    %c0_480 = arith.constant 0 : index
    %1031 = vector.load %arg7[%c4_478, %c0_479, %c0_480] : memref<8x2x32xf32, #tpu.memory_space<vmem>>, vector<1x2x32xf32>
    %1032 = vector.shape_cast %1031 : vector<1x2x32xf32> to vector<2x32xf32>
    %1033 = vector.shape_cast %1030 : vector<2x32xf32> to vector<1x2x32xf32>
    tpu.vector_store %arg7[%c4_478, %c0_479, %c0_480], %1033 {strides = array<i32>} : memref<8x2x32xf32, #tpu.memory_space<vmem>>, vector<1x2x32xf32>,
    %1034 = vector.extract_strided_slice %1008 {offsets = [0, 32], sizes = [2, 32], strides = [1, 1]} : vector<2x64xf32> to vector<2x32xf32>
    %c5_481 = arith.constant 5 : index
    %c0_482 = arith.constant 0 : index
    %c0_483 = arith.constant 0 : index
    %1035 = vector.load %arg7[%c5_481, %c0_482, %c0_483] : memref<8x2x32xf32, #tpu.memory_space<vmem>>, vector<1x2x32xf32>
    %1036 = vector.shape_cast %1035 : vector<1x2x32xf32> to vector<2x32xf32>
    %1037 = vector.shape_cast %1034 : vector<2x32xf32> to vector<1x2x32xf32>
    tpu.vector_store %arg7[%c5_481, %c0_482, %c0_483], %1037 {strides = array<i32>} : memref<8x2x32xf32, #tpu.memory_space<vmem>>, vector<1x2x32xf32>,
    %cst_484 = arith.constant 0.000000e+00 : f32
    %1038 = vector.broadcast %cst_484 : f32 to vector<2x64xf32>
    %cst_485 = arith.constant 0.000000e+00 : f32
    %1039 = vector.broadcast %cst_485 : f32 to vector<2x64xf32>
    %c0_i32_486 = arith.constant 0 : i32
    %1040 = arith.index_cast %c0_i32_486 : i32 to index
    %c0_487 = arith.constant 0 : index
    %c0_488 = arith.constant 0 : index
    %1041 = vector.load %arg8[%1040, %c0_487, %c0_488] : memref<8x2x64xf32, #tpu.memory_space<vmem>>, vector<1x2x64xf32>
    %1042 = vector.shape_cast %1041 : vector<1x2x64xf32> to vector<2x64xf32>
    %c7_i32_489 = arith.constant 7 : i32
    %1043 = arith.subi %c7_i32_489, %c0_i32_486 : i32
    %1044 = arith.index_cast %1043 : i32 to index
    %c0_490 = arith.constant 0 : index
    %c0_491 = arith.constant 0 : index
    %1045 = vector.load %arg8[%1044, %c0_490, %c0_491] : memref<8x2x64xf32, #tpu.memory_space<vmem>>, vector<1x2x64xf32>
    %1046 = vector.shape_cast %1045 : vector<1x2x64xf32> to vector<2x64xf32>
    %1047 = tpu.concatenate %1042, %1046, %1038 in 1 : vector<2x64xf32>, vector<2x64xf32>, vector<2x64xf32> -> vector<2x192xf32>
    %c3_492 = arith.constant 3 : index
    %c0_493 = arith.constant 0 : index
    %c0_494 = arith.constant 0 : index
    %1048 = vector.load %arg1[%c3_492, %c0_493, %c0_494] : memref<4x192x256xf32, #tpu.memory_space<vmem>>, vector<1x192x256xf32>
    %1049 = vector.shape_cast %1048 : vector<1x192x256xf32> to vector<192x256xf32>
    %cst_495 = arith.constant dense<0.000000e+00> : vector<2x256xf32>
    %1050 = tpu.matmul %1047, %1049, %cst_495 {dimension_numbers = #tpu.dot_dimension_numbers<[1], [0], [0], [1], [0, 0, 1, 1], [], []>} : vector<2x192xf32>, vector<192x256xf32>, vector<2x256xf32> -> vector<2x256xf32>
    %c3_496 = arith.constant 3 : index
    %c0_497 = arith.constant 0 : index
    %c0_498 = arith.constant 0 : index
    %1051 = vector.load %arg2[%c3_496, %c0_497, %c0_498] : memref<4x1x256xf32, #tpu.memory_space<vmem>>, vector<1x1x256xf32>
    %1052 = vector.shape_cast %1051 : vector<1x1x256xf32> to vector<1x256xf32>
    %1053 = vector.broadcast %1052 : vector<1x256xf32> to vector<2x256xf32>
    %1054 = arith.addf %1050, %1053 : vector<2x256xf32>
    %1055 = arith.negf %1054 : vector<2x256xf32>
    %1056 = math.exp %1055 : vector<2x256xf32>
    %cst_499 = arith.constant 1.000000e+00 : f32
    %1057 = vector.broadcast %cst_499 : f32 to vector<2x256xf32>
    %1058 = arith.addf %1057, %1056 : vector<2x256xf32>
    %1059 = arith.divf %1057, %1058 : vector<2x256xf32>
    %1060 = math.tanh %1054 : vector<2x256xf32>
    %1061 = vector.extract_strided_slice %1059 {offsets = [0, 0], sizes = [2, 64], strides = [1, 1]} : vector<2x256xf32> to vector<2x64xf32>
    %1062 = vector.extract_strided_slice %1059 {offsets = [0, 64], sizes = [2, 64], strides = [1, 1]} : vector<2x256xf32> to vector<2x64xf32>
    %1063 = vector.extract_strided_slice %1060 {offsets = [0, 128], sizes = [2, 64], strides = [1, 1]} : vector<2x256xf32> to vector<2x64xf32>
    %1064 = vector.extract_strided_slice %1059 {offsets = [0, 192], sizes = [2, 64], strides = [1, 1]} : vector<2x256xf32> to vector<2x64xf32>
    %1065 = arith.mulf %1062, %1039 : vector<2x64xf32>
    %1066 = arith.mulf %1061, %1063 : vector<2x64xf32>
    %1067 = arith.addf %1065, %1066 : vector<2x64xf32>
    %1068 = math.tanh %1067 : vector<2x64xf32>
    %1069 = arith.mulf %1064, %1068 : vector<2x64xf32>
    %1070 = vector.extract_strided_slice %1069 {offsets = [0, 0], sizes = [2, 32], strides = [1, 1]} : vector<2x64xf32> to vector<2x32xf32>
    %1071 = arith.index_cast %c0_i32_486 : i32 to index
    %c0_500 = arith.constant 0 : index
    %c0_501 = arith.constant 0 : index
    %1072 = vector.load %arg9[%1071, %c0_500, %c0_501] : memref<8x2x64xf32, #tpu.memory_space<vmem>>, vector<1x2x32xf32>
    %1073 = vector.shape_cast %1072 : vector<1x2x32xf32> to vector<2x32xf32>
    %1074 = vector.shape_cast %1070 : vector<2x32xf32> to vector<1x2x32xf32>
    tpu.vector_store %arg9[%1071, %c0_500, %c0_501], %1074 {strides = array<i32>} : memref<8x2x64xf32, #tpu.memory_space<vmem>>, vector<1x2x32xf32>,
    %1075 = vector.extract_strided_slice %1069 {offsets = [0, 32], sizes = [2, 32], strides = [1, 1]} : vector<2x64xf32> to vector<2x32xf32>
    %c7_i32_502 = arith.constant 7 : i32
    %1076 = arith.subi %c7_i32_502, %c0_i32_486 : i32
    %1077 = arith.index_cast %1076 : i32 to index
    %c0_503 = arith.constant 0 : index
    %c32_504 = arith.constant 32 : index
    %1078 = vector.load %arg9[%1077, %c0_503, %c32_504] : memref<8x2x64xf32, #tpu.memory_space<vmem>>, vector<1x2x32xf32>
    %1079 = vector.shape_cast %1078 : vector<1x2x32xf32> to vector<2x32xf32>
    %1080 = vector.shape_cast %1075 : vector<2x32xf32> to vector<1x2x32xf32>
    tpu.vector_store %arg9[%1077, %c0_503, %c32_504], %1080 {strides = array<i32>} : memref<8x2x64xf32, #tpu.memory_space<vmem>>, vector<1x2x32xf32>,
    %c1_i32_505 = arith.constant 1 : i32
    %1081 = arith.index_cast %c1_i32_505 : i32 to index
    %c0_506 = arith.constant 0 : index
    %c0_507 = arith.constant 0 : index
    %1082 = vector.load %arg8[%1081, %c0_506, %c0_507] : memref<8x2x64xf32, #tpu.memory_space<vmem>>, vector<1x2x64xf32>
    %1083 = vector.shape_cast %1082 : vector<1x2x64xf32> to vector<2x64xf32>
    %c7_i32_508 = arith.constant 7 : i32
    %1084 = arith.subi %c7_i32_508, %c1_i32_505 : i32
    %1085 = arith.index_cast %1084 : i32 to index
    %c0_509 = arith.constant 0 : index
    %c0_510 = arith.constant 0 : index
    %1086 = vector.load %arg8[%1085, %c0_509, %c0_510] : memref<8x2x64xf32, #tpu.memory_space<vmem>>, vector<1x2x64xf32>
    %1087 = vector.shape_cast %1086 : vector<1x2x64xf32> to vector<2x64xf32>
    %1088 = tpu.concatenate %1083, %1087, %1069 in 1 : vector<2x64xf32>, vector<2x64xf32>, vector<2x64xf32> -> vector<2x192xf32>
    %c3_511 = arith.constant 3 : index
    %c0_512 = arith.constant 0 : index
    %c0_513 = arith.constant 0 : index
    %1089 = vector.load %arg1[%c3_511, %c0_512, %c0_513] : memref<4x192x256xf32, #tpu.memory_space<vmem>>, vector<1x192x256xf32>
    %1090 = vector.shape_cast %1089 : vector<1x192x256xf32> to vector<192x256xf32>
    %cst_514 = arith.constant dense<0.000000e+00> : vector<2x256xf32>
    %1091 = tpu.matmul %1088, %1090, %cst_514 {dimension_numbers = #tpu.dot_dimension_numbers<[1], [0], [0], [1], [0, 0, 1, 1], [], []>} : vector<2x192xf32>, vector<192x256xf32>, vector<2x256xf32> -> vector<2x256xf32>
    %c3_515 = arith.constant 3 : index
    %c0_516 = arith.constant 0 : index
    %c0_517 = arith.constant 0 : index
    %1092 = vector.load %arg2[%c3_515, %c0_516, %c0_517] : memref<4x1x256xf32, #tpu.memory_space<vmem>>, vector<1x1x256xf32>
    %1093 = vector.shape_cast %1092 : vector<1x1x256xf32> to vector<1x256xf32>
    %1094 = vector.broadcast %1093 : vector<1x256xf32> to vector<2x256xf32>
    %1095 = arith.addf %1091, %1094 : vector<2x256xf32>
    %1096 = arith.negf %1095 : vector<2x256xf32>
    %1097 = math.exp %1096 : vector<2x256xf32>
    %cst_518 = arith.constant 1.000000e+00 : f32
    %1098 = vector.broadcast %cst_518 : f32 to vector<2x256xf32>
    %1099 = arith.addf %1098, %1097 : vector<2x256xf32>
    %1100 = arith.divf %1098, %1099 : vector<2x256xf32>
    %1101 = math.tanh %1095 : vector<2x256xf32>
    %1102 = vector.extract_strided_slice %1100 {offsets = [0, 0], sizes = [2, 64], strides = [1, 1]} : vector<2x256xf32> to vector<2x64xf32>
    %1103 = vector.extract_strided_slice %1100 {offsets = [0, 64], sizes = [2, 64], strides = [1, 1]} : vector<2x256xf32> to vector<2x64xf32>
    %1104 = vector.extract_strided_slice %1101 {offsets = [0, 128], sizes = [2, 64], strides = [1, 1]} : vector<2x256xf32> to vector<2x64xf32>
    %1105 = vector.extract_strided_slice %1100 {offsets = [0, 192], sizes = [2, 64], strides = [1, 1]} : vector<2x256xf32> to vector<2x64xf32>
    %1106 = arith.mulf %1103, %1067 : vector<2x64xf32>
    %1107 = arith.mulf %1102, %1104 : vector<2x64xf32>
    %1108 = arith.addf %1106, %1107 : vector<2x64xf32>
    %1109 = math.tanh %1108 : vector<2x64xf32>
    %1110 = arith.mulf %1105, %1109 : vector<2x64xf32>
    %1111 = vector.extract_strided_slice %1110 {offsets = [0, 0], sizes = [2, 32], strides = [1, 1]} : vector<2x64xf32> to vector<2x32xf32>
    %1112 = arith.index_cast %c1_i32_505 : i32 to index
    %c0_519 = arith.constant 0 : index
    %c0_520 = arith.constant 0 : index
    %1113 = vector.load %arg9[%1112, %c0_519, %c0_520] : memref<8x2x64xf32, #tpu.memory_space<vmem>>, vector<1x2x32xf32>
    %1114 = vector.shape_cast %1113 : vector<1x2x32xf32> to vector<2x32xf32>
    %1115 = vector.shape_cast %1111 : vector<2x32xf32> to vector<1x2x32xf32>
    tpu.vector_store %arg9[%1112, %c0_519, %c0_520], %1115 {strides = array<i32>} : memref<8x2x64xf32, #tpu.memory_space<vmem>>, vector<1x2x32xf32>,
    %1116 = vector.extract_strided_slice %1110 {offsets = [0, 32], sizes = [2, 32], strides = [1, 1]} : vector<2x64xf32> to vector<2x32xf32>
    %c7_i32_521 = arith.constant 7 : i32
    %1117 = arith.subi %c7_i32_521, %c1_i32_505 : i32
    %1118 = arith.index_cast %1117 : i32 to index
    %c0_522 = arith.constant 0 : index
    %c32_523 = arith.constant 32 : index
    %1119 = vector.load %arg9[%1118, %c0_522, %c32_523] : memref<8x2x64xf32, #tpu.memory_space<vmem>>, vector<1x2x32xf32>
    %1120 = vector.shape_cast %1119 : vector<1x2x32xf32> to vector<2x32xf32>
    %1121 = vector.shape_cast %1116 : vector<2x32xf32> to vector<1x2x32xf32>
    tpu.vector_store %arg9[%1118, %c0_522, %c32_523], %1121 {strides = array<i32>} : memref<8x2x64xf32, #tpu.memory_space<vmem>>, vector<1x2x32xf32>,
    %c2_i32_524 = arith.constant 2 : i32
    %1122 = arith.index_cast %c2_i32_524 : i32 to index
    %c0_525 = arith.constant 0 : index
    %c0_526 = arith.constant 0 : index
    %1123 = vector.load %arg8[%1122, %c0_525, %c0_526] : memref<8x2x64xf32, #tpu.memory_space<vmem>>, vector<1x2x64xf32>
    %1124 = vector.shape_cast %1123 : vector<1x2x64xf32> to vector<2x64xf32>
    %c7_i32_527 = arith.constant 7 : i32
    %1125 = arith.subi %c7_i32_527, %c2_i32_524 : i32
    %1126 = arith.index_cast %1125 : i32 to index
    %c0_528 = arith.constant 0 : index
    %c0_529 = arith.constant 0 : index
    %1127 = vector.load %arg8[%1126, %c0_528, %c0_529] : memref<8x2x64xf32, #tpu.memory_space<vmem>>, vector<1x2x64xf32>
    %1128 = vector.shape_cast %1127 : vector<1x2x64xf32> to vector<2x64xf32>
    %1129 = tpu.concatenate %1124, %1128, %1110 in 1 : vector<2x64xf32>, vector<2x64xf32>, vector<2x64xf32> -> vector<2x192xf32>
    %c3_530 = arith.constant 3 : index
    %c0_531 = arith.constant 0 : index
    %c0_532 = arith.constant 0 : index
    %1130 = vector.load %arg1[%c3_530, %c0_531, %c0_532] : memref<4x192x256xf32, #tpu.memory_space<vmem>>, vector<1x192x256xf32>
    %1131 = vector.shape_cast %1130 : vector<1x192x256xf32> to vector<192x256xf32>
    %cst_533 = arith.constant dense<0.000000e+00> : vector<2x256xf32>
    %1132 = tpu.matmul %1129, %1131, %cst_533 {dimension_numbers = #tpu.dot_dimension_numbers<[1], [0], [0], [1], [0, 0, 1, 1], [], []>} : vector<2x192xf32>, vector<192x256xf32>, vector<2x256xf32> -> vector<2x256xf32>
    %c3_534 = arith.constant 3 : index
    %c0_535 = arith.constant 0 : index
    %c0_536 = arith.constant 0 : index
    %1133 = vector.load %arg2[%c3_534, %c0_535, %c0_536] : memref<4x1x256xf32, #tpu.memory_space<vmem>>, vector<1x1x256xf32>
    %1134 = vector.shape_cast %1133 : vector<1x1x256xf32> to vector<1x256xf32>
    %1135 = vector.broadcast %1134 : vector<1x256xf32> to vector<2x256xf32>
    %1136 = arith.addf %1132, %1135 : vector<2x256xf32>
    %1137 = arith.negf %1136 : vector<2x256xf32>
    %1138 = math.exp %1137 : vector<2x256xf32>
    %cst_537 = arith.constant 1.000000e+00 : f32
    %1139 = vector.broadcast %cst_537 : f32 to vector<2x256xf32>
    %1140 = arith.addf %1139, %1138 : vector<2x256xf32>
    %1141 = arith.divf %1139, %1140 : vector<2x256xf32>
    %1142 = math.tanh %1136 : vector<2x256xf32>
    %1143 = vector.extract_strided_slice %1141 {offsets = [0, 0], sizes = [2, 64], strides = [1, 1]} : vector<2x256xf32> to vector<2x64xf32>
    %1144 = vector.extract_strided_slice %1141 {offsets = [0, 64], sizes = [2, 64], strides = [1, 1]} : vector<2x256xf32> to vector<2x64xf32>
    %1145 = vector.extract_strided_slice %1142 {offsets = [0, 128], sizes = [2, 64], strides = [1, 1]} : vector<2x256xf32> to vector<2x64xf32>
    %1146 = vector.extract_strided_slice %1141 {offsets = [0, 192], sizes = [2, 64], strides = [1, 1]} : vector<2x256xf32> to vector<2x64xf32>
    %1147 = arith.mulf %1144, %1108 : vector<2x64xf32>
    %1148 = arith.mulf %1143, %1145 : vector<2x64xf32>
    %1149 = arith.addf %1147, %1148 : vector<2x64xf32>
    %1150 = math.tanh %1149 : vector<2x64xf32>
    %1151 = arith.mulf %1146, %1150 : vector<2x64xf32>
    %1152 = vector.extract_strided_slice %1151 {offsets = [0, 0], sizes = [2, 32], strides = [1, 1]} : vector<2x64xf32> to vector<2x32xf32>
    %1153 = arith.index_cast %c2_i32_524 : i32 to index
    %c0_538 = arith.constant 0 : index
    %c0_539 = arith.constant 0 : index
    %1154 = vector.load %arg9[%1153, %c0_538, %c0_539] : memref<8x2x64xf32, #tpu.memory_space<vmem>>, vector<1x2x32xf32>
    %1155 = vector.shape_cast %1154 : vector<1x2x32xf32> to vector<2x32xf32>
    %1156 = vector.shape_cast %1152 : vector<2x32xf32> to vector<1x2x32xf32>
    tpu.vector_store %arg9[%1153, %c0_538, %c0_539], %1156 {strides = array<i32>} : memref<8x2x64xf32, #tpu.memory_space<vmem>>, vector<1x2x32xf32>,
    %1157 = vector.extract_strided_slice %1151 {offsets = [0, 32], sizes = [2, 32], strides = [1, 1]} : vector<2x64xf32> to vector<2x32xf32>
    %c7_i32_540 = arith.constant 7 : i32
    %1158 = arith.subi %c7_i32_540, %c2_i32_524 : i32
    %1159 = arith.index_cast %1158 : i32 to index
    %c0_541 = arith.constant 0 : index
    %c32_542 = arith.constant 32 : index
    %1160 = vector.load %arg9[%1159, %c0_541, %c32_542] : memref<8x2x64xf32, #tpu.memory_space<vmem>>, vector<1x2x32xf32>
    %1161 = vector.shape_cast %1160 : vector<1x2x32xf32> to vector<2x32xf32>
    %1162 = vector.shape_cast %1157 : vector<2x32xf32> to vector<1x2x32xf32>
    tpu.vector_store %arg9[%1159, %c0_541, %c32_542], %1162 {strides = array<i32>} : memref<8x2x64xf32, #tpu.memory_space<vmem>>, vector<1x2x32xf32>,
    %c3_i32_543 = arith.constant 3 : i32
    %1163 = arith.index_cast %c3_i32_543 : i32 to index
    %c0_544 = arith.constant 0 : index
    %c0_545 = arith.constant 0 : index
    %1164 = vector.load %arg8[%1163, %c0_544, %c0_545] : memref<8x2x64xf32, #tpu.memory_space<vmem>>, vector<1x2x64xf32>
    %1165 = vector.shape_cast %1164 : vector<1x2x64xf32> to vector<2x64xf32>
    %c7_i32_546 = arith.constant 7 : i32
    %1166 = arith.subi %c7_i32_546, %c3_i32_543 : i32
    %1167 = arith.index_cast %1166 : i32 to index
    %c0_547 = arith.constant 0 : index
    %c0_548 = arith.constant 0 : index
    %1168 = vector.load %arg8[%1167, %c0_547, %c0_548] : memref<8x2x64xf32, #tpu.memory_space<vmem>>, vector<1x2x64xf32>
    %1169 = vector.shape_cast %1168 : vector<1x2x64xf32> to vector<2x64xf32>
    %1170 = tpu.concatenate %1165, %1169, %1151 in 1 : vector<2x64xf32>, vector<2x64xf32>, vector<2x64xf32> -> vector<2x192xf32>
    %c3_549 = arith.constant 3 : index
    %c0_550 = arith.constant 0 : index
    %c0_551 = arith.constant 0 : index
    %1171 = vector.load %arg1[%c3_549, %c0_550, %c0_551] : memref<4x192x256xf32, #tpu.memory_space<vmem>>, vector<1x192x256xf32>
    %1172 = vector.shape_cast %1171 : vector<1x192x256xf32> to vector<192x256xf32>
    %cst_552 = arith.constant dense<0.000000e+00> : vector<2x256xf32>
    %1173 = tpu.matmul %1170, %1172, %cst_552 {dimension_numbers = #tpu.dot_dimension_numbers<[1], [0], [0], [1], [0, 0, 1, 1], [], []>} : vector<2x192xf32>, vector<192x256xf32>, vector<2x256xf32> -> vector<2x256xf32>
    %c3_553 = arith.constant 3 : index
    %c0_554 = arith.constant 0 : index
    %c0_555 = arith.constant 0 : index
    %1174 = vector.load %arg2[%c3_553, %c0_554, %c0_555] : memref<4x1x256xf32, #tpu.memory_space<vmem>>, vector<1x1x256xf32>
    %1175 = vector.shape_cast %1174 : vector<1x1x256xf32> to vector<1x256xf32>
    %1176 = vector.broadcast %1175 : vector<1x256xf32> to vector<2x256xf32>
    %1177 = arith.addf %1173, %1176 : vector<2x256xf32>
    %1178 = arith.negf %1177 : vector<2x256xf32>
    %1179 = math.exp %1178 : vector<2x256xf32>
    %cst_556 = arith.constant 1.000000e+00 : f32
    %1180 = vector.broadcast %cst_556 : f32 to vector<2x256xf32>
    %1181 = arith.addf %1180, %1179 : vector<2x256xf32>
    %1182 = arith.divf %1180, %1181 : vector<2x256xf32>
    %1183 = math.tanh %1177 : vector<2x256xf32>
    %1184 = vector.extract_strided_slice %1182 {offsets = [0, 0], sizes = [2, 64], strides = [1, 1]} : vector<2x256xf32> to vector<2x64xf32>
    %1185 = vector.extract_strided_slice %1182 {offsets = [0, 64], sizes = [2, 64], strides = [1, 1]} : vector<2x256xf32> to vector<2x64xf32>
    %1186 = vector.extract_strided_slice %1183 {offsets = [0, 128], sizes = [2, 64], strides = [1, 1]} : vector<2x256xf32> to vector<2x64xf32>
    %1187 = vector.extract_strided_slice %1182 {offsets = [0, 192], sizes = [2, 64], strides = [1, 1]} : vector<2x256xf32> to vector<2x64xf32>
    %1188 = arith.mulf %1185, %1149 : vector<2x64xf32>
    %1189 = arith.mulf %1184, %1186 : vector<2x64xf32>
    %1190 = arith.addf %1188, %1189 : vector<2x64xf32>
    %1191 = math.tanh %1190 : vector<2x64xf32>
    %1192 = arith.mulf %1187, %1191 : vector<2x64xf32>
    %1193 = vector.extract_strided_slice %1192 {offsets = [0, 0], sizes = [2, 32], strides = [1, 1]} : vector<2x64xf32> to vector<2x32xf32>
    %1194 = arith.index_cast %c3_i32_543 : i32 to index
    %c0_557 = arith.constant 0 : index
    %c0_558 = arith.constant 0 : index
    %1195 = vector.load %arg9[%1194, %c0_557, %c0_558] : memref<8x2x64xf32, #tpu.memory_space<vmem>>, vector<1x2x32xf32>
    %1196 = vector.shape_cast %1195 : vector<1x2x32xf32> to vector<2x32xf32>
    %1197 = vector.shape_cast %1193 : vector<2x32xf32> to vector<1x2x32xf32>
    tpu.vector_store %arg9[%1194, %c0_557, %c0_558], %1197 {strides = array<i32>} : memref<8x2x64xf32, #tpu.memory_space<vmem>>, vector<1x2x32xf32>,
    %1198 = vector.extract_strided_slice %1192 {offsets = [0, 32], sizes = [2, 32], strides = [1, 1]} : vector<2x64xf32> to vector<2x32xf32>
    %c7_i32_559 = arith.constant 7 : i32
    %1199 = arith.subi %c7_i32_559, %c3_i32_543 : i32
    %1200 = arith.index_cast %1199 : i32 to index
    %c0_560 = arith.constant 0 : index
    %c32_561 = arith.constant 32 : index
    %1201 = vector.load %arg9[%1200, %c0_560, %c32_561] : memref<8x2x64xf32, #tpu.memory_space<vmem>>, vector<1x2x32xf32>
    %1202 = vector.shape_cast %1201 : vector<1x2x32xf32> to vector<2x32xf32>
    %1203 = vector.shape_cast %1198 : vector<2x32xf32> to vector<1x2x32xf32>
    tpu.vector_store %arg9[%1200, %c0_560, %c32_561], %1203 {strides = array<i32>} : memref<8x2x64xf32, #tpu.memory_space<vmem>>, vector<1x2x32xf32>,
    %c4_i32_562 = arith.constant 4 : i32
    %1204 = arith.index_cast %c4_i32_562 : i32 to index
    %c0_563 = arith.constant 0 : index
    %c0_564 = arith.constant 0 : index
    %1205 = vector.load %arg8[%1204, %c0_563, %c0_564] : memref<8x2x64xf32, #tpu.memory_space<vmem>>, vector<1x2x64xf32>
    %1206 = vector.shape_cast %1205 : vector<1x2x64xf32> to vector<2x64xf32>
    %c7_i32_565 = arith.constant 7 : i32
    %1207 = arith.subi %c7_i32_565, %c4_i32_562 : i32
    %1208 = arith.index_cast %1207 : i32 to index
    %c0_566 = arith.constant 0 : index
    %c0_567 = arith.constant 0 : index
    %1209 = vector.load %arg8[%1208, %c0_566, %c0_567] : memref<8x2x64xf32, #tpu.memory_space<vmem>>, vector<1x2x64xf32>
    %1210 = vector.shape_cast %1209 : vector<1x2x64xf32> to vector<2x64xf32>
    %1211 = tpu.concatenate %1206, %1210, %1192 in 1 : vector<2x64xf32>, vector<2x64xf32>, vector<2x64xf32> -> vector<2x192xf32>
    %c3_568 = arith.constant 3 : index
    %c0_569 = arith.constant 0 : index
    %c0_570 = arith.constant 0 : index
    %1212 = vector.load %arg1[%c3_568, %c0_569, %c0_570] : memref<4x192x256xf32, #tpu.memory_space<vmem>>, vector<1x192x256xf32>
    %1213 = vector.shape_cast %1212 : vector<1x192x256xf32> to vector<192x256xf32>
    %cst_571 = arith.constant dense<0.000000e+00> : vector<2x256xf32>
    %1214 = tpu.matmul %1211, %1213, %cst_571 {dimension_numbers = #tpu.dot_dimension_numbers<[1], [0], [0], [1], [0, 0, 1, 1], [], []>} : vector<2x192xf32>, vector<192x256xf32>, vector<2x256xf32> -> vector<2x256xf32>
    %c3_572 = arith.constant 3 : index
    %c0_573 = arith.constant 0 : index
    %c0_574 = arith.constant 0 : index
    %1215 = vector.load %arg2[%c3_572, %c0_573, %c0_574] : memref<4x1x256xf32, #tpu.memory_space<vmem>>, vector<1x1x256xf32>
    %1216 = vector.shape_cast %1215 : vector<1x1x256xf32> to vector<1x256xf32>
    %1217 = vector.broadcast %1216 : vector<1x256xf32> to vector<2x256xf32>
    %1218 = arith.addf %1214, %1217 : vector<2x256xf32>
    %1219 = arith.negf %1218 : vector<2x256xf32>
    %1220 = math.exp %1219 : vector<2x256xf32>
    %cst_575 = arith.constant 1.000000e+00 : f32
    %1221 = vector.broadcast %cst_575 : f32 to vector<2x256xf32>
    %1222 = arith.addf %1221, %1220 : vector<2x256xf32>
    %1223 = arith.divf %1221, %1222 : vector<2x256xf32>
    %1224 = math.tanh %1218 : vector<2x256xf32>
    %1225 = vector.extract_strided_slice %1223 {offsets = [0, 0], sizes = [2, 64], strides = [1, 1]} : vector<2x256xf32> to vector<2x64xf32>
    %1226 = vector.extract_strided_slice %1223 {offsets = [0, 64], sizes = [2, 64], strides = [1, 1]} : vector<2x256xf32> to vector<2x64xf32>
    %1227 = vector.extract_strided_slice %1224 {offsets = [0, 128], sizes = [2, 64], strides = [1, 1]} : vector<2x256xf32> to vector<2x64xf32>
    %1228 = vector.extract_strided_slice %1223 {offsets = [0, 192], sizes = [2, 64], strides = [1, 1]} : vector<2x256xf32> to vector<2x64xf32>
    %1229 = arith.mulf %1226, %1190 : vector<2x64xf32>
    %1230 = arith.mulf %1225, %1227 : vector<2x64xf32>
    %1231 = arith.addf %1229, %1230 : vector<2x64xf32>
    %1232 = math.tanh %1231 : vector<2x64xf32>
    %1233 = arith.mulf %1228, %1232 : vector<2x64xf32>
    %1234 = vector.extract_strided_slice %1233 {offsets = [0, 0], sizes = [2, 32], strides = [1, 1]} : vector<2x64xf32> to vector<2x32xf32>
    %1235 = arith.index_cast %c4_i32_562 : i32 to index
    %c0_576 = arith.constant 0 : index
    %c0_577 = arith.constant 0 : index
    %1236 = vector.load %arg9[%1235, %c0_576, %c0_577] : memref<8x2x64xf32, #tpu.memory_space<vmem>>, vector<1x2x32xf32>
    %1237 = vector.shape_cast %1236 : vector<1x2x32xf32> to vector<2x32xf32>
    %1238 = vector.shape_cast %1234 : vector<2x32xf32> to vector<1x2x32xf32>
    tpu.vector_store %arg9[%1235, %c0_576, %c0_577], %1238 {strides = array<i32>} : memref<8x2x64xf32, #tpu.memory_space<vmem>>, vector<1x2x32xf32>,
    %1239 = vector.extract_strided_slice %1233 {offsets = [0, 32], sizes = [2, 32], strides = [1, 1]} : vector<2x64xf32> to vector<2x32xf32>
    %c7_i32_578 = arith.constant 7 : i32
    %1240 = arith.subi %c7_i32_578, %c4_i32_562 : i32
    %1241 = arith.index_cast %1240 : i32 to index
    %c0_579 = arith.constant 0 : index
    %c32_580 = arith.constant 32 : index
    %1242 = vector.load %arg9[%1241, %c0_579, %c32_580] : memref<8x2x64xf32, #tpu.memory_space<vmem>>, vector<1x2x32xf32>
    %1243 = vector.shape_cast %1242 : vector<1x2x32xf32> to vector<2x32xf32>
    %1244 = vector.shape_cast %1239 : vector<2x32xf32> to vector<1x2x32xf32>
    tpu.vector_store %arg9[%1241, %c0_579, %c32_580], %1244 {strides = array<i32>} : memref<8x2x64xf32, #tpu.memory_space<vmem>>, vector<1x2x32xf32>,
    %c5_i32_581 = arith.constant 5 : i32
    %1245 = arith.index_cast %c5_i32_581 : i32 to index
    %c0_582 = arith.constant 0 : index
    %c0_583 = arith.constant 0 : index
    %1246 = vector.load %arg8[%1245, %c0_582, %c0_583] : memref<8x2x64xf32, #tpu.memory_space<vmem>>, vector<1x2x64xf32>
    %1247 = vector.shape_cast %1246 : vector<1x2x64xf32> to vector<2x64xf32>
    %c7_i32_584 = arith.constant 7 : i32
    %1248 = arith.subi %c7_i32_584, %c5_i32_581 : i32
    %1249 = arith.index_cast %1248 : i32 to index
    %c0_585 = arith.constant 0 : index
    %c0_586 = arith.constant 0 : index
    %1250 = vector.load %arg8[%1249, %c0_585, %c0_586] : memref<8x2x64xf32, #tpu.memory_space<vmem>>, vector<1x2x64xf32>
    %1251 = vector.shape_cast %1250 : vector<1x2x64xf32> to vector<2x64xf32>
    %1252 = tpu.concatenate %1247, %1251, %1233 in 1 : vector<2x64xf32>, vector<2x64xf32>, vector<2x64xf32> -> vector<2x192xf32>
    %c3_587 = arith.constant 3 : index
    %c0_588 = arith.constant 0 : index
    %c0_589 = arith.constant 0 : index
    %1253 = vector.load %arg1[%c3_587, %c0_588, %c0_589] : memref<4x192x256xf32, #tpu.memory_space<vmem>>, vector<1x192x256xf32>
    %1254 = vector.shape_cast %1253 : vector<1x192x256xf32> to vector<192x256xf32>
    %cst_590 = arith.constant dense<0.000000e+00> : vector<2x256xf32>
    %1255 = tpu.matmul %1252, %1254, %cst_590 {dimension_numbers = #tpu.dot_dimension_numbers<[1], [0], [0], [1], [0, 0, 1, 1], [], []>} : vector<2x192xf32>, vector<192x256xf32>, vector<2x256xf32> -> vector<2x256xf32>
    %c3_591 = arith.constant 3 : index
    %c0_592 = arith.constant 0 : index
    %c0_593 = arith.constant 0 : index
    %1256 = vector.load %arg2[%c3_591, %c0_592, %c0_593] : memref<4x1x256xf32, #tpu.memory_space<vmem>>, vector<1x1x256xf32>
    %1257 = vector.shape_cast %1256 : vector<1x1x256xf32> to vector<1x256xf32>
    %1258 = vector.broadcast %1257 : vector<1x256xf32> to vector<2x256xf32>
    %1259 = arith.addf %1255, %1258 : vector<2x256xf32>
    %1260 = arith.negf %1259 : vector<2x256xf32>
    %1261 = math.exp %1260 : vector<2x256xf32>
    %cst_594 = arith.constant 1.000000e+00 : f32
    %1262 = vector.broadcast %cst_594 : f32 to vector<2x256xf32>
    %1263 = arith.addf %1262, %1261 : vector<2x256xf32>
    %1264 = arith.divf %1262, %1263 : vector<2x256xf32>
    %1265 = math.tanh %1259 : vector<2x256xf32>
    %1266 = vector.extract_strided_slice %1264 {offsets = [0, 0], sizes = [2, 64], strides = [1, 1]} : vector<2x256xf32> to vector<2x64xf32>
    %1267 = vector.extract_strided_slice %1264 {offsets = [0, 64], sizes = [2, 64], strides = [1, 1]} : vector<2x256xf32> to vector<2x64xf32>
    %1268 = vector.extract_strided_slice %1265 {offsets = [0, 128], sizes = [2, 64], strides = [1, 1]} : vector<2x256xf32> to vector<2x64xf32>
    %1269 = vector.extract_strided_slice %1264 {offsets = [0, 192], sizes = [2, 64], strides = [1, 1]} : vector<2x256xf32> to vector<2x64xf32>
    %1270 = arith.mulf %1267, %1231 : vector<2x64xf32>
    %1271 = arith.mulf %1266, %1268 : vector<2x64xf32>
    %1272 = arith.addf %1270, %1271 : vector<2x64xf32>
    %1273 = math.tanh %1272 : vector<2x64xf32>
    %1274 = arith.mulf %1269, %1273 : vector<2x64xf32>
    %1275 = vector.extract_strided_slice %1274 {offsets = [0, 0], sizes = [2, 32], strides = [1, 1]} : vector<2x64xf32> to vector<2x32xf32>
    %1276 = arith.index_cast %c5_i32_581 : i32 to index
    %c0_595 = arith.constant 0 : index
    %c0_596 = arith.constant 0 : index
    %1277 = vector.load %arg9[%1276, %c0_595, %c0_596] : memref<8x2x64xf32, #tpu.memory_space<vmem>>, vector<1x2x32xf32>
    %1278 = vector.shape_cast %1277 : vector<1x2x32xf32> to vector<2x32xf32>
    %1279 = vector.shape_cast %1275 : vector<2x32xf32> to vector<1x2x32xf32>
    tpu.vector_store %arg9[%1276, %c0_595, %c0_596], %1279 {strides = array<i32>} : memref<8x2x64xf32, #tpu.memory_space<vmem>>, vector<1x2x32xf32>,
    %1280 = vector.extract_strided_slice %1274 {offsets = [0, 32], sizes = [2, 32], strides = [1, 1]} : vector<2x64xf32> to vector<2x32xf32>
    %c7_i32_597 = arith.constant 7 : i32
    %1281 = arith.subi %c7_i32_597, %c5_i32_581 : i32
    %1282 = arith.index_cast %1281 : i32 to index
    %c0_598 = arith.constant 0 : index
    %c32_599 = arith.constant 32 : index
    %1283 = vector.load %arg9[%1282, %c0_598, %c32_599] : memref<8x2x64xf32, #tpu.memory_space<vmem>>, vector<1x2x32xf32>
    %1284 = vector.shape_cast %1283 : vector<1x2x32xf32> to vector<2x32xf32>
    %1285 = vector.shape_cast %1280 : vector<2x32xf32> to vector<1x2x32xf32>
    tpu.vector_store %arg9[%1282, %c0_598, %c32_599], %1285 {strides = array<i32>} : memref<8x2x64xf32, #tpu.memory_space<vmem>>, vector<1x2x32xf32>,
    %c6_i32_600 = arith.constant 6 : i32
    %1286 = arith.index_cast %c6_i32_600 : i32 to index
    %c0_601 = arith.constant 0 : index
    %c0_602 = arith.constant 0 : index
    %1287 = vector.load %arg8[%1286, %c0_601, %c0_602] : memref<8x2x64xf32, #tpu.memory_space<vmem>>, vector<1x2x64xf32>
    %1288 = vector.shape_cast %1287 : vector<1x2x64xf32> to vector<2x64xf32>
    %c7_i32_603 = arith.constant 7 : i32
    %1289 = arith.subi %c7_i32_603, %c6_i32_600 : i32
    %1290 = arith.index_cast %1289 : i32 to index
    %c0_604 = arith.constant 0 : index
    %c0_605 = arith.constant 0 : index
    %1291 = vector.load %arg8[%1290, %c0_604, %c0_605] : memref<8x2x64xf32, #tpu.memory_space<vmem>>, vector<1x2x64xf32>
    %1292 = vector.shape_cast %1291 : vector<1x2x64xf32> to vector<2x64xf32>
    %1293 = tpu.concatenate %1288, %1292, %1274 in 1 : vector<2x64xf32>, vector<2x64xf32>, vector<2x64xf32> -> vector<2x192xf32>
    %c3_606 = arith.constant 3 : index
    %c0_607 = arith.constant 0 : index
    %c0_608 = arith.constant 0 : index
    %1294 = vector.load %arg1[%c3_606, %c0_607, %c0_608] : memref<4x192x256xf32, #tpu.memory_space<vmem>>, vector<1x192x256xf32>
    %1295 = vector.shape_cast %1294 : vector<1x192x256xf32> to vector<192x256xf32>
    %cst_609 = arith.constant dense<0.000000e+00> : vector<2x256xf32>
    %1296 = tpu.matmul %1293, %1295, %cst_609 {dimension_numbers = #tpu.dot_dimension_numbers<[1], [0], [0], [1], [0, 0, 1, 1], [], []>} : vector<2x192xf32>, vector<192x256xf32>, vector<2x256xf32> -> vector<2x256xf32>
    %c3_610 = arith.constant 3 : index
    %c0_611 = arith.constant 0 : index
    %c0_612 = arith.constant 0 : index
    %1297 = vector.load %arg2[%c3_610, %c0_611, %c0_612] : memref<4x1x256xf32, #tpu.memory_space<vmem>>, vector<1x1x256xf32>
    %1298 = vector.shape_cast %1297 : vector<1x1x256xf32> to vector<1x256xf32>
    %1299 = vector.broadcast %1298 : vector<1x256xf32> to vector<2x256xf32>
    %1300 = arith.addf %1296, %1299 : vector<2x256xf32>
    %1301 = arith.negf %1300 : vector<2x256xf32>
    %1302 = math.exp %1301 : vector<2x256xf32>
    %cst_613 = arith.constant 1.000000e+00 : f32
    %1303 = vector.broadcast %cst_613 : f32 to vector<2x256xf32>
    %1304 = arith.addf %1303, %1302 : vector<2x256xf32>
    %1305 = arith.divf %1303, %1304 : vector<2x256xf32>
    %1306 = math.tanh %1300 : vector<2x256xf32>
    %1307 = vector.extract_strided_slice %1305 {offsets = [0, 0], sizes = [2, 64], strides = [1, 1]} : vector<2x256xf32> to vector<2x64xf32>
    %1308 = vector.extract_strided_slice %1305 {offsets = [0, 64], sizes = [2, 64], strides = [1, 1]} : vector<2x256xf32> to vector<2x64xf32>
    %1309 = vector.extract_strided_slice %1306 {offsets = [0, 128], sizes = [2, 64], strides = [1, 1]} : vector<2x256xf32> to vector<2x64xf32>
    %1310 = vector.extract_strided_slice %1305 {offsets = [0, 192], sizes = [2, 64], strides = [1, 1]} : vector<2x256xf32> to vector<2x64xf32>
    %1311 = arith.mulf %1308, %1272 : vector<2x64xf32>
    %1312 = arith.mulf %1307, %1309 : vector<2x64xf32>
    %1313 = arith.addf %1311, %1312 : vector<2x64xf32>
    %1314 = math.tanh %1313 : vector<2x64xf32>
    %1315 = arith.mulf %1310, %1314 : vector<2x64xf32>
    %1316 = vector.extract_strided_slice %1315 {offsets = [0, 0], sizes = [2, 32], strides = [1, 1]} : vector<2x64xf32> to vector<2x32xf32>
    %1317 = arith.index_cast %c6_i32_600 : i32 to index
    %c0_614 = arith.constant 0 : index
    %c0_615 = arith.constant 0 : index
    %1318 = vector.load %arg9[%1317, %c0_614, %c0_615] : memref<8x2x64xf32, #tpu.memory_space<vmem>>, vector<1x2x32xf32>
    %1319 = vector.shape_cast %1318 : vector<1x2x32xf32> to vector<2x32xf32>
    %1320 = vector.shape_cast %1316 : vector<2x32xf32> to vector<1x2x32xf32>
    tpu.vector_store %arg9[%1317, %c0_614, %c0_615], %1320 {strides = array<i32>} : memref<8x2x64xf32, #tpu.memory_space<vmem>>, vector<1x2x32xf32>,
    %1321 = vector.extract_strided_slice %1315 {offsets = [0, 32], sizes = [2, 32], strides = [1, 1]} : vector<2x64xf32> to vector<2x32xf32>
    %c7_i32_616 = arith.constant 7 : i32
    %1322 = arith.subi %c7_i32_616, %c6_i32_600 : i32
    %1323 = arith.index_cast %1322 : i32 to index
    %c0_617 = arith.constant 0 : index
    %c32_618 = arith.constant 32 : index
    %1324 = vector.load %arg9[%1323, %c0_617, %c32_618] : memref<8x2x64xf32, #tpu.memory_space<vmem>>, vector<1x2x32xf32>
    %1325 = vector.shape_cast %1324 : vector<1x2x32xf32> to vector<2x32xf32>
    %1326 = vector.shape_cast %1321 : vector<2x32xf32> to vector<1x2x32xf32>
    tpu.vector_store %arg9[%1323, %c0_617, %c32_618], %1326 {strides = array<i32>} : memref<8x2x64xf32, #tpu.memory_space<vmem>>, vector<1x2x32xf32>,
    %c7_i32_619 = arith.constant 7 : i32
    %1327 = arith.index_cast %c7_i32_619 : i32 to index
    %c0_620 = arith.constant 0 : index
    %c0_621 = arith.constant 0 : index
    %1328 = vector.load %arg8[%1327, %c0_620, %c0_621] : memref<8x2x64xf32, #tpu.memory_space<vmem>>, vector<1x2x64xf32>
    %1329 = vector.shape_cast %1328 : vector<1x2x64xf32> to vector<2x64xf32>
    %c7_i32_622 = arith.constant 7 : i32
    %1330 = arith.subi %c7_i32_622, %c7_i32_619 : i32
    %1331 = arith.index_cast %1330 : i32 to index
    %c0_623 = arith.constant 0 : index
    %c0_624 = arith.constant 0 : index
    %1332 = vector.load %arg8[%1331, %c0_623, %c0_624] : memref<8x2x64xf32, #tpu.memory_space<vmem>>, vector<1x2x64xf32>
    %1333 = vector.shape_cast %1332 : vector<1x2x64xf32> to vector<2x64xf32>
    %1334 = tpu.concatenate %1329, %1333, %1315 in 1 : vector<2x64xf32>, vector<2x64xf32>, vector<2x64xf32> -> vector<2x192xf32>
    %c3_625 = arith.constant 3 : index
    %c0_626 = arith.constant 0 : index
    %c0_627 = arith.constant 0 : index
    %1335 = vector.load %arg1[%c3_625, %c0_626, %c0_627] : memref<4x192x256xf32, #tpu.memory_space<vmem>>, vector<1x192x256xf32>
    %1336 = vector.shape_cast %1335 : vector<1x192x256xf32> to vector<192x256xf32>
    %cst_628 = arith.constant dense<0.000000e+00> : vector<2x256xf32>
    %1337 = tpu.matmul %1334, %1336, %cst_628 {dimension_numbers = #tpu.dot_dimension_numbers<[1], [0], [0], [1], [0, 0, 1, 1], [], []>} : vector<2x192xf32>, vector<192x256xf32>, vector<2x256xf32> -> vector<2x256xf32>
    %c3_629 = arith.constant 3 : index
    %c0_630 = arith.constant 0 : index
    %c0_631 = arith.constant 0 : index
    %1338 = vector.load %arg2[%c3_629, %c0_630, %c0_631] : memref<4x1x256xf32, #tpu.memory_space<vmem>>, vector<1x1x256xf32>
    %1339 = vector.shape_cast %1338 : vector<1x1x256xf32> to vector<1x256xf32>
    %1340 = vector.broadcast %1339 : vector<1x256xf32> to vector<2x256xf32>
    %1341 = arith.addf %1337, %1340 : vector<2x256xf32>
    %1342 = arith.negf %1341 : vector<2x256xf32>
    %1343 = math.exp %1342 : vector<2x256xf32>
    %cst_632 = arith.constant 1.000000e+00 : f32
    %1344 = vector.broadcast %cst_632 : f32 to vector<2x256xf32>
    %1345 = arith.addf %1344, %1343 : vector<2x256xf32>
    %1346 = arith.divf %1344, %1345 : vector<2x256xf32>
    %1347 = math.tanh %1341 : vector<2x256xf32>
    %1348 = vector.extract_strided_slice %1346 {offsets = [0, 0], sizes = [2, 64], strides = [1, 1]} : vector<2x256xf32> to vector<2x64xf32>
    %1349 = vector.extract_strided_slice %1346 {offsets = [0, 64], sizes = [2, 64], strides = [1, 1]} : vector<2x256xf32> to vector<2x64xf32>
    %1350 = vector.extract_strided_slice %1347 {offsets = [0, 128], sizes = [2, 64], strides = [1, 1]} : vector<2x256xf32> to vector<2x64xf32>
    %1351 = vector.extract_strided_slice %1346 {offsets = [0, 192], sizes = [2, 64], strides = [1, 1]} : vector<2x256xf32> to vector<2x64xf32>
    %1352 = arith.mulf %1349, %1313 : vector<2x64xf32>
    %1353 = arith.mulf %1348, %1350 : vector<2x64xf32>
    %1354 = arith.addf %1352, %1353 : vector<2x64xf32>
    %1355 = math.tanh %1354 : vector<2x64xf32>
    %1356 = arith.mulf %1351, %1355 : vector<2x64xf32>
    %1357 = vector.extract_strided_slice %1356 {offsets = [0, 0], sizes = [2, 32], strides = [1, 1]} : vector<2x64xf32> to vector<2x32xf32>
    %1358 = arith.index_cast %c7_i32_619 : i32 to index
    %c0_633 = arith.constant 0 : index
    %c0_634 = arith.constant 0 : index
    %1359 = vector.load %arg9[%1358, %c0_633, %c0_634] : memref<8x2x64xf32, #tpu.memory_space<vmem>>, vector<1x2x32xf32>
    %1360 = vector.shape_cast %1359 : vector<1x2x32xf32> to vector<2x32xf32>
    %1361 = vector.shape_cast %1357 : vector<2x32xf32> to vector<1x2x32xf32>
    tpu.vector_store %arg9[%1358, %c0_633, %c0_634], %1361 {strides = array<i32>} : memref<8x2x64xf32, #tpu.memory_space<vmem>>, vector<1x2x32xf32>,
    %1362 = vector.extract_strided_slice %1356 {offsets = [0, 32], sizes = [2, 32], strides = [1, 1]} : vector<2x64xf32> to vector<2x32xf32>
    %c7_i32_635 = arith.constant 7 : i32
    %1363 = arith.subi %c7_i32_635, %c7_i32_619 : i32
    %1364 = arith.index_cast %1363 : i32 to index
    %c0_636 = arith.constant 0 : index
    %c32_637 = arith.constant 32 : index
    %1365 = vector.load %arg9[%1364, %c0_636, %c32_637] : memref<8x2x64xf32, #tpu.memory_space<vmem>>, vector<1x2x32xf32>
    %1366 = vector.shape_cast %1365 : vector<1x2x32xf32> to vector<2x32xf32>
    %1367 = vector.shape_cast %1362 : vector<2x32xf32> to vector<1x2x32xf32>
    tpu.vector_store %arg9[%1364, %c0_636, %c32_637], %1367 {strides = array<i32>} : memref<8x2x64xf32, #tpu.memory_space<vmem>>, vector<1x2x32xf32>,
    %c8_i32_638 = arith.constant 8 : i32
    %1368 = vector.extract_strided_slice %1356 {offsets = [0, 0], sizes = [2, 32], strides = [1, 1]} : vector<2x64xf32> to vector<2x32xf32>
    %c6 = arith.constant 6 : index
    %c0_639 = arith.constant 0 : index
    %c0_640 = arith.constant 0 : index
    %1369 = vector.load %arg6[%c6, %c0_639, %c0_640] : memref<8x2x32xf32, #tpu.memory_space<vmem>>, vector<1x2x32xf32>
    %1370 = vector.shape_cast %1369 : vector<1x2x32xf32> to vector<2x32xf32>
    %1371 = vector.shape_cast %1368 : vector<2x32xf32> to vector<1x2x32xf32>
    tpu.vector_store %arg6[%c6, %c0_639, %c0_640], %1371 {strides = array<i32>} : memref<8x2x32xf32, #tpu.memory_space<vmem>>, vector<1x2x32xf32>,
    %1372 = vector.extract_strided_slice %1356 {offsets = [0, 32], sizes = [2, 32], strides = [1, 1]} : vector<2x64xf32> to vector<2x32xf32>
    %c7 = arith.constant 7 : index
    %c0_641 = arith.constant 0 : index
    %c0_642 = arith.constant 0 : index
    %1373 = vector.load %arg6[%c7, %c0_641, %c0_642] : memref<8x2x32xf32, #tpu.memory_space<vmem>>, vector<1x2x32xf32>
    %1374 = vector.shape_cast %1373 : vector<1x2x32xf32> to vector<2x32xf32>
    %1375 = vector.shape_cast %1372 : vector<2x32xf32> to vector<1x2x32xf32>
    tpu.vector_store %arg6[%c7, %c0_641, %c0_642], %1375 {strides = array<i32>} : memref<8x2x32xf32, #tpu.memory_space<vmem>>, vector<1x2x32xf32>,
    %1376 = vector.extract_strided_slice %1354 {offsets = [0, 0], sizes = [2, 32], strides = [1, 1]} : vector<2x64xf32> to vector<2x32xf32>
    %c6_643 = arith.constant 6 : index
    %c0_644 = arith.constant 0 : index
    %c0_645 = arith.constant 0 : index
    %1377 = vector.load %arg7[%c6_643, %c0_644, %c0_645] : memref<8x2x32xf32, #tpu.memory_space<vmem>>, vector<1x2x32xf32>
    %1378 = vector.shape_cast %1377 : vector<1x2x32xf32> to vector<2x32xf32>
    %1379 = vector.shape_cast %1376 : vector<2x32xf32> to vector<1x2x32xf32>
    tpu.vector_store %arg7[%c6_643, %c0_644, %c0_645], %1379 {strides = array<i32>} : memref<8x2x32xf32, #tpu.memory_space<vmem>>, vector<1x2x32xf32>,
    %1380 = vector.extract_strided_slice %1354 {offsets = [0, 32], sizes = [2, 32], strides = [1, 1]} : vector<2x64xf32> to vector<2x32xf32>
    %c7_646 = arith.constant 7 : index
    %c0_647 = arith.constant 0 : index
    %c0_648 = arith.constant 0 : index
    %1381 = vector.load %arg7[%c7_646, %c0_647, %c0_648] : memref<8x2x32xf32, #tpu.memory_space<vmem>>, vector<1x2x32xf32>
    %1382 = vector.shape_cast %1381 : vector<1x2x32xf32> to vector<2x32xf32>
    %1383 = vector.shape_cast %1380 : vector<2x32xf32> to vector<1x2x32xf32>
    tpu.vector_store %arg7[%c7_646, %c0_647, %c0_648], %1383 {strides = array<i32>} : memref<8x2x32xf32, #tpu.memory_space<vmem>>, vector<1x2x32xf32>,
    %c0_649 = arith.constant 0 : index
    %c0_650 = arith.constant 0 : index
    %1384 = vector.load %arg3[%c0_649, %c0_650] : memref<64x4xf32, #tpu.memory_space<vmem>>, vector<64x4xf32>
    %c0_651 = arith.constant 0 : index
    %c0_652 = arith.constant 0 : index
    %1385 = vector.load %arg4[%c0_651, %c0_652] : memref<1x4xf32, #tpu.memory_space<vmem>>, vector<1x4xf32>
    %c0_653 = arith.constant 0 : index
    %c0_654 = arith.constant 0 : index
    %c0_655 = arith.constant 0 : index
    %1386 = vector.load %arg9[%c0_653, %c0_654, %c0_655] : memref<8x2x64xf32, #tpu.memory_space<vmem>>, vector<1x2x64xf32>
    %1387 = vector.shape_cast %1386 : vector<1x2x64xf32> to vector<2x64xf32>
    %cst_656 = arith.constant dense<0.000000e+00> : vector<2x4xf32>
    %1388 = tpu.matmul %1387, %1384, %cst_656 {dimension_numbers = #tpu.dot_dimension_numbers<[1], [0], [0], [1], [0, 0, 1, 1], [], []>} : vector<2x64xf32>, vector<64x4xf32>, vector<2x4xf32> -> vector<2x4xf32>
    %1389 = vector.broadcast %1385 : vector<1x4xf32> to vector<2x4xf32>
    %1390 = arith.addf %1388, %1389 : vector<2x4xf32>
    %c0_657 = arith.constant 0 : index
    %c0_658 = arith.constant 0 : index
    %c0_659 = arith.constant 0 : index
    %1391 = vector.load %arg5[%c0_657, %c0_658, %c0_659] : memref<8x2x4xf32, #tpu.memory_space<vmem>>, vector<1x2x4xf32>
    %1392 = vector.shape_cast %1391 : vector<1x2x4xf32> to vector<2x4xf32>
    %1393 = vector.shape_cast %1390 : vector<2x4xf32> to vector<1x2x4xf32>
    tpu.vector_store %arg5[%c0_657, %c0_658, %c0_659], %1393 {strides = array<i32>} : memref<8x2x4xf32, #tpu.memory_space<vmem>>, vector<1x2x4xf32>,
    %c1_660 = arith.constant 1 : index
    %c0_661 = arith.constant 0 : index
    %c0_662 = arith.constant 0 : index
    %1394 = vector.load %arg9[%c1_660, %c0_661, %c0_662] : memref<8x2x64xf32, #tpu.memory_space<vmem>>, vector<1x2x64xf32>
    %1395 = vector.shape_cast %1394 : vector<1x2x64xf32> to vector<2x64xf32>
    %cst_663 = arith.constant dense<0.000000e+00> : vector<2x4xf32>
    %1396 = tpu.matmul %1395, %1384, %cst_663 {dimension_numbers = #tpu.dot_dimension_numbers<[1], [0], [0], [1], [0, 0, 1, 1], [], []>} : vector<2x64xf32>, vector<64x4xf32>, vector<2x4xf32> -> vector<2x4xf32>
    %1397 = vector.broadcast %1385 : vector<1x4xf32> to vector<2x4xf32>
    %1398 = arith.addf %1396, %1397 : vector<2x4xf32>
    %c1_664 = arith.constant 1 : index
    %c0_665 = arith.constant 0 : index
    %c0_666 = arith.constant 0 : index
    %1399 = vector.load %arg5[%c1_664, %c0_665, %c0_666] : memref<8x2x4xf32, #tpu.memory_space<vmem>>, vector<1x2x4xf32>
    %1400 = vector.shape_cast %1399 : vector<1x2x4xf32> to vector<2x4xf32>
    %1401 = vector.shape_cast %1398 : vector<2x4xf32> to vector<1x2x4xf32>
    tpu.vector_store %arg5[%c1_664, %c0_665, %c0_666], %1401 {strides = array<i32>} : memref<8x2x4xf32, #tpu.memory_space<vmem>>, vector<1x2x4xf32>,
    %c2_667 = arith.constant 2 : index
    %c0_668 = arith.constant 0 : index
    %c0_669 = arith.constant 0 : index
    %1402 = vector.load %arg9[%c2_667, %c0_668, %c0_669] : memref<8x2x64xf32, #tpu.memory_space<vmem>>, vector<1x2x64xf32>
    %1403 = vector.shape_cast %1402 : vector<1x2x64xf32> to vector<2x64xf32>
    %cst_670 = arith.constant dense<0.000000e+00> : vector<2x4xf32>
    %1404 = tpu.matmul %1403, %1384, %cst_670 {dimension_numbers = #tpu.dot_dimension_numbers<[1], [0], [0], [1], [0, 0, 1, 1], [], []>} : vector<2x64xf32>, vector<64x4xf32>, vector<2x4xf32> -> vector<2x4xf32>
    %1405 = vector.broadcast %1385 : vector<1x4xf32> to vector<2x4xf32>
    %1406 = arith.addf %1404, %1405 : vector<2x4xf32>
    %c2_671 = arith.constant 2 : index
    %c0_672 = arith.constant 0 : index
    %c0_673 = arith.constant 0 : index
    %1407 = vector.load %arg5[%c2_671, %c0_672, %c0_673] : memref<8x2x4xf32, #tpu.memory_space<vmem>>, vector<1x2x4xf32>
    %1408 = vector.shape_cast %1407 : vector<1x2x4xf32> to vector<2x4xf32>
    %1409 = vector.shape_cast %1406 : vector<2x4xf32> to vector<1x2x4xf32>
    tpu.vector_store %arg5[%c2_671, %c0_672, %c0_673], %1409 {strides = array<i32>} : memref<8x2x4xf32, #tpu.memory_space<vmem>>, vector<1x2x4xf32>,
    %c3_674 = arith.constant 3 : index
    %c0_675 = arith.constant 0 : index
    %c0_676 = arith.constant 0 : index
    %1410 = vector.load %arg9[%c3_674, %c0_675, %c0_676] : memref<8x2x64xf32, #tpu.memory_space<vmem>>, vector<1x2x64xf32>
    %1411 = vector.shape_cast %1410 : vector<1x2x64xf32> to vector<2x64xf32>
    %cst_677 = arith.constant dense<0.000000e+00> : vector<2x4xf32>
    %1412 = tpu.matmul %1411, %1384, %cst_677 {dimension_numbers = #tpu.dot_dimension_numbers<[1], [0], [0], [1], [0, 0, 1, 1], [], []>} : vector<2x64xf32>, vector<64x4xf32>, vector<2x4xf32> -> vector<2x4xf32>
    %1413 = vector.broadcast %1385 : vector<1x4xf32> to vector<2x4xf32>
    %1414 = arith.addf %1412, %1413 : vector<2x4xf32>
    %c3_678 = arith.constant 3 : index
    %c0_679 = arith.constant 0 : index
    %c0_680 = arith.constant 0 : index
    %1415 = vector.load %arg5[%c3_678, %c0_679, %c0_680] : memref<8x2x4xf32, #tpu.memory_space<vmem>>, vector<1x2x4xf32>
    %1416 = vector.shape_cast %1415 : vector<1x2x4xf32> to vector<2x4xf32>
    %1417 = vector.shape_cast %1414 : vector<2x4xf32> to vector<1x2x4xf32>
    tpu.vector_store %arg5[%c3_678, %c0_679, %c0_680], %1417 {strides = array<i32>} : memref<8x2x4xf32, #tpu.memory_space<vmem>>, vector<1x2x4xf32>,
    %c4_681 = arith.constant 4 : index
    %c0_682 = arith.constant 0 : index
    %c0_683 = arith.constant 0 : index
    %1418 = vector.load %arg9[%c4_681, %c0_682, %c0_683] : memref<8x2x64xf32, #tpu.memory_space<vmem>>, vector<1x2x64xf32>
    %1419 = vector.shape_cast %1418 : vector<1x2x64xf32> to vector<2x64xf32>
    %cst_684 = arith.constant dense<0.000000e+00> : vector<2x4xf32>
    %1420 = tpu.matmul %1419, %1384, %cst_684 {dimension_numbers = #tpu.dot_dimension_numbers<[1], [0], [0], [1], [0, 0, 1, 1], [], []>} : vector<2x64xf32>, vector<64x4xf32>, vector<2x4xf32> -> vector<2x4xf32>
    %1421 = vector.broadcast %1385 : vector<1x4xf32> to vector<2x4xf32>
    %1422 = arith.addf %1420, %1421 : vector<2x4xf32>
    %c4_685 = arith.constant 4 : index
    %c0_686 = arith.constant 0 : index
    %c0_687 = arith.constant 0 : index
    %1423 = vector.load %arg5[%c4_685, %c0_686, %c0_687] : memref<8x2x4xf32, #tpu.memory_space<vmem>>, vector<1x2x4xf32>
    %1424 = vector.shape_cast %1423 : vector<1x2x4xf32> to vector<2x4xf32>
    %1425 = vector.shape_cast %1422 : vector<2x4xf32> to vector<1x2x4xf32>
    tpu.vector_store %arg5[%c4_685, %c0_686, %c0_687], %1425 {strides = array<i32>} : memref<8x2x4xf32, #tpu.memory_space<vmem>>, vector<1x2x4xf32>,
    %c5_688 = arith.constant 5 : index
    %c0_689 = arith.constant 0 : index
    %c0_690 = arith.constant 0 : index
    %1426 = vector.load %arg9[%c5_688, %c0_689, %c0_690] : memref<8x2x64xf32, #tpu.memory_space<vmem>>, vector<1x2x64xf32>
    %1427 = vector.shape_cast %1426 : vector<1x2x64xf32> to vector<2x64xf32>
    %cst_691 = arith.constant dense<0.000000e+00> : vector<2x4xf32>
    %1428 = tpu.matmul %1427, %1384, %cst_691 {dimension_numbers = #tpu.dot_dimension_numbers<[1], [0], [0], [1], [0, 0, 1, 1], [], []>} : vector<2x64xf32>, vector<64x4xf32>, vector<2x4xf32> -> vector<2x4xf32>
    %1429 = vector.broadcast %1385 : vector<1x4xf32> to vector<2x4xf32>
    %1430 = arith.addf %1428, %1429 : vector<2x4xf32>
    %c5_692 = arith.constant 5 : index
    %c0_693 = arith.constant 0 : index
    %c0_694 = arith.constant 0 : index
    %1431 = vector.load %arg5[%c5_692, %c0_693, %c0_694] : memref<8x2x4xf32, #tpu.memory_space<vmem>>, vector<1x2x4xf32>
    %1432 = vector.shape_cast %1431 : vector<1x2x4xf32> to vector<2x4xf32>
    %1433 = vector.shape_cast %1430 : vector<2x4xf32> to vector<1x2x4xf32>
    tpu.vector_store %arg5[%c5_692, %c0_693, %c0_694], %1433 {strides = array<i32>} : memref<8x2x4xf32, #tpu.memory_space<vmem>>, vector<1x2x4xf32>,
    %c6_695 = arith.constant 6 : index
    %c0_696 = arith.constant 0 : index
    %c0_697 = arith.constant 0 : index
    %1434 = vector.load %arg9[%c6_695, %c0_696, %c0_697] : memref<8x2x64xf32, #tpu.memory_space<vmem>>, vector<1x2x64xf32>
    %1435 = vector.shape_cast %1434 : vector<1x2x64xf32> to vector<2x64xf32>
    %cst_698 = arith.constant dense<0.000000e+00> : vector<2x4xf32>
    %1436 = tpu.matmul %1435, %1384, %cst_698 {dimension_numbers = #tpu.dot_dimension_numbers<[1], [0], [0], [1], [0, 0, 1, 1], [], []>} : vector<2x64xf32>, vector<64x4xf32>, vector<2x4xf32> -> vector<2x4xf32>
    %1437 = vector.broadcast %1385 : vector<1x4xf32> to vector<2x4xf32>
    %1438 = arith.addf %1436, %1437 : vector<2x4xf32>
    %c6_699 = arith.constant 6 : index
    %c0_700 = arith.constant 0 : index
    %c0_701 = arith.constant 0 : index
    %1439 = vector.load %arg5[%c6_699, %c0_700, %c0_701] : memref<8x2x4xf32, #tpu.memory_space<vmem>>, vector<1x2x4xf32>
    %1440 = vector.shape_cast %1439 : vector<1x2x4xf32> to vector<2x4xf32>
    %1441 = vector.shape_cast %1438 : vector<2x4xf32> to vector<1x2x4xf32>
    tpu.vector_store %arg5[%c6_699, %c0_700, %c0_701], %1441 {strides = array<i32>} : memref<8x2x4xf32, #tpu.memory_space<vmem>>, vector<1x2x4xf32>,
    %c7_702 = arith.constant 7 : index
    %c0_703 = arith.constant 0 : index
    %c0_704 = arith.constant 0 : index
    %1442 = vector.load %arg9[%c7_702, %c0_703, %c0_704] : memref<8x2x64xf32, #tpu.memory_space<vmem>>, vector<1x2x64xf32>
    %1443 = vector.shape_cast %1442 : vector<1x2x64xf32> to vector<2x64xf32>
    %cst_705 = arith.constant dense<0.000000e+00> : vector<2x4xf32>
    %1444 = tpu.matmul %1443, %1384, %cst_705 {dimension_numbers = #tpu.dot_dimension_numbers<[1], [0], [0], [1], [0, 0, 1, 1], [], []>} : vector<2x64xf32>, vector<64x4xf32>, vector<2x4xf32> -> vector<2x4xf32>
    %1445 = vector.broadcast %1385 : vector<1x4xf32> to vector<2x4xf32>
    %1446 = arith.addf %1444, %1445 : vector<2x4xf32>
    %c7_706 = arith.constant 7 : index
    %c0_707 = arith.constant 0 : index
    %c0_708 = arith.constant 0 : index
    %1447 = vector.load %arg5[%c7_706, %c0_707, %c0_708] : memref<8x2x4xf32, #tpu.memory_space<vmem>>, vector<1x2x4xf32>
    %1448 = vector.shape_cast %1447 : vector<1x2x4xf32> to vector<2x4xf32>
    %1449 = vector.shape_cast %1446 : vector<2x4xf32> to vector<1x2x4xf32>
    tpu.vector_store %arg5[%c7_706, %c0_707, %c0_708], %1449 {strides = array<i32>} : memref<8x2x4xf32, #tpu.memory_space<vmem>>, vector<1x2x4xf32>,
    return
  }
}

</mosaic_0001>

<llo_original>
// kernel: model_forward.1
$region0: #{model_forward.1}
  #allocation0 [shape = 'u32[]', space=smem, size = 0x4, offset = 0x4, fixed_abs, tag = 'smem constant byte address 0x4 - core index']
  #allocation1 [shape = 'u32[144,128]{1,0:T(1,128)}', space=vmem, size = 0x12000, scoped, tag = 'internal scratch']
  #allocation2 [shape = 'f32[8,2,64]{2,1,0:T(2,128)}', space=vmem, size = 0x2000, scoped, tag = 'scratch operand']
  #allocation3 [shape = 'f32[8,2,64]{2,1,0:T(2,128)}', space=vmem, size = 0x2000, scoped, tag = 'scratch operand']
  %s0 = inlined_call_operand.vmem [shape: f32[8,2,64], index: 0, kind: input, shape index: {}]
  %s1 = inlined_call_operand.vmem [shape: f32[4,192,256], index: 1, kind: input, shape index: {}]
  %s2 = inlined_call_operand.vmem [shape: f32[4,1,256], index: 2, kind: input, shape index: {}]
  %s3 = inlined_call_operand.vmem [shape: f32[64,4], index: 3, kind: input, shape index: {}]
  %s4 = inlined_call_operand.vmem [shape: f32[1,4], index: 4, kind: input, shape index: {}]
  %s5 = inlined_call_operand.vmem [shape: f32[8,2,4], index: 5, kind: output, shape index: {0}]
  %s6 = inlined_call_operand.hbm [shape: f32[8,2,32], index: 6, kind: output, shape index: {1}]
  %s7 = inlined_call_operand.hbm [shape: f32[8,2,32], index: 7, kind: output, shape index: {2}]
  %8 = xla_tuple %s5, %s6, %s7
  %s9 = sld [smem:[#allocation0]]
  $region46: #{model_forward.1} parent=0
    _
  %s11 = ssub.s32 1, %s9
  %s12 = scalar_select 0, %s11, %s9
  $region1: #{model_forward.1} parent=0
    #allocation4 [shape = 'u8[8192]{0}', space=vmem, size = 0x2000, scoped, tag = 'output window, operand 1, single buffered']
    #allocation5 [shape = 's32[1]{0}', space=sflag, size = 0x4, scoped, tag = 'scoped memory for model_forward.1']
    #allocation6 [shape = 'u8[8192]{0}', space=vmem, size = 0x2000, scoped, tag = 'output window, operand 2, single buffered']
    #allocation7 [shape = 's32[1]{0}', space=sflag, size = 0x4, scoped, tag = 'scoped memory for model_forward.1']
    %13 = vsyncpa [#allocation5], 0
    %14 = vsyncpa [#allocation7], 0
    // Predicated region
    $region2: #{model_forward.1} parent=1 // pred_check
      _
    $region3: #{model_forward.1} parent=1 // pred_check_branch
      %16 = sbr.rel (0) target = $region5
    $region4: #{model_forward.1} parent=1 // pred_region
      _
    $region5: #{model_forward.1} parent=1 // pred_fallthru
      _
    // Predicated region
    $region6: #{model_forward.1} parent=1 // pred_check
      _
    $region7: #{model_forward.1} parent=1 // pred_check_branch
      %18 = sbr.rel (0) target = $region9
    $region8: #{model_forward.1} parent=1 // pred_region
      _
    $region9: #{model_forward.1} parent=1 // pred_fallthru
      _
    // Predicated region
    $region10: #{model_forward.1} parent=1 // pred_check
      _
    $region11: #{model_forward.1} parent=1 // pred_check_branch
      %20 = sbr.rel (0) target = $region13
    $region12: #{model_forward.1} parent=1 // pred_region
      _
    $region13: #{model_forward.1} parent=1 // pred_fallthru
      _
    // Predicated region
    $region14: #{model_forward.1} parent=1 // pred_check
      _
    $region15: #{model_forward.1} parent=1 // pred_check_branch
      %22 = sbr.rel (0) target = $region17
    $region16: #{model_forward.1} parent=1 // pred_region
      _
    $region17: #{model_forward.1} parent=1 // pred_fallthru
      _
    // Predicated region
    $region18: #{model_forward.1} parent=1 // pred_check
      _
    $region19: #{model_forward.1} parent=1 // pred_check_branch
      %24 = sbr.rel (0) target = $region21
    $region20: #{model_forward.1} parent=1 // pred_region
      _
    $region21: #{model_forward.1} parent=1 // pred_fallthru
      _
    %v25 = vld [vmem:[%s0] sm:$0x3]
    %s26 = scalar_lea.vmem %s0, 14
    %v27 = vld [vmem:[%s26] sm:$0x3]
    %29 = vrot.lane.b32.xlu0 %v27, 64
    %v30 = vpop.permute.xlu0 %29
    %vm32 = vcmask 523264
    %v33 = vsel %vm32, %v25, %v30
    %v34 = vld [vmem:[%s1] sm:$0xff]
    %v35 = vld [vmem:[%s1 + $0x8] sm:$0xff]
    %v36 = vld [vmem:[%s1 + $0x10] sm:$0xff]
    %v37 = vld [vmem:[%s1 + $0x18] sm:$0xff]
    %v38 = vld [vmem:[%s1 + $0x20] sm:$0xff]
    %v39 = vld [vmem:[%s1 + $0x28] sm:$0xff]
    %v40 = vld [vmem:[%s1 + $0x30] sm:$0xff]
    %v41 = vld [vmem:[%s1 + $0x38] sm:$0xff]
    %v42 = vld [vmem:[%s1 + $0x40] sm:$0xff]
    %v43 = vld [vmem:[%s1 + $0x48] sm:$0xff]
    %v44 = vld [vmem:[%s1 + $0x50] sm:$0xff]
    %v45 = vld [vmem:[%s1 + $0x58] sm:$0xff]
    %v46 = vld [vmem:[%s1 + $0x60] sm:$0xff]
    %v47 = vld [vmem:[%s1 + $0x68] sm:$0xff]
    %v48 = vld [vmem:[%s1 + $0x70] sm:$0xff]
    %v49 = vld [vmem:[%s1 + $0x78] sm:$0xff]
    %v50 = vld [vmem:[%s1 + $0x80] sm:$0xff]
    %v51 = vld [vmem:[%s1 + $0x88] sm:$0xff]
    %v52 = vld [vmem:[%s1 + $0x90] sm:$0xff]
    %v53 = vld [vmem:[%s1 + $0x98] sm:$0xff]
    %v54 = vld [vmem:[%s1 + $0xa0] sm:$0xff]
    %v55 = vld [vmem:[%s1 + $0xa8] sm:$0xff]
    %v56 = vld [vmem:[%s1 + $0xb0] sm:$0xff]
    %v57 = vld [vmem:[%s1 + $0xb8] sm:$0xff]
    %v58 = vld [vmem:[%s1 + $0xc0] sm:$0xff]
    %v59 = vld [vmem:[%s1 + $0xc8] sm:$0xff]
    %v60 = vld [vmem:[%s1 + $0xd0] sm:$0xff]
    %v61 = vld [vmem:[%s1 + $0xd8] sm:$0xff]
    %v62 = vld [vmem:[%s1 + $0xe0] sm:$0xff]
    %v63 = vld [vmem:[%s1 + $0xe8] sm:$0xff]
    %v64 = vld [vmem:[%s1 + $0xf0] sm:$0xff]
    %v65 = vld [vmem:[%s1 + $0xf8] sm:$0xff]
    %v66 = vld [vmem:[%s1 + $0x100] sm:$0xff]
    %v67 = vld [vmem:[%s1 + $0x108] sm:$0xff]
    %v68 = vld [vmem:[%s1 + $0x110] sm:$0xff]
    %v69 = vld [vmem:[%s1 + $0x118] sm:$0xff]
    %v70 = vld [vmem:[%s1 + $0x120] sm:$0xff]
    %v71 = vld [vmem:[%s1 + $0x128] sm:$0xff]
    %v72 = vld [vmem:[%s1 + $0x130] sm:$0xff]
    %v73 = vld [vmem:[%s1 + $0x138] sm:$0xff]
    %v74 = vld [vmem:[%s1 + $0x140] sm:$0xff]
    %v75 = vld [vmem:[%s1 + $0x148] sm:$0xff]
    %v76 = vld [vmem:[%s1 + $0x150] sm:$0xff]
    %v77 = vld [vmem:[%s1 + $0x158] sm:$0xff]
    %v78 = vld [vmem:[%s1 + $0x160] sm:$0xff]
    %v79 = vld [vmem:[%s1 + $0x168] sm:$0xff]
    %v80 = vld [vmem:[%s1 + $0x170] sm:$0xff]
    %v81 = vld [vmem:[%s1 + $0x178] sm:$0xff]
    %v82 = vld [vmem:[%s2] sm:$0x3]
    %v84 = vlaneseq
    %v85 = vshrl.u32 %v84, 7
    %v86 = vsub.s32 0, %v85
    %v87 = vrot.slane %v82, %v86
    %v88 = vlaneseq
    %v89 = vshrl.u32 %v88, 7
    %v90 = vsub.s32 1, %v89
    %v91 = vrot.slane %v82, %v90
    %v95 = vsel %vm32, 0.0, 0
    %97 = vmatprep.subr.mxu0 %v65
    %98 = vmatpush1.msra.mxu0 %v64
    %99 = vmatprep.subr.mxu0 %v63
    %100 = vmatpush1.msra.mxu0 %v62
    %101 = vmatprep.subr.mxu0 %v61
    %102 = vmatpush1.msra.mxu0 %v60
    %103 = vmatprep.subr.mxu0 %v59
    %104 = vmatpush1.msra.mxu0 %v58
    %105 = vmatprep.subr.mxu0 %v57
    %106 = vmatpush1.msra.mxu0 %v56
    %107 = vmatprep.subr.mxu0 %v55
    %108 = vmatpush1.msra.mxu0 %v54
    %109 = vmatprep.subr.mxu0 %v53
    %110 = vmatpush1.msra.mxu0 %v52
    %111 = vmatprep.subr.mxu0 %v51
    %112 = vmatpush1.msra.mxu0 %v50
    %113 = vmatprep.subr.mxu0 %v49
    %114 = vmatpush1.msra.mxu0 %v48
    %115 = vmatprep.subr.mxu0 %v47
    %116 = vmatpush1.msra.mxu0 %v46
    %117 = vmatprep.subr.mxu0 %v45
    %118 = vmatpush1.msra.mxu0 %v44
    %119 = vmatprep.subr.mxu0 %v43
    %120 = vmatpush1.msra.mxu0 %v42
    %121 = vmatprep.subr.mxu0 %v41
    %122 = vmatpush1.msra.mxu0 %v40
    %123 = vmatprep.subr.mxu0 %v39
    %124 = vmatpush1.msra.mxu0 %v38
    %125 = vmatprep.subr.mxu0 %v37
    %126 = vmatpush1.msra.mxu0 %v36
    %127 = vmatprep.subr.mxu0 %v35
    %128 = vmatpush1.msra.mxu0 %v34
    %129 = vmatprep.subr.mxu0 0.0
    %130 = vmatpush2.msra.mxu0 0.0
    %131 = vmatprep.subr.mxu0 0.0
    %132 = vmatpush2.msra.mxu0 0.0
    %133 = vmatprep.subr.mxu0 0.0
    %134 = vmatpush2.msra.mxu0 0.0
    %135 = vmatprep.subr.mxu0 0.0
    %136 = vmatpush2.msra.mxu0 0.0
    %137 = vmatprep.subr.mxu0 0.0
    %138 = vmatpush2.msra.mxu0 0.0
    %139 = vmatprep.subr.mxu0 0.0
    %140 = vmatpush2.msra.mxu0 0.0
    %141 = vmatprep.subr.mxu0 0.0
    %142 = vmatpush2.msra.mxu0 0.0
    %143 = vmatprep.subr.mxu0 0.0
    %144 = vmatpush2.msra.mxu0 0.0
    %145 = vmatprep.subr.mxu0 %v81
    %146 = vmatpush2.msra.mxu0 %v80
    %147 = vmatprep.subr.mxu0 %v79
    %148 = vmatpush2.msra.mxu0 %v78
    %149 = vmatprep.subr.mxu0 %v77
    %150 = vmatpush2.msra.mxu0 %v76
    %151 = vmatprep.subr.mxu0 %v75
    %152 = vmatpush2.msra.mxu0 %v74
    %153 = vmatprep.subr.mxu0 %v73
    %154 = vmatpush2.msra.mxu0 %v72
    %155 = vmatprep.subr.mxu0 %v71
    %156 = vmatpush2.msra.mxu0 %v70
    %157 = vmatprep.subr.mxu0 %v69
    %158 = vmatpush2.msra.mxu0 %v68
    %159 = vmatprep.subr.mxu0 %v67
    %160 = vmatpush2.msra.mxu0 %v66
    %161 = vmatprep.mubr.f32.mxu0 %v95
    %162 = vmatmul.mubr.f32.gmra.mxu0 %v33
    %v163 = vpop.f32.mrf.mxu0
    %v164 = vadd.f32 %v87, %v163
    %v165 = vpop.f32.mrf.mxu0
    %v166 = vadd.f32 %v91, %v165
    %167 = vdwg.mxu0
    %v168 = vxor.u32 %v164, 2147483648
    %v169 = vxor.u32 %v166, 2147483648
    %v170 = vmul.f32 %v168, 1.442695
    %v171 = vpow.pop %v170
    %v172 = vmul.f32 %v169, 1.442695
    %v173 = vpow.pop %v172
    %v174 = vadd.f32 %v171, 1.0
    %v175 = vadd.f32 %v173, 1.0
    %v176 = vrcp.pop %v174
    %v177 = vmul.f32 1.0, %v176
    %v178 = vrcp.pop %v175
    %v179 = vmul.f32 1.0, %v178
    %v180 = vtanh.pop %v166
    %v181 = vmul.f32 %v177, 0.0
    %v182 = vmul.f32 %v177, %v180
    %184 = vrot.lane.b32.xlu0 %v182, 64
    %v185 = vpop.permute.xlu0 %184
    %v187 = vadd.f32 %v181, %v185
    %v188 = vtanh.pop %v187
    %v189 = vmul.f32 %v179, %v188
    %191 = vrot.lane.b32.xlu0 %v189, 64
    %v192 = vpop.permute.xlu0 %191
    %vm194 = vcmask 254976
    %195 = vst.msk [vmem:[#allocation2] sm:$0x3] %vm194, %v192
    %s196 = scalar_lea.vmem [#allocation2], 14
    %vm197 = vcmask 517376
    %198 = vst.msk [vmem:[%s196] sm:$0x3] %vm197, %v192
    %s199 = scalar_lea.vmem %s0, 2
    %v200 = vld [vmem:[%s199] sm:$0x3]
    %s201 = scalar_lea.vmem %s0, 12
    %v202 = vld [vmem:[%s201] sm:$0x3]
    %204 = vrot.lane.b32.xlu0 %v202, 64
    %v205 = vpop.permute.xlu0 %204
    %v207 = vsel %vm32, %v200, %v205
    %v208 = vld [vmem:[%s1] sm:$0xff]
    %v209 = vld [vmem:[%s1 + $0x8] sm:$0xff]
    %v210 = vld [vmem:[%s1 + $0x10] sm:$0xff]
    %v211 = vld [vmem:[%s1 + $0x18] sm:$0xff]
    %v212 = vld [vmem:[%s1 + $0x20] sm:$0xff]
    %v213 = vld [vmem:[%s1 + $0x28] sm:$0xff]
    %v214 = vld [vmem:[%s1 + $0x30] sm:$0xff]
    %v215 = vld [vmem:[%s1 + $0x38] sm:$0xff]
    %v216 = vld [vmem:[%s1 + $0x40] sm:$0xff]
    %v217 = vld [vmem:[%s1 + $0x48] sm:$0xff]
    %v218 = vld [vmem:[%s1 + $0x50] sm:$0xff]
    %v219 = vld [vmem:[%s1 + $0x58] sm:$0xff]
    %v220 = vld [vmem:[%s1 + $0x60] sm:$0xff]
    %v221 = vld [vmem:[%s1 + $0x68] sm:$0xff]
    %v222 = vld [vmem:[%s1 + $0x70] sm:$0xff]
    %v223 = vld [vmem:[%s1 + $0x78] sm:$0xff]
    %v224 = vld [vmem:[%s1 + $0x80] sm:$0xff]
    %v225 = vld [vmem:[%s1 + $0x88] sm:$0xff]
    %v226 = vld [vmem:[%s1 + $0x90] sm:$0xff]
    %v227 = vld [vmem:[%s1 + $0x98] sm:$0xff]
    %v228 = vld [vmem:[%s1 + $0xa0] sm:$0xff]
    %v229 = vld [vmem:[%s1 + $0xa8] sm:$0xff]
    %v230 = vld [vmem:[%s1 + $0xb0] sm:$0xff]
    %v231 = vld [vmem:[%s1 + $0xb8] sm:$0xff]
    %v232 = vld [vmem:[%s1 + $0xc0] sm:$0xff]
    %v233 = vld [vmem:[%s1 + $0xc8] sm:$0xff]
    %v234 = vld [vmem:[%s1 + $0xd0] sm:$0xff]
    %v235 = vld [vmem:[%s1 + $0xd8] sm:$0xff]
    %v236 = vld [vmem:[%s1 + $0xe0] sm:$0xff]
    %v237 = vld [vmem:[%s1 + $0xe8] sm:$0xff]
    %v238 = vld [vmem:[%s1 + $0xf0] sm:$0xff]
    %v239 = vld [vmem:[%s1 + $0xf8] sm:$0xff]
    %v240 = vld [vmem:[%s1 + $0x100] sm:$0xff]
    %v241 = vld [vmem:[%s1 + $0x108] sm:$0xff]
    %v242 = vld [vmem:[%s1 + $0x110] sm:$0xff]
    %v243 = vld [vmem:[%s1 + $0x118] sm:$0xff]
    %v244 = vld [vmem:[%s1 + $0x120] sm:$0xff]
    %v245 = vld [vmem:[%s1 + $0x128] sm:$0xff]
    %v246 = vld [vmem:[%s1 + $0x130] sm:$0xff]
    %v247 = vld [vmem:[%s1 + $0x138] sm:$0xff]
    %v248 = vld [vmem:[%s1 + $0x140] sm:$0xff]
    %v249 = vld [vmem:[%s1 + $0x148] sm:$0xff]
    %v250 = vld [vmem:[%s1 + $0x150] sm:$0xff]
    %v251 = vld [vmem:[%s1 + $0x158] sm:$0xff]
    %v252 = vld [vmem:[%s1 + $0x160] sm:$0xff]
    %v253 = vld [vmem:[%s1 + $0x168] sm:$0xff]
    %v254 = vld [vmem:[%s1 + $0x170] sm:$0xff]
    %v255 = vld [vmem:[%s1 + $0x178] sm:$0xff]
    %v256 = vld [vmem:[%s2] sm:$0x3]
    %v258 = vlaneseq
    %v259 = vshrl.u32 %v258, 7
    %v260 = vsub.s32 0, %v259
    %v261 = vrot.slane %v256, %v260
    %v262 = vlaneseq
    %v263 = vshrl.u32 %v262, 7
    %v264 = vsub.s32 1, %v263
    %v265 = vrot.slane %v256, %v264
    %v268 = vsel %vm32, %v192, 0
    %270 = vmatprep.subr.mxu0 %v239
    %271 = vmatpush1.msra.mxu0 %v238
    %272 = vmatprep.subr.mxu0 %v237
    %273 = vmatpush1.msra.mxu0 %v236
    %274 = vmatprep.subr.mxu0 %v235
    %275 = vmatpush1.msra.mxu0 %v234
    %276 = vmatprep.subr.mxu0 %v233
    %277 = vmatpush1.msra.mxu0 %v232
    %278 = vmatprep.subr.mxu0 %v231
    %279 = vmatpush1.msra.mxu0 %v230
    %280 = vmatprep.subr.mxu0 %v229
    %281 = vmatpush1.msra.mxu0 %v228
    %282 = vmatprep.subr.mxu0 %v227
    %283 = vmatpush1.msra.mxu0 %v226
    %284 = vmatprep.subr.mxu0 %v225
    %285 = vmatpush1.msra.mxu0 %v224
    %286 = vmatprep.subr.mxu0 %v223
    %287 = vmatpush1.msra.mxu0 %v222
    %288 = vmatprep.subr.mxu0 %v221
    %289 = vmatpush1.msra.mxu0 %v220
    %290 = vmatprep.subr.mxu0 %v219
    %291 = vmatpush1.msra.mxu0 %v218
    %292 = vmatprep.subr.mxu0 %v217
    %293 = vmatpush1.msra.mxu0 %v216
    %294 = vmatprep.subr.mxu0 %v215
    %295 = vmatpush1.msra.mxu0 %v214
    %296 = vmatprep.subr.mxu0 %v213
    %297 = vmatpush1.msra.mxu0 %v212
    %298 = vmatprep.subr.mxu0 %v211
    %299 = vmatpush1.msra.mxu0 %v210
    %300 = vmatprep.subr.mxu0 %v209
    %301 = vmatpush1.msra.mxu0 %v208
    %302 = vmatprep.subr.mxu0 0.0
    %303 = vmatpush2.msra.mxu0 0.0
    %304 = vmatprep.subr.mxu0 0.0
    %305 = vmatpush2.msra.mxu0 0.0
    %306 = vmatprep.subr.mxu0 0.0
    %307 = vmatpush2.msra.mxu0 0.0
    %308 = vmatprep.subr.mxu0 0.0
    %309 = vmatpush2.msra.mxu0 0.0
    %310 = vmatprep.subr.mxu0 0.0
    %311 = vmatpush2.msra.mxu0 0.0
    %312 = vmatprep.subr.mxu0 0.0
    %313 = vmatpush2.msra.mxu0 0.0
    %314 = vmatprep.subr.mxu0 0.0
    %315 = vmatpush2.msra.mxu0 0.0
    %316 = vmatprep.subr.mxu0 0.0
    %317 = vmatpush2.msra.mxu0 0.0
    %318 = vmatprep.subr.mxu0 %v255
    %319 = vmatpush2.msra.mxu0 %v254
    %320 = vmatprep.subr.mxu0 %v253
    %321 = vmatpush2.msra.mxu0 %v252
    %322 = vmatprep.subr.mxu0 %v251
    %323 = vmatpush2.msra.mxu0 %v250
    %324 = vmatprep.subr.mxu0 %v249
    %325 = vmatpush2.msra.mxu0 %v248
    %326 = vmatprep.subr.mxu0 %v247
    %327 = vmatpush2.msra.mxu0 %v246
    %328 = vmatprep.subr.mxu0 %v245
    %329 = vmatpush2.msra.mxu0 %v244
    %330 = vmatprep.subr.mxu0 %v243
    %331 = vmatpush2.msra.mxu0 %v242
    %332 = vmatprep.subr.mxu0 %v241
    %333 = vmatpush2.msra.mxu0 %v240
    %334 = vmatprep.mubr.f32.mxu0 %v268
    %335 = vmatmul.mubr.f32.gmra.mxu0 %v207
    %v336 = vpop.f32.mrf.mxu0
    %v337 = vadd.f32 %v261, %v336
    %v338 = vpop.f32.mrf.mxu0
    %v339 = vadd.f32 %v265, %v338
    %340 = vdwg.mxu0
    %v341 = vxor.u32 %v337, 2147483648
    %v342 = vxor.u32 %v339, 2147483648
    %v343 = vmul.f32 %v341, 1.442695
    %v344 = vpow.pop %v343
    %v345 = vmul.f32 %v342, 1.442695
    %v346 = vpow.pop %v345
    %v347 = vadd.f32 %v344, 1.0
    %v348 = vadd.f32 %v346, 1.0
    %v349 = vrcp.pop %v347
    %v350 = vmul.f32 1.0, %v349
    %v351 = vrcp.pop %v348
    %v352 = vmul.f32 1.0, %v351
    %v353 = vtanh.pop %v339
    %v354 = vmul.f32 %v350, %v187
    %v355 = vmul.f32 %v350, %v353
    %357 = vrot.lane.b32.xlu0 %v355, 64
    %v358 = vpop.permute.xlu0 %357
    %v360 = vadd.f32 %v354, %v358
    %v361 = vtanh.pop %v360
    %v362 = vmul.f32 %v352, %v361
    %364 = vrot.lane.b32.xlu0 %v362, 64
    %v365 = vpop.permute.xlu0 %364
    %s367 = scalar_lea.vmem [#allocation2], 2
    %368 = vst.msk [vmem:[%s367] sm:$0x3] %vm194, %v365
    %s369 = scalar_lea.vmem [#allocation2], 12
    %370 = vst.msk [vmem:[%s369] sm:$0x3] %vm197, %v365
    %s371 = scalar_lea.vmem %s0, 4
    %v372 = vld [vmem:[%s371] sm:$0x3]
    %s373 = scalar_lea.vmem %s0, 10
    %v374 = vld [vmem:[%s373] sm:$0x3]
    %376 = vrot.lane.b32.xlu0 %v374, 64
    %v377 = vpop.permute.xlu0 %376
    %v379 = vsel %vm32, %v372, %v377
    %v380 = vld [vmem:[%s1] sm:$0xff]
    %v381 = vld [vmem:[%s1 + $0x8] sm:$0xff]
    %v382 = vld [vmem:[%s1 + $0x10] sm:$0xff]
    %v383 = vld [vmem:[%s1 + $0x18] sm:$0xff]
    %v384 = vld [vmem:[%s1 + $0x20] sm:$0xff]
    %v385 = vld [vmem:[%s1 + $0x28] sm:$0xff]
    %v386 = vld [vmem:[%s1 + $0x30] sm:$0xff]
    %v387 = vld [vmem:[%s1 + $0x38] sm:$0xff]
    %v388 = vld [vmem:[%s1 + $0x40] sm:$0xff]
    %v389 = vld [vmem:[%s1 + $0x48] sm:$0xff]
    %v390 = vld [vmem:[%s1 + $0x50] sm:$0xff]
    %v391 = vld [vmem:[%s1 + $0x58] sm:$0xff]
    %v392 = vld [vmem:[%s1 + $0x60] sm:$0xff]
    %v393 = vld [vmem:[%s1 + $0x68] sm:$0xff]
    %v394 = vld [vmem:[%s1 + $0x70] sm:$0xff]
    %v395 = vld [vmem:[%s1 + $0x78] sm:$0xff]
    %v396 = vld [vmem:[%s1 + $0x80] sm:$0xff]
    %v397 = vld [vmem:[%s1 + $0x88] sm:$0xff]
    %v398 = vld [vmem:[%s1 + $0x90] sm:$0xff]
    %v399 = vld [vmem:[%s1 + $0x98] sm:$0xff]
    %v400 = vld [vmem:[%s1 + $0xa0] sm:$0xff]
    %v401 = vld [vmem:[%s1 + $0xa8] sm:$0xff]
    %v402 = vld [vmem:[%s1 + $0xb0] sm:$0xff]
    %v403 = vld [vmem:[%s1 + $0xb8] sm:$0xff]
    %v404 = vld [vmem:[%s1 + $0xc0] sm:$0xff]
    %v405 = vld [vmem:[%s1 + $0xc8] sm:$0xff]
    %v406 = vld [vmem:[%s1 + $0xd0] sm:$0xff]
    %v407 = vld [vmem:[%s1 + $0xd8] sm:$0xff]
    %v408 = vld [vmem:[%s1 + $0xe0] sm:$0xff]
    %v409 = vld [vmem:[%s1 + $0xe8] sm:$0xff]
    %v410 = vld [vmem:[%s1 + $0xf0] sm:$0xff]
    %v411 = vld [vmem:[%s1 + $0xf8] sm:$0xff]
    %v412 = vld [vmem:[%s1 + $0x100] sm:$0xff]
    %v413 = vld [vmem:[%s1 + $0x108] sm:$0xff]
    %v414 = vld [vmem:[%s1 + $0x110] sm:$0xff]
    %v415 = vld [vmem:[%s1 + $0x118] sm:$0xff]
    %v416 = vld [vmem:[%s1 + $0x120] sm:$0xff]
    %v417 = vld [vmem:[%s1 + $0x128] sm:$0xff]
    %v418 = vld [vmem:[%s1 + $0x130] sm:$0xff]
    %v419 = vld [vmem:[%s1 + $0x138] sm:$0xff]
    %v420 = vld [vmem:[%s1 + $0x140] sm:$0xff]
    %v421 = vld [vmem:[%s1 + $0x148] sm:$0xff]
    %v422 = vld [vmem:[%s1 + $0x150] sm:$0xff]
    %v423 = vld [vmem:[%s1 + $0x158] sm:$0xff]
    %v424 = vld [vmem:[%s1 + $0x160] sm:$0xff]
    %v425 = vld [vmem:[%s1 + $0x168] sm:$0xff]
    %v426 = vld [vmem:[%s1 + $0x170] sm:$0xff]
    %v427 = vld [vmem:[%s1 + $0x178] sm:$0xff]
    %v428 = vld [vmem:[%s2] sm:$0x3]
    %v430 = vlaneseq
    %v431 = vshrl.u32 %v430, 7
    %v432 = vsub.s32 0, %v431
    %v433 = vrot.slane %v428, %v432
    %v434 = vlaneseq
    %v435 = vshrl.u32 %v434, 7
    %v436 = vsub.s32 1, %v435
    %v437 = vrot.slane %v428, %v436
    %v440 = vsel %vm32, %v365, 0
    %442 = vmatprep.subr.mxu0 %v411
    %443 = vmatpush1.msra.mxu0 %v410
    %444 = vmatprep.subr.mxu0 %v409
    %445 = vmatpush1.msra.mxu0 %v408
    %446 = vmatprep.subr.mxu0 %v407
    %447 = vmatpush1.msra.mxu0 %v406
    %448 = vmatprep.subr.mxu0 %v405
    %449 = vmatpush1.msra.mxu0 %v404
    %450 = vmatprep.subr.mxu0 %v403
    %451 = vmatpush1.msra.mxu0 %v402
    %452 = vmatprep.subr.mxu0 %v401
    %453 = vmatpush1.msra.mxu0 %v400
    %454 = vmatprep.subr.mxu0 %v399
    %455 = vmatpush1.msra.mxu0 %v398
    %456 = vmatprep.subr.mxu0 %v397
    %457 = vmatpush1.msra.mxu0 %v396
    %458 = vmatprep.subr.mxu0 %v395
    %459 = vmatpush1.msra.mxu0 %v394
    %460 = vmatprep.subr.mxu0 %v393
    %461 = vmatpush1.msra.mxu0 %v392
    %462 = vmatprep.subr.mxu0 %v391
    %463 = vmatpush1.msra.mxu0 %v390
    %464 = vmatprep.subr.mxu0 %v389
    %465 = vmatpush1.msra.mxu0 %v388
    %466 = vmatprep.subr.mxu0 %v387
    %467 = vmatpush1.msra.mxu0 %v386
    %468 = vmatprep.subr.mxu0 %v385
    %469 = vmatpush1.msra.mxu0 %v384
    %470 = vmatprep.subr.mxu0 %v383
    %471 = vmatpush1.msra.mxu0 %v382
    %472 = vmatprep.subr.mxu0 %v381
    %473 = vmatpush1.msra.mxu0 %v380
    %474 = vmatprep.subr.mxu0 0.0
    %475 = vmatpush2.msra.mxu0 0.0
    %476 = vmatprep.subr.mxu0 0.0
    %477 = vmatpush2.msra.mxu0 0.0
    %478 = vmatprep.subr.mxu0 0.0
    %479 = vmatpush2.msra.mxu0 0.0
    %480 = vmatprep.subr.mxu0 0.0
    %481 = vmatpush2.msra.mxu0 0.0
    %482 = vmatprep.subr.mxu0 0.0
    %483 = vmatpush2.msra.mxu0 0.0
    %484 = vmatprep.subr.mxu0 0.0
    %485 = vmatpush2.msra.mxu0 0.0
    %486 = vmatprep.subr.mxu0 0.0
    %487 = vmatpush2.msra.mxu0 0.0
    %488 = vmatprep.subr.mxu0 0.0
    %489 = vmatpush2.msra.mxu0 0.0
    %490 = vmatprep.subr.mxu0 %v427
    %491 = vmatpush2.msra.mxu0 %v426
    %492 = vmatprep.subr.mxu0 %v425
    %493 = vmatpush2.msra.mxu0 %v424
    %494 = vmatprep.subr.mxu0 %v423
    %495 = vmatpush2.msra.mxu0 %v422
    %496 = vmatprep.subr.mxu0 %v421
    %497 = vmatpush2.msra.mxu0 %v420
    %498 = vmatprep.subr.mxu0 %v419
    %499 = vmatpush2.msra.mxu0 %v418
    %500 = vmatprep.subr.mxu0 %v417
    %501 = vmatpush2.msra.mxu0 %v416
    %502 = vmatprep.subr.mxu0 %v415
    %503 = vmatpush2.msra.mxu0 %v414
    %504 = vmatprep.subr.mxu0 %v413
    %505 = vmatpush2.msra.mxu0 %v412
    %506 = vmatprep.mubr.f32.mxu0 %v440
    %507 = vmatmul.mubr.f32.gmra.mxu0 %v379
    %v508 = vpop.f32.mrf.mxu0
    %v509 = vadd.f32 %v433, %v508
    %v510 = vpop.f32.mrf.mxu0
    %v511 = vadd.f32 %v437, %v510
    %512 = vdwg.mxu0
    %v513 = vxor.u32 %v509, 2147483648
    %v514 = vxor.u32 %v511, 2147483648
    %v515 = vmul.f32 %v513, 1.442695
    %v516 = vpow.pop %v515
    %v517 = vmul.f32 %v514, 1.442695
    %v518 = vpow.pop %v517
    %v519 = vadd.f32 %v516, 1.0
    %v520 = vadd.f32 %v518, 1.0
    %v521 = vrcp.pop %v519
    %v522 = vmul.f32 1.0, %v521
    %v523 = vrcp.pop %v520
    %v524 = vmul.f32 1.0, %v523
    %v525 = vtanh.pop %v511
    %v526 = vmul.f32 %v522, %v360
    %v527 = vmul.f32 %v522, %v525
    %529 = vrot.lane.b32.xlu0 %v527, 64
    %v530 = vpop.permute.xlu0 %529
    %v532 = vadd.f32 %v526, %v530
    %v533 = vtanh.pop %v532
    %v534 = vmul.f32 %v524, %v533
    %536 = vrot.lane.b32.xlu0 %v534, 64
    %v537 = vpop.permute.xlu0 %536
    %s539 = scalar_lea.vmem [#allocation2], 4
    %540 = vst.msk [vmem:[%s539] sm:$0x3] %vm194, %v537
    %s541 = scalar_lea.vmem [#allocation2], 10
    %542 = vst.msk [vmem:[%s541] sm:$0x3] %vm197, %v537
    %s543 = scalar_lea.vmem %s0, 6
    %v544 = vld [vmem:[%s543] sm:$0x3]
    %s545 = scalar_lea.vmem %s0, 8
    %v546 = vld [vmem:[%s545] sm:$0x3]
    %548 = vrot.lane.b32.xlu0 %v546, 64
    %v549 = vpop.permute.xlu0 %548
    %v551 = vsel %vm32, %v544, %v549
    %v552 = vld [vmem:[%s1] sm:$0xff]
    %v553 = vld [vmem:[%s1 + $0x8] sm:$0xff]
    %v554 = vld [vmem:[%s1 + $0x10] sm:$0xff]
    %v555 = vld [vmem:[%s1 + $0x18] sm:$0xff]
    %v556 = vld [vmem:[%s1 + $0x20] sm:$0xff]
    %v557 = vld [vmem:[%s1 + $0x28] sm:$0xff]
    %v558 = vld [vmem:[%s1 + $0x30] sm:$0xff]
    %v559 = vld [vmem:[%s1 + $0x38] sm:$0xff]
    %v560 = vld [vmem:[%s1 + $0x40] sm:$0xff]
    %v561 = vld [vmem:[%s1 + $0x48] sm:$0xff]
    %v562 = vld [vmem:[%s1 + $0x50] sm:$0xff]
    %v563 = vld [vmem:[%s1 + $0x58] sm:$0xff]
    %v564 = vld [vmem:[%s1 + $0x60] sm:$0xff]
    %v565 = vld [vmem:[%s1 + $0x68] sm:$0xff]
    %v566 = vld [vmem:[%s1 + $0x70] sm:$0xff]
    %v567 = vld [vmem:[%s1 + $0x78] sm:$0xff]
    %v568 = vld [vmem:[%s1 + $0x80] sm:$0xff]
    %v569 = vld [vmem:[%s1 + $0x88] sm:$0xff]
    %v570 = vld [vmem:[%s1 + $0x90] sm:$0xff]
    %v571 = vld [vmem:[%s1 + $0x98] sm:$0xff]
    %v572 = vld [vmem:[%s1 + $0xa0] sm:$0xff]
    %v573 = vld [vmem:[%s1 + $0xa8] sm:$0xff]
    %v574 = vld [vmem:[%s1 + $0xb0] sm:$0xff]
    %v575 = vld [vmem:[%s1 + $0xb8] sm:$0xff]
    %v576 = vld [vmem:[%s1 + $0xc0] sm:$0xff]
    %v577 = vld [vmem:[%s1 + $0xc8] sm:$0xff]
    %v578 = vld [vmem:[%s1 + $0xd0] sm:$0xff]
    %v579 = vld [vmem:[%s1 + $0xd8] sm:$0xff]
    %v580 = vld [vmem:[%s1 + $0xe0] sm:$0xff]
    %v581 = vld [vmem:[%s1 + $0xe8] sm:$0xff]
    %v582 = vld [vmem:[%s1 + $0xf0] sm:$0xff]
    %v583 = vld [vmem:[%s1 + $0xf8] sm:$0xff]
    %v584 = vld [vmem:[%s1 + $0x100] sm:$0xff]
    %v585 = vld [vmem:[%s1 + $0x108] sm:$0xff]
    %v586 = vld [vmem:[%s1 + $0x110] sm:$0xff]
    %v587 = vld [vmem:[%s1 + $0x118] sm:$0xff]
    %v588 = vld [vmem:[%s1 + $0x120] sm:$0xff]
    %v589 = vld [vmem:[%s1 + $0x128] sm:$0xff]
    %v590 = vld [vmem:[%s1 + $0x130] sm:$0xff]
    %v591 = vld [vmem:[%s1 + $0x138] sm:$0xff]
    %v592 = vld [vmem:[%s1 + $0x140] sm:$0xff]
    %v593 = vld [vmem:[%s1 + $0x148] sm:$0xff]
    %v594 = vld [vmem:[%s1 + $0x150] sm:$0xff]
    %v595 = vld [vmem:[%s1 + $0x158] sm:$0xff]
    %v596 = vld [vmem:[%s1 + $0x160] sm:$0xff]
    %v597 = vld [vmem:[%s1 + $0x168] sm:$0xff]
    %v598 = vld [vmem:[%s1 + $0x170] sm:$0xff]
    %v599 = vld [vmem:[%s1 + $0x178] sm:$0xff]
    %v600 = vld [vmem:[%s2] sm:$0x3]
    %v602 = vlaneseq
    %v603 = vshrl.u32 %v602, 7
    %v604 = vsub.s32 0, %v603
    %v605 = vrot.slane %v600, %v604
    %v606 = vlaneseq
    %v607 = vshrl.u32 %v606, 7
    %v608 = vsub.s32 1, %v607
    %v609 = vrot.slane %v600, %v608
    %v612 = vsel %vm32, %v537, 0
    %614 = vmatprep.subr.mxu0 %v583
    %615 = vmatpush1.msra.mxu0 %v582
    %616 = vmatprep.subr.mxu0 %v581
    %617 = vmatpush1.msra.mxu0 %v580
    %618 = vmatprep.subr.mxu0 %v579
    %619 = vmatpush1.msra.mxu0 %v578
    %620 = vmatprep.subr.mxu0 %v577
    %621 = vmatpush1.msra.mxu0 %v576
    %622 = vmatprep.subr.mxu0 %v575
    %623 = vmatpush1.msra.mxu0 %v574
    %624 = vmatprep.subr.mxu0 %v573
    %625 = vmatpush1.msra.mxu0 %v572
    %626 = vmatprep.subr.mxu0 %v571
    %627 = vmatpush1.msra.mxu0 %v570
    %628 = vmatprep.subr.mxu0 %v569
    %629 = vmatpush1.msra.mxu0 %v568
    %630 = vmatprep.subr.mxu0 %v567
    %631 = vmatpush1.msra.mxu0 %v566
    %632 = vmatprep.subr.mxu0 %v565
    %633 = vmatpush1.msra.mxu0 %v564
    %634 = vmatprep.subr.mxu0 %v563
    %635 = vmatpush1.msra.mxu0 %v562
    %636 = vmatprep.subr.mxu0 %v561
    %637 = vmatpush1.msra.mxu0 %v560
    %638 = vmatprep.subr.mxu0 %v559
    %639 = vmatpush1.msra.mxu0 %v558
    %640 = vmatprep.subr.mxu0 %v557
    %641 = vmatpush1.msra.mxu0 %v556
    %642 = vmatprep.subr.mxu0 %v555
    %643 = vmatpush1.msra.mxu0 %v554
    %644 = vmatprep.subr.mxu0 %v553
    %645 = vmatpush1.msra.mxu0 %v552
    %646 = vmatprep.subr.mxu0 0.0
    %647 = vmatpush2.msra.mxu0 0.0
    %648 = vmatprep.subr.mxu0 0.0
    %649 = vmatpush2.msra.mxu0 0.0
    %650 = vmatprep.subr.mxu0 0.0
    %651 = vmatpush2.msra.mxu0 0.0
    %652 = vmatprep.subr.mxu0 0.0
    %653 = vmatpush2.msra.mxu0 0.0
    %654 = vmatprep.subr.mxu0 0.0
    %655 = vmatpush2.msra.mxu0 0.0
    %656 = vmatprep.subr.mxu0 0.0
    %657 = vmatpush2.msra.mxu0 0.0
    %658 = vmatprep.subr.mxu0 0.0
    %659 = vmatpush2.msra.mxu0 0.0
    %660 = vmatprep.subr.mxu0 0.0
    %661 = vmatpush2.msra.mxu0 0.0
    %662 = vmatprep.subr.mxu0 %v599
    %663 = vmatpush2.msra.mxu0 %v598
    %664 = vmatprep.subr.mxu0 %v597
    %665 = vmatpush2.msra.mxu0 %v596
    %666 = vmatprep.subr.mxu0 %v595
    %667 = vmatpush2.msra.mxu0 %v594
    %668 = vmatprep.subr.mxu0 %v593
    %669 = vmatpush2.msra.mxu0 %v592
    %670 = vmatprep.subr.mxu0 %v591
    %671 = vmatpush2.msra.mxu0 %v590
    %672 = vmatprep.subr.mxu0 %v589
    %673 = vmatpush2.msra.mxu0 %v588
    %674 = vmatprep.subr.mxu0 %v587
    %675 = vmatpush2.msra.mxu0 %v586
    %676 = vmatprep.subr.mxu0 %v585
    %677 = vmatpush2.msra.mxu0 %v584
    %678 = vmatprep.mubr.f32.mxu0 %v612
    %679 = vmatmul.mubr.f32.gmra.mxu0 %v551
    %v680 = vpop.f32.mrf.mxu0
    %v681 = vadd.f32 %v605, %v680
    %v682 = vpop.f32.mrf.mxu0
    %v683 = vadd.f32 %v609, %v682
    %684 = vdwg.mxu0
    %v685 = vxor.u32 %v681, 2147483648
    %v686 = vxor.u32 %v683, 2147483648
    %v687 = vmul.f32 %v685, 1.442695
    %v688 = vpow.pop %v687
    %v689 = vmul.f32 %v686, 1.442695
    %v690 = vpow.pop %v689
    %v691 = vadd.f32 %v688, 1.0
    %v692 = vadd.f32 %v690, 1.0
    %v693 = vrcp.pop %v691
    %v694 = vmul.f32 1.0, %v693
    %v695 = vrcp.pop %v692
    %v696 = vmul.f32 1.0, %v695
    %v697 = vtanh.pop %v683
    %v698 = vmul.f32 %v694, %v532
    %v699 = vmul.f32 %v694, %v697
    %701 = vrot.lane.b32.xlu0 %v699, 64
    %v702 = vpop.permute.xlu0 %701
    %v704 = vadd.f32 %v698, %v702
    %v705 = vtanh.pop %v704
    %v706 = vmul.f32 %v696, %v705
    %708 = vrot.lane.b32.xlu0 %v706, 64
    %v709 = vpop.permute.xlu0 %708
    %s711 = scalar_lea.vmem [#allocation2], 6
    %712 = vst.msk [vmem:[%s711] sm:$0x3] %vm194, %v709
    %s713 = scalar_lea.vmem [#allocation2], 8
    %714 = vst.msk [vmem:[%s713] sm:$0x3] %vm197, %v709
    %v715 = vld [vmem:[%s545] sm:$0x3]
    %v716 = vld [vmem:[%s543] sm:$0x3]
    %718 = vrot.lane.b32.xlu0 %v716, 64
    %v719 = vpop.permute.xlu0 %718
    %v721 = vsel %vm32, %v715, %v719
    %v722 = vld [vmem:[%s1] sm:$0xff]
    %v723 = vld [vmem:[%s1 + $0x8] sm:$0xff]
    %v724 = vld [vmem:[%s1 + $0x10] sm:$0xff]
    %v725 = vld [vmem:[%s1 + $0x18] sm:$0xff]
    %v726 = vld [vmem:[%s1 + $0x20] sm:$0xff]
    %v727 = vld [vmem:[%s1 + $0x28] sm:$0xff]
    %v728 = vld [vmem:[%s1 + $0x30] sm:$0xff]
    %v729 = vld [vmem:[%s1 + $0x38] sm:$0xff]
    %v730 = vld [vmem:[%s1 + $0x40] sm:$0xff]
    %v731 = vld [vmem:[%s1 + $0x48] sm:$0xff]
    %v732 = vld [vmem:[%s1 + $0x50] sm:$0xff]
    %v733 = vld [vmem:[%s1 + $0x58] sm:$0xff]
    %v734 = vld [vmem:[%s1 + $0x60] sm:$0xff]
    %v735 = vld [vmem:[%s1 + $0x68] sm:$0xff]
    %v736 = vld [vmem:[%s1 + $0x70] sm:$0xff]
    %v737 = vld [vmem:[%s1 + $0x78] sm:$0xff]
    %v738 = vld [vmem:[%s1 + $0x80] sm:$0xff]
    %v739 = vld [vmem:[%s1 + $0x88] sm:$0xff]
    %v740 = vld [vmem:[%s1 + $0x90] sm:$0xff]
    %v741 = vld [vmem:[%s1 + $0x98] sm:$0xff]
    %v742 = vld [vmem:[%s1 + $0xa0] sm:$0xff]
    %v743 = vld [vmem:[%s1 + $0xa8] sm:$0xff]
    %v744 = vld [vmem:[%s1 + $0xb0] sm:$0xff]
    %v745 = vld [vmem:[%s1 + $0xb8] sm:$0xff]
    %v746 = vld [vmem:[%s1 + $0xc0] sm:$0xff]
    %v747 = vld [vmem:[%s1 + $0xc8] sm:$0xff]
    %v748 = vld [vmem:[%s1 + $0xd0] sm:$0xff]
    %v749 = vld [vmem:[%s1 + $0xd8] sm:$0xff]
    %v750 = vld [vmem:[%s1 + $0xe0] sm:$0xff]
    %v751 = vld [vmem:[%s1 + $0xe8] sm:$0xff]
    %v752 = vld [vmem:[%s1 + $0xf0] sm:$0xff]
    %v753 = vld [vmem:[%s1 + $0xf8] sm:$0xff]
    %v754 = vld [vmem:[%s1 + $0x100] sm:$0xff]
    %v755 = vld [vmem:[%s1 + $0x108] sm:$0xff]
    %v756 = vld [vmem:[%s1 + $0x110] sm:$0xff]
    %v757 = vld [vmem:[%s1 + $0x118] sm:$0xff]
    %v758 = vld [vmem:[%s1 + $0x120] sm:$0xff]
    %v759 = vld [vmem:[%s1 + $0x128] sm:$0xff]
    %v760 = vld [vmem:[%s1 + $0x130] sm:$0xff]
    %v761 = vld [vmem:[%s1 + $0x138] sm:$0xff]
    %v762 = vld [vmem:[%s1 + $0x140] sm:$0xff]
    %v763 = vld [vmem:[%s1 + $0x148] sm:$0xff]
    %v764 = vld [vmem:[%s1 + $0x150] sm:$0xff]
    %v765 = vld [vmem:[%s1 + $0x158] sm:$0xff]
    %v766 = vld [vmem:[%s1 + $0x160] sm:$0xff]
    %v767 = vld [vmem:[%s1 + $0x168] sm:$0xff]
    %v768 = vld [vmem:[%s1 + $0x170] sm:$0xff]
    %v769 = vld [vmem:[%s1 + $0x178] sm:$0xff]
    %v770 = vld [vmem:[%s2] sm:$0x3]
    %v772 = vlaneseq
    %v773 = vshrl.u32 %v772, 7
    %v774 = vsub.s32 0, %v773
    %v775 = vrot.slane %v770, %v774
    %v776 = vlaneseq
    %v777 = vshrl.u32 %v776, 7
    %v778 = vsub.s32 1, %v777
    %v779 = vrot.slane %v770, %v778
    %v782 = vsel %vm32, %v709, 0
    %784 = vmatprep.subr.mxu0 %v753
    %785 = vmatpush1.msra.mxu0 %v752
    %786 = vmatprep.subr.mxu0 %v751
    %787 = vmatpush1.msra.mxu0 %v750
    %788 = vmatprep.subr.mxu0 %v749
    %789 = vmatpush1.msra.mxu0 %v748
    %790 = vmatprep.subr.mxu0 %v747
    %791 = vmatpush1.msra.mxu0 %v746
    %792 = vmatprep.subr.mxu0 %v745
    %793 = vmatpush1.msra.mxu0 %v744
    %794 = vmatprep.subr.mxu0 %v743
    %795 = vmatpush1.msra.mxu0 %v742
    %796 = vmatprep.subr.mxu0 %v741
    %797 = vmatpush1.msra.mxu0 %v740
    %798 = vmatprep.subr.mxu0 %v739
    %799 = vmatpush1.msra.mxu0 %v738
    %800 = vmatprep.subr.mxu0 %v737
    %801 = vmatpush1.msra.mxu0 %v736
    %802 = vmatprep.subr.mxu0 %v735
    %803 = vmatpush1.msra.mxu0 %v734
    %804 = vmatprep.subr.mxu0 %v733
    %805 = vmatpush1.msra.mxu0 %v732
    %806 = vmatprep.subr.mxu0 %v731
    %807 = vmatpush1.msra.mxu0 %v730
    %808 = vmatprep.subr.mxu0 %v729
    %809 = vmatpush1.msra.mxu0 %v728
    %810 = vmatprep.subr.mxu0 %v727
    %811 = vmatpush1.msra.mxu0 %v726
    %812 = vmatprep.subr.mxu0 %v725
    %813 = vmatpush1.msra.mxu0 %v724
    %814 = vmatprep.subr.mxu0 %v723
    %815 = vmatpush1.msra.mxu0 %v722
    %816 = vmatprep.subr.mxu0 0.0
    %817 = vmatpush2.msra.mxu0 0.0
    %818 = vmatprep.subr.mxu0 0.0
    %819 = vmatpush2.msra.mxu0 0.0
    %820 = vmatprep.subr.mxu0 0.0
    %821 = vmatpush2.msra.mxu0 0.0
    %822 = vmatprep.subr.mxu0 0.0
    %823 = vmatpush2.msra.mxu0 0.0
    %824 = vmatprep.subr.mxu0 0.0
    %825 = vmatpush2.msra.mxu0 0.0
    %826 = vmatprep.subr.mxu0 0.0
    %827 = vmatpush2.msra.mxu0 0.0
    %828 = vmatprep.subr.mxu0 0.0
    %829 = vmatpush2.msra.mxu0 0.0
    %830 = vmatprep.subr.mxu0 0.0
    %831 = vmatpush2.msra.mxu0 0.0
    %832 = vmatprep.subr.mxu0 %v769
    %833 = vmatpush2.msra.mxu0 %v768
    %834 = vmatprep.subr.mxu0 %v767
    %835 = vmatpush2.msra.mxu0 %v766
    %836 = vmatprep.subr.mxu0 %v765
    %837 = vmatpush2.msra.mxu0 %v764
    %838 = vmatprep.subr.mxu0 %v763
    %839 = vmatpush2.msra.mxu0 %v762
    %840 = vmatprep.subr.mxu0 %v761
    %841 = vmatpush2.msra.mxu0 %v760
    %842 = vmatprep.subr.mxu0 %v759
    %843 = vmatpush2.msra.mxu0 %v758
    %844 = vmatprep.subr.mxu0 %v757
    %845 = vmatpush2.msra.mxu0 %v756
    %846 = vmatprep.subr.mxu0 %v755
    %847 = vmatpush2.msra.mxu0 %v754
    %848 = vmatprep.mubr.f32.mxu0 %v782
    %849 = vmatmul.mubr.f32.gmra.mxu0 %v721
    %v850 = vpop.f32.mrf.mxu0
    %v851 = vadd.f32 %v775, %v850
    %v852 = vpop.f32.mrf.mxu0
    %v853 = vadd.f32 %v779, %v852
    %854 = vdwg.mxu0
    %v855 = vxor.u32 %v851, 2147483648
    %v856 = vxor.u32 %v853, 2147483648
    %v857 = vmul.f32 %v855, 1.442695
    %v858 = vpow.pop %v857
    %v859 = vmul.f32 %v856, 1.442695
    %v860 = vpow.pop %v859
    %v861 = vadd.f32 %v858, 1.0
    %v862 = vadd.f32 %v860, 1.0
    %v863 = vrcp.pop %v861
    %v864 = vmul.f32 1.0, %v863
    %v865 = vrcp.pop %v862
    %v866 = vmul.f32 1.0, %v865
    %v867 = vtanh.pop %v853
    %v868 = vmul.f32 %v864, %v704
    %v869 = vmul.f32 %v864, %v867
    %871 = vrot.lane.b32.xlu0 %v869, 64
    %v872 = vpop.permute.xlu0 %871
    %v874 = vadd.f32 %v868, %v872
    %v875 = vtanh.pop %v874
    %v876 = vmul.f32 %v866, %v875
    %878 = vrot.lane.b32.xlu0 %v876, 64
    %v879 = vpop.permute.xlu0 %878
    %881 = vst.msk [vmem:[%s713] sm:$0x3] %vm194, %v879
    %882 = vst.msk [vmem:[%s711] sm:$0x3] %vm197, %v879
    %v883 = vld [vmem:[%s373] sm:$0x3]
    %v884 = vld [vmem:[%s371] sm:$0x3]
    %886 = vrot.lane.b32.xlu0 %v884, 64
    %v887 = vpop.permute.xlu0 %886
    %v889 = vsel %vm32, %v883, %v887
    %v890 = vld [vmem:[%s1] sm:$0xff]
    %v891 = vld [vmem:[%s1 + $0x8] sm:$0xff]
    %v892 = vld [vmem:[%s1 + $0x10] sm:$0xff]
    %v893 = vld [vmem:[%s1 + $0x18] sm:$0xff]
    %v894 = vld [vmem:[%s1 + $0x20] sm:$0xff]
    %v895 = vld [vmem:[%s1 + $0x28] sm:$0xff]
    %v896 = vld [vmem:[%s1 + $0x30] sm:$0xff]
    %v897 = vld [vmem:[%s1 + $0x38] sm:$0xff]
    %v898 = vld [vmem:[%s1 + $0x40] sm:$0xff]
    %v899 = vld [vmem:[%s1 + $0x48] sm:$0xff]
    %v900 = vld [vmem:[%s1 + $0x50] sm:$0xff]
    %v901 = vld [vmem:[%s1 + $0x58] sm:$0xff]
    %v902 = vld [vmem:[%s1 + $0x60] sm:$0xff]
    %v903 = vld [vmem:[%s1 + $0x68] sm:$0xff]
    %v904 = vld [vmem:[%s1 + $0x70] sm:$0xff]
    %v905 = vld [vmem:[%s1 + $0x78] sm:$0xff]
    %v906 = vld [vmem:[%s1 + $0x80] sm:$0xff]
    %v907 = vld [vmem:[%s1 + $0x88] sm:$0xff]
    %v908 = vld [vmem:[%s1 + $0x90] sm:$0xff]
    %v909 = vld [vmem:[%s1 + $0x98] sm:$0xff]
    %v910 = vld [vmem:[%s1 + $0xa0] sm:$0xff]
    %v911 = vld [vmem:[%s1 + $0xa8] sm:$0xff]
    %v912 = vld [vmem:[%s1 + $0xb0] sm:$0xff]
    %v913 = vld [vmem:[%s1 + $0xb8] sm:$0xff]
    %v914 = vld [vmem:[%s1 + $0xc0] sm:$0xff]
    %v915 = vld [vmem:[%s1 + $0xc8] sm:$0xff]
    %v916 = vld [vmem:[%s1 + $0xd0] sm:$0xff]
    %v917 = vld [vmem:[%s1 + $0xd8] sm:$0xff]
    %v918 = vld [vmem:[%s1 + $0xe0] sm:$0xff]
    %v919 = vld [vmem:[%s1 + $0xe8] sm:$0xff]
    %v920 = vld [vmem:[%s1 + $0xf0] sm:$0xff]
    %v921 = vld [vmem:[%s1 + $0xf8] sm:$0xff]
    %v922 = vld [vmem:[%s1 + $0x100] sm:$0xff]
    %v923 = vld [vmem:[%s1 + $0x108] sm:$0xff]
    %v924 = vld [vmem:[%s1 + $0x110] sm:$0xff]
    %v925 = vld [vmem:[%s1 + $0x118] sm:$0xff]
    %v926 = vld [vmem:[%s1 + $0x120] sm:$0xff]
    %v927 = vld [vmem:[%s1 + $0x128] sm:$0xff]
    %v928 = vld [vmem:[%s1 + $0x130] sm:$0xff]
    %v929 = vld [vmem:[%s1 + $0x138] sm:$0xff]
    %v930 = vld [vmem:[%s1 + $0x140] sm:$0xff]
    %v931 = vld [vmem:[%s1 + $0x148] sm:$0xff]
    %v932 = vld [vmem:[%s1 + $0x150] sm:$0xff]
    %v933 = vld [vmem:[%s1 + $0x158] sm:$0xff]
    %v934 = vld [vmem:[%s1 + $0x160] sm:$0xff]
    %v935 = vld [vmem:[%s1 + $0x168] sm:$0xff]
    %v936 = vld [vmem:[%s1 + $0x170] sm:$0xff]
    %v937 = vld [vmem:[%s1 + $0x178] sm:$0xff]
    %v938 = vld [vmem:[%s2] sm:$0x3]
    %v940 = vlaneseq
    %v941 = vshrl.u32 %v940, 7
    %v942 = vsub.s32 0, %v941
    %v943 = vrot.slane %v938, %v942
    %v944 = vlaneseq
    %v945 = vshrl.u32 %v944, 7
    %v946 = vsub.s32 1, %v945
    %v947 = vrot.slane %v938, %v946
    %v950 = vsel %vm32, %v879, 0
    %952 = vmatprep.subr.mxu0 %v921
    %953 = vmatpush1.msra.mxu0 %v920
    %954 = vmatprep.subr.mxu0 %v919
    %955 = vmatpush1.msra.mxu0 %v918
    %956 = vmatprep.subr.mxu0 %v917
    %957 = vmatpush1.msra.mxu0 %v916
    %958 = vmatprep.subr.mxu0 %v915
    %959 = vmatpush1.msra.mxu0 %v914
    %960 = vmatprep.subr.mxu0 %v913
    %961 = vmatpush1.msra.mxu0 %v912
    %962 = vmatprep.subr.mxu0 %v911
    %963 = vmatpush1.msra.mxu0 %v910
    %964 = vmatprep.subr.mxu0 %v909
    %965 = vmatpush1.msra.mxu0 %v908
    %966 = vmatprep.subr.mxu0 %v907
    %967 = vmatpush1.msra.mxu0 %v906
    %968 = vmatprep.subr.mxu0 %v905
    %969 = vmatpush1.msra.mxu0 %v904
    %970 = vmatprep.subr.mxu0 %v903
    %971 = vmatpush1.msra.mxu0 %v902
    %972 = vmatprep.subr.mxu0 %v901
    %973 = vmatpush1.msra.mxu0 %v900
    %974 = vmatprep.subr.mxu0 %v899
    %975 = vmatpush1.msra.mxu0 %v898
    %976 = vmatprep.subr.mxu0 %v897
    %977 = vmatpush1.msra.mxu0 %v896
    %978 = vmatprep.subr.mxu0 %v895
    %979 = vmatpush1.msra.mxu0 %v894
    %980 = vmatprep.subr.mxu0 %v893
    %981 = vmatpush1.msra.mxu0 %v892
    %982 = vmatprep.subr.mxu0 %v891
    %983 = vmatpush1.msra.mxu0 %v890
    %984 = vmatprep.subr.mxu0 0.0
    %985 = vmatpush2.msra.mxu0 0.0
    %986 = vmatprep.subr.mxu0 0.0
    %987 = vmatpush2.msra.mxu0 0.0
    %988 = vmatprep.subr.mxu0 0.0
    %989 = vmatpush2.msra.mxu0 0.0
    %990 = vmatprep.subr.mxu0 0.0
    %991 = vmatpush2.msra.mxu0 0.0
    %992 = vmatprep.subr.mxu0 0.0
    %993 = vmatpush2.msra.mxu0 0.0
    %994 = vmatprep.subr.mxu0 0.0
    %995 = vmatpush2.msra.mxu0 0.0
    %996 = vmatprep.subr.mxu0 0.0
    %997 = vmatpush2.msra.mxu0 0.0
    %998 = vmatprep.subr.mxu0 0.0
    %999 = vmatpush2.msra.mxu0 0.0
    %1000 = vmatprep.subr.mxu0 %v937
    %1001 = vmatpush2.msra.mxu0 %v936
    %1002 = vmatprep.subr.mxu0 %v935
    %1003 = vmatpush2.msra.mxu0 %v934
    %1004 = vmatprep.subr.mxu0 %v933
    %1005 = vmatpush2.msra.mxu0 %v932
    %1006 = vmatprep.subr.mxu0 %v931
    %1007 = vmatpush2.msra.mxu0 %v930
    %1008 = vmatprep.subr.mxu0 %v929
    %1009 = vmatpush2.msra.mxu0 %v928
    %1010 = vmatprep.subr.mxu0 %v927
    %1011 = vmatpush2.msra.mxu0 %v926
    %1012 = vmatprep.subr.mxu0 %v925
    %1013 = vmatpush2.msra.mxu0 %v924
    %1014 = vmatprep.subr.mxu0 %v923
    %1015 = vmatpush2.msra.mxu0 %v922
    %1016 = vmatprep.mubr.f32.mxu0 %v950
    %1017 = vmatmul.mubr.f32.gmra.mxu0 %v889
    %v1018 = vpop.f32.mrf.mxu0
    %v1019 = vadd.f32 %v943, %v1018
    %v1020 = vpop.f32.mrf.mxu0
    %v1021 = vadd.f32 %v947, %v1020
    %1022 = vdwg.mxu0
    %v1023 = vxor.u32 %v1019, 2147483648
    %v1024 = vxor.u32 %v1021, 2147483648
    %v1025 = vmul.f32 %v1023, 1.442695
    %v1026 = vpow.pop %v1025
    %v1027 = vmul.f32 %v1024, 1.442695
    %v1028 = vpow.pop %v1027
    %v1029 = vadd.f32 %v1026, 1.0
    %v1030 = vadd.f32 %v1028, 1.0
    %v1031 = vrcp.pop %v1029
    %v1032 = vmul.f32 1.0, %v1031
    %v1033 = vrcp.pop %v1030
    %v1034 = vmul.f32 1.0, %v1033
    %v1035 = vtanh.pop %v1021
    %v1036 = vmul.f32 %v1032, %v874
    %v1037 = vmul.f32 %v1032, %v1035
    %1039 = vrot.lane.b32.xlu0 %v1037, 64
    %v1040 = vpop.permute.xlu0 %1039
    %v1042 = vadd.f32 %v1036, %v1040
    %v1043 = vtanh.pop %v1042
    %v1044 = vmul.f32 %v1034, %v1043
    %1046 = vrot.lane.b32.xlu0 %v1044, 64
    %v1047 = vpop.permute.xlu0 %1046
    %1049 = vst.msk [vmem:[%s541] sm:$0x3] %vm194, %v1047
    %1050 = vst.msk [vmem:[%s539] sm:$0x3] %vm197, %v1047
    %v1051 = vld [vmem:[%s201] sm:$0x3]
    %v1052 = vld [vmem:[%s199] sm:$0x3]
    %1054 = vrot.lane.b32.xlu0 %v1052, 64
    %v1055 = vpop.permute.xlu0 %1054
    %v1057 = vsel %vm32, %v1051, %v1055
    %v1058 = vld [vmem:[%s1] sm:$0xff]
    %v1059 = vld [vmem:[%s1 + $0x8] sm:$0xff]
    %v1060 = vld [vmem:[%s1 + $0x10] sm:$0xff]
    %v1061 = vld [vmem:[%s1 + $0x18] sm:$0xff]
    %v1062 = vld [vmem:[%s1 + $0x20] sm:$0xff]
    %v1063 = vld [vmem:[%s1 + $0x28] sm:$0xff]
    %v1064 = vld [vmem:[%s1 + $0x30] sm:$0xff]
    %v1065 = vld [vmem:[%s1 + $0x38] sm:$0xff]
    %v1066 = vld [vmem:[%s1 + $0x40] sm:$0xff]
    %v1067 = vld [vmem:[%s1 + $0x48] sm:$0xff]
    %v1068 = vld [vmem:[%s1 + $0x50] sm:$0xff]
    %v1069 = vld [vmem:[%s1 + $0x58] sm:$0xff]
    %v1070 = vld [vmem:[%s1 + $0x60] sm:$0xff]
    %v1071 = vld [vmem:[%s1 + $0x68] sm:$0xff]
    %v1072 = vld [vmem:[%s1 + $0x70] sm:$0xff]
    %v1073 = vld [vmem:[%s1 + $0x78] sm:$0xff]
    %v1074 = vld [vmem:[%s1 + $0x80] sm:$0xff]
    %v1075 = vld [vmem:[%s1 + $0x88] sm:$0xff]
    %v1076 = vld [vmem:[%s1 + $0x90] sm:$0xff]
    %v1077 = vld [vmem:[%s1 + $0x98] sm:$0xff]
    %v1078 = vld [vmem:[%s1 + $0xa0] sm:$0xff]
    %v1079 = vld [vmem:[%s1 + $0xa8] sm:$0xff]
    %v1080 = vld [vmem:[%s1 + $0xb0] sm:$0xff]
    %v1081 = vld [vmem:[%s1 + $0xb8] sm:$0xff]
    %v1082 = vld [vmem:[%s1 + $0xc0] sm:$0xff]
    %v1083 = vld [vmem:[%s1 + $0xc8] sm:$0xff]
    %v1084 = vld [vmem:[%s1 + $0xd0] sm:$0xff]
    %v1085 = vld [vmem:[%s1 + $0xd8] sm:$0xff]
    %v1086 = vld [vmem:[%s1 + $0xe0] sm:$0xff]
    %v1087 = vld [vmem:[%s1 + $0xe8] sm:$0xff]
    %v1088 = vld [vmem:[%s1 + $0xf0] sm:$0xff]
    %v1089 = vld [vmem:[%s1 + $0xf8] sm:$0xff]
    %v1090 = vld [vmem:[%s1 + $0x100] sm:$0xff]
    %v1091 = vld [vmem:[%s1 + $0x108] sm:$0xff]
    %v1092 = vld [vmem:[%s1 + $0x110] sm:$0xff]
    %v1093 = vld [vmem:[%s1 + $0x118] sm:$0xff]
    %v1094 = vld [vmem:[%s1 + $0x120] sm:$0xff]
    %v1095 = vld [vmem:[%s1 + $0x128] sm:$0xff]
    %v1096 = vld [vmem:[%s1 + $0x130] sm:$0xff]
    %v1097 = vld [vmem:[%s1 + $0x138] sm:$0xff]
    %v1098 = vld [vmem:[%s1 + $0x140] sm:$0xff]
    %v1099 = vld [vmem:[%s1 + $0x148] sm:$0xff]
    %v1100 = vld [vmem:[%s1 + $0x150] sm:$0xff]
    %v1101 = vld [vmem:[%s1 + $0x158] sm:$0xff]
    %v1102 = vld [vmem:[%s1 + $0x160] sm:$0xff]
    %v1103 = vld [vmem:[%s1 + $0x168] sm:$0xff]
    %v1104 = vld [vmem:[%s1 + $0x170] sm:$0xff]
    %v1105 = vld [vmem:[%s1 + $0x178] sm:$0xff]
    %v1106 = vld [vmem:[%s2] sm:$0x3]
    %v1108 = vlaneseq
    %v1109 = vshrl.u32 %v1108, 7
    %v1110 = vsub.s32 0, %v1109
    %v1111 = vrot.slane %v1106, %v1110
    %v1112 = vlaneseq
    %v1113 = vshrl.u32 %v1112, 7
    %v1114 = vsub.s32 1, %v1113
    %v1115 = vrot.slane %v1106, %v1114
    %v1118 = vsel %vm32, %v1047, 0
    %1120 = vmatprep.subr.mxu0 %v1089
    %1121 = vmatpush1.msra.mxu0 %v1088
    %1122 = vmatprep.subr.mxu0 %v1087
    %1123 = vmatpush1.msra.mxu0 %v1086
    %1124 = vmatprep.subr.mxu0 %v1085
    %1125 = vmatpush1.msra.mxu0 %v1084
    %1126 = vmatprep.subr.mxu0 %v1083
    %1127 = vmatpush1.msra.mxu0 %v1082
    %1128 = vmatprep.subr.mxu0 %v1081
    %1129 = vmatpush1.msra.mxu0 %v1080
    %1130 = vmatprep.subr.mxu0 %v1079
    %1131 = vmatpush1.msra.mxu0 %v1078
    %1132 = vmatprep.subr.mxu0 %v1077
    %1133 = vmatpush1.msra.mxu0 %v1076
    %1134 = vmatprep.subr.mxu0 %v1075
    %1135 = vmatpush1.msra.mxu0 %v1074
    %1136 = vmatprep.subr.mxu0 %v1073
    %1137 = vmatpush1.msra.mxu0 %v1072
    %1138 = vmatprep.subr.mxu0 %v1071
    %1139 = vmatpush1.msra.mxu0 %v1070
    %1140 = vmatprep.subr.mxu0 %v1069
    %1141 = vmatpush1.msra.mxu0 %v1068
    %1142 = vmatprep.subr.mxu0 %v1067
    %1143 = vmatpush1.msra.mxu0 %v1066
    %1144 = vmatprep.subr.mxu0 %v1065
    %1145 = vmatpush1.msra.mxu0 %v1064
    %1146 = vmatprep.subr.mxu0 %v1063
    %1147 = vmatpush1.msra.mxu0 %v1062
    %1148 = vmatprep.subr.mxu0 %v1061
    %1149 = vmatpush1.msra.mxu0 %v1060
    %1150 = vmatprep.subr.mxu0 %v1059
    %1151 = vmatpush1.msra.mxu0 %v1058
    %1152 = vmatprep.subr.mxu0 0.0
    %1153 = vmatpush2.msra.mxu0 0.0
    %1154 = vmatprep.subr.mxu0 0.0
    %1155 = vmatpush2.msra.mxu0 0.0
    %1156 = vmatprep.subr.mxu0 0.0
    %1157 = vmatpush2.msra.mxu0 0.0
    %1158 = vmatprep.subr.mxu0 0.0
    %1159 = vmatpush2.msra.mxu0 0.0
    %1160 = vmatprep.subr.mxu0 0.0
    %1161 = vmatpush2.msra.mxu0 0.0
    %1162 = vmatprep.subr.mxu0 0.0
    %1163 = vmatpush2.msra.mxu0 0.0
    %1164 = vmatprep.subr.mxu0 0.0
    %1165 = vmatpush2.msra.mxu0 0.0
    %1166 = vmatprep.subr.mxu0 0.0
    %1167 = vmatpush2.msra.mxu0 0.0
    %1168 = vmatprep.subr.mxu0 %v1105
    %1169 = vmatpush2.msra.mxu0 %v1104
    %1170 = vmatprep.subr.mxu0 %v1103
    %1171 = vmatpush2.msra.mxu0 %v1102
    %1172 = vmatprep.subr.mxu0 %v1101
    %1173 = vmatpush2.msra.mxu0 %v1100
    %1174 = vmatprep.subr.mxu0 %v1099
    %1175 = vmatpush2.msra.mxu0 %v1098
    %1176 = vmatprep.subr.mxu0 %v1097
    %1177 = vmatpush2.msra.mxu0 %v1096
    %1178 = vmatprep.subr.mxu0 %v1095
    %1179 = vmatpush2.msra.mxu0 %v1094
    %1180 = vmatprep.subr.mxu0 %v1093
    %1181 = vmatpush2.msra.mxu0 %v1092
    %1182 = vmatprep.subr.mxu0 %v1091
    %1183 = vmatpush2.msra.mxu0 %v1090
    %1184 = vmatprep.mubr.f32.mxu0 %v1118
    %1185 = vmatmul.mubr.f32.gmra.mxu0 %v1057
    %v1186 = vpop.f32.mrf.mxu0
    %v1187 = vadd.f32 %v1111, %v1186
    %v1188 = vpop.f32.mrf.mxu0
    %v1189 = vadd.f32 %v1115, %v1188
    %1190 = vdwg.mxu0
    %v1191 = vxor.u32 %v1187, 2147483648
    %v1192 = vxor.u32 %v1189, 2147483648
    %v1193 = vmul.f32 %v1191, 1.442695
    %v1194 = vpow.pop %v1193
    %v1195 = vmul.f32 %v1192, 1.442695
    %v1196 = vpow.pop %v1195
    %v1197 = vadd.f32 %v1194, 1.0
    %v1198 = vadd.f32 %v1196, 1.0
    %v1199 = vrcp.pop %v1197
    %v1200 = vmul.f32 1.0, %v1199
    %v1201 = vrcp.pop %v1198
    %v1202 = vmul.f32 1.0, %v1201
    %v1203 = vtanh.pop %v1189
    %v1204 = vmul.f32 %v1200, %v1042
    %v1205 = vmul.f32 %v1200, %v1203
    %1207 = vrot.lane.b32.xlu0 %v1205, 64
    %v1208 = vpop.permute.xlu0 %1207
    %v1210 = vadd.f32 %v1204, %v1208
    %v1211 = vtanh.pop %v1210
    %v1212 = vmul.f32 %v1202, %v1211
    %1214 = vrot.lane.b32.xlu0 %v1212, 64
    %v1215 = vpop.permute.xlu0 %1214
    %1217 = vst.msk [vmem:[%s369] sm:$0x3] %vm194, %v1215
    %1218 = vst.msk [vmem:[%s367] sm:$0x3] %vm197, %v1215
    %v1219 = vld [vmem:[%s26] sm:$0x3]
    %v1220 = vld [vmem:[%s0] sm:$0x3]
    %1222 = vrot.lane.b32.xlu0 %v1220, 64
    %v1223 = vpop.permute.xlu0 %1222
    %v1225 = vsel %vm32, %v1219, %v1223
    %v1226 = vld [vmem:[%s1] sm:$0xff]
    %v1227 = vld [vmem:[%s1 + $0x8] sm:$0xff]
    %v1228 = vld [vmem:[%s1 + $0x10] sm:$0xff]
    %v1229 = vld [vmem:[%s1 + $0x18] sm:$0xff]
    %v1230 = vld [vmem:[%s1 + $0x20] sm:$0xff]
    %v1231 = vld [vmem:[%s1 + $0x28] sm:$0xff]
    %v1232 = vld [vmem:[%s1 + $0x30] sm:$0xff]
    %v1233 = vld [vmem:[%s1 + $0x38] sm:$0xff]
    %v1234 = vld [vmem:[%s1 + $0x40] sm:$0xff]
    %v1235 = vld [vmem:[%s1 + $0x48] sm:$0xff]
    %v1236 = vld [vmem:[%s1 + $0x50] sm:$0xff]
    %v1237 = vld [vmem:[%s1 + $0x58] sm:$0xff]
    %v1238 = vld [vmem:[%s1 + $0x60] sm:$0xff]
    %v1239 = vld [vmem:[%s1 + $0x68] sm:$0xff]
    %v1240 = vld [vmem:[%s1 + $0x70] sm:$0xff]
    %v1241 = vld [vmem:[%s1 + $0x78] sm:$0xff]
    %v1242 = vld [vmem:[%s1 + $0x80] sm:$0xff]
    %v1243 = vld [vmem:[%s1 + $0x88] sm:$0xff]
    %v1244 = vld [vmem:[%s1 + $0x90] sm:$0xff]
    %v1245 = vld [vmem:[%s1 + $0x98] sm:$0xff]
    %v1246 = vld [vmem:[%s1 + $0xa0] sm:$0xff]
    %v1247 = vld [vmem:[%s1 + $0xa8] sm:$0xff]
    %v1248 = vld [vmem:[%s1 + $0xb0] sm:$0xff]
    %v1249 = vld [vmem:[%s1 + $0xb8] sm:$0xff]
    %v1250 = vld [vmem:[%s1 + $0xc0] sm:$0xff]
    %v1251 = vld [vmem:[%s1 + $0xc8] sm:$0xff]
    %v1252 = vld [vmem:[%s1 + $0xd0] sm:$0xff]
    %v1253 = vld [vmem:[%s1 + $0xd8] sm:$0xff]
    %v1254 = vld [vmem:[%s1 + $0xe0] sm:$0xff]
    %v1255 = vld [vmem:[%s1 + $0xe8] sm:$0xff]
    %v1256 = vld [vmem:[%s1 + $0xf0] sm:$0xff]
    %v1257 = vld [vmem:[%s1 + $0xf8] sm:$0xff]
    %v1258 = vld [vmem:[%s1 + $0x100] sm:$0xff]
    %v1259 = vld [vmem:[%s1 + $0x108] sm:$0xff]
    %v1260 = vld [vmem:[%s1 + $0x110] sm:$0xff]
    %v1261 = vld [vmem:[%s1 + $0x118] sm:$0xff]
    %v1262 = vld [vmem:[%s1 + $0x120] sm:$0xff]
    %v1263 = vld [vmem:[%s1 + $0x128] sm:$0xff]
    %v1264 = vld [vmem:[%s1 + $0x130] sm:$0xff]
    %v1265 = vld [vmem:[%s1 + $0x138] sm:$0xff]
    %v1266 = vld [vmem:[%s1 + $0x140] sm:$0xff]
    %v1267 = vld [vmem:[%s1 + $0x148] sm:$0xff]
    %v1268 = vld [vmem:[%s1 + $0x150] sm:$0xff]
    %v1269 = vld [vmem:[%s1 + $0x158] sm:$0xff]
    %v1270 = vld [vmem:[%s1 + $0x160] sm:$0xff]
    %v1271 = vld [vmem:[%s1 + $0x168] sm:$0xff]
    %v1272 = vld [vmem:[%s1 + $0x170] sm:$0xff]
    %v1273 = vld [vmem:[%s1 + $0x178] sm:$0xff]
    %v1274 = vld [vmem:[%s2] sm:$0x3]
    %v1276 = vlaneseq
    %v1277 = vshrl.u32 %v1276, 7
    %v1278 = vsub.s32 0, %v1277
    %v1279 = vrot.slane %v1274, %v1278
    %v1280 = vlaneseq
    %v1281 = vshrl.u32 %v1280, 7
    %v1282 = vsub.s32 1, %v1281
    %v1283 = vrot.slane %v1274, %v1282
    %v1286 = vsel %vm32, %v1215, 0
    %1288 = vmatprep.subr.mxu0 %v1257
    %1289 = vmatpush1.msra.mxu0 %v1256
    %1290 = vmatprep.subr.mxu0 %v1255
    %1291 = vmatpush1.msra.mxu0 %v1254
    %1292 = vmatprep.subr.mxu0 %v1253
    %1293 = vmatpush1.msra.mxu0 %v1252
    %1294 = vmatprep.subr.mxu0 %v1251
    %1295 = vmatpush1.msra.mxu0 %v1250
    %1296 = vmatprep.subr.mxu0 %v1249
    %1297 = vmatpush1.msra.mxu0 %v1248
    %1298 = vmatprep.subr.mxu0 %v1247
    %1299 = vmatpush1.msra.mxu0 %v1246
    %1300 = vmatprep.subr.mxu0 %v1245
    %1301 = vmatpush1.msra.mxu0 %v1244
    %1302 = vmatprep.subr.mxu0 %v1243
    %1303 = vmatpush1.msra.mxu0 %v1242
    %1304 = vmatprep.subr.mxu0 %v1241
    %1305 = vmatpush1.msra.mxu0 %v1240
    %1306 = vmatprep.subr.mxu0 %v1239
    %1307 = vmatpush1.msra.mxu0 %v1238
    %1308 = vmatprep.subr.mxu0 %v1237
    %1309 = vmatpush1.msra.mxu0 %v1236
    %1310 = vmatprep.subr.mxu0 %v1235
    %1311 = vmatpush1.msra.mxu0 %v1234
    %1312 = vmatprep.subr.mxu0 %v1233
    %1313 = vmatpush1.msra.mxu0 %v1232
    %1314 = vmatprep.subr.mxu0 %v1231
    %1315 = vmatpush1.msra.mxu0 %v1230
    %1316 = vmatprep.subr.mxu0 %v1229
    %1317 = vmatpush1.msra.mxu0 %v1228
    %1318 = vmatprep.subr.mxu0 %v1227
    %1319 = vmatpush1.msra.mxu0 %v1226
    %1320 = vmatprep.subr.mxu0 0.0
    %1321 = vmatpush2.msra.mxu0 0.0
    %1322 = vmatprep.subr.mxu0 0.0
    %1323 = vmatpush2.msra.mxu0 0.0
    %1324 = vmatprep.subr.mxu0 0.0
    %1325 = vmatpush2.msra.mxu0 0.0
    %1326 = vmatprep.subr.mxu0 0.0
    %1327 = vmatpush2.msra.mxu0 0.0
    %1328 = vmatprep.subr.mxu0 0.0
    %1329 = vmatpush2.msra.mxu0 0.0
    %1330 = vmatprep.subr.mxu0 0.0
    %1331 = vmatpush2.msra.mxu0 0.0
    %1332 = vmatprep.subr.mxu0 0.0
    %1333 = vmatpush2.msra.mxu0 0.0
    %1334 = vmatprep.subr.mxu0 0.0
    %1335 = vmatpush2.msra.mxu0 0.0
    %1336 = vmatprep.subr.mxu0 %v1273
    %1337 = vmatpush2.msra.mxu0 %v1272
    %1338 = vmatprep.subr.mxu0 %v1271
    %1339 = vmatpush2.msra.mxu0 %v1270
    %1340 = vmatprep.subr.mxu0 %v1269
    %1341 = vmatpush2.msra.mxu0 %v1268
    %1342 = vmatprep.subr.mxu0 %v1267
    %1343 = vmatpush2.msra.mxu0 %v1266
    %1344 = vmatprep.subr.mxu0 %v1265
    %1345 = vmatpush2.msra.mxu0 %v1264
    %1346 = vmatprep.subr.mxu0 %v1263
    %1347 = vmatpush2.msra.mxu0 %v1262
    %1348 = vmatprep.subr.mxu0 %v1261
    %1349 = vmatpush2.msra.mxu0 %v1260
    %1350 = vmatprep.subr.mxu0 %v1259
    %1351 = vmatpush2.msra.mxu0 %v1258
    %1352 = vmatprep.mubr.f32.mxu0 %v1286
    %1353 = vmatmul.mubr.f32.gmra.mxu0 %v1225
    %v1354 = vpop.f32.mrf.mxu0
    %v1355 = vadd.f32 %v1279, %v1354
    %v1356 = vpop.f32.mrf.mxu0
    %v1357 = vadd.f32 %v1283, %v1356
    %1358 = vdwg.mxu0
    %v1359 = vxor.u32 %v1355, 2147483648
    %v1360 = vxor.u32 %v1357, 2147483648
    %v1361 = vmul.f32 %v1359, 1.442695
    %v1362 = vpow.pop %v1361
    %v1363 = vmul.f32 %v1360, 1.442695
    %v1364 = vpow.pop %v1363
    %v1365 = vadd.f32 %v1362, 1.0
    %v1366 = vadd.f32 %v1364, 1.0
    %v1367 = vrcp.pop %v1365
    %v1368 = vmul.f32 1.0, %v1367
    %v1369 = vrcp.pop %v1366
    %v1370 = vmul.f32 1.0, %v1369
    %v1371 = vtanh.pop %v1357
    %v1372 = vmul.f32 %v1368, %v1210
    %v1373 = vmul.f32 %v1368, %v1371
    %1375 = vrot.lane.b32.xlu0 %v1373, 64
    %v1376 = vpop.permute.xlu0 %1375
    %v1378 = vadd.f32 %v1372, %v1376
    %v1379 = vtanh.pop %v1378
    %v1380 = vmul.f32 %v1370, %v1379
    %1382 = vrot.lane.b32.xlu0 %v1380, 64
    %v1383 = vpop.permute.xlu0 %1382
    %1385 = vst.msk [vmem:[%s196] sm:$0x3] %vm194, %v1383
    %1386 = vst.msk [vmem:[#allocation2] sm:$0x3] %vm197, %v1383
    %1387 = vst.msk [vmem:[#allocation4] sm:$0x3] %vm194, %v1383
    %1388 = vrot.lane.b32.xlu0 %v1380, 32
    %v1389 = vpop.permute.xlu0 %1388
    %s1391 = scalar_lea.vmem [#allocation4], 2
    %1392 = vst.msk [vmem:[%s1391] sm:$0x3] %vm194, %v1389
    %1394 = vrot.lane.b32.xlu0 %v1378, 64
    %v1395 = vpop.permute.xlu0 %1394
    %1397 = vst.msk [vmem:[#allocation6] sm:$0x3] %vm194, %v1395
    %1398 = vrot.lane.b32.xlu0 %v1378, 32
    %v1399 = vpop.permute.xlu0 %1398
    %s1401 = scalar_lea.vmem [#allocation6], 2
    %1402 = vst.msk [vmem:[%s1401] sm:$0x3] %vm194, %v1399
    %v1403 = vld [vmem:[#allocation2] sm:$0x3]
    %v1404 = vld [vmem:[%s196] sm:$0x3]
    %1406 = vrot.lane.b32.xlu0 %v1404, 64
    %v1407 = vpop.permute.xlu0 %1406
    %v1409 = vsel %vm32, %v1403, %v1407
    %s1410 = scalar_lea.vmem %s1, 384
    %v1411 = vld [vmem:[%s1410] sm:$0xff]
    %v1412 = vld [vmem:[%s1410 + $0x8] sm:$0xff]
    %v1413 = vld [vmem:[%s1410 + $0x10] sm:$0xff]
    %v1414 = vld [vmem:[%s1410 + $0x18] sm:$0xff]
    %v1415 = vld [vmem:[%s1410 + $0x20] sm:$0xff]
    %v1416 = vld [vmem:[%s1410 + $0x28] sm:$0xff]
    %v1417 = vld [vmem:[%s1410 + $0x30] sm:$0xff]
    %v1418 = vld [vmem:[%s1410 + $0x38] sm:$0xff]
    %v1419 = vld [vmem:[%s1410 + $0x40] sm:$0xff]
    %v1420 = vld [vmem:[%s1410 + $0x48] sm:$0xff]
    %v1421 = vld [vmem:[%s1410 + $0x50] sm:$0xff]
    %v1422 = vld [vmem:[%s1410 + $0x58] sm:$0xff]
    %v1423 = vld [vmem:[%s1410 + $0x60] sm:$0xff]
    %v1424 = vld [vmem:[%s1410 + $0x68] sm:$0xff]
    %v1425 = vld [vmem:[%s1410 + $0x70] sm:$0xff]
    %v1426 = vld [vmem:[%s1410 + $0x78] sm:$0xff]
    %v1427 = vld [vmem:[%s1410 + $0x80] sm:$0xff]
    %v1428 = vld [vmem:[%s1410 + $0x88] sm:$0xff]
    %v1429 = vld [vmem:[%s1410 + $0x90] sm:$0xff]
    %v1430 = vld [vmem:[%s1410 + $0x98] sm:$0xff]
    %v1431 = vld [vmem:[%s1410 + $0xa0] sm:$0xff]
    %v1432 = vld [vmem:[%s1410 + $0xa8] sm:$0xff]
    %v1433 = vld [vmem:[%s1410 + $0xb0] sm:$0xff]
    %v1434 = vld [vmem:[%s1410 + $0xb8] sm:$0xff]
    %v1435 = vld [vmem:[%s1410 + $0xc0] sm:$0xff]
    %v1436 = vld [vmem:[%s1410 + $0xc8] sm:$0xff]
    %v1437 = vld [vmem:[%s1410 + $0xd0] sm:$0xff]
    %v1438 = vld [vmem:[%s1410 + $0xd8] sm:$0xff]
    %v1439 = vld [vmem:[%s1410 + $0xe0] sm:$0xff]
    %v1440 = vld [vmem:[%s1410 + $0xe8] sm:$0xff]
    %v1441 = vld [vmem:[%s1410 + $0xf0] sm:$0xff]
    %v1442 = vld [vmem:[%s1410 + $0xf8] sm:$0xff]
    %v1443 = vld [vmem:[%s1410 + $0x100] sm:$0xff]
    %v1444 = vld [vmem:[%s1410 + $0x108] sm:$0xff]
    %v1445 = vld [vmem:[%s1410 + $0x110] sm:$0xff]
    %v1446 = vld [vmem:[%s1410 + $0x118] sm:$0xff]
    %v1447 = vld [vmem:[%s1410 + $0x120] sm:$0xff]
    %v1448 = vld [vmem:[%s1410 + $0x128] sm:$0xff]
    %v1449 = vld [vmem:[%s1410 + $0x130] sm:$0xff]
    %v1450 = vld [vmem:[%s1410 + $0x138] sm:$0xff]
    %v1451 = vld [vmem:[%s1410 + $0x140] sm:$0xff]
    %v1452 = vld [vmem:[%s1410 + $0x148] sm:$0xff]
    %v1453 = vld [vmem:[%s1410 + $0x150] sm:$0xff]
    %v1454 = vld [vmem:[%s1410 + $0x158] sm:$0xff]
    %v1455 = vld [vmem:[%s1410 + $0x160] sm:$0xff]
    %v1456 = vld [vmem:[%s1410 + $0x168] sm:$0xff]
    %v1457 = vld [vmem:[%s1410 + $0x170] sm:$0xff]
    %v1458 = vld [vmem:[%s1410 + $0x178] sm:$0xff]
    %s1459 = scalar_lea.vmem %s2, 2
    %v1460 = vld [vmem:[%s1459] sm:$0x3]
    %v1462 = vlaneseq
    %v1463 = vshrl.u32 %v1462, 7
    %v1464 = vsub.s32 0, %v1463
    %v1465 = vrot.slane %v1460, %v1464
    %v1466 = vlaneseq
    %v1467 = vshrl.u32 %v1466, 7
    %v1468 = vsub.s32 1, %v1467
    %v1469 = vrot.slane %v1460, %v1468
    %1472 = vmatprep.subr.mxu0 %v1442
    %1473 = vmatpush1.msra.mxu0 %v1441
    %1474 = vmatprep.subr.mxu0 %v1440
    %1475 = vmatpush1.msra.mxu0 %v1439
    %1476 = vmatprep.subr.mxu0 %v1438
    %1477 = vmatpush1.msra.mxu0 %v1437
    %1478 = vmatprep.subr.mxu0 %v1436
    %1479 = vmatpush1.msra.mxu0 %v1435
    %1480 = vmatprep.subr.mxu0 %v1434
    %1481 = vmatpush1.msra.mxu0 %v1433
    %1482 = vmatprep.subr.mxu0 %v1432
    %1483 = vmatpush1.msra.mxu0 %v1431
    %1484 = vmatprep.subr.mxu0 %v1430
    %1485 = vmatpush1.msra.mxu0 %v1429
    %1486 = vmatprep.subr.mxu0 %v1428
    %1487 = vmatpush1.msra.mxu0 %v1427
    %1488 = vmatprep.subr.mxu0 %v1426
    %1489 = vmatpush1.msra.mxu0 %v1425
    %1490 = vmatprep.subr.mxu0 %v1424
    %1491 = vmatpush1.msra.mxu0 %v1423
    %1492 = vmatprep.subr.mxu0 %v1422
    %1493 = vmatpush1.msra.mxu0 %v1421
    %1494 = vmatprep.subr.mxu0 %v1420
    %1495 = vmatpush1.msra.mxu0 %v1419
    %1496 = vmatprep.subr.mxu0 %v1418
    %1497 = vmatpush1.msra.mxu0 %v1417
    %1498 = vmatprep.subr.mxu0 %v1416
    %1499 = vmatpush1.msra.mxu0 %v1415
    %1500 = vmatprep.subr.mxu0 %v1414
    %1501 = vmatpush1.msra.mxu0 %v1413
    %1502 = vmatprep.subr.mxu0 %v1412
    %1503 = vmatpush1.msra.mxu0 %v1411
    %1504 = vmatprep.subr.mxu0 0.0
    %1505 = vmatpush2.msra.mxu0 0.0
    %1506 = vmatprep.subr.mxu0 0.0
    %1507 = vmatpush2.msra.mxu0 0.0
    %1508 = vmatprep.subr.mxu0 0.0
    %1509 = vmatpush2.msra.mxu0 0.0
    %1510 = vmatprep.subr.mxu0 0.0
    %1511 = vmatpush2.msra.mxu0 0.0
    %1512 = vmatprep.subr.mxu0 0.0
    %1513 = vmatpush2.msra.mxu0 0.0
    %1514 = vmatprep.subr.mxu0 0.0
    %1515 = vmatpush2.msra.mxu0 0.0
    %1516 = vmatprep.subr.mxu0 0.0
    %1517 = vmatpush2.msra.mxu0 0.0
    %1518 = vmatprep.subr.mxu0 0.0
    %1519 = vmatpush2.msra.mxu0 0.0
    %1520 = vmatprep.subr.mxu0 %v1458
    %1521 = vmatpush2.msra.mxu0 %v1457
    %1522 = vmatprep.subr.mxu0 %v1456
    %1523 = vmatpush2.msra.mxu0 %v1455
    %1524 = vmatprep.subr.mxu0 %v1454
    %1525 = vmatpush2.msra.mxu0 %v1453
    %1526 = vmatprep.subr.mxu0 %v1452
    %1527 = vmatpush2.msra.mxu0 %v1451
    %1528 = vmatprep.subr.mxu0 %v1450
    %1529 = vmatpush2.msra.mxu0 %v1449
    %1530 = vmatprep.subr.mxu0 %v1448
    %1531 = vmatpush2.msra.mxu0 %v1447
    %1532 = vmatprep.subr.mxu0 %v1446
    %1533 = vmatpush2.msra.mxu0 %v1445
    %1534 = vmatprep.subr.mxu0 %v1444
    %1535 = vmatpush2.msra.mxu0 %v1443
    %1536 = vmatprep.mubr.f32.mxu0 %v95
    %1537 = vmatmul.mubr.f32.gmra.mxu0 %v1409
    %v1538 = vpop.f32.mrf.mxu0
    %v1539 = vadd.f32 %v1465, %v1538
    %v1540 = vpop.f32.mrf.mxu0
    %v1541 = vadd.f32 %v1469, %v1540
    %1542 = vdwg.mxu0
    %v1543 = vxor.u32 %v1539, 2147483648
    %v1544 = vxor.u32 %v1541, 2147483648
    %v1545 = vmul.f32 %v1543, 1.442695
    %v1546 = vpow.pop %v1545
    %v1547 = vmul.f32 %v1544, 1.442695
    %v1548 = vpow.pop %v1547
    %v1549 = vadd.f32 %v1546, 1.0
    %v1550 = vadd.f32 %v1548, 1.0
    %v1551 = vrcp.pop %v1549
    %v1552 = vmul.f32 1.0, %v1551
    %v1553 = vrcp.pop %v1550
    %v1554 = vmul.f32 1.0, %v1553
    %v1555 = vtanh.pop %v1541
    %v1556 = vmul.f32 %v1552, 0.0
    %v1557 = vmul.f32 %v1552, %v1555
    %1559 = vrot.lane.b32.xlu0 %v1557, 64
    %v1560 = vpop.permute.xlu0 %1559
    %v1562 = vadd.f32 %v1556, %v1560
    %v1563 = vtanh.pop %v1562
    %v1564 = vmul.f32 %v1554, %v1563
    %1566 = vrot.lane.b32.xlu0 %v1564, 64
    %v1567 = vpop.permute.xlu0 %1566
    %1569 = vst.msk [vmem:[#allocation3] sm:$0x3] %vm194, %v1567
    %s1570 = scalar_lea.vmem [#allocation3], 14
    %1571 = vst.msk [vmem:[%s1570] sm:$0x3] %vm197, %v1567
    %v1572 = vld [vmem:[%s367] sm:$0x3]
    %v1573 = vld [vmem:[%s369] sm:$0x3]
    %1575 = vrot.lane.b32.xlu0 %v1573, 64
    %v1576 = vpop.permute.xlu0 %1575
    %v1578 = vsel %vm32, %v1572, %v1576
    %v1579 = vld [vmem:[%s1410] sm:$0xff]
    %v1580 = vld [vmem:[%s1410 + $0x8] sm:$0xff]
    %v1581 = vld [vmem:[%s1410 + $0x10] sm:$0xff]
    %v1582 = vld [vmem:[%s1410 + $0x18] sm:$0xff]
    %v1583 = vld [vmem:[%s1410 + $0x20] sm:$0xff]
    %v1584 = vld [vmem:[%s1410 + $0x28] sm:$0xff]
    %v1585 = vld [vmem:[%s1410 + $0x30] sm:$0xff]
    %v1586 = vld [vmem:[%s1410 + $0x38] sm:$0xff]
    %v1587 = vld [vmem:[%s1410 + $0x40] sm:$0xff]
    %v1588 = vld [vmem:[%s1410 + $0x48] sm:$0xff]
    %v1589 = vld [vmem:[%s1410 + $0x50] sm:$0xff]
    %v1590 = vld [vmem:[%s1410 + $0x58] sm:$0xff]
    %v1591 = vld [vmem:[%s1410 + $0x60] sm:$0xff]
    %v1592 = vld [vmem:[%s1410 + $0x68] sm:$0xff]
    %v1593 = vld [vmem:[%s1410 + $0x70] sm:$0xff]
    %v1594 = vld [vmem:[%s1410 + $0x78] sm:$0xff]
    %v1595 = vld [vmem:[%s1410 + $0x80] sm:$0xff]
    %v1596 = vld [vmem:[%s1410 + $0x88] sm:$0xff]
    %v1597 = vld [vmem:[%s1410 + $0x90] sm:$0xff]
    %v1598 = vld [vmem:[%s1410 + $0x98] sm:$0xff]
    %v1599 = vld [vmem:[%s1410 + $0xa0] sm:$0xff]
    %v1600 = vld [vmem:[%s1410 + $0xa8] sm:$0xff]
    %v1601 = vld [vmem:[%s1410 + $0xb0] sm:$0xff]
    %v1602 = vld [vmem:[%s1410 + $0xb8] sm:$0xff]
    %v1603 = vld [vmem:[%s1410 + $0xc0] sm:$0xff]
    %v1604 = vld [vmem:[%s1410 + $0xc8] sm:$0xff]
    %v1605 = vld [vmem:[%s1410 + $0xd0] sm:$0xff]
    %v1606 = vld [vmem:[%s1410 + $0xd8] sm:$0xff]
    %v1607 = vld [vmem:[%s1410 + $0xe0] sm:$0xff]
    %v1608 = vld [vmem:[%s1410 + $0xe8] sm:$0xff]
    %v1609 = vld [vmem:[%s1410 + $0xf0] sm:$0xff]
    %v1610 = vld [vmem:[%s1410 + $0xf8] sm:$0xff]
    %v1611 = vld [vmem:[%s1410 + $0x100] sm:$0xff]
    %v1612 = vld [vmem:[%s1410 + $0x108] sm:$0xff]
    %v1613 = vld [vmem:[%s1410 + $0x110] sm:$0xff]
    %v1614 = vld [vmem:[%s1410 + $0x118] sm:$0xff]
    %v1615 = vld [vmem:[%s1410 + $0x120] sm:$0xff]
    %v1616 = vld [vmem:[%s1410 + $0x128] sm:$0xff]
    %v1617 = vld [vmem:[%s1410 + $0x130] sm:$0xff]
    %v1618 = vld [vmem:[%s1410 + $0x138] sm:$0xff]
    %v1619 = vld [vmem:[%s1410 + $0x140] sm:$0xff]
    %v1620 = vld [vmem:[%s1410 + $0x148] sm:$0xff]
    %v1621 = vld [vmem:[%s1410 + $0x150] sm:$0xff]
    %v1622 = vld [vmem:[%s1410 + $0x158] sm:$0xff]
    %v1623 = vld [vmem:[%s1410 + $0x160] sm:$0xff]
    %v1624 = vld [vmem:[%s1410 + $0x168] sm:$0xff]
    %v1625 = vld [vmem:[%s1410 + $0x170] sm:$0xff]
    %v1626 = vld [vmem:[%s1410 + $0x178] sm:$0xff]
    %v1627 = vld [vmem:[%s1459] sm:$0x3]
    %v1629 = vlaneseq
    %v1630 = vshrl.u32 %v1629, 7
    %v1631 = vsub.s32 0, %v1630
    %v1632 = vrot.slane %v1627, %v1631
    %v1633 = vlaneseq
    %v1634 = vshrl.u32 %v1633, 7
    %v1635 = vsub.s32 1, %v1634
    %v1636 = vrot.slane %v1627, %v1635
    %v1639 = vsel %vm32, %v1567, 0
    %1641 = vmatprep.subr.mxu0 %v1610
    %1642 = vmatpush1.msra.mxu0 %v1609
    %1643 = vmatprep.subr.mxu0 %v1608
    %1644 = vmatpush1.msra.mxu0 %v1607
    %1645 = vmatprep.subr.mxu0 %v1606
    %1646 = vmatpush1.msra.mxu0 %v1605
    %1647 = vmatprep.subr.mxu0 %v1604
    %1648 = vmatpush1.msra.mxu0 %v1603
    %1649 = vmatprep.subr.mxu0 %v1602
    %1650 = vmatpush1.msra.mxu0 %v1601
    %1651 = vmatprep.subr.mxu0 %v1600
    %1652 = vmatpush1.msra.mxu0 %v1599
    %1653 = vmatprep.subr.mxu0 %v1598
    %1654 = vmatpush1.msra.mxu0 %v1597
    %1655 = vmatprep.subr.mxu0 %v1596
    %1656 = vmatpush1.msra.mxu0 %v1595
    %1657 = vmatprep.subr.mxu0 %v1594
    %1658 = vmatpush1.msra.mxu0 %v1593
    %1659 = vmatprep.subr.mxu0 %v1592
    %1660 = vmatpush1.msra.mxu0 %v1591
    %1661 = vmatprep.subr.mxu0 %v1590
    %1662 = vmatpush1.msra.mxu0 %v1589
    %1663 = vmatprep.subr.mxu0 %v1588
    %1664 = vmatpush1.msra.mxu0 %v1587
    %1665 = vmatprep.subr.mxu0 %v1586
    %1666 = vmatpush1.msra.mxu0 %v1585
    %1667 = vmatprep.subr.mxu0 %v1584
    %1668 = vmatpush1.msra.mxu0 %v1583
    %1669 = vmatprep.subr.mxu0 %v1582
    %1670 = vmatpush1.msra.mxu0 %v1581
    %1671 = vmatprep.subr.mxu0 %v1580
    %1672 = vmatpush1.msra.mxu0 %v1579
    %1673 = vmatprep.subr.mxu0 0.0
    %1674 = vmatpush2.msra.mxu0 0.0
    %1675 = vmatprep.subr.mxu0 0.0
    %1676 = vmatpush2.msra.mxu0 0.0
    %1677 = vmatprep.subr.mxu0 0.0
    %1678 = vmatpush2.msra.mxu0 0.0
    %1679 = vmatprep.subr.mxu0 0.0
    %1680 = vmatpush2.msra.mxu0 0.0
    %1681 = vmatprep.subr.mxu0 0.0
    %1682 = vmatpush2.msra.mxu0 0.0
    %1683 = vmatprep.subr.mxu0 0.0
    %1684 = vmatpush2.msra.mxu0 0.0
    %1685 = vmatprep.subr.mxu0 0.0
    %1686 = vmatpush2.msra.mxu0 0.0
    %1687 = vmatprep.subr.mxu0 0.0
    %1688 = vmatpush2.msra.mxu0 0.0
    %1689 = vmatprep.subr.mxu0 %v1626
    %1690 = vmatpush2.msra.mxu0 %v1625
    %1691 = vmatprep.subr.mxu0 %v1624
    %1692 = vmatpush2.msra.mxu0 %v1623
    %1693 = vmatprep.subr.mxu0 %v1622
    %1694 = vmatpush2.msra.mxu0 %v1621
    %1695 = vmatprep.subr.mxu0 %v1620
    %1696 = vmatpush2.msra.mxu0 %v1619
    %1697 = vmatprep.subr.mxu0 %v1618
    %1698 = vmatpush2.msra.mxu0 %v1617
    %1699 = vmatprep.subr.mxu0 %v1616
    %1700 = vmatpush2.msra.mxu0 %v1615
    %1701 = vmatprep.subr.mxu0 %v1614
    %1702 = vmatpush2.msra.mxu0 %v1613
    %1703 = vmatprep.subr.mxu0 %v1612
    %1704 = vmatpush2.msra.mxu0 %v1611
    %1705 = vmatprep.mubr.f32.mxu0 %v1639
    %1706 = vmatmul.mubr.f32.gmra.mxu0 %v1578
    %v1707 = vpop.f32.mrf.mxu0
    %v1708 = vadd.f32 %v1632, %v1707
    %v1709 = vpop.f32.mrf.mxu0
    %v1710 = vadd.f32 %v1636, %v1709
    %1711 = vdwg.mxu0
    %v1712 = vxor.u32 %v1708, 2147483648
    %v1713 = vxor.u32 %v1710, 2147483648
    %v1714 = vmul.f32 %v1712, 1.442695
    %v1715 = vpow.pop %v1714
    %v1716 = vmul.f32 %v1713, 1.442695
    %v1717 = vpow.pop %v1716
    %v1718 = vadd.f32 %v1715, 1.0
    %v1719 = vadd.f32 %v1717, 1.0
    %v1720 = vrcp.pop %v1718
    %v1721 = vmul.f32 1.0, %v1720
    %v1722 = vrcp.pop %v1719
    %v1723 = vmul.f32 1.0, %v1722
    %v1724 = vtanh.pop %v1710
    %v1725 = vmul.f32 %v1721, %v1562
    %v1726 = vmul.f32 %v1721, %v1724
    %1728 = vrot.lane.b32.xlu0 %v1726, 64
    %v1729 = vpop.permute.xlu0 %1728
    %v1731 = vadd.f32 %v1725, %v1729
    %v1732 = vtanh.pop %v1731
    %v1733 = vmul.f32 %v1723, %v1732
    %1735 = vrot.lane.b32.xlu0 %v1733, 64
    %v1736 = vpop.permute.xlu0 %1735
    %s1738 = scalar_lea.vmem [#allocation3], 2
    %1739 = vst.msk [vmem:[%s1738] sm:$0x3] %vm194, %v1736
    %s1740 = scalar_lea.vmem [#allocation3], 12
    %1741 = vst.msk [vmem:[%s1740] sm:$0x3] %vm197, %v1736
    %v1742 = vld [vmem:[%s539] sm:$0x3]
    %v1743 = vld [vmem:[%s541] sm:$0x3]
    %1745 = vrot.lane.b32.xlu0 %v1743, 64
    %v1746 = vpop.permute.xlu0 %1745
    %v1748 = vsel %vm32, %v1742, %v1746
    %v1749 = vld [vmem:[%s1410] sm:$0xff]
    %v1750 = vld [vmem:[%s1410 + $0x8] sm:$0xff]
    %v1751 = vld [vmem:[%s1410 + $0x10] sm:$0xff]
    %v1752 = vld [vmem:[%s1410 + $0x18] sm:$0xff]
    %v1753 = vld [vmem:[%s1410 + $0x20] sm:$0xff]
    %v1754 = vld [vmem:[%s1410 + $0x28] sm:$0xff]
    %v1755 = vld [vmem:[%s1410 + $0x30] sm:$0xff]
    %v1756 = vld [vmem:[%s1410 + $0x38] sm:$0xff]
    %v1757 = vld [vmem:[%s1410 + $0x40] sm:$0xff]
    %v1758 = vld [vmem:[%s1410 + $0x48] sm:$0xff]
    %v1759 = vld [vmem:[%s1410 + $0x50] sm:$0xff]
    %v1760 = vld [vmem:[%s1410 + $0x58] sm:$0xff]
    %v1761 = vld [vmem:[%s1410 + $0x60] sm:$0xff]
    %v1762 = vld [vmem:[%s1410 + $0x68] sm:$0xff]
    %v1763 = vld [vmem:[%s1410 + $0x70] sm:$0xff]
    %v1764 = vld [vmem:[%s1410 + $0x78] sm:$0xff]
    %v1765 = vld [vmem:[%s1410 + $0x80] sm:$0xff]
    %v1766 = vld [vmem:[%s1410 + $0x88] sm:$0xff]
    %v1767 = vld [vmem:[%s1410 + $0x90] sm:$0xff]
    %v1768 = vld [vmem:[%s1410 + $0x98] sm:$0xff]
    %v1769 = vld [vmem:[%s1410 + $0xa0] sm:$0xff]
    %v1770 = vld [vmem:[%s1410 + $0xa8] sm:$0xff]
    %v1771 = vld [vmem:[%s1410 + $0xb0] sm:$0xff]
    %v1772 = vld [vmem:[%s1410 + $0xb8] sm:$0xff]
    %v1773 = vld [vmem:[%s1410 + $0xc0] sm:$0xff]
    %v1774 = vld [vmem:[%s1410 + $0xc8] sm:$0xff]
    %v1775 = vld [vmem:[%s1410 + $0xd0] sm:$0xff]
    %v1776 = vld [vmem:[%s1410 + $0xd8] sm:$0xff]
    %v1777 = vld [vmem:[%s1410 + $0xe0] sm:$0xff]
    %v1778 = vld [vmem:[%s1410 + $0xe8] sm:$0xff]
    %v1779 = vld [vmem:[%s1410 + $0xf0] sm:$0xff]
    %v1780 = vld [vmem:[%s1410 + $0xf8] sm:$0xff]
    %v1781 = vld [vmem:[%s1410 + $0x100] sm:$0xff]
    %v1782 = vld [vmem:[%s1410 + $0x108] sm:$0xff]
    %v1783 = vld [vmem:[%s1410 + $0x110] sm:$0xff]
    %v1784 = vld [vmem:[%s1410 + $0x118] sm:$0xff]
    %v1785 = vld [vmem:[%s1410 + $0x120] sm:$0xff]
    %v1786 = vld [vmem:[%s1410 + $0x128] sm:$0xff]
    %v1787 = vld [vmem:[%s1410 + $0x130] sm:$0xff]
    %v1788 = vld [vmem:[%s1410 + $0x138] sm:$0xff]
    %v1789 = vld [vmem:[%s1410 + $0x140] sm:$0xff]
    %v1790 = vld [vmem:[%s1410 + $0x148] sm:$0xff]
    %v1791 = vld [vmem:[%s1410 + $0x150] sm:$0xff]
    %v1792 = vld [vmem:[%s1410 + $0x158] sm:$0xff]
    %v1793 = vld [vmem:[%s1410 + $0x160] sm:$0xff]
    %v1794 = vld [vmem:[%s1410 + $0x168] sm:$0xff]
    %v1795 = vld [vmem:[%s1410 + $0x170] sm:$0xff]
    %v1796 = vld [vmem:[%s1410 + $0x178] sm:$0xff]
    %v1797 = vld [vmem:[%s1459] sm:$0x3]
    %v1799 = vlaneseq
    %v1800 = vshrl.u32 %v1799, 7
    %v1801 = vsub.s32 0, %v1800
    %v1802 = vrot.slane %v1797, %v1801
    %v1803 = vlaneseq
    %v1804 = vshrl.u32 %v1803, 7
    %v1805 = vsub.s32 1, %v1804
    %v1806 = vrot.slane %v1797, %v1805
    %v1809 = vsel %vm32, %v1736, 0
    %1811 = vmatprep.subr.mxu0 %v1780
    %1812 = vmatpush1.msra.mxu0 %v1779
    %1813 = vmatprep.subr.mxu0 %v1778
    %1814 = vmatpush1.msra.mxu0 %v1777
    %1815 = vmatprep.subr.mxu0 %v1776
    %1816 = vmatpush1.msra.mxu0 %v1775
    %1817 = vmatprep.subr.mxu0 %v1774
    %1818 = vmatpush1.msra.mxu0 %v1773
    %1819 = vmatprep.subr.mxu0 %v1772
    %1820 = vmatpush1.msra.mxu0 %v1771
    %1821 = vmatprep.subr.mxu0 %v1770
    %1822 = vmatpush1.msra.mxu0 %v1769
    %1823 = vmatprep.subr.mxu0 %v1768
    %1824 = vmatpush1.msra.mxu0 %v1767
    %1825 = vmatprep.subr.mxu0 %v1766
    %1826 = vmatpush1.msra.mxu0 %v1765
    %1827 = vmatprep.subr.mxu0 %v1764
    %1828 = vmatpush1.msra.mxu0 %v1763
    %1829 = vmatprep.subr.mxu0 %v1762
    %1830 = vmatpush1.msra.mxu0 %v1761
    %1831 = vmatprep.subr.mxu0 %v1760
    %1832 = vmatpush1.msra.mxu0 %v1759
    %1833 = vmatprep.subr.mxu0 %v1758
    %1834 = vmatpush1.msra.mxu0 %v1757
    %1835 = vmatprep.subr.mxu0 %v1756
    %1836 = vmatpush1.msra.mxu0 %v1755
    %1837 = vmatprep.subr.mxu0 %v1754
    %1838 = vmatpush1.msra.mxu0 %v1753
    %1839 = vmatprep.subr.mxu0 %v1752
    %1840 = vmatpush1.msra.mxu0 %v1751
    %1841 = vmatprep.subr.mxu0 %v1750
    %1842 = vmatpush1.msra.mxu0 %v1749
    %1843 = vmatprep.subr.mxu0 0.0
    %1844 = vmatpush2.msra.mxu0 0.0
    %1845 = vmatprep.subr.mxu0 0.0
    %1846 = vmatpush2.msra.mxu0 0.0
    %1847 = vmatprep.subr.mxu0 0.0
    %1848 = vmatpush2.msra.mxu0 0.0
    %1849 = vmatprep.subr.mxu0 0.0
    %1850 = vmatpush2.msra.mxu0 0.0
    %1851 = vmatprep.subr.mxu0 0.0
    %1852 = vmatpush2.msra.mxu0 0.0
    %1853 = vmatprep.subr.mxu0 0.0
    %1854 = vmatpush2.msra.mxu0 0.0
    %1855 = vmatprep.subr.mxu0 0.0
    %1856 = vmatpush2.msra.mxu0 0.0
    %1857 = vmatprep.subr.mxu0 0.0
    %1858 = vmatpush2.msra.mxu0 0.0
    %1859 = vmatprep.subr.mxu0 %v1796
    %1860 = vmatpush2.msra.mxu0 %v1795
    %1861 = vmatprep.subr.mxu0 %v1794
    %1862 = vmatpush2.msra.mxu0 %v1793
    %1863 = vmatprep.subr.mxu0 %v1792
    %1864 = vmatpush2.msra.mxu0 %v1791
    %1865 = vmatprep.subr.mxu0 %v1790
    %1866 = vmatpush2.msra.mxu0 %v1789
    %1867 = vmatprep.subr.mxu0 %v1788
    %1868 = vmatpush2.msra.mxu0 %v1787
    %1869 = vmatprep.subr.mxu0 %v1786
    %1870 = vmatpush2.msra.mxu0 %v1785
    %1871 = vmatprep.subr.mxu0 %v1784
    %1872 = vmatpush2.msra.mxu0 %v1783
    %1873 = vmatprep.subr.mxu0 %v1782
    %1874 = vmatpush2.msra.mxu0 %v1781
    %1875 = vmatprep.mubr.f32.mxu0 %v1809
    %1876 = vmatmul.mubr.f32.gmra.mxu0 %v1748
    %v1877 = vpop.f32.mrf.mxu0
    %v1878 = vadd.f32 %v1802, %v1877
    %v1879 = vpop.f32.mrf.mxu0
    %v1880 = vadd.f32 %v1806, %v1879
    %1881 = vdwg.mxu0
    %v1882 = vxor.u32 %v1878, 2147483648
    %v1883 = vxor.u32 %v1880, 2147483648
    %v1884 = vmul.f32 %v1882, 1.442695
    %v1885 = vpow.pop %v1884
    %v1886 = vmul.f32 %v1883, 1.442695
    %v1887 = vpow.pop %v1886
    %v1888 = vadd.f32 %v1885, 1.0
    %v1889 = vadd.f32 %v1887, 1.0
    %v1890 = vrcp.pop %v1888
    %v1891 = vmul.f32 1.0, %v1890
    %v1892 = vrcp.pop %v1889
    %v1893 = vmul.f32 1.0, %v1892
    %v1894 = vtanh.pop %v1880
    %v1895 = vmul.f32 %v1891, %v1731
    %v1896 = vmul.f32 %v1891, %v1894
    %1898 = vrot.lane.b32.xlu0 %v1896, 64
    %v1899 = vpop.permute.xlu0 %1898
    %v1901 = vadd.f32 %v1895, %v1899
    %v1902 = vtanh.pop %v1901
    %v1903 = vmul.f32 %v1893, %v1902
    %1905 = vrot.lane.b32.xlu0 %v1903, 64
    %v1906 = vpop.permute.xlu0 %1905
    %s1908 = scalar_lea.vmem [#allocation3], 4
    %1909 = vst.msk [vmem:[%s1908] sm:$0x3] %vm194, %v1906
    %s1910 = scalar_lea.vmem [#allocation3], 10
    %1911 = vst.msk [vmem:[%s1910] sm:$0x3] %vm197, %v1906
    %v1912 = vld [vmem:[%s711] sm:$0x3]
    %v1913 = vld [vmem:[%s713] sm:$0x3]
    %1915 = vrot.lane.b32.xlu0 %v1913, 64
    %v1916 = vpop.permute.xlu0 %1915
    %v1918 = vsel %vm32, %v1912, %v1916
    %v1919 = vld [vmem:[%s1410] sm:$0xff]
    %v1920 = vld [vmem:[%s1410 + $0x8] sm:$0xff]
    %v1921 = vld [vmem:[%s1410 + $0x10] sm:$0xff]
    %v1922 = vld [vmem:[%s1410 + $0x18] sm:$0xff]
    %v1923 = vld [vmem:[%s1410 + $0x20] sm:$0xff]
    %v1924 = vld [vmem:[%s1410 + $0x28] sm:$0xff]
    %v1925 = vld [vmem:[%s1410 + $0x30] sm:$0xff]
    %v1926 = vld [vmem:[%s1410 + $0x38] sm:$0xff]
    %v1927 = vld [vmem:[%s1410 + $0x40] sm:$0xff]
    %v1928 = vld [vmem:[%s1410 + $0x48] sm:$0xff]
    %v1929 = vld [vmem:[%s1410 + $0x50] sm:$0xff]
    %v1930 = vld [vmem:[%s1410 + $0x58] sm:$0xff]
    %v1931 = vld [vmem:[%s1410 + $0x60] sm:$0xff]
    %v1932 = vld [vmem:[%s1410 + $0x68] sm:$0xff]
    %v1933 = vld [vmem:[%s1410 + $0x70] sm:$0xff]
    %v1934 = vld [vmem:[%s1410 + $0x78] sm:$0xff]
    %v1935 = vld [vmem:[%s1410 + $0x80] sm:$0xff]
    %v1936 = vld [vmem:[%s1410 + $0x88] sm:$0xff]
    %v1937 = vld [vmem:[%s1410 + $0x90] sm:$0xff]
    %v1938 = vld [vmem:[%s1410 + $0x98] sm:$0xff]
    %v1939 = vld [vmem:[%s1410 + $0xa0] sm:$0xff]
    %v1940 = vld [vmem:[%s1410 + $0xa8] sm:$0xff]
    %v1941 = vld [vmem:[%s1410 + $0xb0] sm:$0xff]
    %v1942 = vld [vmem:[%s1410 + $0xb8] sm:$0xff]
    %v1943 = vld [vmem:[%s1410 + $0xc0] sm:$0xff]
    %v1944 = vld [vmem:[%s1410 + $0xc8] sm:$0xff]
    %v1945 = vld [vmem:[%s1410 + $0xd0] sm:$0xff]
    %v1946 = vld [vmem:[%s1410 + $0xd8] sm:$0xff]
    %v1947 = vld [vmem:[%s1410 + $0xe0] sm:$0xff]
    %v1948 = vld [vmem:[%s1410 + $0xe8] sm:$0xff]
    %v1949 = vld [vmem:[%s1410 + $0xf0] sm:$0xff]
    %v1950 = vld [vmem:[%s1410 + $0xf8] sm:$0xff]
    %v1951 = vld [vmem:[%s1410 + $0x100] sm:$0xff]
    %v1952 = vld [vmem:[%s1410 + $0x108] sm:$0xff]
    %v1953 = vld [vmem:[%s1410 + $0x110] sm:$0xff]
    %v1954 = vld [vmem:[%s1410 + $0x118] sm:$0xff]
    %v1955 = vld [vmem:[%s1410 + $0x120] sm:$0xff]
    %v1956 = vld [vmem:[%s1410 + $0x128] sm:$0xff]
    %v1957 = vld [vmem:[%s1410 + $0x130] sm:$0xff]
    %v1958 = vld [vmem:[%s1410 + $0x138] sm:$0xff]
    %v1959 = vld [vmem:[%s1410 + $0x140] sm:$0xff]
    %v1960 = vld [vmem:[%s1410 + $0x148] sm:$0xff]
    %v1961 = vld [vmem:[%s1410 + $0x150] sm:$0xff]
    %v1962 = vld [vmem:[%s1410 + $0x158] sm:$0xff]
    %v1963 = vld [vmem:[%s1410 + $0x160] sm:$0xff]
    %v1964 = vld [vmem:[%s1410 + $0x168] sm:$0xff]
    %v1965 = vld [vmem:[%s1410 + $0x170] sm:$0xff]
    %v1966 = vld [vmem:[%s1410 + $0x178] sm:$0xff]
    %v1967 = vld [vmem:[%s1459] sm:$0x3]
    %v1969 = vlaneseq
    %v1970 = vshrl.u32 %v1969, 7
    %v1971 = vsub.s32 0, %v1970
    %v1972 = vrot.slane %v1967, %v1971
    %v1973 = vlaneseq
    %v1974 = vshrl.u32 %v1973, 7
    %v1975 = vsub.s32 1, %v1974
    %v1976 = vrot.slane %v1967, %v1975
    %v1979 = vsel %vm32, %v1906, 0
    %1981 = vmatprep.subr.mxu0 %v1950
    %1982 = vmatpush1.msra.mxu0 %v1949
    %1983 = vmatprep.subr.mxu0 %v1948
    %1984 = vmatpush1.msra.mxu0 %v1947
    %1985 = vmatprep.subr.mxu0 %v1946
    %1986 = vmatpush1.msra.mxu0 %v1945
    %1987 = vmatprep.subr.mxu0 %v1944
    %1988 = vmatpush1.msra.mxu0 %v1943
    %1989 = vmatprep.subr.mxu0 %v1942
    %1990 = vmatpush1.msra.mxu0 %v1941
    %1991 = vmatprep.subr.mxu0 %v1940
    %1992 = vmatpush1.msra.mxu0 %v1939
    %1993 = vmatprep.subr.mxu0 %v1938
    %1994 = vmatpush1.msra.mxu0 %v1937
    %1995 = vmatprep.subr.mxu0 %v1936
    %1996 = vmatpush1.msra.mxu0 %v1935
    %1997 = vmatprep.subr.mxu0 %v1934
    %1998 = vmatpush1.msra.mxu0 %v1933
    %1999 = vmatprep.subr.mxu0 %v1932
    %2000 = vmatpush1.msra.mxu0 %v1931
    %2001 = vmatprep.subr.mxu0 %v1930
    %2002 = vmatpush1.msra.mxu0 %v1929
    %2003 = vmatprep.subr.mxu0 %v1928
    %2004 = vmatpush1.msra.mxu0 %v1927
    %2005 = vmatprep.subr.mxu0 %v1926
    %2006 = vmatpush1.msra.mxu0 %v1925
    %2007 = vmatprep.subr.mxu0 %v1924
    %2008 = vmatpush1.msra.mxu0 %v1923
    %2009 = vmatprep.subr.mxu0 %v1922
    %2010 = vmatpush1.msra.mxu0 %v1921
    %2011 = vmatprep.subr.mxu0 %v1920
    %2012 = vmatpush1.msra.mxu0 %v1919
    %2013 = vmatprep.subr.mxu0 0.0
    %2014 = vmatpush2.msra.mxu0 0.0
    %2015 = vmatprep.subr.mxu0 0.0
    %2016 = vmatpush2.msra.mxu0 0.0
    %2017 = vmatprep.subr.mxu0 0.0
    %2018 = vmatpush2.msra.mxu0 0.0
    %2019 = vmatprep.subr.mxu0 0.0
    %2020 = vmatpush2.msra.mxu0 0.0
    %2021 = vmatprep.subr.mxu0 0.0
    %2022 = vmatpush2.msra.mxu0 0.0
    %2023 = vmatprep.subr.mxu0 0.0
    %2024 = vmatpush2.msra.mxu0 0.0
    %2025 = vmatprep.subr.mxu0 0.0
    %2026 = vmatpush2.msra.mxu0 0.0
    %2027 = vmatprep.subr.mxu0 0.0
    %2028 = vmatpush2.msra.mxu0 0.0
    %2029 = vmatprep.subr.mxu0 %v1966
    %2030 = vmatpush2.msra.mxu0 %v1965
    %2031 = vmatprep.subr.mxu0 %v1964
    %2032 = vmatpush2.msra.mxu0 %v1963
    %2033 = vmatprep.subr.mxu0 %v1962
    %2034 = vmatpush2.msra.mxu0 %v1961
    %2035 = vmatprep.subr.mxu0 %v1960
    %2036 = vmatpush2.msra.mxu0 %v1959
    %2037 = vmatprep.subr.mxu0 %v1958
    %2038 = vmatpush2.msra.mxu0 %v1957
    %2039 = vmatprep.subr.mxu0 %v1956
    %2040 = vmatpush2.msra.mxu0 %v1955
    %2041 = vmatprep.subr.mxu0 %v1954
    %2042 = vmatpush2.msra.mxu0 %v1953
    %2043 = vmatprep.subr.mxu0 %v1952
    %2044 = vmatpush2.msra.mxu0 %v1951
    %2045 = vmatprep.mubr.f32.mxu0 %v1979
    %2046 = vmatmul.mubr.f32.gmra.mxu0 %v1918
    %v2047 = vpop.f32.mrf.mxu0
    %v2048 = vadd.f32 %v1972, %v2047
    %v2049 = vpop.f32.mrf.mxu0
    %v2050 = vadd.f32 %v1976, %v2049
    %2051 = vdwg.mxu0
    %v2052 = vxor.u32 %v2048, 2147483648
    %v2053 = vxor.u32 %v2050, 2147483648
    %v2054 = vmul.f32 %v2052, 1.442695
    %v2055 = vpow.pop %v2054
    %v2056 = vmul.f32 %v2053, 1.442695
    %v2057 = vpow.pop %v2056
    %v2058 = vadd.f32 %v2055, 1.0
    %v2059 = vadd.f32 %v2057, 1.0
    %v2060 = vrcp.pop %v2058
    %v2061 = vmul.f32 1.0, %v2060
    %v2062 = vrcp.pop %v2059
    %v2063 = vmul.f32 1.0, %v2062
    %v2064 = vtanh.pop %v2050
    %v2065 = vmul.f32 %v2061, %v1901
    %v2066 = vmul.f32 %v2061, %v2064
    %2068 = vrot.lane.b32.xlu0 %v2066, 64
    %v2069 = vpop.permute.xlu0 %2068
    %v2071 = vadd.f32 %v2065, %v2069
    %v2072 = vtanh.pop %v2071
    %v2073 = vmul.f32 %v2063, %v2072
    %2075 = vrot.lane.b32.xlu0 %v2073, 64
    %v2076 = vpop.permute.xlu0 %2075
    %s2078 = scalar_lea.vmem [#allocation3], 6
    %2079 = vst.msk [vmem:[%s2078] sm:$0x3] %vm194, %v2076
    %s2080 = scalar_lea.vmem [#allocation3], 8
    %2081 = vst.msk [vmem:[%s2080] sm:$0x3] %vm197, %v2076
    %v2082 = vld [vmem:[%s713] sm:$0x3]
    %v2083 = vld [vmem:[%s711] sm:$0x3]
    %2085 = vrot.lane.b32.xlu0 %v2083, 64
    %v2086 = vpop.permute.xlu0 %2085
    %v2088 = vsel %vm32, %v2082, %v2086
    %v2089 = vld [vmem:[%s1410] sm:$0xff]
    %v2090 = vld [vmem:[%s1410 + $0x8] sm:$0xff]
    %v2091 = vld [vmem:[%s1410 + $0x10] sm:$0xff]
    %v2092 = vld [vmem:[%s1410 + $0x18] sm:$0xff]
    %v2093 = vld [vmem:[%s1410 + $0x20] sm:$0xff]
    %v2094 = vld [vmem:[%s1410 + $0x28] sm:$0xff]
    %v2095 = vld [vmem:[%s1410 + $0x30] sm:$0xff]
    %v2096 = vld [vmem:[%s1410 + $0x38] sm:$0xff]
    %v2097 = vld [vmem:[%s1410 + $0x40] sm:$0xff]
    %v2098 = vld [vmem:[%s1410 + $0x48] sm:$0xff]
    %v2099 = vld [vmem:[%s1410 + $0x50] sm:$0xff]
    %v2100 = vld [vmem:[%s1410 + $0x58] sm:$0xff]
    %v2101 = vld [vmem:[%s1410 + $0x60] sm:$0xff]
    %v2102 = vld [vmem:[%s1410 + $0x68] sm:$0xff]
    %v2103 = vld [vmem:[%s1410 + $0x70] sm:$0xff]
    %v2104 = vld [vmem:[%s1410 + $0x78] sm:$0xff]
    %v2105 = vld [vmem:[%s1410 + $0x80] sm:$0xff]
    %v2106 = vld [vmem:[%s1410 + $0x88] sm:$0xff]
    %v2107 = vld [vmem:[%s1410 + $0x90] sm:$0xff]
    %v2108 = vld [vmem:[%s1410 + $0x98] sm:$0xff]
    %v2109 = vld [vmem:[%s1410 + $0xa0] sm:$0xff]
    %v2110 = vld [vmem:[%s1410 + $0xa8] sm:$0xff]
    %v2111 = vld [vmem:[%s1410 + $0xb0] sm:$0xff]
    %v2112 = vld [vmem:[%s1410 + $0xb8] sm:$0xff]
    %v2113 = vld [vmem:[%s1410 + $0xc0] sm:$0xff]
    %v2114 = vld [vmem:[%s1410 + $0xc8] sm:$0xff]
    %v2115 = vld [vmem:[%s1410 + $0xd0] sm:$0xff]
    %v2116 = vld [vmem:[%s1410 + $0xd8] sm:$0xff]
    %v2117 = vld [vmem:[%s1410 + $0xe0] sm:$0xff]
    %v2118 = vld [vmem:[%s1410 + $0xe8] sm:$0xff]
    %v2119 = vld [vmem:[%s1410 + $0xf0] sm:$0xff]
    %v2120 = vld [vmem:[%s1410 + $0xf8] sm:$0xff]
    %v2121 = vld [vmem:[%s1410 + $0x100] sm:$0xff]
    %v2122 = vld [vmem:[%s1410 + $0x108] sm:$0xff]
    %v2123 = vld [vmem:[%s1410 + $0x110] sm:$0xff]
    %v2124 = vld [vmem:[%s1410 + $0x118] sm:$0xff]
    %v2125 = vld [vmem:[%s1410 + $0x120] sm:$0xff]
    %v2126 = vld [vmem:[%s1410 + $0x128] sm:$0xff]
    %v2127 = vld [vmem:[%s1410 + $0x130] sm:$0xff]
    %v2128 = vld [vmem:[%s1410 + $0x138] sm:$0xff]
    %v2129 = vld [vmem:[%s1410 + $0x140] sm:$0xff]
    %v2130 = vld [vmem:[%s1410 + $0x148] sm:$0xff]
    %v2131 = vld [vmem:[%s1410 + $0x150] sm:$0xff]
    %v2132 = vld [vmem:[%s1410 + $0x158] sm:$0xff]
    %v2133 = vld [vmem:[%s1410 + $0x160] sm:$0xff]
    %v2134 = vld [vmem:[%s1410 + $0x168] sm:$0xff]
    %v2135 = vld [vmem:[%s1410 + $0x170] sm:$0xff]
    %v2136 = vld [vmem:[%s1410 + $0x178] sm:$0xff]
    %v2137 = vld [vmem:[%s1459] sm:$0x3]
    %v2139 = vlaneseq
    %v2140 = vshrl.u32 %v2139, 7
    %v2141 = vsub.s32 0, %v2140
    %v2142 = vrot.slane %v2137, %v2141
    %v2143 = vlaneseq
    %v2144 = vshrl.u32 %v2143, 7
    %v2145 = vsub.s32 1, %v2144
    %v2146 = vrot.slane %v2137, %v2145
    %v2149 = vsel %vm32, %v2076, 0
    %2151 = vmatprep.subr.mxu0 %v2120
    %2152 = vmatpush1.msra.mxu0 %v2119
    %2153 = vmatprep.subr.mxu0 %v2118
    %2154 = vmatpush1.msra.mxu0 %v2117
    %2155 = vmatprep.subr.mxu0 %v2116
    %2156 = vmatpush1.msra.mxu0 %v2115
    %2157 = vmatprep.subr.mxu0 %v2114
    %2158 = vmatpush1.msra.mxu0 %v2113
    %2159 = vmatprep.subr.mxu0 %v2112
    %2160 = vmatpush1.msra.mxu0 %v2111
    %2161 = vmatprep.subr.mxu0 %v2110
    %2162 = vmatpush1.msra.mxu0 %v2109
    %2163 = vmatprep.subr.mxu0 %v2108
    %2164 = vmatpush1.msra.mxu0 %v2107
    %2165 = vmatprep.subr.mxu0 %v2106
    %2166 = vmatpush1.msra.mxu0 %v2105
    %2167 = vmatprep.subr.mxu0 %v2104
    %2168 = vmatpush1.msra.mxu0 %v2103
    %2169 = vmatprep.subr.mxu0 %v2102
    %2170 = vmatpush1.msra.mxu0 %v2101
    %2171 = vmatprep.subr.mxu0 %v2100
    %2172 = vmatpush1.msra.mxu0 %v2099
    %2173 = vmatprep.subr.mxu0 %v2098
    %2174 = vmatpush1.msra.mxu0 %v2097
    %2175 = vmatprep.subr.mxu0 %v2096
    %2176 = vmatpush1.msra.mxu0 %v2095
    %2177 = vmatprep.subr.mxu0 %v2094
    %2178 = vmatpush1.msra.mxu0 %v2093
    %2179 = vmatprep.subr.mxu0 %v2092
    %2180 = vmatpush1.msra.mxu0 %v2091
    %2181 = vmatprep.subr.mxu0 %v2090
    %2182 = vmatpush1.msra.mxu0 %v2089
    %2183 = vmatprep.subr.mxu0 0.0
    %2184 = vmatpush2.msra.mxu0 0.0
    %2185 = vmatprep.subr.mxu0 0.0
    %2186 = vmatpush2.msra.mxu0 0.0
    %2187 = vmatprep.subr.mxu0 0.0
    %2188 = vmatpush2.msra.mxu0 0.0
    %2189 = vmatprep.subr.mxu0 0.0
    %2190 = vmatpush2.msra.mxu0 0.0
    %2191 = vmatprep.subr.mxu0 0.0
    %2192 = vmatpush2.msra.mxu0 0.0
    %2193 = vmatprep.subr.mxu0 0.0
    %2194 = vmatpush2.msra.mxu0 0.0
    %2195 = vmatprep.subr.mxu0 0.0
    %2196 = vmatpush2.msra.mxu0 0.0
    %2197 = vmatprep.subr.mxu0 0.0
    %2198 = vmatpush2.msra.mxu0 0.0
    %2199 = vmatprep.subr.mxu0 %v2136
    %2200 = vmatpush2.msra.mxu0 %v2135
    %2201 = vmatprep.subr.mxu0 %v2134
    %2202 = vmatpush2.msra.mxu0 %v2133
    %2203 = vmatprep.subr.mxu0 %v2132
    %2204 = vmatpush2.msra.mxu0 %v2131
    %2205 = vmatprep.subr.mxu0 %v2130
    %2206 = vmatpush2.msra.mxu0 %v2129
    %2207 = vmatprep.subr.mxu0 %v2128
    %2208 = vmatpush2.msra.mxu0 %v2127
    %2209 = vmatprep.subr.mxu0 %v2126
    %2210 = vmatpush2.msra.mxu0 %v2125
    %2211 = vmatprep.subr.mxu0 %v2124
    %2212 = vmatpush2.msra.mxu0 %v2123
    %2213 = vmatprep.subr.mxu0 %v2122
    %2214 = vmatpush2.msra.mxu0 %v2121
    %2215 = vmatprep.mubr.f32.mxu0 %v2149
    %2216 = vmatmul.mubr.f32.gmra.mxu0 %v2088
    %v2217 = vpop.f32.mrf.mxu0
    %v2218 = vadd.f32 %v2142, %v2217
    %v2219 = vpop.f32.mrf.mxu0
    %v2220 = vadd.f32 %v2146, %v2219
    %2221 = vdwg.mxu0
    %v2222 = vxor.u32 %v2218, 2147483648
    %v2223 = vxor.u32 %v2220, 2147483648
    %v2224 = vmul.f32 %v2222, 1.442695
    %v2225 = vpow.pop %v2224
    %v2226 = vmul.f32 %v2223, 1.442695
    %v2227 = vpow.pop %v2226
    %v2228 = vadd.f32 %v2225, 1.0
    %v2229 = vadd.f32 %v2227, 1.0
    %v2230 = vrcp.pop %v2228
    %v2231 = vmul.f32 1.0, %v2230
    %v2232 = vrcp.pop %v2229
    %v2233 = vmul.f32 1.0, %v2232
    %v2234 = vtanh.pop %v2220
    %v2235 = vmul.f32 %v2231, %v2071
    %v2236 = vmul.f32 %v2231, %v2234
    %2238 = vrot.lane.b32.xlu0 %v2236, 64
    %v2239 = vpop.permute.xlu0 %2238
    %v2241 = vadd.f32 %v2235, %v2239
    %v2242 = vtanh.pop %v2241
    %v2243 = vmul.f32 %v2233, %v2242
    %2245 = vrot.lane.b32.xlu0 %v2243, 64
    %v2246 = vpop.permute.xlu0 %2245
    %2248 = vst.msk [vmem:[%s2080] sm:$0x3] %vm194, %v2246
    %2249 = vst.msk [vmem:[%s2078] sm:$0x3] %vm197, %v2246
    %v2250 = vld [vmem:[%s541] sm:$0x3]
    %v2251 = vld [vmem:[%s539] sm:$0x3]
    %2253 = vrot.lane.b32.xlu0 %v2251, 64
    %v2254 = vpop.permute.xlu0 %2253
    %v2256 = vsel %vm32, %v2250, %v2254
    %v2257 = vld [vmem:[%s1410] sm:$0xff]
    %v2258 = vld [vmem:[%s1410 + $0x8] sm:$0xff]
    %v2259 = vld [vmem:[%s1410 + $0x10] sm:$0xff]
    %v2260 = vld [vmem:[%s1410 + $0x18] sm:$0xff]
    %v2261 = vld [vmem:[%s1410 + $0x20] sm:$0xff]
    %v2262 = vld [vmem:[%s1410 + $0x28] sm:$0xff]
    %v2263 = vld [vmem:[%s1410 + $0x30] sm:$0xff]
    %v2264 = vld [vmem:[%s1410 + $0x38] sm:$0xff]
    %v2265 = vld [vmem:[%s1410 + $0x40] sm:$0xff]
    %v2266 = vld [vmem:[%s1410 + $0x48] sm:$0xff]
    %v2267 = vld [vmem:[%s1410 + $0x50] sm:$0xff]
    %v2268 = vld [vmem:[%s1410 + $0x58] sm:$0xff]
    %v2269 = vld [vmem:[%s1410 + $0x60] sm:$0xff]
    %v2270 = vld [vmem:[%s1410 + $0x68] sm:$0xff]
    %v2271 = vld [vmem:[%s1410 + $0x70] sm:$0xff]
    %v2272 = vld [vmem:[%s1410 + $0x78] sm:$0xff]
    %v2273 = vld [vmem:[%s1410 + $0x80] sm:$0xff]
    %v2274 = vld [vmem:[%s1410 + $0x88] sm:$0xff]
    %v2275 = vld [vmem:[%s1410 + $0x90] sm:$0xff]
    %v2276 = vld [vmem:[%s1410 + $0x98] sm:$0xff]
    %v2277 = vld [vmem:[%s1410 + $0xa0] sm:$0xff]
    %v2278 = vld [vmem:[%s1410 + $0xa8] sm:$0xff]
    %v2279 = vld [vmem:[%s1410 + $0xb0] sm:$0xff]
    %v2280 = vld [vmem:[%s1410 + $0xb8] sm:$0xff]
    %v2281 = vld [vmem:[%s1410 + $0xc0] sm:$0xff]
    %v2282 = vld [vmem:[%s1410 + $0xc8] sm:$0xff]
    %v2283 = vld [vmem:[%s1410 + $0xd0] sm:$0xff]
    %v2284 = vld [vmem:[%s1410 + $0xd8] sm:$0xff]
    %v2285 = vld [vmem:[%s1410 + $0xe0] sm:$0xff]
    %v2286 = vld [vmem:[%s1410 + $0xe8] sm:$0xff]
    %v2287 = vld [vmem:[%s1410 + $0xf0] sm:$0xff]
    %v2288 = vld [vmem:[%s1410 + $0xf8] sm:$0xff]
    %v2289 = vld [vmem:[%s1410 + $0x100] sm:$0xff]
    %v2290 = vld [vmem:[%s1410 + $0x108] sm:$0xff]
    %v2291 = vld [vmem:[%s1410 + $0x110] sm:$0xff]
    %v2292 = vld [vmem:[%s1410 + $0x118] sm:$0xff]
    %v2293 = vld [vmem:[%s1410 + $0x120] sm:$0xff]
    %v2294 = vld [vmem:[%s1410 + $0x128] sm:$0xff]
    %v2295 = vld [vmem:[%s1410 + $0x130] sm:$0xff]
    %v2296 = vld [vmem:[%s1410 + $0x138] sm:$0xff]
    %v2297 = vld [vmem:[%s1410 + $0x140] sm:$0xff]
    %v2298 = vld [vmem:[%s1410 + $0x148] sm:$0xff]
    %v2299 = vld [vmem:[%s1410 + $0x150] sm:$0xff]
    %v2300 = vld [vmem:[%s1410 + $0x158] sm:$0xff]
    %v2301 = vld [vmem:[%s1410 + $0x160] sm:$0xff]
    %v2302 = vld [vmem:[%s1410 + $0x168] sm:$0xff]
    %v2303 = vld [vmem:[%s1410 + $0x170] sm:$0xff]
    %v2304 = vld [vmem:[%s1410 + $0x178] sm:$0xff]
    %v2305 = vld [vmem:[%s1459] sm:$0x3]
    %v2307 = vlaneseq
    %v2308 = vshrl.u32 %v2307, 7
    %v2309 = vsub.s32 0, %v2308
    %v2310 = vrot.slane %v2305, %v2309
    %v2311 = vlaneseq
    %v2312 = vshrl.u32 %v2311, 7
    %v2313 = vsub.s32 1, %v2312
    %v2314 = vrot.slane %v2305, %v2313
    %v2317 = vsel %vm32, %v2246, 0
    %2319 = vmatprep.subr.mxu0 %v2288
    %2320 = vmatpush1.msra.mxu0 %v2287
    %2321 = vmatprep.subr.mxu0 %v2286
    %2322 = vmatpush1.msra.mxu0 %v2285
    %2323 = vmatprep.subr.mxu0 %v2284
    %2324 = vmatpush1.msra.mxu0 %v2283
    %2325 = vmatprep.subr.mxu0 %v2282
    %2326 = vmatpush1.msra.mxu0 %v2281
    %2327 = vmatprep.subr.mxu0 %v2280
    %2328 = vmatpush1.msra.mxu0 %v2279
    %2329 = vmatprep.subr.mxu0 %v2278
    %2330 = vmatpush1.msra.mxu0 %v2277
    %2331 = vmatprep.subr.mxu0 %v2276
    %2332 = vmatpush1.msra.mxu0 %v2275
    %2333 = vmatprep.subr.mxu0 %v2274
    %2334 = vmatpush1.msra.mxu0 %v2273
    %2335 = vmatprep.subr.mxu0 %v2272
    %2336 = vmatpush1.msra.mxu0 %v2271
    %2337 = vmatprep.subr.mxu0 %v2270
    %2338 = vmatpush1.msra.mxu0 %v2269
    %2339 = vmatprep.subr.mxu0 %v2268
    %2340 = vmatpush1.msra.mxu0 %v2267
    %2341 = vmatprep.subr.mxu0 %v2266
    %2342 = vmatpush1.msra.mxu0 %v2265
    %2343 = vmatprep.subr.mxu0 %v2264
    %2344 = vmatpush1.msra.mxu0 %v2263
    %2345 = vmatprep.subr.mxu0 %v2262
    %2346 = vmatpush1.msra.mxu0 %v2261
    %2347 = vmatprep.subr.mxu0 %v2260
    %2348 = vmatpush1.msra.mxu0 %v2259
    %2349 = vmatprep.subr.mxu0 %v2258
    %2350 = vmatpush1.msra.mxu0 %v2257
    %2351 = vmatprep.subr.mxu0 0.0
    %2352 = vmatpush2.msra.mxu0 0.0
    %2353 = vmatprep.subr.mxu0 0.0
    %2354 = vmatpush2.msra.mxu0 0.0
    %2355 = vmatprep.subr.mxu0 0.0
    %2356 = vmatpush2.msra.mxu0 0.0
    %2357 = vmatprep.subr.mxu0 0.0
    %2358 = vmatpush2.msra.mxu0 0.0
    %2359 = vmatprep.subr.mxu0 0.0
    %2360 = vmatpush2.msra.mxu0 0.0
    %2361 = vmatprep.subr.mxu0 0.0
    %2362 = vmatpush2.msra.mxu0 0.0
    %2363 = vmatprep.subr.mxu0 0.0
    %2364 = vmatpush2.msra.mxu0 0.0
    %2365 = vmatprep.subr.mxu0 0.0
    %2366 = vmatpush2.msra.mxu0 0.0
    %2367 = vmatprep.subr.mxu0 %v2304
    %2368 = vmatpush2.msra.mxu0 %v2303
    %2369 = vmatprep.subr.mxu0 %v2302
    %2370 = vmatpush2.msra.mxu0 %v2301
    %2371 = vmatprep.subr.mxu0 %v2300
    %2372 = vmatpush2.msra.mxu0 %v2299
    %2373 = vmatprep.subr.mxu0 %v2298
    %2374 = vmatpush2.msra.mxu0 %v2297
    %2375 = vmatprep.subr.mxu0 %v2296
    %2376 = vmatpush2.msra.mxu0 %v2295
    %2377 = vmatprep.subr.mxu0 %v2294
    %2378 = vmatpush2.msra.mxu0 %v2293
    %2379 = vmatprep.subr.mxu0 %v2292
    %2380 = vmatpush2.msra.mxu0 %v2291
    %2381 = vmatprep.subr.mxu0 %v2290
    %2382 = vmatpush2.msra.mxu0 %v2289
    %2383 = vmatprep.mubr.f32.mxu0 %v2317
    %2384 = vmatmul.mubr.f32.gmra.mxu0 %v2256
    %v2385 = vpop.f32.mrf.mxu0
    %v2386 = vadd.f32 %v2310, %v2385
    %v2387 = vpop.f32.mrf.mxu0
    %v2388 = vadd.f32 %v2314, %v2387
    %2389 = vdwg.mxu0
    %v2390 = vxor.u32 %v2386, 2147483648
    %v2391 = vxor.u32 %v2388, 2147483648
    %v2392 = vmul.f32 %v2390, 1.442695
    %v2393 = vpow.pop %v2392
    %v2394 = vmul.f32 %v2391, 1.442695
    %v2395 = vpow.pop %v2394
    %v2396 = vadd.f32 %v2393, 1.0
    %v2397 = vadd.f32 %v2395, 1.0
    %v2398 = vrcp.pop %v2396
    %v2399 = vmul.f32 1.0, %v2398
    %v2400 = vrcp.pop %v2397
    %v2401 = vmul.f32 1.0, %v2400
    %v2402 = vtanh.pop %v2388
    %v2403 = vmul.f32 %v2399, %v2241
    %v2404 = vmul.f32 %v2399, %v2402
    %2406 = vrot.lane.b32.xlu0 %v2404, 64
    %v2407 = vpop.permute.xlu0 %2406
    %v2409 = vadd.f32 %v2403, %v2407
    %v2410 = vtanh.pop %v2409
    %v2411 = vmul.f32 %v2401, %v2410
    %2413 = vrot.lane.b32.xlu0 %v2411, 64
    %v2414 = vpop.permute.xlu0 %2413
    %2416 = vst.msk [vmem:[%s1910] sm:$0x3] %vm194, %v2414
    %2417 = vst.msk [vmem:[%s1908] sm:$0x3] %vm197, %v2414
    %v2418 = vld [vmem:[%s369] sm:$0x3]
    %v2419 = vld [vmem:[%s367] sm:$0x3]
    %2421 = vrot.lane.b32.xlu0 %v2419, 64
    %v2422 = vpop.permute.xlu0 %2421
    %v2424 = vsel %vm32, %v2418, %v2422
    %v2425 = vld [vmem:[%s1410] sm:$0xff]
    %v2426 = vld [vmem:[%s1410 + $0x8] sm:$0xff]
    %v2427 = vld [vmem:[%s1410 + $0x10] sm:$0xff]
    %v2428 = vld [vmem:[%s1410 + $0x18] sm:$0xff]
    %v2429 = vld [vmem:[%s1410 + $0x20] sm:$0xff]
    %v2430 = vld [vmem:[%s1410 + $0x28] sm:$0xff]
    %v2431 = vld [vmem:[%s1410 + $0x30] sm:$0xff]
    %v2432 = vld [vmem:[%s1410 + $0x38] sm:$0xff]
    %v2433 = vld [vmem:[%s1410 + $0x40] sm:$0xff]
    %v2434 = vld [vmem:[%s1410 + $0x48] sm:$0xff]
    %v2435 = vld [vmem:[%s1410 + $0x50] sm:$0xff]
    %v2436 = vld [vmem:[%s1410 + $0x58] sm:$0xff]
    %v2437 = vld [vmem:[%s1410 + $0x60] sm:$0xff]
    %v2438 = vld [vmem:[%s1410 + $0x68] sm:$0xff]
    %v2439 = vld [vmem:[%s1410 + $0x70] sm:$0xff]
    %v2440 = vld [vmem:[%s1410 + $0x78] sm:$0xff]
    %v2441 = vld [vmem:[%s1410 + $0x80] sm:$0xff]
    %v2442 = vld [vmem:[%s1410 + $0x88] sm:$0xff]
    %v2443 = vld [vmem:[%s1410 + $0x90] sm:$0xff]
    %v2444 = vld [vmem:[%s1410 + $0x98] sm:$0xff]
    %v2445 = vld [vmem:[%s1410 + $0xa0] sm:$0xff]
    %v2446 = vld [vmem:[%s1410 + $0xa8] sm:$0xff]
    %v2447 = vld [vmem:[%s1410 + $0xb0] sm:$0xff]
    %v2448 = vld [vmem:[%s1410 + $0xb8] sm:$0xff]
    %v2449 = vld [vmem:[%s1410 + $0xc0] sm:$0xff]
    %v2450 = vld [vmem:[%s1410 + $0xc8] sm:$0xff]
    %v2451 = vld [vmem:[%s1410 + $0xd0] sm:$0xff]
    %v2452 = vld [vmem:[%s1410 + $0xd8] sm:$0xff]
    %v2453 = vld [vmem:[%s1410 + $0xe0] sm:$0xff]
    %v2454 = vld [vmem:[%s1410 + $0xe8] sm:$0xff]
    %v2455 = vld [vmem:[%s1410 + $0xf0] sm:$0xff]
    %v2456 = vld [vmem:[%s1410 + $0xf8] sm:$0xff]
    %v2457 = vld [vmem:[%s1410 + $0x100] sm:$0xff]
    %v2458 = vld [vmem:[%s1410 + $0x108] sm:$0xff]
    %v2459 = vld [vmem:[%s1410 + $0x110] sm:$0xff]
    %v2460 = vld [vmem:[%s1410 + $0x118] sm:$0xff]
    %v2461 = vld [vmem:[%s1410 + $0x120] sm:$0xff]
    %v2462 = vld [vmem:[%s1410 + $0x128] sm:$0xff]
    %v2463 = vld [vmem:[%s1410 + $0x130] sm:$0xff]
    %v2464 = vld [vmem:[%s1410 + $0x138] sm:$0xff]
    %v2465 = vld [vmem:[%s1410 + $0x140] sm:$0xff]
    %v2466 = vld [vmem:[%s1410 + $0x148] sm:$0xff]
    %v2467 = vld [vmem:[%s1410 + $0x150] sm:$0xff]
    %v2468 = vld [vmem:[%s1410 + $0x158] sm:$0xff]
    %v2469 = vld [vmem:[%s1410 + $0x160] sm:$0xff]
    %v2470 = vld [vmem:[%s1410 + $0x168] sm:$0xff]
    %v2471 = vld [vmem:[%s1410 + $0x170] sm:$0xff]
    %v2472 = vld [vmem:[%s1410 + $0x178] sm:$0xff]
    %v2473 = vld [vmem:[%s1459] sm:$0x3]
    %v2475 = vlaneseq
    %v2476 = vshrl.u32 %v2475, 7
    %v2477 = vsub.s32 0, %v2476
    %v2478 = vrot.slane %v2473, %v2477
    %v2479 = vlaneseq
    %v2480 = vshrl.u32 %v2479, 7
    %v2481 = vsub.s32 1, %v2480
    %v2482 = vrot.slane %v2473, %v2481
    %v2485 = vsel %vm32, %v2414, 0
    %2487 = vmatprep.subr.mxu0 %v2456
    %2488 = vmatpush1.msra.mxu0 %v2455
    %2489 = vmatprep.subr.mxu0 %v2454
    %2490 = vmatpush1.msra.mxu0 %v2453
    %2491 = vmatprep.subr.mxu0 %v2452
    %2492 = vmatpush1.msra.mxu0 %v2451
    %2493 = vmatprep.subr.mxu0 %v2450
    %2494 = vmatpush1.msra.mxu0 %v2449
    %2495 = vmatprep.subr.mxu0 %v2448
    %2496 = vmatpush1.msra.mxu0 %v2447
    %2497 = vmatprep.subr.mxu0 %v2446
    %2498 = vmatpush1.msra.mxu0 %v2445
    %2499 = vmatprep.subr.mxu0 %v2444
    %2500 = vmatpush1.msra.mxu0 %v2443
    %2501 = vmatprep.subr.mxu0 %v2442
    %2502 = vmatpush1.msra.mxu0 %v2441
    %2503 = vmatprep.subr.mxu0 %v2440
    %2504 = vmatpush1.msra.mxu0 %v2439
    %2505 = vmatprep.subr.mxu0 %v2438
    %2506 = vmatpush1.msra.mxu0 %v2437
    %2507 = vmatprep.subr.mxu0 %v2436
    %2508 = vmatpush1.msra.mxu0 %v2435
    %2509 = vmatprep.subr.mxu0 %v2434
    %2510 = vmatpush1.msra.mxu0 %v2433
    %2511 = vmatprep.subr.mxu0 %v2432
    %2512 = vmatpush1.msra.mxu0 %v2431
    %2513 = vmatprep.subr.mxu0 %v2430
    %2514 = vmatpush1.msra.mxu0 %v2429
    %2515 = vmatprep.subr.mxu0 %v2428
    %2516 = vmatpush1.msra.mxu0 %v2427
    %2517 = vmatprep.subr.mxu0 %v2426
    %2518 = vmatpush1.msra.mxu0 %v2425
    %2519 = vmatprep.subr.mxu0 0.0
    %2520 = vmatpush2.msra.mxu0 0.0
    %2521 = vmatprep.subr.mxu0 0.0
    %2522 = vmatpush2.msra.mxu0 0.0
    %2523 = vmatprep.subr.mxu0 0.0
    %2524 = vmatpush2.msra.mxu0 0.0
    %2525 = vmatprep.subr.mxu0 0.0
    %2526 = vmatpush2.msra.mxu0 0.0
    %2527 = vmatprep.subr.mxu0 0.0
    %2528 = vmatpush2.msra.mxu0 0.0
    %2529 = vmatprep.subr.mxu0 0.0
    %2530 = vmatpush2.msra.mxu0 0.0
    %2531 = vmatprep.subr.mxu0 0.0
    %2532 = vmatpush2.msra.mxu0 0.0
    %2533 = vmatprep.subr.mxu0 0.0
    %2534 = vmatpush2.msra.mxu0 0.0
    %2535 = vmatprep.subr.mxu0 %v2472
    %2536 = vmatpush2.msra.mxu0 %v2471
    %2537 = vmatprep.subr.mxu0 %v2470
    %2538 = vmatpush2.msra.mxu0 %v2469
    %2539 = vmatprep.subr.mxu0 %v2468
    %2540 = vmatpush2.msra.mxu0 %v2467
    %2541 = vmatprep.subr.mxu0 %v2466
    %2542 = vmatpush2.msra.mxu0 %v2465
    %2543 = vmatprep.subr.mxu0 %v2464
    %2544 = vmatpush2.msra.mxu0 %v2463
    %2545 = vmatprep.subr.mxu0 %v2462
    %2546 = vmatpush2.msra.mxu0 %v2461
    %2547 = vmatprep.subr.mxu0 %v2460
    %2548 = vmatpush2.msra.mxu0 %v2459
    %2549 = vmatprep.subr.mxu0 %v2458
    %2550 = vmatpush2.msra.mxu0 %v2457
    %2551 = vmatprep.mubr.f32.mxu0 %v2485
    %2552 = vmatmul.mubr.f32.gmra.mxu0 %v2424
    %v2553 = vpop.f32.mrf.mxu0
    %v2554 = vadd.f32 %v2478, %v2553
    %v2555 = vpop.f32.mrf.mxu0
    %v2556 = vadd.f32 %v2482, %v2555
    %2557 = vdwg.mxu0
    %v2558 = vxor.u32 %v2554, 2147483648
    %v2559 = vxor.u32 %v2556, 2147483648
    %v2560 = vmul.f32 %v2558, 1.442695
    %v2561 = vpow.pop %v2560
    %v2562 = vmul.f32 %v2559, 1.442695
    %v2563 = vpow.pop %v2562
    %v2564 = vadd.f32 %v2561, 1.0
    %v2565 = vadd.f32 %v2563, 1.0
    %v2566 = vrcp.pop %v2564
    %v2567 = vmul.f32 1.0, %v2566
    %v2568 = vrcp.pop %v2565
    %v2569 = vmul.f32 1.0, %v2568
    %v2570 = vtanh.pop %v2556
    %v2571 = vmul.f32 %v2567, %v2409
    %v2572 = vmul.f32 %v2567, %v2570
    %2574 = vrot.lane.b32.xlu0 %v2572, 64
    %v2575 = vpop.permute.xlu0 %2574
    %v2577 = vadd.f32 %v2571, %v2575
    %v2578 = vtanh.pop %v2577
    %v2579 = vmul.f32 %v2569, %v2578
    %2581 = vrot.lane.b32.xlu0 %v2579, 64
    %v2582 = vpop.permute.xlu0 %2581
    %2584 = vst.msk [vmem:[%s1740] sm:$0x3] %vm194, %v2582
    %2585 = vst.msk [vmem:[%s1738] sm:$0x3] %vm197, %v2582
    %v2586 = vld [vmem:[%s196] sm:$0x3]
    %v2587 = vld [vmem:[#allocation2] sm:$0x3]
    %2589 = vrot.lane.b32.xlu0 %v2587, 64
    %v2590 = vpop.permute.xlu0 %2589
    %v2592 = vsel %vm32, %v2586, %v2590
    %v2593 = vld [vmem:[%s1410] sm:$0xff]
    %v2594 = vld [vmem:[%s1410 + $0x8] sm:$0xff]
    %v2595 = vld [vmem:[%s1410 + $0x10] sm:$0xff]
    %v2596 = vld [vmem:[%s1410 + $0x18] sm:$0xff]
    %v2597 = vld [vmem:[%s1410 + $0x20] sm:$0xff]
    %v2598 = vld [vmem:[%s1410 + $0x28] sm:$0xff]
    %v2599 = vld [vmem:[%s1410 + $0x30] sm:$0xff]
    %v2600 = vld [vmem:[%s1410 + $0x38] sm:$0xff]
    %v2601 = vld [vmem:[%s1410 + $0x40] sm:$0xff]
    %v2602 = vld [vmem:[%s1410 + $0x48] sm:$0xff]
    %v2603 = vld [vmem:[%s1410 + $0x50] sm:$0xff]
    %v2604 = vld [vmem:[%s1410 + $0x58] sm:$0xff]
    %v2605 = vld [vmem:[%s1410 + $0x60] sm:$0xff]
    %v2606 = vld [vmem:[%s1410 + $0x68] sm:$0xff]
    %v2607 = vld [vmem:[%s1410 + $0x70] sm:$0xff]
    %v2608 = vld [vmem:[%s1410 + $0x78] sm:$0xff]
    %v2609 = vld [vmem:[%s1410 + $0x80] sm:$0xff]
    %v2610 = vld [vmem:[%s1410 + $0x88] sm:$0xff]
    %v2611 = vld [vmem:[%s1410 + $0x90] sm:$0xff]
    %v2612 = vld [vmem:[%s1410 + $0x98] sm:$0xff]
    %v2613 = vld [vmem:[%s1410 + $0xa0] sm:$0xff]
    %v2614 = vld [vmem:[%s1410 + $0xa8] sm:$0xff]
    %v2615 = vld [vmem:[%s1410 + $0xb0] sm:$0xff]
    %v2616 = vld [vmem:[%s1410 + $0xb8] sm:$0xff]
    %v2617 = vld [vmem:[%s1410 + $0xc0] sm:$0xff]
    %v2618 = vld [vmem:[%s1410 + $0xc8] sm:$0xff]
    %v2619 = vld [vmem:[%s1410 + $0xd0] sm:$0xff]
    %v2620 = vld [vmem:[%s1410 + $0xd8] sm:$0xff]
    %v2621 = vld [vmem:[%s1410 + $0xe0] sm:$0xff]
    %v2622 = vld [vmem:[%s1410 + $0xe8] sm:$0xff]
    %v2623 = vld [vmem:[%s1410 + $0xf0] sm:$0xff]
    %v2624 = vld [vmem:[%s1410 + $0xf8] sm:$0xff]
    %v2625 = vld [vmem:[%s1410 + $0x100] sm:$0xff]
    %v2626 = vld [vmem:[%s1410 + $0x108] sm:$0xff]
    %v2627 = vld [vmem:[%s1410 + $0x110] sm:$0xff]
    %v2628 = vld [vmem:[%s1410 + $0x118] sm:$0xff]
    %v2629 = vld [vmem:[%s1410 + $0x120] sm:$0xff]
    %v2630 = vld [vmem:[%s1410 + $0x128] sm:$0xff]
    %v2631 = vld [vmem:[%s1410 + $0x130] sm:$0xff]
    %v2632 = vld [vmem:[%s1410 + $0x138] sm:$0xff]
    %v2633 = vld [vmem:[%s1410 + $0x140] sm:$0xff]
    %v2634 = vld [vmem:[%s1410 + $0x148] sm:$0xff]
    %v2635 = vld [vmem:[%s1410 + $0x150] sm:$0xff]
    %v2636 = vld [vmem:[%s1410 + $0x158] sm:$0xff]
    %v2637 = vld [vmem:[%s1410 + $0x160] sm:$0xff]
    %v2638 = vld [vmem:[%s1410 + $0x168] sm:$0xff]
    %v2639 = vld [vmem:[%s1410 + $0x170] sm:$0xff]
    %v2640 = vld [vmem:[%s1410 + $0x178] sm:$0xff]
    %v2641 = vld [vmem:[%s1459] sm:$0x3]
    %v2643 = vlaneseq
    %v2644 = vshrl.u32 %v2643, 7
    %v2645 = vsub.s32 0, %v2644
    %v2646 = vrot.slane %v2641, %v2645
    %v2647 = vlaneseq
    %v2648 = vshrl.u32 %v2647, 7
    %v2649 = vsub.s32 1, %v2648
    %v2650 = vrot.slane %v2641, %v2649
    %v2653 = vsel %vm32, %v2582, 0
    %2655 = vmatprep.subr.mxu0 %v2624
    %2656 = vmatpush1.msra.mxu0 %v2623
    %2657 = vmatprep.subr.mxu0 %v2622
    %2658 = vmatpush1.msra.mxu0 %v2621
    %2659 = vmatprep.subr.mxu0 %v2620
    %2660 = vmatpush1.msra.mxu0 %v2619
    %2661 = vmatprep.subr.mxu0 %v2618
    %2662 = vmatpush1.msra.mxu0 %v2617
    %2663 = vmatprep.subr.mxu0 %v2616
    %2664 = vmatpush1.msra.mxu0 %v2615
    %2665 = vmatprep.subr.mxu0 %v2614
    %2666 = vmatpush1.msra.mxu0 %v2613
    %2667 = vmatprep.subr.mxu0 %v2612
    %2668 = vmatpush1.msra.mxu0 %v2611
    %2669 = vmatprep.subr.mxu0 %v2610
    %2670 = vmatpush1.msra.mxu0 %v2609
    %2671 = vmatprep.subr.mxu0 %v2608
    %2672 = vmatpush1.msra.mxu0 %v2607
    %2673 = vmatprep.subr.mxu0 %v2606
    %2674 = vmatpush1.msra.mxu0 %v2605
    %2675 = vmatprep.subr.mxu0 %v2604
    %2676 = vmatpush1.msra.mxu0 %v2603
    %2677 = vmatprep.subr.mxu0 %v2602
    %2678 = vmatpush1.msra.mxu0 %v2601
    %2679 = vmatprep.subr.mxu0 %v2600
    %2680 = vmatpush1.msra.mxu0 %v2599
    %2681 = vmatprep.subr.mxu0 %v2598
    %2682 = vmatpush1.msra.mxu0 %v2597
    %2683 = vmatprep.subr.mxu0 %v2596
    %2684 = vmatpush1.msra.mxu0 %v2595
    %2685 = vmatprep.subr.mxu0 %v2594
    %2686 = vmatpush1.msra.mxu0 %v2593
    %2687 = vmatprep.subr.mxu0 0.0
    %2688 = vmatpush2.msra.mxu0 0.0
    %2689 = vmatprep.subr.mxu0 0.0
    %2690 = vmatpush2.msra.mxu0 0.0
    %2691 = vmatprep.subr.mxu0 0.0
    %2692 = vmatpush2.msra.mxu0 0.0
    %2693 = vmatprep.subr.mxu0 0.0
    %2694 = vmatpush2.msra.mxu0 0.0
    %2695 = vmatprep.subr.mxu0 0.0
    %2696 = vmatpush2.msra.mxu0 0.0
    %2697 = vmatprep.subr.mxu0 0.0
    %2698 = vmatpush2.msra.mxu0 0.0
    %2699 = vmatprep.subr.mxu0 0.0
    %2700 = vmatpush2.msra.mxu0 0.0
    %2701 = vmatprep.subr.mxu0 0.0
    %2702 = vmatpush2.msra.mxu0 0.0
    %2703 = vmatprep.subr.mxu0 %v2640
    %2704 = vmatpush2.msra.mxu0 %v2639
    %2705 = vmatprep.subr.mxu0 %v2638
    %2706 = vmatpush2.msra.mxu0 %v2637
    %2707 = vmatprep.subr.mxu0 %v2636
    %2708 = vmatpush2.msra.mxu0 %v2635
    %2709 = vmatprep.subr.mxu0 %v2634
    %2710 = vmatpush2.msra.mxu0 %v2633
    %2711 = vmatprep.subr.mxu0 %v2632
    %2712 = vmatpush2.msra.mxu0 %v2631
    %2713 = vmatprep.subr.mxu0 %v2630
    %2714 = vmatpush2.msra.mxu0 %v2629
    %2715 = vmatprep.subr.mxu0 %v2628
    %2716 = vmatpush2.msra.mxu0 %v2627
    %2717 = vmatprep.subr.mxu0 %v2626
    %2718 = vmatpush2.msra.mxu0 %v2625
    %2719 = vmatprep.mubr.f32.mxu0 %v2653
    %2720 = vmatmul.mubr.f32.gmra.mxu0 %v2592
    %v2721 = vpop.f32.mrf.mxu0
    %v2722 = vadd.f32 %v2646, %v2721
    %v2723 = vpop.f32.mrf.mxu0
    %v2724 = vadd.f32 %v2650, %v2723
    %2725 = vdwg.mxu0
    %v2726 = vxor.u32 %v2722, 2147483648
    %v2727 = vxor.u32 %v2724, 2147483648
    %v2728 = vmul.f32 %v2726, 1.442695
    %v2729 = vpow.pop %v2728
    %v2730 = vmul.f32 %v2727, 1.442695
    %v2731 = vpow.pop %v2730
    %v2732 = vadd.f32 %v2729, 1.0
    %v2733 = vadd.f32 %v2731, 1.0
    %v2734 = vrcp.pop %v2732
    %v2735 = vmul.f32 1.0, %v2734
    %v2736 = vrcp.pop %v2733
    %v2737 = vmul.f32 1.0, %v2736
    %v2738 = vtanh.pop %v2724
    %v2739 = vmul.f32 %v2735, %v2577
    %v2740 = vmul.f32 %v2735, %v2738
    %2742 = vrot.lane.b32.xlu0 %v2740, 64
    %v2743 = vpop.permute.xlu0 %2742
    %v2745 = vadd.f32 %v2739, %v2743
    %v2746 = vtanh.pop %v2745
    %v2747 = vmul.f32 %v2737, %v2746
    %2749 = vrot.lane.b32.xlu0 %v2747, 64
    %v2750 = vpop.permute.xlu0 %2749
    %2752 = vst.msk [vmem:[%s1570] sm:$0x3] %vm194, %v2750
    %2753 = vst.msk [vmem:[#allocation3] sm:$0x3] %vm197, %v2750
    %s2754 = scalar_lea.vmem [#allocation4], 4
    %2755 = vst.msk [vmem:[%s2754] sm:$0x3] %vm194, %v2750
    %2756 = vrot.lane.b32.xlu0 %v2747, 32
    %v2757 = vpop.permute.xlu0 %2756
    %s2759 = scalar_lea.vmem [#allocation4], 6
    %2760 = vst.msk [vmem:[%s2759] sm:$0x3] %vm194, %v2757
    %2762 = vrot.lane.b32.xlu0 %v2745, 64
    %v2763 = vpop.permute.xlu0 %2762
    %s2765 = scalar_lea.vmem [#allocation6], 4
    %2766 = vst.msk [vmem:[%s2765] sm:$0x3] %vm194, %v2763
    %2767 = vrot.lane.b32.xlu0 %v2745, 32
    %v2768 = vpop.permute.xlu0 %2767
    %s2770 = scalar_lea.vmem [#allocation6], 6
    %2771 = vst.msk [vmem:[%s2770] sm:$0x3] %vm194, %v2768
    %v2772 = vld [vmem:[#allocation3] sm:$0x3]
    %v2773 = vld [vmem:[%s1570] sm:$0x3]
    %2775 = vrot.lane.b32.xlu0 %v2773, 64
    %v2776 = vpop.permute.xlu0 %2775
    %v2778 = vsel %vm32, %v2772, %v2776
    %s2779 = scalar_lea.vmem %s1, 768
    %v2780 = vld [vmem:[%s2779] sm:$0xff]
    %v2781 = vld [vmem:[%s2779 + $0x8] sm:$0xff]
    %v2782 = vld [vmem:[%s2779 + $0x10] sm:$0xff]
    %v2783 = vld [vmem:[%s2779 + $0x18] sm:$0xff]
    %v2784 = vld [vmem:[%s2779 + $0x20] sm:$0xff]
    %v2785 = vld [vmem:[%s2779 + $0x28] sm:$0xff]
    %v2786 = vld [vmem:[%s2779 + $0x30] sm:$0xff]
    %v2787 = vld [vmem:[%s2779 + $0x38] sm:$0xff]
    %v2788 = vld [vmem:[%s2779 + $0x40] sm:$0xff]
    %v2789 = vld [vmem:[%s2779 + $0x48] sm:$0xff]
    %v2790 = vld [vmem:[%s2779 + $0x50] sm:$0xff]
    %v2791 = vld [vmem:[%s2779 + $0x58] sm:$0xff]
    %v2792 = vld [vmem:[%s2779 + $0x60] sm:$0xff]
    %v2793 = vld [vmem:[%s2779 + $0x68] sm:$0xff]
    %v2794 = vld [vmem:[%s2779 + $0x70] sm:$0xff]
    %v2795 = vld [vmem:[%s2779 + $0x78] sm:$0xff]
    %v2796 = vld [vmem:[%s2779 + $0x80] sm:$0xff]
    %v2797 = vld [vmem:[%s2779 + $0x88] sm:$0xff]
    %v2798 = vld [vmem:[%s2779 + $0x90] sm:$0xff]
    %v2799 = vld [vmem:[%s2779 + $0x98] sm:$0xff]
    %v2800 = vld [vmem:[%s2779 + $0xa0] sm:$0xff]
    %v2801 = vld [vmem:[%s2779 + $0xa8] sm:$0xff]
    %v2802 = vld [vmem:[%s2779 + $0xb0] sm:$0xff]
    %v2803 = vld [vmem:[%s2779 + $0xb8] sm:$0xff]
    %v2804 = vld [vmem:[%s2779 + $0xc0] sm:$0xff]
    %v2805 = vld [vmem:[%s2779 + $0xc8] sm:$0xff]
    %v2806 = vld [vmem:[%s2779 + $0xd0] sm:$0xff]
    %v2807 = vld [vmem:[%s2779 + $0xd8] sm:$0xff]
    %v2808 = vld [vmem:[%s2779 + $0xe0] sm:$0xff]
    %v2809 = vld [vmem:[%s2779 + $0xe8] sm:$0xff]
    %v2810 = vld [vmem:[%s2779 + $0xf0] sm:$0xff]
    %v2811 = vld [vmem:[%s2779 + $0xf8] sm:$0xff]
    %v2812 = vld [vmem:[%s2779 + $0x100] sm:$0xff]
    %v2813 = vld [vmem:[%s2779 + $0x108] sm:$0xff]
    %v2814 = vld [vmem:[%s2779 + $0x110] sm:$0xff]
    %v2815 = vld [vmem:[%s2779 + $0x118] sm:$0xff]
    %v2816 = vld [vmem:[%s2779 + $0x120] sm:$0xff]
    %v2817 = vld [vmem:[%s2779 + $0x128] sm:$0xff]
    %v2818 = vld [vmem:[%s2779 + $0x130] sm:$0xff]
    %v2819 = vld [vmem:[%s2779 + $0x138] sm:$0xff]
    %v2820 = vld [vmem:[%s2779 + $0x140] sm:$0xff]
    %v2821 = vld [vmem:[%s2779 + $0x148] sm:$0xff]
    %v2822 = vld [vmem:[%s2779 + $0x150] sm:$0xff]
    %v2823 = vld [vmem:[%s2779 + $0x158] sm:$0xff]
    %v2824 = vld [vmem:[%s2779 + $0x160] sm:$0xff]
    %v2825 = vld [vmem:[%s2779 + $0x168] sm:$0xff]
    %v2826 = vld [vmem:[%s2779 + $0x170] sm:$0xff]
    %v2827 = vld [vmem:[%s2779 + $0x178] sm:$0xff]
    %s2828 = scalar_lea.vmem %s2, 4
    %v2829 = vld [vmem:[%s2828] sm:$0x3]
    %v2831 = vlaneseq
    %v2832 = vshrl.u32 %v2831, 7
    %v2833 = vsub.s32 0, %v2832
    %v2834 = vrot.slane %v2829, %v2833
    %v2835 = vlaneseq
    %v2836 = vshrl.u32 %v2835, 7
    %v2837 = vsub.s32 1, %v2836
    %v2838 = vrot.slane %v2829, %v2837
    %2841 = vmatprep.subr.mxu0 %v2811
    %2842 = vmatpush1.msra.mxu0 %v2810
    %2843 = vmatprep.subr.mxu0 %v2809
    %2844 = vmatpush1.msra.mxu0 %v2808
    %2845 = vmatprep.subr.mxu0 %v2807
    %2846 = vmatpush1.msra.mxu0 %v2806
    %2847 = vmatprep.subr.mxu0 %v2805
    %2848 = vmatpush1.msra.mxu0 %v2804
    %2849 = vmatprep.subr.mxu0 %v2803
    %2850 = vmatpush1.msra.mxu0 %v2802
    %2851 = vmatprep.subr.mxu0 %v2801
    %2852 = vmatpush1.msra.mxu0 %v2800
    %2853 = vmatprep.subr.mxu0 %v2799
    %2854 = vmatpush1.msra.mxu0 %v2798
    %2855 = vmatprep.subr.mxu0 %v2797
    %2856 = vmatpush1.msra.mxu0 %v2796
    %2857 = vmatprep.subr.mxu0 %v2795
    %2858 = vmatpush1.msra.mxu0 %v2794
    %2859 = vmatprep.subr.mxu0 %v2793
    %2860 = vmatpush1.msra.mxu0 %v2792
    %2861 = vmatprep.subr.mxu0 %v2791
    %2862 = vmatpush1.msra.mxu0 %v2790
    %2863 = vmatprep.subr.mxu0 %v2789
    %2864 = vmatpush1.msra.mxu0 %v2788
    %2865 = vmatprep.subr.mxu0 %v2787
    %2866 = vmatpush1.msra.mxu0 %v2786
    %2867 = vmatprep.subr.mxu0 %v2785
    %2868 = vmatpush1.msra.mxu0 %v2784
    %2869 = vmatprep.subr.mxu0 %v2783
    %2870 = vmatpush1.msra.mxu0 %v2782
    %2871 = vmatprep.subr.mxu0 %v2781
    %2872 = vmatpush1.msra.mxu0 %v2780
    %2873 = vmatprep.subr.mxu0 0.0
    %2874 = vmatpush2.msra.mxu0 0.0
    %2875 = vmatprep.subr.mxu0 0.0
    %2876 = vmatpush2.msra.mxu0 0.0
    %2877 = vmatprep.subr.mxu0 0.0
    %2878 = vmatpush2.msra.mxu0 0.0
    %2879 = vmatprep.subr.mxu0 0.0
    %2880 = vmatpush2.msra.mxu0 0.0
    %2881 = vmatprep.subr.mxu0 0.0
    %2882 = vmatpush2.msra.mxu0 0.0
    %2883 = vmatprep.subr.mxu0 0.0
    %2884 = vmatpush2.msra.mxu0 0.0
    %2885 = vmatprep.subr.mxu0 0.0
    %2886 = vmatpush2.msra.mxu0 0.0
    %2887 = vmatprep.subr.mxu0 0.0
    %2888 = vmatpush2.msra.mxu0 0.0
    %2889 = vmatprep.subr.mxu0 %v2827
    %2890 = vmatpush2.msra.mxu0 %v2826
    %2891 = vmatprep.subr.mxu0 %v2825
    %2892 = vmatpush2.msra.mxu0 %v2824
    %2893 = vmatprep.subr.mxu0 %v2823
    %2894 = vmatpush2.msra.mxu0 %v2822
    %2895 = vmatprep.subr.mxu0 %v2821
    %2896 = vmatpush2.msra.mxu0 %v2820
    %2897 = vmatprep.subr.mxu0 %v2819
    %2898 = vmatpush2.msra.mxu0 %v2818
    %2899 = vmatprep.subr.mxu0 %v2817
    %2900 = vmatpush2.msra.mxu0 %v2816
    %2901 = vmatprep.subr.mxu0 %v2815
    %2902 = vmatpush2.msra.mxu0 %v2814
    %2903 = vmatprep.subr.mxu0 %v2813
    %2904 = vmatpush2.msra.mxu0 %v2812
    %2905 = vmatprep.mubr.f32.mxu0 %v95
    %2906 = vmatmul.mubr.f32.gmra.mxu0 %v2778
    %v2907 = vpop.f32.mrf.mxu0
    %v2908 = vadd.f32 %v2834, %v2907
    %v2909 = vpop.f32.mrf.mxu0
    %v2910 = vadd.f32 %v2838, %v2909
    %2911 = vdwg.mxu0
    %v2912 = vxor.u32 %v2908, 2147483648
    %v2913 = vxor.u32 %v2910, 2147483648
    %v2914 = vmul.f32 %v2912, 1.442695
    %v2915 = vpow.pop %v2914
    %v2916 = vmul.f32 %v2913, 1.442695
    %v2917 = vpow.pop %v2916
    %v2918 = vadd.f32 %v2915, 1.0
    %v2919 = vadd.f32 %v2917, 1.0
    %v2920 = vrcp.pop %v2918
    %v2921 = vmul.f32 1.0, %v2920
    %v2922 = vrcp.pop %v2919
    %v2923 = vmul.f32 1.0, %v2922
    %v2924 = vtanh.pop %v2910
    %v2925 = vmul.f32 %v2921, 0.0
    %v2926 = vmul.f32 %v2921, %v2924
    %2928 = vrot.lane.b32.xlu0 %v2926, 64
    %v2929 = vpop.permute.xlu0 %2928
    %v2931 = vadd.f32 %v2925, %v2929
    %v2932 = vtanh.pop %v2931
    %v2933 = vmul.f32 %v2923, %v2932
    %2935 = vrot.lane.b32.xlu0 %v2933, 64
    %v2936 = vpop.permute.xlu0 %2935
    %2938 = vst.msk [vmem:[#allocation2] sm:$0x3] %vm194, %v2936
    %2939 = vst.msk [vmem:[%s196] sm:$0x3] %vm197, %v2936
    %v2940 = vld [vmem:[%s1738] sm:$0x3]
    %v2941 = vld [vmem:[%s1740] sm:$0x3]
    %2943 = vrot.lane.b32.xlu0 %v2941, 64
    %v2944 = vpop.permute.xlu0 %2943
    %v2946 = vsel %vm32, %v2940, %v2944
    %v2947 = vld [vmem:[%s2779] sm:$0xff]
    %v2948 = vld [vmem:[%s2779 + $0x8] sm:$0xff]
    %v2949 = vld [vmem:[%s2779 + $0x10] sm:$0xff]
    %v2950 = vld [vmem:[%s2779 + $0x18] sm:$0xff]
    %v2951 = vld [vmem:[%s2779 + $0x20] sm:$0xff]
    %v2952 = vld [vmem:[%s2779 + $0x28] sm:$0xff]
    %v2953 = vld [vmem:[%s2779 + $0x30] sm:$0xff]
    %v2954 = vld [vmem:[%s2779 + $0x38] sm:$0xff]
    %v2955 = vld [vmem:[%s2779 + $0x40] sm:$0xff]
    %v2956 = vld [vmem:[%s2779 + $0x48] sm:$0xff]
    %v2957 = vld [vmem:[%s2779 + $0x50] sm:$0xff]
    %v2958 = vld [vmem:[%s2779 + $0x58] sm:$0xff]
    %v2959 = vld [vmem:[%s2779 + $0x60] sm:$0xff]
    %v2960 = vld [vmem:[%s2779 + $0x68] sm:$0xff]
    %v2961 = vld [vmem:[%s2779 + $0x70] sm:$0xff]
    %v2962 = vld [vmem:[%s2779 + $0x78] sm:$0xff]
    %v2963 = vld [vmem:[%s2779 + $0x80] sm:$0xff]
    %v2964 = vld [vmem:[%s2779 + $0x88] sm:$0xff]
    %v2965 = vld [vmem:[%s2779 + $0x90] sm:$0xff]
    %v2966 = vld [vmem:[%s2779 + $0x98] sm:$0xff]
    %v2967 = vld [vmem:[%s2779 + $0xa0] sm:$0xff]
    %v2968 = vld [vmem:[%s2779 + $0xa8] sm:$0xff]
    %v2969 = vld [vmem:[%s2779 + $0xb0] sm:$0xff]
    %v2970 = vld [vmem:[%s2779 + $0xb8] sm:$0xff]
    %v2971 = vld [vmem:[%s2779 + $0xc0] sm:$0xff]
    %v2972 = vld [vmem:[%s2779 + $0xc8] sm:$0xff]
    %v2973 = vld [vmem:[%s2779 + $0xd0] sm:$0xff]
    %v2974 = vld [vmem:[%s2779 + $0xd8] sm:$0xff]
    %v2975 = vld [vmem:[%s2779 + $0xe0] sm:$0xff]
    %v2976 = vld [vmem:[%s2779 + $0xe8] sm:$0xff]
    %v2977 = vld [vmem:[%s2779 + $0xf0] sm:$0xff]
    %v2978 = vld [vmem:[%s2779 + $0xf8] sm:$0xff]
    %v2979 = vld [vmem:[%s2779 + $0x100] sm:$0xff]
    %v2980 = vld [vmem:[%s2779 + $0x108] sm:$0xff]
    %v2981 = vld [vmem:[%s2779 + $0x110] sm:$0xff]
    %v2982 = vld [vmem:[%s2779 + $0x118] sm:$0xff]
    %v2983 = vld [vmem:[%s2779 + $0x120] sm:$0xff]
    %v2984 = vld [vmem:[%s2779 + $0x128] sm:$0xff]
    %v2985 = vld [vmem:[%s2779 + $0x130] sm:$0xff]
    %v2986 = vld [vmem:[%s2779 + $0x138] sm:$0xff]
    %v2987 = vld [vmem:[%s2779 + $0x140] sm:$0xff]
    %v2988 = vld [vmem:[%s2779 + $0x148] sm:$0xff]
    %v2989 = vld [vmem:[%s2779 + $0x150] sm:$0xff]
    %v2990 = vld [vmem:[%s2779 + $0x158] sm:$0xff]
    %v2991 = vld [vmem:[%s2779 + $0x160] sm:$0xff]
    %v2992 = vld [vmem:[%s2779 + $0x168] sm:$0xff]
    %v2993 = vld [vmem:[%s2779 + $0x170] sm:$0xff]
    %v2994 = vld [vmem:[%s2779 + $0x178] sm:$0xff]
    %v2995 = vld [vmem:[%s2828] sm:$0x3]
    %v2997 = vlaneseq
    %v2998 = vshrl.u32 %v2997, 7
    %v2999 = vsub.s32 0, %v2998
    %v3000 = vrot.slane %v2995, %v2999
    %v3001 = vlaneseq
    %v3002 = vshrl.u32 %v3001, 7
    %v3003 = vsub.s32 1, %v3002
    %v3004 = vrot.slane %v2995, %v3003
    %v3007 = vsel %vm32, %v2936, 0
    %3009 = vmatprep.subr.mxu0 %v2978
    %3010 = vmatpush1.msra.mxu0 %v2977
    %3011 = vmatprep.subr.mxu0 %v2976
    %3012 = vmatpush1.msra.mxu0 %v2975
    %3013 = vmatprep.subr.mxu0 %v2974
    %3014 = vmatpush1.msra.mxu0 %v2973
    %3015 = vmatprep.subr.mxu0 %v2972
    %3016 = vmatpush1.msra.mxu0 %v2971
    %3017 = vmatprep.subr.mxu0 %v2970
    %3018 = vmatpush1.msra.mxu0 %v2969
    %3019 = vmatprep.subr.mxu0 %v2968
    %3020 = vmatpush1.msra.mxu0 %v2967
    %3021 = vmatprep.subr.mxu0 %v2966
    %3022 = vmatpush1.msra.mxu0 %v2965
    %3023 = vmatprep.subr.mxu0 %v2964
    %3024 = vmatpush1.msra.mxu0 %v2963
    %3025 = vmatprep.subr.mxu0 %v2962
    %3026 = vmatpush1.msra.mxu0 %v2961
    %3027 = vmatprep.subr.mxu0 %v2960
    %3028 = vmatpush1.msra.mxu0 %v2959
    %3029 = vmatprep.subr.mxu0 %v2958
    %3030 = vmatpush1.msra.mxu0 %v2957
    %3031 = vmatprep.subr.mxu0 %v2956
    %3032 = vmatpush1.msra.mxu0 %v2955
    %3033 = vmatprep.subr.mxu0 %v2954
    %3034 = vmatpush1.msra.mxu0 %v2953
    %3035 = vmatprep.subr.mxu0 %v2952
    %3036 = vmatpush1.msra.mxu0 %v2951
    %3037 = vmatprep.subr.mxu0 %v2950
    %3038 = vmatpush1.msra.mxu0 %v2949
    %3039 = vmatprep.subr.mxu0 %v2948
    %3040 = vmatpush1.msra.mxu0 %v2947
    %3041 = vmatprep.subr.mxu0 0.0
    %3042 = vmatpush2.msra.mxu0 0.0
    %3043 = vmatprep.subr.mxu0 0.0
    %3044 = vmatpush2.msra.mxu0 0.0
    %3045 = vmatprep.subr.mxu0 0.0
    %3046 = vmatpush2.msra.mxu0 0.0
    %3047 = vmatprep.subr.mxu0 0.0
    %3048 = vmatpush2.msra.mxu0 0.0
    %3049 = vmatprep.subr.mxu0 0.0
    %3050 = vmatpush2.msra.mxu0 0.0
    %3051 = vmatprep.subr.mxu0 0.0
    %3052 = vmatpush2.msra.mxu0 0.0
    %3053 = vmatprep.subr.mxu0 0.0
    %3054 = vmatpush2.msra.mxu0 0.0
    %3055 = vmatprep.subr.mxu0 0.0
    %3056 = vmatpush2.msra.mxu0 0.0
    %3057 = vmatprep.subr.mxu0 %v2994
    %3058 = vmatpush2.msra.mxu0 %v2993
    %3059 = vmatprep.subr.mxu0 %v2992
    %3060 = vmatpush2.msra.mxu0 %v2991
    %3061 = vmatprep.subr.mxu0 %v2990
    %3062 = vmatpush2.msra.mxu0 %v2989
    %3063 = vmatprep.subr.mxu0 %v2988
    %3064 = vmatpush2.msra.mxu0 %v2987
    %3065 = vmatprep.subr.mxu0 %v2986
    %3066 = vmatpush2.msra.mxu0 %v2985
    %3067 = vmatprep.subr.mxu0 %v2984
    %3068 = vmatpush2.msra.mxu0 %v2983
    %3069 = vmatprep.subr.mxu0 %v2982
    %3070 = vmatpush2.msra.mxu0 %v2981
    %3071 = vmatprep.subr.mxu0 %v2980
    %3072 = vmatpush2.msra.mxu0 %v2979
    %3073 = vmatprep.mubr.f32.mxu0 %v3007
    %3074 = vmatmul.mubr.f32.gmra.mxu0 %v2946
    %v3075 = vpop.f32.mrf.mxu0
    %v3076 = vadd.f32 %v3000, %v3075
    %v3077 = vpop.f32.mrf.mxu0
    %v3078 = vadd.f32 %v3004, %v3077
    %3079 = vdwg.mxu0
    %v3080 = vxor.u32 %v3076, 2147483648
    %v3081 = vxor.u32 %v3078, 2147483648
    %v3082 = vmul.f32 %v3080, 1.442695
    %v3083 = vpow.pop %v3082
    %v3084 = vmul.f32 %v3081, 1.442695
    %v3085 = vpow.pop %v3084
    %v3086 = vadd.f32 %v3083, 1.0
    %v3087 = vadd.f32 %v3085, 1.0
    %v3088 = vrcp.pop %v3086
    %v3089 = vmul.f32 1.0, %v3088
    %v3090 = vrcp.pop %v3087
    %v3091 = vmul.f32 1.0, %v3090
    %v3092 = vtanh.pop %v3078
    %v3093 = vmul.f32 %v3089, %v2931
    %v3094 = vmul.f32 %v3089, %v3092
    %3096 = vrot.lane.b32.xlu0 %v3094, 64
    %v3097 = vpop.permute.xlu0 %3096
    %v3099 = vadd.f32 %v3093, %v3097
    %v3100 = vtanh.pop %v3099
    %v3101 = vmul.f32 %v3091, %v3100
    %3103 = vrot.lane.b32.xlu0 %v3101, 64
    %v3104 = vpop.permute.xlu0 %3103
    %3106 = vst.msk [vmem:[%s367] sm:$0x3] %vm194, %v3104
    %3107 = vst.msk [vmem:[%s369] sm:$0x3] %vm197, %v3104
    %v3108 = vld [vmem:[%s1908] sm:$0x3]
    %v3109 = vld [vmem:[%s1910] sm:$0x3]
    %3111 = vrot.lane.b32.xlu0 %v3109, 64
    %v3112 = vpop.permute.xlu0 %3111
    %v3114 = vsel %vm32, %v3108, %v3112
    %v3115 = vld [vmem:[%s2779] sm:$0xff]
    %v3116 = vld [vmem:[%s2779 + $0x8] sm:$0xff]
    %v3117 = vld [vmem:[%s2779 + $0x10] sm:$0xff]
    %v3118 = vld [vmem:[%s2779 + $0x18] sm:$0xff]
    %v3119 = vld [vmem:[%s2779 + $0x20] sm:$0xff]
    %v3120 = vld [vmem:[%s2779 + $0x28] sm:$0xff]
    %v3121 = vld [vmem:[%s2779 + $0x30] sm:$0xff]
    %v3122 = vld [vmem:[%s2779 + $0x38] sm:$0xff]
    %v3123 = vld [vmem:[%s2779 + $0x40] sm:$0xff]
    %v3124 = vld [vmem:[%s2779 + $0x48] sm:$0xff]
    %v3125 = vld [vmem:[%s2779 + $0x50] sm:$0xff]
    %v3126 = vld [vmem:[%s2779 + $0x58] sm:$0xff]
    %v3127 = vld [vmem:[%s2779 + $0x60] sm:$0xff]
    %v3128 = vld [vmem:[%s2779 + $0x68] sm:$0xff]
    %v3129 = vld [vmem:[%s2779 + $0x70] sm:$0xff]
    %v3130 = vld [vmem:[%s2779 + $0x78] sm:$0xff]
    %v3131 = vld [vmem:[%s2779 + $0x80] sm:$0xff]
    %v3132 = vld [vmem:[%s2779 + $0x88] sm:$0xff]
    %v3133 = vld [vmem:[%s2779 + $0x90] sm:$0xff]
    %v3134 = vld [vmem:[%s2779 + $0x98] sm:$0xff]
    %v3135 = vld [vmem:[%s2779 + $0xa0] sm:$0xff]
    %v3136 = vld [vmem:[%s2779 + $0xa8] sm:$0xff]
    %v3137 = vld [vmem:[%s2779 + $0xb0] sm:$0xff]
    %v3138 = vld [vmem:[%s2779 + $0xb8] sm:$0xff]
    %v3139 = vld [vmem:[%s2779 + $0xc0] sm:$0xff]
    %v3140 = vld [vmem:[%s2779 + $0xc8] sm:$0xff]
    %v3141 = vld [vmem:[%s2779 + $0xd0] sm:$0xff]
    %v3142 = vld [vmem:[%s2779 + $0xd8] sm:$0xff]
    %v3143 = vld [vmem:[%s2779 + $0xe0] sm:$0xff]
    %v3144 = vld [vmem:[%s2779 + $0xe8] sm:$0xff]
    %v3145 = vld [vmem:[%s2779 + $0xf0] sm:$0xff]
    %v3146 = vld [vmem:[%s2779 + $0xf8] sm:$0xff]
    %v3147 = vld [vmem:[%s2779 + $0x100] sm:$0xff]
    %v3148 = vld [vmem:[%s2779 + $0x108] sm:$0xff]
    %v3149 = vld [vmem:[%s2779 + $0x110] sm:$0xff]
    %v3150 = vld [vmem:[%s2779 + $0x118] sm:$0xff]
    %v3151 = vld [vmem:[%s2779 + $0x120] sm:$0xff]
    %v3152 = vld [vmem:[%s2779 + $0x128] sm:$0xff]
    %v3153 = vld [vmem:[%s2779 + $0x130] sm:$0xff]
    %v3154 = vld [vmem:[%s2779 + $0x138] sm:$0xff]
    %v3155 = vld [vmem:[%s2779 + $0x140] sm:$0xff]
    %v3156 = vld [vmem:[%s2779 + $0x148] sm:$0xff]
    %v3157 = vld [vmem:[%s2779 + $0x150] sm:$0xff]
    %v3158 = vld [vmem:[%s2779 + $0x158] sm:$0xff]
    %v3159 = vld [vmem:[%s2779 + $0x160] sm:$0xff]
    %v3160 = vld [vmem:[%s2779 + $0x168] sm:$0xff]
    %v3161 = vld [vmem:[%s2779 + $0x170] sm:$0xff]
    %v3162 = vld [vmem:[%s2779 + $0x178] sm:$0xff]
    %v3163 = vld [vmem:[%s2828] sm:$0x3]
    %v3165 = vlaneseq
    %v3166 = vshrl.u32 %v3165, 7
    %v3167 = vsub.s32 0, %v3166
    %v3168 = vrot.slane %v3163, %v3167
    %v3169 = vlaneseq
    %v3170 = vshrl.u32 %v3169, 7
    %v3171 = vsub.s32 1, %v3170
    %v3172 = vrot.slane %v3163, %v3171
    %v3175 = vsel %vm32, %v3104, 0
    %3177 = vmatprep.subr.mxu0 %v3146
    %3178 = vmatpush1.msra.mxu0 %v3145
    %3179 = vmatprep.subr.mxu0 %v3144
    %3180 = vmatpush1.msra.mxu0 %v3143
    %3181 = vmatprep.subr.mxu0 %v3142
    %3182 = vmatpush1.msra.mxu0 %v3141
    %3183 = vmatprep.subr.mxu0 %v3140
    %3184 = vmatpush1.msra.mxu0 %v3139
    %3185 = vmatprep.subr.mxu0 %v3138
    %3186 = vmatpush1.msra.mxu0 %v3137
    %3187 = vmatprep.subr.mxu0 %v3136
    %3188 = vmatpush1.msra.mxu0 %v3135
    %3189 = vmatprep.subr.mxu0 %v3134
    %3190 = vmatpush1.msra.mxu0 %v3133
    %3191 = vmatprep.subr.mxu0 %v3132
    %3192 = vmatpush1.msra.mxu0 %v3131
    %3193 = vmatprep.subr.mxu0 %v3130
    %3194 = vmatpush1.msra.mxu0 %v3129
    %3195 = vmatprep.subr.mxu0 %v3128
    %3196 = vmatpush1.msra.mxu0 %v3127
    %3197 = vmatprep.subr.mxu0 %v3126
    %3198 = vmatpush1.msra.mxu0 %v3125
    %3199 = vmatprep.subr.mxu0 %v3124
    %3200 = vmatpush1.msra.mxu0 %v3123
    %3201 = vmatprep.subr.mxu0 %v3122
    %3202 = vmatpush1.msra.mxu0 %v3121
    %3203 = vmatprep.subr.mxu0 %v3120
    %3204 = vmatpush1.msra.mxu0 %v3119
    %3205 = vmatprep.subr.mxu0 %v3118
    %3206 = vmatpush1.msra.mxu0 %v3117
    %3207 = vmatprep.subr.mxu0 %v3116
    %3208 = vmatpush1.msra.mxu0 %v3115
    %3209 = vmatprep.subr.mxu0 0.0
    %3210 = vmatpush2.msra.mxu0 0.0
    %3211 = vmatprep.subr.mxu0 0.0
    %3212 = vmatpush2.msra.mxu0 0.0
    %3213 = vmatprep.subr.mxu0 0.0
    %3214 = vmatpush2.msra.mxu0 0.0
    %3215 = vmatprep.subr.mxu0 0.0
    %3216 = vmatpush2.msra.mxu0 0.0
    %3217 = vmatprep.subr.mxu0 0.0
    %3218 = vmatpush2.msra.mxu0 0.0
    %3219 = vmatprep.subr.mxu0 0.0
    %3220 = vmatpush2.msra.mxu0 0.0
    %3221 = vmatprep.subr.mxu0 0.0
    %3222 = vmatpush2.msra.mxu0 0.0
    %3223 = vmatprep.subr.mxu0 0.0
    %3224 = vmatpush2.msra.mxu0 0.0
    %3225 = vmatprep.subr.mxu0 %v3162
    %3226 = vmatpush2.msra.mxu0 %v3161
    %3227 = vmatprep.subr.mxu0 %v3160
    %3228 = vmatpush2.msra.mxu0 %v3159
    %3229 = vmatprep.subr.mxu0 %v3158
    %3230 = vmatpush2.msra.mxu0 %v3157
    %3231 = vmatprep.subr.mxu0 %v3156
    %3232 = vmatpush2.msra.mxu0 %v3155
    %3233 = vmatprep.subr.mxu0 %v3154
    %3234 = vmatpush2.msra.mxu0 %v3153
    %3235 = vmatprep.subr.mxu0 %v3152
    %3236 = vmatpush2.msra.mxu0 %v3151
    %3237 = vmatprep.subr.mxu0 %v3150
    %3238 = vmatpush2.msra.mxu0 %v3149
    %3239 = vmatprep.subr.mxu0 %v3148
    %3240 = vmatpush2.msra.mxu0 %v3147
    %3241 = vmatprep.mubr.f32.mxu0 %v3175
    %3242 = vmatmul.mubr.f32.gmra.mxu0 %v3114
    %v3243 = vpop.f32.mrf.mxu0
    %v3244 = vadd.f32 %v3168, %v3243
    %v3245 = vpop.f32.mrf.mxu0
    %v3246 = vadd.f32 %v3172, %v3245
    %3247 = vdwg.mxu0
    %v3248 = vxor.u32 %v3244, 2147483648
    %v3249 = vxor.u32 %v3246, 2147483648
    %v3250 = vmul.f32 %v3248, 1.442695
    %v3251 = vpow.pop %v3250
    %v3252 = vmul.f32 %v3249, 1.442695
    %v3253 = vpow.pop %v3252
    %v3254 = vadd.f32 %v3251, 1.0
    %v3255 = vadd.f32 %v3253, 1.0
    %v3256 = vrcp.pop %v3254
    %v3257 = vmul.f32 1.0, %v3256
    %v3258 = vrcp.pop %v3255
    %v3259 = vmul.f32 1.0, %v3258
    %v3260 = vtanh.pop %v3246
    %v3261 = vmul.f32 %v3257, %v3099
    %v3262 = vmul.f32 %v3257, %v3260
    %3264 = vrot.lane.b32.xlu0 %v3262, 64
    %v3265 = vpop.permute.xlu0 %3264
    %v3267 = vadd.f32 %v3261, %v3265
    %v3268 = vtanh.pop %v3267
    %v3269 = vmul.f32 %v3259, %v3268
    %3271 = vrot.lane.b32.xlu0 %v3269, 64
    %v3272 = vpop.permute.xlu0 %3271
    %3274 = vst.msk [vmem:[%s539] sm:$0x3] %vm194, %v3272
    %3275 = vst.msk [vmem:[%s541] sm:$0x3] %vm197, %v3272
    %v3276 = vld [vmem:[%s2078] sm:$0x3]
    %v3277 = vld [vmem:[%s2080] sm:$0x3]
    %3279 = vrot.lane.b32.xlu0 %v3277, 64
    %v3280 = vpop.permute.xlu0 %3279
    %v3282 = vsel %vm32, %v3276, %v3280
    %v3283 = vld [vmem:[%s2779] sm:$0xff]
    %v3284 = vld [vmem:[%s2779 + $0x8] sm:$0xff]
    %v3285 = vld [vmem:[%s2779 + $0x10] sm:$0xff]
    %v3286 = vld [vmem:[%s2779 + $0x18] sm:$0xff]
    %v3287 = vld [vmem:[%s2779 + $0x20] sm:$0xff]
    %v3288 = vld [vmem:[%s2779 + $0x28] sm:$0xff]
    %v3289 = vld [vmem:[%s2779 + $0x30] sm:$0xff]
    %v3290 = vld [vmem:[%s2779 + $0x38] sm:$0xff]
    %v3291 = vld [vmem:[%s2779 + $0x40] sm:$0xff]
    %v3292 = vld [vmem:[%s2779 + $0x48] sm:$0xff]
    %v3293 = vld [vmem:[%s2779 + $0x50] sm:$0xff]
    %v3294 = vld [vmem:[%s2779 + $0x58] sm:$0xff]
    %v3295 = vld [vmem:[%s2779 + $0x60] sm:$0xff]
    %v3296 = vld [vmem:[%s2779 + $0x68] sm:$0xff]
    %v3297 = vld [vmem:[%s2779 + $0x70] sm:$0xff]
    %v3298 = vld [vmem:[%s2779 + $0x78] sm:$0xff]
    %v3299 = vld [vmem:[%s2779 + $0x80] sm:$0xff]
    %v3300 = vld [vmem:[%s2779 + $0x88] sm:$0xff]
    %v3301 = vld [vmem:[%s2779 + $0x90] sm:$0xff]
    %v3302 = vld [vmem:[%s2779 + $0x98] sm:$0xff]
    %v3303 = vld [vmem:[%s2779 + $0xa0] sm:$0xff]
    %v3304 = vld [vmem:[%s2779 + $0xa8] sm:$0xff]
    %v3305 = vld [vmem:[%s2779 + $0xb0] sm:$0xff]
    %v3306 = vld [vmem:[%s2779 + $0xb8] sm:$0xff]
    %v3307 = vld [vmem:[%s2779 + $0xc0] sm:$0xff]
    %v3308 = vld [vmem:[%s2779 + $0xc8] sm:$0xff]
    %v3309 = vld [vmem:[%s2779 + $0xd0] sm:$0xff]
    %v3310 = vld [vmem:[%s2779 + $0xd8] sm:$0xff]
    %v3311 = vld [vmem:[%s2779 + $0xe0] sm:$0xff]
    %v3312 = vld [vmem:[%s2779 + $0xe8] sm:$0xff]
    %v3313 = vld [vmem:[%s2779 + $0xf0] sm:$0xff]
    %v3314 = vld [vmem:[%s2779 + $0xf8] sm:$0xff]
    %v3315 = vld [vmem:[%s2779 + $0x100] sm:$0xff]
    %v3316 = vld [vmem:[%s2779 + $0x108] sm:$0xff]
    %v3317 = vld [vmem:[%s2779 + $0x110] sm:$0xff]
    %v3318 = vld [vmem:[%s2779 + $0x118] sm:$0xff]
    %v3319 = vld [vmem:[%s2779 + $0x120] sm:$0xff]
    %v3320 = vld [vmem:[%s2779 + $0x128] sm:$0xff]
    %v3321 = vld [vmem:[%s2779 + $0x130] sm:$0xff]
    %v3322 = vld [vmem:[%s2779 + $0x138] sm:$0xff]
    %v3323 = vld [vmem:[%s2779 + $0x140] sm:$0xff]
    %v3324 = vld [vmem:[%s2779 + $0x148] sm:$0xff]
    %v3325 = vld [vmem:[%s2779 + $0x150] sm:$0xff]
    %v3326 = vld [vmem:[%s2779 + $0x158] sm:$0xff]
    %v3327 = vld [vmem:[%s2779 + $0x160] sm:$0xff]
    %v3328 = vld [vmem:[%s2779 + $0x168] sm:$0xff]
    %v3329 = vld [vmem:[%s2779 + $0x170] sm:$0xff]
    %v3330 = vld [vmem:[%s2779 + $0x178] sm:$0xff]
    %v3331 = vld [vmem:[%s2828] sm:$0x3]
    %v3333 = vlaneseq
    %v3334 = vshrl.u32 %v3333, 7
    %v3335 = vsub.s32 0, %v3334
    %v3336 = vrot.slane %v3331, %v3335
    %v3337 = vlaneseq
    %v3338 = vshrl.u32 %v3337, 7
    %v3339 = vsub.s32 1, %v3338
    %v3340 = vrot.slane %v3331, %v3339
    %v3343 = vsel %vm32, %v3272, 0
    %3345 = vmatprep.subr.mxu0 %v3314
    %3346 = vmatpush1.msra.mxu0 %v3313
    %3347 = vmatprep.subr.mxu0 %v3312
    %3348 = vmatpush1.msra.mxu0 %v3311
    %3349 = vmatprep.subr.mxu0 %v3310
    %3350 = vmatpush1.msra.mxu0 %v3309
    %3351 = vmatprep.subr.mxu0 %v3308
    %3352 = vmatpush1.msra.mxu0 %v3307
    %3353 = vmatprep.subr.mxu0 %v3306
    %3354 = vmatpush1.msra.mxu0 %v3305
    %3355 = vmatprep.subr.mxu0 %v3304
    %3356 = vmatpush1.msra.mxu0 %v3303
    %3357 = vmatprep.subr.mxu0 %v3302
    %3358 = vmatpush1.msra.mxu0 %v3301
    %3359 = vmatprep.subr.mxu0 %v3300
    %3360 = vmatpush1.msra.mxu0 %v3299
    %3361 = vmatprep.subr.mxu0 %v3298
    %3362 = vmatpush1.msra.mxu0 %v3297
    %3363 = vmatprep.subr.mxu0 %v3296
    %3364 = vmatpush1.msra.mxu0 %v3295
    %3365 = vmatprep.subr.mxu0 %v3294
    %3366 = vmatpush1.msra.mxu0 %v3293
    %3367 = vmatprep.subr.mxu0 %v3292
    %3368 = vmatpush1.msra.mxu0 %v3291
    %3369 = vmatprep.subr.mxu0 %v3290
    %3370 = vmatpush1.msra.mxu0 %v3289
    %3371 = vmatprep.subr.mxu0 %v3288
    %3372 = vmatpush1.msra.mxu0 %v3287
    %3373 = vmatprep.subr.mxu0 %v3286
    %3374 = vmatpush1.msra.mxu0 %v3285
    %3375 = vmatprep.subr.mxu0 %v3284
    %3376 = vmatpush1.msra.mxu0 %v3283
    %3377 = vmatprep.subr.mxu0 0.0
    %3378 = vmatpush2.msra.mxu0 0.0
    %3379 = vmatprep.subr.mxu0 0.0
    %3380 = vmatpush2.msra.mxu0 0.0
    %3381 = vmatprep.subr.mxu0 0.0
    %3382 = vmatpush2.msra.mxu0 0.0
    %3383 = vmatprep.subr.mxu0 0.0
    %3384 = vmatpush2.msra.mxu0 0.0
    %3385 = vmatprep.subr.mxu0 0.0
    %3386 = vmatpush2.msra.mxu0 0.0
    %3387 = vmatprep.subr.mxu0 0.0
    %3388 = vmatpush2.msra.mxu0 0.0
    %3389 = vmatprep.subr.mxu0 0.0
    %3390 = vmatpush2.msra.mxu0 0.0
    %3391 = vmatprep.subr.mxu0 0.0
    %3392 = vmatpush2.msra.mxu0 0.0
    %3393 = vmatprep.subr.mxu0 %v3330
    %3394 = vmatpush2.msra.mxu0 %v3329
    %3395 = vmatprep.subr.mxu0 %v3328
    %3396 = vmatpush2.msra.mxu0 %v3327
    %3397 = vmatprep.subr.mxu0 %v3326
    %3398 = vmatpush2.msra.mxu0 %v3325
    %3399 = vmatprep.subr.mxu0 %v3324
    %3400 = vmatpush2.msra.mxu0 %v3323
    %3401 = vmatprep.subr.mxu0 %v3322
    %3402 = vmatpush2.msra.mxu0 %v3321
    %3403 = vmatprep.subr.mxu0 %v3320
    %3404 = vmatpush2.msra.mxu0 %v3319
    %3405 = vmatprep.subr.mxu0 %v3318
    %3406 = vmatpush2.msra.mxu0 %v3317
    %3407 = vmatprep.subr.mxu0 %v3316
    %3408 = vmatpush2.msra.mxu0 %v3315
    %3409 = vmatprep.mubr.f32.mxu0 %v3343
    %3410 = vmatmul.mubr.f32.gmra.mxu0 %v3282
    %v3411 = vpop.f32.mrf.mxu0
    %v3412 = vadd.f32 %v3336, %v3411
    %v3413 = vpop.f32.mrf.mxu0
    %v3414 = vadd.f32 %v3340, %v3413
    %3415 = vdwg.mxu0
    %v3416 = vxor.u32 %v3412, 2147483648
    %v3417 = vxor.u32 %v3414, 2147483648
    %v3418 = vmul.f32 %v3416, 1.442695
    %v3419 = vpow.pop %v3418
    %v3420 = vmul.f32 %v3417, 1.442695
    %v3421 = vpow.pop %v3420
    %v3422 = vadd.f32 %v3419, 1.0
    %v3423 = vadd.f32 %v3421, 1.0
    %v3424 = vrcp.pop %v3422
    %v3425 = vmul.f32 1.0, %v3424
    %v3426 = vrcp.pop %v3423
    %v3427 = vmul.f32 1.0, %v3426
    %v3428 = vtanh.pop %v3414
    %v3429 = vmul.f32 %v3425, %v3267
    %v3430 = vmul.f32 %v3425, %v3428
    %3432 = vrot.lane.b32.xlu0 %v3430, 64
    %v3433 = vpop.permute.xlu0 %3432
    %v3435 = vadd.f32 %v3429, %v3433
    %v3436 = vtanh.pop %v3435
    %v3437 = vmul.f32 %v3427, %v3436
    %3439 = vrot.lane.b32.xlu0 %v3437, 64
    %v3440 = vpop.permute.xlu0 %3439
    %3442 = vst.msk [vmem:[%s711] sm:$0x3] %vm194, %v3440
    %3443 = vst.msk [vmem:[%s713] sm:$0x3] %vm197, %v3440
    %v3444 = vld [vmem:[%s2080] sm:$0x3]
    %v3445 = vld [vmem:[%s2078] sm:$0x3]
    %3447 = vrot.lane.b32.xlu0 %v3445, 64
    %v3448 = vpop.permute.xlu0 %3447
    %v3450 = vsel %vm32, %v3444, %v3448
    %v3451 = vld [vmem:[%s2779] sm:$0xff]
    %v3452 = vld [vmem:[%s2779 + $0x8] sm:$0xff]
    %v3453 = vld [vmem:[%s2779 + $0x10] sm:$0xff]
    %v3454 = vld [vmem:[%s2779 + $0x18] sm:$0xff]
    %v3455 = vld [vmem:[%s2779 + $0x20] sm:$0xff]
    %v3456 = vld [vmem:[%s2779 + $0x28] sm:$0xff]
    %v3457 = vld [vmem:[%s2779 + $0x30] sm:$0xff]
    %v3458 = vld [vmem:[%s2779 + $0x38] sm:$0xff]
    %v3459 = vld [vmem:[%s2779 + $0x40] sm:$0xff]
    %v3460 = vld [vmem:[%s2779 + $0x48] sm:$0xff]
    %v3461 = vld [vmem:[%s2779 + $0x50] sm:$0xff]
    %v3462 = vld [vmem:[%s2779 + $0x58] sm:$0xff]
    %v3463 = vld [vmem:[%s2779 + $0x60] sm:$0xff]
    %v3464 = vld [vmem:[%s2779 + $0x68] sm:$0xff]
    %v3465 = vld [vmem:[%s2779 + $0x70] sm:$0xff]
    %v3466 = vld [vmem:[%s2779 + $0x78] sm:$0xff]
    %v3467 = vld [vmem:[%s2779 + $0x80] sm:$0xff]
    %v3468 = vld [vmem:[%s2779 + $0x88] sm:$0xff]
    %v3469 = vld [vmem:[%s2779 + $0x90] sm:$0xff]
    %v3470 = vld [vmem:[%s2779 + $0x98] sm:$0xff]
    %v3471 = vld [vmem:[%s2779 + $0xa0] sm:$0xff]
    %v3472 = vld [vmem:[%s2779 + $0xa8] sm:$0xff]
    %v3473 = vld [vmem:[%s2779 + $0xb0] sm:$0xff]
    %v3474 = vld [vmem:[%s2779 + $0xb8] sm:$0xff]
    %v3475 = vld [vmem:[%s2779 + $0xc0] sm:$0xff]
    %v3476 = vld [vmem:[%s2779 + $0xc8] sm:$0xff]
    %v3477 = vld [vmem:[%s2779 + $0xd0] sm:$0xff]
    %v3478 = vld [vmem:[%s2779 + $0xd8] sm:$0xff]
    %v3479 = vld [vmem:[%s2779 + $0xe0] sm:$0xff]
    %v3480 = vld [vmem:[%s2779 + $0xe8] sm:$0xff]
    %v3481 = vld [vmem:[%s2779 + $0xf0] sm:$0xff]
    %v3482 = vld [vmem:[%s2779 + $0xf8] sm:$0xff]
    %v3483 = vld [vmem:[%s2779 + $0x100] sm:$0xff]
    %v3484 = vld [vmem:[%s2779 + $0x108] sm:$0xff]
    %v3485 = vld [vmem:[%s2779 + $0x110] sm:$0xff]
    %v3486 = vld [vmem:[%s2779 + $0x118] sm:$0xff]
    %v3487 = vld [vmem:[%s2779 + $0x120] sm:$0xff]
    %v3488 = vld [vmem:[%s2779 + $0x128] sm:$0xff]
    %v3489 = vld [vmem:[%s2779 + $0x130] sm:$0xff]
    %v3490 = vld [vmem:[%s2779 + $0x138] sm:$0xff]
    %v3491 = vld [vmem:[%s2779 + $0x140] sm:$0xff]
    %v3492 = vld [vmem:[%s2779 + $0x148] sm:$0xff]
    %v3493 = vld [vmem:[%s2779 + $0x150] sm:$0xff]
    %v3494 = vld [vmem:[%s2779 + $0x158] sm:$0xff]
    %v3495 = vld [vmem:[%s2779 + $0x160] sm:$0xff]
    %v3496 = vld [vmem:[%s2779 + $0x168] sm:$0xff]
    %v3497 = vld [vmem:[%s2779 + $0x170] sm:$0xff]
    %v3498 = vld [vmem:[%s2779 + $0x178] sm:$0xff]
    %v3499 = vld [vmem:[%s2828] sm:$0x3]
    %v3501 = vlaneseq
    %v3502 = vshrl.u32 %v3501, 7
    %v3503 = vsub.s32 0, %v3502
    %v3504 = vrot.slane %v3499, %v3503
    %v3505 = vlaneseq
    %v3506 = vshrl.u32 %v3505, 7
    %v3507 = vsub.s32 1, %v3506
    %v3508 = vrot.slane %v3499, %v3507
    %v3511 = vsel %vm32, %v3440, 0
    %3513 = vmatprep.subr.mxu0 %v3482
    %3514 = vmatpush1.msra.mxu0 %v3481
    %3515 = vmatprep.subr.mxu0 %v3480
    %3516 = vmatpush1.msra.mxu0 %v3479
    %3517 = vmatprep.subr.mxu0 %v3478
    %3518 = vmatpush1.msra.mxu0 %v3477
    %3519 = vmatprep.subr.mxu0 %v3476
    %3520 = vmatpush1.msra.mxu0 %v3475
    %3521 = vmatprep.subr.mxu0 %v3474
    %3522 = vmatpush1.msra.mxu0 %v3473
    %3523 = vmatprep.subr.mxu0 %v3472
    %3524 = vmatpush1.msra.mxu0 %v3471
    %3525 = vmatprep.subr.mxu0 %v3470
    %3526 = vmatpush1.msra.mxu0 %v3469
    %3527 = vmatprep.subr.mxu0 %v3468
    %3528 = vmatpush1.msra.mxu0 %v3467
    %3529 = vmatprep.subr.mxu0 %v3466
    %3530 = vmatpush1.msra.mxu0 %v3465
    %3531 = vmatprep.subr.mxu0 %v3464
    %3532 = vmatpush1.msra.mxu0 %v3463
    %3533 = vmatprep.subr.mxu0 %v3462
    %3534 = vmatpush1.msra.mxu0 %v3461
    %3535 = vmatprep.subr.mxu0 %v3460
    %3536 = vmatpush1.msra.mxu0 %v3459
    %3537 = vmatprep.subr.mxu0 %v3458
    %3538 = vmatpush1.msra.mxu0 %v3457
    %3539 = vmatprep.subr.mxu0 %v3456
    %3540 = vmatpush1.msra.mxu0 %v3455
    %3541 = vmatprep.subr.mxu0 %v3454
    %3542 = vmatpush1.msra.mxu0 %v3453
    %3543 = vmatprep.subr.mxu0 %v3452
    %3544 = vmatpush1.msra.mxu0 %v3451
    %3545 = vmatprep.subr.mxu0 0.0
    %3546 = vmatpush2.msra.mxu0 0.0
    %3547 = vmatprep.subr.mxu0 0.0
    %3548 = vmatpush2.msra.mxu0 0.0
    %3549 = vmatprep.subr.mxu0 0.0
    %3550 = vmatpush2.msra.mxu0 0.0
    %3551 = vmatprep.subr.mxu0 0.0
    %3552 = vmatpush2.msra.mxu0 0.0
    %3553 = vmatprep.subr.mxu0 0.0
    %3554 = vmatpush2.msra.mxu0 0.0
    %3555 = vmatprep.subr.mxu0 0.0
    %3556 = vmatpush2.msra.mxu0 0.0
    %3557 = vmatprep.subr.mxu0 0.0
    %3558 = vmatpush2.msra.mxu0 0.0
    %3559 = vmatprep.subr.mxu0 0.0
    %3560 = vmatpush2.msra.mxu0 0.0
    %3561 = vmatprep.subr.mxu0 %v3498
    %3562 = vmatpush2.msra.mxu0 %v3497
    %3563 = vmatprep.subr.mxu0 %v3496
    %3564 = vmatpush2.msra.mxu0 %v3495
    %3565 = vmatprep.subr.mxu0 %v3494
    %3566 = vmatpush2.msra.mxu0 %v3493
    %3567 = vmatprep.subr.mxu0 %v3492
    %3568 = vmatpush2.msra.mxu0 %v3491
    %3569 = vmatprep.subr.mxu0 %v3490
    %3570 = vmatpush2.msra.mxu0 %v3489
    %3571 = vmatprep.subr.mxu0 %v3488
    %3572 = vmatpush2.msra.mxu0 %v3487
    %3573 = vmatprep.subr.mxu0 %v3486
    %3574 = vmatpush2.msra.mxu0 %v3485
    %3575 = vmatprep.subr.mxu0 %v3484
    %3576 = vmatpush2.msra.mxu0 %v3483
    %3577 = vmatprep.mubr.f32.mxu0 %v3511
    %3578 = vmatmul.mubr.f32.gmra.mxu0 %v3450
    %v3579 = vpop.f32.mrf.mxu0
    %v3580 = vadd.f32 %v3504, %v3579
    %v3581 = vpop.f32.mrf.mxu0
    %v3582 = vadd.f32 %v3508, %v3581
    %3583 = vdwg.mxu0
    %v3584 = vxor.u32 %v3580, 2147483648
    %v3585 = vxor.u32 %v3582, 2147483648
    %v3586 = vmul.f32 %v3584, 1.442695
    %v3587 = vpow.pop %v3586
    %v3588 = vmul.f32 %v3585, 1.442695
    %v3589 = vpow.pop %v3588
    %v3590 = vadd.f32 %v3587, 1.0
    %v3591 = vadd.f32 %v3589, 1.0
    %v3592 = vrcp.pop %v3590
    %v3593 = vmul.f32 1.0, %v3592
    %v3594 = vrcp.pop %v3591
    %v3595 = vmul.f32 1.0, %v3594
    %v3596 = vtanh.pop %v3582
    %v3597 = vmul.f32 %v3593, %v3435
    %v3598 = vmul.f32 %v3593, %v3596
    %3600 = vrot.lane.b32.xlu0 %v3598, 64
    %v3601 = vpop.permute.xlu0 %3600
    %v3603 = vadd.f32 %v3597, %v3601
    %v3604 = vtanh.pop %v3603
    %v3605 = vmul.f32 %v3595, %v3604
    %3607 = vrot.lane.b32.xlu0 %v3605, 64
    %v3608 = vpop.permute.xlu0 %3607
    %3610 = vst.msk [vmem:[%s713] sm:$0x3] %vm194, %v3608
    %3611 = vst.msk [vmem:[%s711] sm:$0x3] %vm197, %v3608
    %v3612 = vld [vmem:[%s1910] sm:$0x3]
    %v3613 = vld [vmem:[%s1908] sm:$0x3]
    %3615 = vrot.lane.b32.xlu0 %v3613, 64
    %v3616 = vpop.permute.xlu0 %3615
    %v3618 = vsel %vm32, %v3612, %v3616
    %v3619 = vld [vmem:[%s2779] sm:$0xff]
    %v3620 = vld [vmem:[%s2779 + $0x8] sm:$0xff]
    %v3621 = vld [vmem:[%s2779 + $0x10] sm:$0xff]
    %v3622 = vld [vmem:[%s2779 + $0x18] sm:$0xff]
    %v3623 = vld [vmem:[%s2779 + $0x20] sm:$0xff]
    %v3624 = vld [vmem:[%s2779 + $0x28] sm:$0xff]
    %v3625 = vld [vmem:[%s2779 + $0x30] sm:$0xff]
    %v3626 = vld [vmem:[%s2779 + $0x38] sm:$0xff]
    %v3627 = vld [vmem:[%s2779 + $0x40] sm:$0xff]
    %v3628 = vld [vmem:[%s2779 + $0x48] sm:$0xff]
    %v3629 = vld [vmem:[%s2779 + $0x50] sm:$0xff]
    %v3630 = vld [vmem:[%s2779 + $0x58] sm:$0xff]
    %v3631 = vld [vmem:[%s2779 + $0x60] sm:$0xff]
    %v3632 = vld [vmem:[%s2779 + $0x68] sm:$0xff]
    %v3633 = vld [vmem:[%s2779 + $0x70] sm:$0xff]
    %v3634 = vld [vmem:[%s2779 + $0x78] sm:$0xff]
    %v3635 = vld [vmem:[%s2779 + $0x80] sm:$0xff]
    %v3636 = vld [vmem:[%s2779 + $0x88] sm:$0xff]
    %v3637 = vld [vmem:[%s2779 + $0x90] sm:$0xff]
    %v3638 = vld [vmem:[%s2779 + $0x98] sm:$0xff]
    %v3639 = vld [vmem:[%s2779 + $0xa0] sm:$0xff]
    %v3640 = vld [vmem:[%s2779 + $0xa8] sm:$0xff]
    %v3641 = vld [vmem:[%s2779 + $0xb0] sm:$0xff]
    %v3642 = vld [vmem:[%s2779 + $0xb8] sm:$0xff]
    %v3643 = vld [vmem:[%s2779 + $0xc0] sm:$0xff]
    %v3644 = vld [vmem:[%s2779 + $0xc8] sm:$0xff]
    %v3645 = vld [vmem:[%s2779 + $0xd0] sm:$0xff]
    %v3646 = vld [vmem:[%s2779 + $0xd8] sm:$0xff]
    %v3647 = vld [vmem:[%s2779 + $0xe0] sm:$0xff]
    %v3648 = vld [vmem:[%s2779 + $0xe8] sm:$0xff]
    %v3649 = vld [vmem:[%s2779 + $0xf0] sm:$0xff]
    %v3650 = vld [vmem:[%s2779 + $0xf8] sm:$0xff]
    %v3651 = vld [vmem:[%s2779 + $0x100] sm:$0xff]
    %v3652 = vld [vmem:[%s2779 + $0x108] sm:$0xff]
    %v3653 = vld [vmem:[%s2779 + $0x110] sm:$0xff]
    %v3654 = vld [vmem:[%s2779 + $0x118] sm:$0xff]
    %v3655 = vld [vmem:[%s2779 + $0x120] sm:$0xff]
    %v3656 = vld [vmem:[%s2779 + $0x128] sm:$0xff]
    %v3657 = vld [vmem:[%s2779 + $0x130] sm:$0xff]
    %v3658 = vld [vmem:[%s2779 + $0x138] sm:$0xff]
    %v3659 = vld [vmem:[%s2779 + $0x140] sm:$0xff]
    %v3660 = vld [vmem:[%s2779 + $0x148] sm:$0xff]
    %v3661 = vld [vmem:[%s2779 + $0x150] sm:$0xff]
    %v3662 = vld [vmem:[%s2779 + $0x158] sm:$0xff]
    %v3663 = vld [vmem:[%s2779 + $0x160] sm:$0xff]
    %v3664 = vld [vmem:[%s2779 + $0x168] sm:$0xff]
    %v3665 = vld [vmem:[%s2779 + $0x170] sm:$0xff]
    %v3666 = vld [vmem:[%s2779 + $0x178] sm:$0xff]
    %v3667 = vld [vmem:[%s2828] sm:$0x3]
    %v3669 = vlaneseq
    %v3670 = vshrl.u32 %v3669, 7
    %v3671 = vsub.s32 0, %v3670
    %v3672 = vrot.slane %v3667, %v3671
    %v3673 = vlaneseq
    %v3674 = vshrl.u32 %v3673, 7
    %v3675 = vsub.s32 1, %v3674
    %v3676 = vrot.slane %v3667, %v3675
    %v3679 = vsel %vm32, %v3608, 0
    %3681 = vmatprep.subr.mxu0 %v3650
    %3682 = vmatpush1.msra.mxu0 %v3649
    %3683 = vmatprep.subr.mxu0 %v3648
    %3684 = vmatpush1.msra.mxu0 %v3647
    %3685 = vmatprep.subr.mxu0 %v3646
    %3686 = vmatpush1.msra.mxu0 %v3645
    %3687 = vmatprep.subr.mxu0 %v3644
    %3688 = vmatpush1.msra.mxu0 %v3643
    %3689 = vmatprep.subr.mxu0 %v3642
    %3690 = vmatpush1.msra.mxu0 %v3641
    %3691 = vmatprep.subr.mxu0 %v3640
    %3692 = vmatpush1.msra.mxu0 %v3639
    %3693 = vmatprep.subr.mxu0 %v3638
    %3694 = vmatpush1.msra.mxu0 %v3637
    %3695 = vmatprep.subr.mxu0 %v3636
    %3696 = vmatpush1.msra.mxu0 %v3635
    %3697 = vmatprep.subr.mxu0 %v3634
    %3698 = vmatpush1.msra.mxu0 %v3633
    %3699 = vmatprep.subr.mxu0 %v3632
    %3700 = vmatpush1.msra.mxu0 %v3631
    %3701 = vmatprep.subr.mxu0 %v3630
    %3702 = vmatpush1.msra.mxu0 %v3629
    %3703 = vmatprep.subr.mxu0 %v3628
    %3704 = vmatpush1.msra.mxu0 %v3627
    %3705 = vmatprep.subr.mxu0 %v3626
    %3706 = vmatpush1.msra.mxu0 %v3625
    %3707 = vmatprep.subr.mxu0 %v3624
    %3708 = vmatpush1.msra.mxu0 %v3623
    %3709 = vmatprep.subr.mxu0 %v3622
    %3710 = vmatpush1.msra.mxu0 %v3621
    %3711 = vmatprep.subr.mxu0 %v3620
    %3712 = vmatpush1.msra.mxu0 %v3619
    %3713 = vmatprep.subr.mxu0 0.0
    %3714 = vmatpush2.msra.mxu0 0.0
    %3715 = vmatprep.subr.mxu0 0.0
    %3716 = vmatpush2.msra.mxu0 0.0
    %3717 = vmatprep.subr.mxu0 0.0
    %3718 = vmatpush2.msra.mxu0 0.0
    %3719 = vmatprep.subr.mxu0 0.0
    %3720 = vmatpush2.msra.mxu0 0.0
    %3721 = vmatprep.subr.mxu0 0.0
    %3722 = vmatpush2.msra.mxu0 0.0
    %3723 = vmatprep.subr.mxu0 0.0
    %3724 = vmatpush2.msra.mxu0 0.0
    %3725 = vmatprep.subr.mxu0 0.0
    %3726 = vmatpush2.msra.mxu0 0.0
    %3727 = vmatprep.subr.mxu0 0.0
    %3728 = vmatpush2.msra.mxu0 0.0
    %3729 = vmatprep.subr.mxu0 %v3666
    %3730 = vmatpush2.msra.mxu0 %v3665
    %3731 = vmatprep.subr.mxu0 %v3664
    %3732 = vmatpush2.msra.mxu0 %v3663
    %3733 = vmatprep.subr.mxu0 %v3662
    %3734 = vmatpush2.msra.mxu0 %v3661
    %3735 = vmatprep.subr.mxu0 %v3660
    %3736 = vmatpush2.msra.mxu0 %v3659
    %3737 = vmatprep.subr.mxu0 %v3658
    %3738 = vmatpush2.msra.mxu0 %v3657
    %3739 = vmatprep.subr.mxu0 %v3656
    %3740 = vmatpush2.msra.mxu0 %v3655
    %3741 = vmatprep.subr.mxu0 %v3654
    %3742 = vmatpush2.msra.mxu0 %v3653
    %3743 = vmatprep.subr.mxu0 %v3652
    %3744 = vmatpush2.msra.mxu0 %v3651
    %3745 = vmatprep.mubr.f32.mxu0 %v3679
    %3746 = vmatmul.mubr.f32.gmra.mxu0 %v3618
    %v3747 = vpop.f32.mrf.mxu0
    %v3748 = vadd.f32 %v3672, %v3747
    %v3749 = vpop.f32.mrf.mxu0
    %v3750 = vadd.f32 %v3676, %v3749
    %3751 = vdwg.mxu0
    %v3752 = vxor.u32 %v3748, 2147483648
    %v3753 = vxor.u32 %v3750, 2147483648
    %v3754 = vmul.f32 %v3752, 1.442695
    %v3755 = vpow.pop %v3754
    %v3756 = vmul.f32 %v3753, 1.442695
    %v3757 = vpow.pop %v3756
    %v3758 = vadd.f32 %v3755, 1.0
    %v3759 = vadd.f32 %v3757, 1.0
    %v3760 = vrcp.pop %v3758
    %v3761 = vmul.f32 1.0, %v3760
    %v3762 = vrcp.pop %v3759
    %v3763 = vmul.f32 1.0, %v3762
    %v3764 = vtanh.pop %v3750
    %v3765 = vmul.f32 %v3761, %v3603
    %v3766 = vmul.f32 %v3761, %v3764
    %3768 = vrot.lane.b32.xlu0 %v3766, 64
    %v3769 = vpop.permute.xlu0 %3768
    %v3771 = vadd.f32 %v3765, %v3769
    %v3772 = vtanh.pop %v3771
    %v3773 = vmul.f32 %v3763, %v3772
    %3775 = vrot.lane.b32.xlu0 %v3773, 64
    %v3776 = vpop.permute.xlu0 %3775
    %3778 = vst.msk [vmem:[%s541] sm:$0x3] %vm194, %v3776
    %3779 = vst.msk [vmem:[%s539] sm:$0x3] %vm197, %v3776
    %v3780 = vld [vmem:[%s1740] sm:$0x3]
    %v3781 = vld [vmem:[%s1738] sm:$0x3]
    %3783 = vrot.lane.b32.xlu0 %v3781, 64
    %v3784 = vpop.permute.xlu0 %3783
    %v3786 = vsel %vm32, %v3780, %v3784
    %v3787 = vld [vmem:[%s2779] sm:$0xff]
    %v3788 = vld [vmem:[%s2779 + $0x8] sm:$0xff]
    %v3789 = vld [vmem:[%s2779 + $0x10] sm:$0xff]
    %v3790 = vld [vmem:[%s2779 + $0x18] sm:$0xff]
    %v3791 = vld [vmem:[%s2779 + $0x20] sm:$0xff]
    %v3792 = vld [vmem:[%s2779 + $0x28] sm:$0xff]
    %v3793 = vld [vmem:[%s2779 + $0x30] sm:$0xff]
    %v3794 = vld [vmem:[%s2779 + $0x38] sm:$0xff]
    %v3795 = vld [vmem:[%s2779 + $0x40] sm:$0xff]
    %v3796 = vld [vmem:[%s2779 + $0x48] sm:$0xff]
    %v3797 = vld [vmem:[%s2779 + $0x50] sm:$0xff]
    %v3798 = vld [vmem:[%s2779 + $0x58] sm:$0xff]
    %v3799 = vld [vmem:[%s2779 + $0x60] sm:$0xff]
    %v3800 = vld [vmem:[%s2779 + $0x68] sm:$0xff]
    %v3801 = vld [vmem:[%s2779 + $0x70] sm:$0xff]
    %v3802 = vld [vmem:[%s2779 + $0x78] sm:$0xff]
    %v3803 = vld [vmem:[%s2779 + $0x80] sm:$0xff]
    %v3804 = vld [vmem:[%s2779 + $0x88] sm:$0xff]
    %v3805 = vld [vmem:[%s2779 + $0x90] sm:$0xff]
    %v3806 = vld [vmem:[%s2779 + $0x98] sm:$0xff]
    %v3807 = vld [vmem:[%s2779 + $0xa0] sm:$0xff]
    %v3808 = vld [vmem:[%s2779 + $0xa8] sm:$0xff]
    %v3809 = vld [vmem:[%s2779 + $0xb0] sm:$0xff]
    %v3810 = vld [vmem:[%s2779 + $0xb8] sm:$0xff]
    %v3811 = vld [vmem:[%s2779 + $0xc0] sm:$0xff]
    %v3812 = vld [vmem:[%s2779 + $0xc8] sm:$0xff]
    %v3813 = vld [vmem:[%s2779 + $0xd0] sm:$0xff]
    %v3814 = vld [vmem:[%s2779 + $0xd8] sm:$0xff]
    %v3815 = vld [vmem:[%s2779 + $0xe0] sm:$0xff]
    %v3816 = vld [vmem:[%s2779 + $0xe8] sm:$0xff]
    %v3817 = vld [vmem:[%s2779 + $0xf0] sm:$0xff]
    %v3818 = vld [vmem:[%s2779 + $0xf8] sm:$0xff]
    %v3819 = vld [vmem:[%s2779 + $0x100] sm:$0xff]
    %v3820 = vld [vmem:[%s2779 + $0x108] sm:$0xff]
    %v3821 = vld [vmem:[%s2779 + $0x110] sm:$0xff]
    %v3822 = vld [vmem:[%s2779 + $0x118] sm:$0xff]
    %v3823 = vld [vmem:[%s2779 + $0x120] sm:$0xff]
    %v3824 = vld [vmem:[%s2779 + $0x128] sm:$0xff]
    %v3825 = vld [vmem:[%s2779 + $0x130] sm:$0xff]
    %v3826 = vld [vmem:[%s2779 + $0x138] sm:$0xff]
    %v3827 = vld [vmem:[%s2779 + $0x140] sm:$0xff]
    %v3828 = vld [vmem:[%s2779 + $0x148] sm:$0xff]
    %v3829 = vld [vmem:[%s2779 + $0x150] sm:$0xff]
    %v3830 = vld [vmem:[%s2779 + $0x158] sm:$0xff]
    %v3831 = vld [vmem:[%s2779 + $0x160] sm:$0xff]
    %v3832 = vld [vmem:[%s2779 + $0x168] sm:$0xff]
    %v3833 = vld [vmem:[%s2779 + $0x170] sm:$0xff]
    %v3834 = vld [vmem:[%s2779 + $0x178] sm:$0xff]
    %v3835 = vld [vmem:[%s2828] sm:$0x3]
    %v3837 = vlaneseq
    %v3838 = vshrl.u32 %v3837, 7
    %v3839 = vsub.s32 0, %v3838
    %v3840 = vrot.slane %v3835, %v3839
    %v3841 = vlaneseq
    %v3842 = vshrl.u32 %v3841, 7
    %v3843 = vsub.s32 1, %v3842
    %v3844 = vrot.slane %v3835, %v3843
    %v3847 = vsel %vm32, %v3776, 0
    %3849 = vmatprep.subr.mxu0 %v3818
    %3850 = vmatpush1.msra.mxu0 %v3817
    %3851 = vmatprep.subr.mxu0 %v3816
    %3852 = vmatpush1.msra.mxu0 %v3815
    %3853 = vmatprep.subr.mxu0 %v3814
    %3854 = vmatpush1.msra.mxu0 %v3813
    %3855 = vmatprep.subr.mxu0 %v3812
    %3856 = vmatpush1.msra.mxu0 %v3811
    %3857 = vmatprep.subr.mxu0 %v3810
    %3858 = vmatpush1.msra.mxu0 %v3809
    %3859 = vmatprep.subr.mxu0 %v3808
    %3860 = vmatpush1.msra.mxu0 %v3807
    %3861 = vmatprep.subr.mxu0 %v3806
    %3862 = vmatpush1.msra.mxu0 %v3805
    %3863 = vmatprep.subr.mxu0 %v3804
    %3864 = vmatpush1.msra.mxu0 %v3803
    %3865 = vmatprep.subr.mxu0 %v3802
    %3866 = vmatpush1.msra.mxu0 %v3801
    %3867 = vmatprep.subr.mxu0 %v3800
    %3868 = vmatpush1.msra.mxu0 %v3799
    %3869 = vmatprep.subr.mxu0 %v3798
    %3870 = vmatpush1.msra.mxu0 %v3797
    %3871 = vmatprep.subr.mxu0 %v3796
    %3872 = vmatpush1.msra.mxu0 %v3795
    %3873 = vmatprep.subr.mxu0 %v3794
    %3874 = vmatpush1.msra.mxu0 %v3793
    %3875 = vmatprep.subr.mxu0 %v3792
    %3876 = vmatpush1.msra.mxu0 %v3791
    %3877 = vmatprep.subr.mxu0 %v3790
    %3878 = vmatpush1.msra.mxu0 %v3789
    %3879 = vmatprep.subr.mxu0 %v3788
    %3880 = vmatpush1.msra.mxu0 %v3787
    %3881 = vmatprep.subr.mxu0 0.0
    %3882 = vmatpush2.msra.mxu0 0.0
    %3883 = vmatprep.subr.mxu0 0.0
    %3884 = vmatpush2.msra.mxu0 0.0
    %3885 = vmatprep.subr.mxu0 0.0
    %3886 = vmatpush2.msra.mxu0 0.0
    %3887 = vmatprep.subr.mxu0 0.0
    %3888 = vmatpush2.msra.mxu0 0.0
    %3889 = vmatprep.subr.mxu0 0.0
    %3890 = vmatpush2.msra.mxu0 0.0
    %3891 = vmatprep.subr.mxu0 0.0
    %3892 = vmatpush2.msra.mxu0 0.0
    %3893 = vmatprep.subr.mxu0 0.0
    %3894 = vmatpush2.msra.mxu0 0.0
    %3895 = vmatprep.subr.mxu0 0.0
    %3896 = vmatpush2.msra.mxu0 0.0
    %3897 = vmatprep.subr.mxu0 %v3834
    %3898 = vmatpush2.msra.mxu0 %v3833
    %3899 = vmatprep.subr.mxu0 %v3832
    %3900 = vmatpush2.msra.mxu0 %v3831
    %3901 = vmatprep.subr.mxu0 %v3830
    %3902 = vmatpush2.msra.mxu0 %v3829
    %3903 = vmatprep.subr.mxu0 %v3828
    %3904 = vmatpush2.msra.mxu0 %v3827
    %3905 = vmatprep.subr.mxu0 %v3826
    %3906 = vmatpush2.msra.mxu0 %v3825
    %3907 = vmatprep.subr.mxu0 %v3824
    %3908 = vmatpush2.msra.mxu0 %v3823
    %3909 = vmatprep.subr.mxu0 %v3822
    %3910 = vmatpush2.msra.mxu0 %v3821
    %3911 = vmatprep.subr.mxu0 %v3820
    %3912 = vmatpush2.msra.mxu0 %v3819
    %3913 = vmatprep.mubr.f32.mxu0 %v3847
    %3914 = vmatmul.mubr.f32.gmra.mxu0 %v3786
    %v3915 = vpop.f32.mrf.mxu0
    %v3916 = vadd.f32 %v3840, %v3915
    %v3917 = vpop.f32.mrf.mxu0
    %v3918 = vadd.f32 %v3844, %v3917
    %3919 = vdwg.mxu0
    %v3920 = vxor.u32 %v3916, 2147483648
    %v3921 = vxor.u32 %v3918, 2147483648
    %v3922 = vmul.f32 %v3920, 1.442695
    %v3923 = vpow.pop %v3922
    %v3924 = vmul.f32 %v3921, 1.442695
    %v3925 = vpow.pop %v3924
    %v3926 = vadd.f32 %v3923, 1.0
    %v3927 = vadd.f32 %v3925, 1.0
    %v3928 = vrcp.pop %v3926
    %v3929 = vmul.f32 1.0, %v3928
    %v3930 = vrcp.pop %v3927
    %v3931 = vmul.f32 1.0, %v3930
    %v3932 = vtanh.pop %v3918
    %v3933 = vmul.f32 %v3929, %v3771
    %v3934 = vmul.f32 %v3929, %v3932
    %3936 = vrot.lane.b32.xlu0 %v3934, 64
    %v3937 = vpop.permute.xlu0 %3936
    %v3939 = vadd.f32 %v3933, %v3937
    %v3940 = vtanh.pop %v3939
    %v3941 = vmul.f32 %v3931, %v3940
    %3943 = vrot.lane.b32.xlu0 %v3941, 64
    %v3944 = vpop.permute.xlu0 %3943
    %3946 = vst.msk [vmem:[%s369] sm:$0x3] %vm194, %v3944
    %3947 = vst.msk [vmem:[%s367] sm:$0x3] %vm197, %v3944
    %v3948 = vld [vmem:[%s1570] sm:$0x3]
    %v3949 = vld [vmem:[#allocation3] sm:$0x3]
    %3951 = vrot.lane.b32.xlu0 %v3949, 64
    %v3952 = vpop.permute.xlu0 %3951
    %v3954 = vsel %vm32, %v3948, %v3952
    %v3955 = vld [vmem:[%s2779] sm:$0xff]
    %v3956 = vld [vmem:[%s2779 + $0x8] sm:$0xff]
    %v3957 = vld [vmem:[%s2779 + $0x10] sm:$0xff]
    %v3958 = vld [vmem:[%s2779 + $0x18] sm:$0xff]
    %v3959 = vld [vmem:[%s2779 + $0x20] sm:$0xff]
    %v3960 = vld [vmem:[%s2779 + $0x28] sm:$0xff]
    %v3961 = vld [vmem:[%s2779 + $0x30] sm:$0xff]
    %v3962 = vld [vmem:[%s2779 + $0x38] sm:$0xff]
    %v3963 = vld [vmem:[%s2779 + $0x40] sm:$0xff]
    %v3964 = vld [vmem:[%s2779 + $0x48] sm:$0xff]
    %v3965 = vld [vmem:[%s2779 + $0x50] sm:$0xff]
    %v3966 = vld [vmem:[%s2779 + $0x58] sm:$0xff]
    %v3967 = vld [vmem:[%s2779 + $0x60] sm:$0xff]
    %v3968 = vld [vmem:[%s2779 + $0x68] sm:$0xff]
    %v3969 = vld [vmem:[%s2779 + $0x70] sm:$0xff]
    %v3970 = vld [vmem:[%s2779 + $0x78] sm:$0xff]
    %v3971 = vld [vmem:[%s2779 + $0x80] sm:$0xff]
    %v3972 = vld [vmem:[%s2779 + $0x88] sm:$0xff]
    %v3973 = vld [vmem:[%s2779 + $0x90] sm:$0xff]
    %v3974 = vld [vmem:[%s2779 + $0x98] sm:$0xff]
    %v3975 = vld [vmem:[%s2779 + $0xa0] sm:$0xff]
    %v3976 = vld [vmem:[%s2779 + $0xa8] sm:$0xff]
    %v3977 = vld [vmem:[%s2779 + $0xb0] sm:$0xff]
    %v3978 = vld [vmem:[%s2779 + $0xb8] sm:$0xff]
    %v3979 = vld [vmem:[%s2779 + $0xc0] sm:$0xff]
    %v3980 = vld [vmem:[%s2779 + $0xc8] sm:$0xff]
    %v3981 = vld [vmem:[%s2779 + $0xd0] sm:$0xff]
    %v3982 = vld [vmem:[%s2779 + $0xd8] sm:$0xff]
    %v3983 = vld [vmem:[%s2779 + $0xe0] sm:$0xff]
    %v3984 = vld [vmem:[%s2779 + $0xe8] sm:$0xff]
    %v3985 = vld [vmem:[%s2779 + $0xf0] sm:$0xff]
    %v3986 = vld [vmem:[%s2779 + $0xf8] sm:$0xff]
    %v3987 = vld [vmem:[%s2779 + $0x100] sm:$0xff]
    %v3988 = vld [vmem:[%s2779 + $0x108] sm:$0xff]
    %v3989 = vld [vmem:[%s2779 + $0x110] sm:$0xff]
    %v3990 = vld [vmem:[%s2779 + $0x118] sm:$0xff]
    %v3991 = vld [vmem:[%s2779 + $0x120] sm:$0xff]
    %v3992 = vld [vmem:[%s2779 + $0x128] sm:$0xff]
    %v3993 = vld [vmem:[%s2779 + $0x130] sm:$0xff]
    %v3994 = vld [vmem:[%s2779 + $0x138] sm:$0xff]
    %v3995 = vld [vmem:[%s2779 + $0x140] sm:$0xff]
    %v3996 = vld [vmem:[%s2779 + $0x148] sm:$0xff]
    %v3997 = vld [vmem:[%s2779 + $0x150] sm:$0xff]
    %v3998 = vld [vmem:[%s2779 + $0x158] sm:$0xff]
    %v3999 = vld [vmem:[%s2779 + $0x160] sm:$0xff]
    %v4000 = vld [vmem:[%s2779 + $0x168] sm:$0xff]
    %v4001 = vld [vmem:[%s2779 + $0x170] sm:$0xff]
    %v4002 = vld [vmem:[%s2779 + $0x178] sm:$0xff]
    %v4003 = vld [vmem:[%s2828] sm:$0x3]
    %v4005 = vlaneseq
    %v4006 = vshrl.u32 %v4005, 7
    %v4007 = vsub.s32 0, %v4006
    %v4008 = vrot.slane %v4003, %v4007
    %v4009 = vlaneseq
    %v4010 = vshrl.u32 %v4009, 7
    %v4011 = vsub.s32 1, %v4010
    %v4012 = vrot.slane %v4003, %v4011
    %v4015 = vsel %vm32, %v3944, 0
    %4017 = vmatprep.subr.mxu0 %v3986
    %4018 = vmatpush1.msra.mxu0 %v3985
    %4019 = vmatprep.subr.mxu0 %v3984
    %4020 = vmatpush1.msra.mxu0 %v3983
    %4021 = vmatprep.subr.mxu0 %v3982
    %4022 = vmatpush1.msra.mxu0 %v3981
    %4023 = vmatprep.subr.mxu0 %v3980
    %4024 = vmatpush1.msra.mxu0 %v3979
    %4025 = vmatprep.subr.mxu0 %v3978
    %4026 = vmatpush1.msra.mxu0 %v3977
    %4027 = vmatprep.subr.mxu0 %v3976
    %4028 = vmatpush1.msra.mxu0 %v3975
    %4029 = vmatprep.subr.mxu0 %v3974
    %4030 = vmatpush1.msra.mxu0 %v3973
    %4031 = vmatprep.subr.mxu0 %v3972
    %4032 = vmatpush1.msra.mxu0 %v3971
    %4033 = vmatprep.subr.mxu0 %v3970
    %4034 = vmatpush1.msra.mxu0 %v3969
    %4035 = vmatprep.subr.mxu0 %v3968
    %4036 = vmatpush1.msra.mxu0 %v3967
    %4037 = vmatprep.subr.mxu0 %v3966
    %4038 = vmatpush1.msra.mxu0 %v3965
    %4039 = vmatprep.subr.mxu0 %v3964
    %4040 = vmatpush1.msra.mxu0 %v3963
    %4041 = vmatprep.subr.mxu0 %v3962
    %4042 = vmatpush1.msra.mxu0 %v3961
    %4043 = vmatprep.subr.mxu0 %v3960
    %4044 = vmatpush1.msra.mxu0 %v3959
    %4045 = vmatprep.subr.mxu0 %v3958
    %4046 = vmatpush1.msra.mxu0 %v3957
    %4047 = vmatprep.subr.mxu0 %v3956
    %4048 = vmatpush1.msra.mxu0 %v3955
    %4049 = vmatprep.subr.mxu0 0.0
    %4050 = vmatpush2.msra.mxu0 0.0
    %4051 = vmatprep.subr.mxu0 0.0
    %4052 = vmatpush2.msra.mxu0 0.0
    %4053 = vmatprep.subr.mxu0 0.0
    %4054 = vmatpush2.msra.mxu0 0.0
    %4055 = vmatprep.subr.mxu0 0.0
    %4056 = vmatpush2.msra.mxu0 0.0
    %4057 = vmatprep.subr.mxu0 0.0
    %4058 = vmatpush2.msra.mxu0 0.0
    %4059 = vmatprep.subr.mxu0 0.0
    %4060 = vmatpush2.msra.mxu0 0.0
    %4061 = vmatprep.subr.mxu0 0.0
    %4062 = vmatpush2.msra.mxu0 0.0
    %4063 = vmatprep.subr.mxu0 0.0
    %4064 = vmatpush2.msra.mxu0 0.0
    %4065 = vmatprep.subr.mxu0 %v4002
    %4066 = vmatpush2.msra.mxu0 %v4001
    %4067 = vmatprep.subr.mxu0 %v4000
    %4068 = vmatpush2.msra.mxu0 %v3999
    %4069 = vmatprep.subr.mxu0 %v3998
    %4070 = vmatpush2.msra.mxu0 %v3997
    %4071 = vmatprep.subr.mxu0 %v3996
    %4072 = vmatpush2.msra.mxu0 %v3995
    %4073 = vmatprep.subr.mxu0 %v3994
    %4074 = vmatpush2.msra.mxu0 %v3993
    %4075 = vmatprep.subr.mxu0 %v3992
    %4076 = vmatpush2.msra.mxu0 %v3991
    %4077 = vmatprep.subr.mxu0 %v3990
    %4078 = vmatpush2.msra.mxu0 %v3989
    %4079 = vmatprep.subr.mxu0 %v3988
    %4080 = vmatpush2.msra.mxu0 %v3987
    %4081 = vmatprep.mubr.f32.mxu0 %v4015
    %4082 = vmatmul.mubr.f32.gmra.mxu0 %v3954
    %v4083 = vpop.f32.mrf.mxu0
    %v4084 = vadd.f32 %v4008, %v4083
    %v4085 = vpop.f32.mrf.mxu0
    %v4086 = vadd.f32 %v4012, %v4085
    %4087 = vdwg.mxu0
    %v4088 = vxor.u32 %v4084, 2147483648
    %v4089 = vxor.u32 %v4086, 2147483648
    %v4090 = vmul.f32 %v4088, 1.442695
    %v4091 = vpow.pop %v4090
    %v4092 = vmul.f32 %v4089, 1.442695
    %v4093 = vpow.pop %v4092
    %v4094 = vadd.f32 %v4091, 1.0
    %v4095 = vadd.f32 %v4093, 1.0
    %v4096 = vrcp.pop %v4094
    %v4097 = vmul.f32 1.0, %v4096
    %v4098 = vrcp.pop %v4095
    %v4099 = vmul.f32 1.0, %v4098
    %v4100 = vtanh.pop %v4086
    %v4101 = vmul.f32 %v4097, %v3939
    %v4102 = vmul.f32 %v4097, %v4100
    %4104 = vrot.lane.b32.xlu0 %v4102, 64
    %v4105 = vpop.permute.xlu0 %4104
    %v4107 = vadd.f32 %v4101, %v4105
    %v4108 = vtanh.pop %v4107
    %v4109 = vmul.f32 %v4099, %v4108
    %4111 = vrot.lane.b32.xlu0 %v4109, 64
    %v4112 = vpop.permute.xlu0 %4111
    %4114 = vst.msk [vmem:[%s196] sm:$0x3] %vm194, %v4112
    %4115 = vst.msk [vmem:[#allocation2] sm:$0x3] %vm197, %v4112
    %s4116 = scalar_lea.vmem [#allocation4], 8
    %4117 = vst.msk [vmem:[%s4116] sm:$0x3] %vm194, %v4112
    %4118 = vrot.lane.b32.xlu0 %v4109, 32
    %v4119 = vpop.permute.xlu0 %4118
    %s4121 = scalar_lea.vmem [#allocation4], 10
    %4122 = vst.msk [vmem:[%s4121] sm:$0x3] %vm194, %v4119
    %4124 = vrot.lane.b32.xlu0 %v4107, 64
    %v4125 = vpop.permute.xlu0 %4124
    %s4127 = scalar_lea.vmem [#allocation6], 8
    %4128 = vst.msk [vmem:[%s4127] sm:$0x3] %vm194, %v4125
    %4129 = vrot.lane.b32.xlu0 %v4107, 32
    %v4130 = vpop.permute.xlu0 %4129
    %s4132 = scalar_lea.vmem [#allocation6], 10
    %4133 = vst.msk [vmem:[%s4132] sm:$0x3] %vm194, %v4130
    %v4134 = vld [vmem:[#allocation2] sm:$0x3]
    %v4135 = vld [vmem:[%s196] sm:$0x3]
    %4137 = vrot.lane.b32.xlu0 %v4135, 64
    %v4138 = vpop.permute.xlu0 %4137
    %v4140 = vsel %vm32, %v4134, %v4138
    %s4141 = scalar_lea.vmem %s1, 1152
    %v4142 = vld [vmem:[%s4141] sm:$0xff]
    %v4143 = vld [vmem:[%s4141 + $0x8] sm:$0xff]
    %v4144 = vld [vmem:[%s4141 + $0x10] sm:$0xff]
    %v4145 = vld [vmem:[%s4141 + $0x18] sm:$0xff]
    %v4146 = vld [vmem:[%s4141 + $0x20] sm:$0xff]
    %v4147 = vld [vmem:[%s4141 + $0x28] sm:$0xff]
    %v4148 = vld [vmem:[%s4141 + $0x30] sm:$0xff]
    %v4149 = vld [vmem:[%s4141 + $0x38] sm:$0xff]
    %v4150 = vld [vmem:[%s4141 + $0x40] sm:$0xff]
    %v4151 = vld [vmem:[%s4141 + $0x48] sm:$0xff]
    %v4152 = vld [vmem:[%s4141 + $0x50] sm:$0xff]
    %v4153 = vld [vmem:[%s4141 + $0x58] sm:$0xff]
    %v4154 = vld [vmem:[%s4141 + $0x60] sm:$0xff]
    %v4155 = vld [vmem:[%s4141 + $0x68] sm:$0xff]
    %v4156 = vld [vmem:[%s4141 + $0x70] sm:$0xff]
    %v4157 = vld [vmem:[%s4141 + $0x78] sm:$0xff]
    %v4158 = vld [vmem:[%s4141 + $0x80] sm:$0xff]
    %v4159 = vld [vmem:[%s4141 + $0x88] sm:$0xff]
    %v4160 = vld [vmem:[%s4141 + $0x90] sm:$0xff]
    %v4161 = vld [vmem:[%s4141 + $0x98] sm:$0xff]
    %v4162 = vld [vmem:[%s4141 + $0xa0] sm:$0xff]
    %v4163 = vld [vmem:[%s4141 + $0xa8] sm:$0xff]
    %v4164 = vld [vmem:[%s4141 + $0xb0] sm:$0xff]
    %v4165 = vld [vmem:[%s4141 + $0xb8] sm:$0xff]
    %v4166 = vld [vmem:[%s4141 + $0xc0] sm:$0xff]
    %v4167 = vld [vmem:[%s4141 + $0xc8] sm:$0xff]
    %v4168 = vld [vmem:[%s4141 + $0xd0] sm:$0xff]
    %v4169 = vld [vmem:[%s4141 + $0xd8] sm:$0xff]
    %v4170 = vld [vmem:[%s4141 + $0xe0] sm:$0xff]
    %v4171 = vld [vmem:[%s4141 + $0xe8] sm:$0xff]
    %v4172 = vld [vmem:[%s4141 + $0xf0] sm:$0xff]
    %v4173 = vld [vmem:[%s4141 + $0xf8] sm:$0xff]
    %v4174 = vld [vmem:[%s4141 + $0x100] sm:$0xff]
    %v4175 = vld [vmem:[%s4141 + $0x108] sm:$0xff]
    %v4176 = vld [vmem:[%s4141 + $0x110] sm:$0xff]
    %v4177 = vld [vmem:[%s4141 + $0x118] sm:$0xff]
    %v4178 = vld [vmem:[%s4141 + $0x120] sm:$0xff]
    %v4179 = vld [vmem:[%s4141 + $0x128] sm:$0xff]
    %v4180 = vld [vmem:[%s4141 + $0x130] sm:$0xff]
    %v4181 = vld [vmem:[%s4141 + $0x138] sm:$0xff]
    %v4182 = vld [vmem:[%s4141 + $0x140] sm:$0xff]
    %v4183 = vld [vmem:[%s4141 + $0x148] sm:$0xff]
    %v4184 = vld [vmem:[%s4141 + $0x150] sm:$0xff]
    %v4185 = vld [vmem:[%s4141 + $0x158] sm:$0xff]
    %v4186 = vld [vmem:[%s4141 + $0x160] sm:$0xff]
    %v4187 = vld [vmem:[%s4141 + $0x168] sm:$0xff]
    %v4188 = vld [vmem:[%s4141 + $0x170] sm:$0xff]
    %v4189 = vld [vmem:[%s4141 + $0x178] sm:$0xff]
    %s4190 = scalar_lea.vmem %s2, 6
    %v4191 = vld [vmem:[%s4190] sm:$0x3]
    %v4193 = vlaneseq
    %v4194 = vshrl.u32 %v4193, 7
    %v4195 = vsub.s32 0, %v4194
    %v4196 = vrot.slane %v4191, %v4195
    %v4197 = vlaneseq
    %v4198 = vshrl.u32 %v4197, 7
    %v4199 = vsub.s32 1, %v4198
    %v4200 = vrot.slane %v4191, %v4199
    %4203 = vmatprep.subr.mxu0 %v4173
    %4204 = vmatpush1.msra.mxu0 %v4172
    %4205 = vmatprep.subr.mxu0 %v4171
    %4206 = vmatpush1.msra.mxu0 %v4170
    %4207 = vmatprep.subr.mxu0 %v4169
    %4208 = vmatpush1.msra.mxu0 %v4168
    %4209 = vmatprep.subr.mxu0 %v4167
    %4210 = vmatpush1.msra.mxu0 %v4166
    %4211 = vmatprep.subr.mxu0 %v4165
    %4212 = vmatpush1.msra.mxu0 %v4164
    %4213 = vmatprep.subr.mxu0 %v4163
    %4214 = vmatpush1.msra.mxu0 %v4162
    %4215 = vmatprep.subr.mxu0 %v4161
    %4216 = vmatpush1.msra.mxu0 %v4160
    %4217 = vmatprep.subr.mxu0 %v4159
    %4218 = vmatpush1.msra.mxu0 %v4158
    %4219 = vmatprep.subr.mxu0 %v4157
    %4220 = vmatpush1.msra.mxu0 %v4156
    %4221 = vmatprep.subr.mxu0 %v4155
    %4222 = vmatpush1.msra.mxu0 %v4154
    %4223 = vmatprep.subr.mxu0 %v4153
    %4224 = vmatpush1.msra.mxu0 %v4152
    %4225 = vmatprep.subr.mxu0 %v4151
    %4226 = vmatpush1.msra.mxu0 %v4150
    %4227 = vmatprep.subr.mxu0 %v4149
    %4228 = vmatpush1.msra.mxu0 %v4148
    %4229 = vmatprep.subr.mxu0 %v4147
    %4230 = vmatpush1.msra.mxu0 %v4146
    %4231 = vmatprep.subr.mxu0 %v4145
    %4232 = vmatpush1.msra.mxu0 %v4144
    %4233 = vmatprep.subr.mxu0 %v4143
    %4234 = vmatpush1.msra.mxu0 %v4142
    %4235 = vmatprep.subr.mxu0 0.0
    %4236 = vmatpush2.msra.mxu0 0.0
    %4237 = vmatprep.subr.mxu0 0.0
    %4238 = vmatpush2.msra.mxu0 0.0
    %4239 = vmatprep.subr.mxu0 0.0
    %4240 = vmatpush2.msra.mxu0 0.0
    %4241 = vmatprep.subr.mxu0 0.0
    %4242 = vmatpush2.msra.mxu0 0.0
    %4243 = vmatprep.subr.mxu0 0.0
    %4244 = vmatpush2.msra.mxu0 0.0
    %4245 = vmatprep.subr.mxu0 0.0
    %4246 = vmatpush2.msra.mxu0 0.0
    %4247 = vmatprep.subr.mxu0 0.0
    %4248 = vmatpush2.msra.mxu0 0.0
    %4249 = vmatprep.subr.mxu0 0.0
    %4250 = vmatpush2.msra.mxu0 0.0
    %4251 = vmatprep.subr.mxu0 %v4189
    %4252 = vmatpush2.msra.mxu0 %v4188
    %4253 = vmatprep.subr.mxu0 %v4187
    %4254 = vmatpush2.msra.mxu0 %v4186
    %4255 = vmatprep.subr.mxu0 %v4185
    %4256 = vmatpush2.msra.mxu0 %v4184
    %4257 = vmatprep.subr.mxu0 %v4183
    %4258 = vmatpush2.msra.mxu0 %v4182
    %4259 = vmatprep.subr.mxu0 %v4181
    %4260 = vmatpush2.msra.mxu0 %v4180
    %4261 = vmatprep.subr.mxu0 %v4179
    %4262 = vmatpush2.msra.mxu0 %v4178
    %4263 = vmatprep.subr.mxu0 %v4177
    %4264 = vmatpush2.msra.mxu0 %v4176
    %4265 = vmatprep.subr.mxu0 %v4175
    %4266 = vmatpush2.msra.mxu0 %v4174
    %4267 = vmatprep.mubr.f32.mxu0 %v95
    %4268 = vmatmul.mubr.f32.gmra.mxu0 %v4140
    %v4269 = vpop.f32.mrf.mxu0
    %v4270 = vadd.f32 %v4196, %v4269
    %v4271 = vpop.f32.mrf.mxu0
    %v4272 = vadd.f32 %v4200, %v4271
    %4273 = vdwg.mxu0
    %v4274 = vxor.u32 %v4270, 2147483648
    %v4275 = vxor.u32 %v4272, 2147483648
    %v4276 = vmul.f32 %v4274, 1.442695
    %v4277 = vpow.pop %v4276
    %v4278 = vmul.f32 %v4275, 1.442695
    %v4279 = vpow.pop %v4278
    %v4280 = vadd.f32 %v4277, 1.0
    %v4281 = vadd.f32 %v4279, 1.0
    %v4282 = vrcp.pop %v4280
    %v4283 = vmul.f32 1.0, %v4282
    %v4284 = vrcp.pop %v4281
    %v4285 = vmul.f32 1.0, %v4284
    %v4286 = vtanh.pop %v4272
    %v4287 = vmul.f32 %v4283, 0.0
    %v4288 = vmul.f32 %v4283, %v4286
    %4290 = vrot.lane.b32.xlu0 %v4288, 64
    %v4291 = vpop.permute.xlu0 %4290
    %v4293 = vadd.f32 %v4287, %v4291
    %v4294 = vtanh.pop %v4293
    %v4295 = vmul.f32 %v4285, %v4294
    %4297 = vrot.lane.b32.xlu0 %v4295, 64
    %v4298 = vpop.permute.xlu0 %4297
    %4300 = vst.msk [vmem:[#allocation3] sm:$0x3] %vm194, %v4298
    %4301 = vst.msk [vmem:[%s1570] sm:$0x3] %vm197, %v4298
    %v4302 = vld [vmem:[%s367] sm:$0x3]
    %v4303 = vld [vmem:[%s369] sm:$0x3]
    %4305 = vrot.lane.b32.xlu0 %v4303, 64
    %v4306 = vpop.permute.xlu0 %4305
    %v4308 = vsel %vm32, %v4302, %v4306
    %v4309 = vld [vmem:[%s4141] sm:$0xff]
    %v4310 = vld [vmem:[%s4141 + $0x8] sm:$0xff]
    %v4311 = vld [vmem:[%s4141 + $0x10] sm:$0xff]
    %v4312 = vld [vmem:[%s4141 + $0x18] sm:$0xff]
    %v4313 = vld [vmem:[%s4141 + $0x20] sm:$0xff]
    %v4314 = vld [vmem:[%s4141 + $0x28] sm:$0xff]
    %v4315 = vld [vmem:[%s4141 + $0x30] sm:$0xff]
    %v4316 = vld [vmem:[%s4141 + $0x38] sm:$0xff]
    %v4317 = vld [vmem:[%s4141 + $0x40] sm:$0xff]
    %v4318 = vld [vmem:[%s4141 + $0x48] sm:$0xff]
    %v4319 = vld [vmem:[%s4141 + $0x50] sm:$0xff]
    %v4320 = vld [vmem:[%s4141 + $0x58] sm:$0xff]
    %v4321 = vld [vmem:[%s4141 + $0x60] sm:$0xff]
    %v4322 = vld [vmem:[%s4141 + $0x68] sm:$0xff]
    %v4323 = vld [vmem:[%s4141 + $0x70] sm:$0xff]
    %v4324 = vld [vmem:[%s4141 + $0x78] sm:$0xff]
    %v4325 = vld [vmem:[%s4141 + $0x80] sm:$0xff]
    %v4326 = vld [vmem:[%s4141 + $0x88] sm:$0xff]
    %v4327 = vld [vmem:[%s4141 + $0x90] sm:$0xff]
    %v4328 = vld [vmem:[%s4141 + $0x98] sm:$0xff]
    %v4329 = vld [vmem:[%s4141 + $0xa0] sm:$0xff]
    %v4330 = vld [vmem:[%s4141 + $0xa8] sm:$0xff]
    %v4331 = vld [vmem:[%s4141 + $0xb0] sm:$0xff]
    %v4332 = vld [vmem:[%s4141 + $0xb8] sm:$0xff]
    %v4333 = vld [vmem:[%s4141 + $0xc0] sm:$0xff]
    %v4334 = vld [vmem:[%s4141 + $0xc8] sm:$0xff]
    %v4335 = vld [vmem:[%s4141 + $0xd0] sm:$0xff]
    %v4336 = vld [vmem:[%s4141 + $0xd8] sm:$0xff]
    %v4337 = vld [vmem:[%s4141 + $0xe0] sm:$0xff]
    %v4338 = vld [vmem:[%s4141 + $0xe8] sm:$0xff]
    %v4339 = vld [vmem:[%s4141 + $0xf0] sm:$0xff]
    %v4340 = vld [vmem:[%s4141 + $0xf8] sm:$0xff]
    %v4341 = vld [vmem:[%s4141 + $0x100] sm:$0xff]
    %v4342 = vld [vmem:[%s4141 + $0x108] sm:$0xff]
    %v4343 = vld [vmem:[%s4141 + $0x110] sm:$0xff]
    %v4344 = vld [vmem:[%s4141 + $0x118] sm:$0xff]
    %v4345 = vld [vmem:[%s4141 + $0x120] sm:$0xff]
    %v4346 = vld [vmem:[%s4141 + $0x128] sm:$0xff]
    %v4347 = vld [vmem:[%s4141 + $0x130] sm:$0xff]
    %v4348 = vld [vmem:[%s4141 + $0x138] sm:$0xff]
    %v4349 = vld [vmem:[%s4141 + $0x140] sm:$0xff]
    %v4350 = vld [vmem:[%s4141 + $0x148] sm:$0xff]
    %v4351 = vld [vmem:[%s4141 + $0x150] sm:$0xff]
    %v4352 = vld [vmem:[%s4141 + $0x158] sm:$0xff]
    %v4353 = vld [vmem:[%s4141 + $0x160] sm:$0xff]
    %v4354 = vld [vmem:[%s4141 + $0x168] sm:$0xff]
    %v4355 = vld [vmem:[%s4141 + $0x170] sm:$0xff]
    %v4356 = vld [vmem:[%s4141 + $0x178] sm:$0xff]
    %v4357 = vld [vmem:[%s4190] sm:$0x3]
    %v4359 = vlaneseq
    %v4360 = vshrl.u32 %v4359, 7
    %v4361 = vsub.s32 0, %v4360
    %v4362 = vrot.slane %v4357, %v4361
    %v4363 = vlaneseq
    %v4364 = vshrl.u32 %v4363, 7
    %v4365 = vsub.s32 1, %v4364
    %v4366 = vrot.slane %v4357, %v4365
    %v4369 = vsel %vm32, %v4298, 0
    %4371 = vmatprep.subr.mxu0 %v4340
    %4372 = vmatpush1.msra.mxu0 %v4339
    %4373 = vmatprep.subr.mxu0 %v4338
    %4374 = vmatpush1.msra.mxu0 %v4337
    %4375 = vmatprep.subr.mxu0 %v4336
    %4376 = vmatpush1.msra.mxu0 %v4335
    %4377 = vmatprep.subr.mxu0 %v4334
    %4378 = vmatpush1.msra.mxu0 %v4333
    %4379 = vmatprep.subr.mxu0 %v4332
    %4380 = vmatpush1.msra.mxu0 %v4331
    %4381 = vmatprep.subr.mxu0 %v4330
    %4382 = vmatpush1.msra.mxu0 %v4329
    %4383 = vmatprep.subr.mxu0 %v4328
    %4384 = vmatpush1.msra.mxu0 %v4327
    %4385 = vmatprep.subr.mxu0 %v4326
    %4386 = vmatpush1.msra.mxu0 %v4325
    %4387 = vmatprep.subr.mxu0 %v4324
    %4388 = vmatpush1.msra.mxu0 %v4323
    %4389 = vmatprep.subr.mxu0 %v4322
    %4390 = vmatpush1.msra.mxu0 %v4321
    %4391 = vmatprep.subr.mxu0 %v4320
    %4392 = vmatpush1.msra.mxu0 %v4319
    %4393 = vmatprep.subr.mxu0 %v4318
    %4394 = vmatpush1.msra.mxu0 %v4317
    %4395 = vmatprep.subr.mxu0 %v4316
    %4396 = vmatpush1.msra.mxu0 %v4315
    %4397 = vmatprep.subr.mxu0 %v4314
    %4398 = vmatpush1.msra.mxu0 %v4313
    %4399 = vmatprep.subr.mxu0 %v4312
    %4400 = vmatpush1.msra.mxu0 %v4311
    %4401 = vmatprep.subr.mxu0 %v4310
    %4402 = vmatpush1.msra.mxu0 %v4309
    %4403 = vmatprep.subr.mxu0 0.0
    %4404 = vmatpush2.msra.mxu0 0.0
    %4405 = vmatprep.subr.mxu0 0.0
    %4406 = vmatpush2.msra.mxu0 0.0
    %4407 = vmatprep.subr.mxu0 0.0
    %4408 = vmatpush2.msra.mxu0 0.0
    %4409 = vmatprep.subr.mxu0 0.0
    %4410 = vmatpush2.msra.mxu0 0.0
    %4411 = vmatprep.subr.mxu0 0.0
    %4412 = vmatpush2.msra.mxu0 0.0
    %4413 = vmatprep.subr.mxu0 0.0
    %4414 = vmatpush2.msra.mxu0 0.0
    %4415 = vmatprep.subr.mxu0 0.0
    %4416 = vmatpush2.msra.mxu0 0.0
    %4417 = vmatprep.subr.mxu0 0.0
    %4418 = vmatpush2.msra.mxu0 0.0
    %4419 = vmatprep.subr.mxu0 %v4356
    %4420 = vmatpush2.msra.mxu0 %v4355
    %4421 = vmatprep.subr.mxu0 %v4354
    %4422 = vmatpush2.msra.mxu0 %v4353
    %4423 = vmatprep.subr.mxu0 %v4352
    %4424 = vmatpush2.msra.mxu0 %v4351
    %4425 = vmatprep.subr.mxu0 %v4350
    %4426 = vmatpush2.msra.mxu0 %v4349
    %4427 = vmatprep.subr.mxu0 %v4348
    %4428 = vmatpush2.msra.mxu0 %v4347
    %4429 = vmatprep.subr.mxu0 %v4346
    %4430 = vmatpush2.msra.mxu0 %v4345
    %4431 = vmatprep.subr.mxu0 %v4344
    %4432 = vmatpush2.msra.mxu0 %v4343
    %4433 = vmatprep.subr.mxu0 %v4342
    %4434 = vmatpush2.msra.mxu0 %v4341
    %4435 = vmatprep.mubr.f32.mxu0 %v4369
    %4436 = vmatmul.mubr.f32.gmra.mxu0 %v4308
    %v4437 = vpop.f32.mrf.mxu0
    %v4438 = vadd.f32 %v4362, %v4437
    %v4439 = vpop.f32.mrf.mxu0
    %v4440 = vadd.f32 %v4366, %v4439
    %4441 = vdwg.mxu0
    %v4442 = vxor.u32 %v4438, 2147483648
    %v4443 = vxor.u32 %v4440, 2147483648
    %v4444 = vmul.f32 %v4442, 1.442695
    %v4445 = vpow.pop %v4444
    %v4446 = vmul.f32 %v4443, 1.442695
    %v4447 = vpow.pop %v4446
    %v4448 = vadd.f32 %v4445, 1.0
    %v4449 = vadd.f32 %v4447, 1.0
    %v4450 = vrcp.pop %v4448
    %v4451 = vmul.f32 1.0, %v4450
    %v4452 = vrcp.pop %v4449
    %v4453 = vmul.f32 1.0, %v4452
    %v4454 = vtanh.pop %v4440
    %v4455 = vmul.f32 %v4451, %v4293
    %v4456 = vmul.f32 %v4451, %v4454
    %4458 = vrot.lane.b32.xlu0 %v4456, 64
    %v4459 = vpop.permute.xlu0 %4458
    %v4461 = vadd.f32 %v4455, %v4459
    %v4462 = vtanh.pop %v4461
    %v4463 = vmul.f32 %v4453, %v4462
    %4465 = vrot.lane.b32.xlu0 %v4463, 64
    %v4466 = vpop.permute.xlu0 %4465
    %4468 = vst.msk [vmem:[%s1738] sm:$0x3] %vm194, %v4466
    %4469 = vst.msk [vmem:[%s1740] sm:$0x3] %vm197, %v4466
    %v4470 = vld [vmem:[%s539] sm:$0x3]
    %v4471 = vld [vmem:[%s541] sm:$0x3]
    %4473 = vrot.lane.b32.xlu0 %v4471, 64
    %v4474 = vpop.permute.xlu0 %4473
    %v4476 = vsel %vm32, %v4470, %v4474
    %v4477 = vld [vmem:[%s4141] sm:$0xff]
    %v4478 = vld [vmem:[%s4141 + $0x8] sm:$0xff]
    %v4479 = vld [vmem:[%s4141 + $0x10] sm:$0xff]
    %v4480 = vld [vmem:[%s4141 + $0x18] sm:$0xff]
    %v4481 = vld [vmem:[%s4141 + $0x20] sm:$0xff]
    %v4482 = vld [vmem:[%s4141 + $0x28] sm:$0xff]
    %v4483 = vld [vmem:[%s4141 + $0x30] sm:$0xff]
    %v4484 = vld [vmem:[%s4141 + $0x38] sm:$0xff]
    %v4485 = vld [vmem:[%s4141 + $0x40] sm:$0xff]
    %v4486 = vld [vmem:[%s4141 + $0x48] sm:$0xff]
    %v4487 = vld [vmem:[%s4141 + $0x50] sm:$0xff]
    %v4488 = vld [vmem:[%s4141 + $0x58] sm:$0xff]
    %v4489 = vld [vmem:[%s4141 + $0x60] sm:$0xff]
    %v4490 = vld [vmem:[%s4141 + $0x68] sm:$0xff]
    %v4491 = vld [vmem:[%s4141 + $0x70] sm:$0xff]
    %v4492 = vld [vmem:[%s4141 + $0x78] sm:$0xff]
    %v4493 = vld [vmem:[%s4141 + $0x80] sm:$0xff]
    %v4494 = vld [vmem:[%s4141 + $0x88] sm:$0xff]
    %v4495 = vld [vmem:[%s4141 + $0x90] sm:$0xff]
    %v4496 = vld [vmem:[%s4141 + $0x98] sm:$0xff]
    %v4497 = vld [vmem:[%s4141 + $0xa0] sm:$0xff]
    %v4498 = vld [vmem:[%s4141 + $0xa8] sm:$0xff]
    %v4499 = vld [vmem:[%s4141 + $0xb0] sm:$0xff]
    %v4500 = vld [vmem:[%s4141 + $0xb8] sm:$0xff]
    %v4501 = vld [vmem:[%s4141 + $0xc0] sm:$0xff]
    %v4502 = vld [vmem:[%s4141 + $0xc8] sm:$0xff]
    %v4503 = vld [vmem:[%s4141 + $0xd0] sm:$0xff]
    %v4504 = vld [vmem:[%s4141 + $0xd8] sm:$0xff]
    %v4505 = vld [vmem:[%s4141 + $0xe0] sm:$0xff]
    %v4506 = vld [vmem:[%s4141 + $0xe8] sm:$0xff]
    %v4507 = vld [vmem:[%s4141 + $0xf0] sm:$0xff]
    %v4508 = vld [vmem:[%s4141 + $0xf8] sm:$0xff]
    %v4509 = vld [vmem:[%s4141 + $0x100] sm:$0xff]
    %v4510 = vld [vmem:[%s4141 + $0x108] sm:$0xff]
    %v4511 = vld [vmem:[%s4141 + $0x110] sm:$0xff]
    %v4512 = vld [vmem:[%s4141 + $0x118] sm:$0xff]
    %v4513 = vld [vmem:[%s4141 + $0x120] sm:$0xff]
    %v4514 = vld [vmem:[%s4141 + $0x128] sm:$0xff]
    %v4515 = vld [vmem:[%s4141 + $0x130] sm:$0xff]
    %v4516 = vld [vmem:[%s4141 + $0x138] sm:$0xff]
    %v4517 = vld [vmem:[%s4141 + $0x140] sm:$0xff]
    %v4518 = vld [vmem:[%s4141 + $0x148] sm:$0xff]
    %v4519 = vld [vmem:[%s4141 + $0x150] sm:$0xff]
    %v4520 = vld [vmem:[%s4141 + $0x158] sm:$0xff]
    %v4521 = vld [vmem:[%s4141 + $0x160] sm:$0xff]
    %v4522 = vld [vmem:[%s4141 + $0x168] sm:$0xff]
    %v4523 = vld [vmem:[%s4141 + $0x170] sm:$0xff]
    %v4524 = vld [vmem:[%s4141 + $0x178] sm:$0xff]
    %v4525 = vld [vmem:[%s4190] sm:$0x3]
    %v4527 = vlaneseq
    %v4528 = vshrl.u32 %v4527, 7
    %v4529 = vsub.s32 0, %v4528
    %v4530 = vrot.slane %v4525, %v4529
    %v4531 = vlaneseq
    %v4532 = vshrl.u32 %v4531, 7
    %v4533 = vsub.s32 1, %v4532
    %v4534 = vrot.slane %v4525, %v4533
    %v4537 = vsel %vm32, %v4466, 0
    %4539 = vmatprep.subr.mxu0 %v4508
    %4540 = vmatpush1.msra.mxu0 %v4507
    %4541 = vmatprep.subr.mxu0 %v4506
    %4542 = vmatpush1.msra.mxu0 %v4505
    %4543 = vmatprep.subr.mxu0 %v4504
    %4544 = vmatpush1.msra.mxu0 %v4503
    %4545 = vmatprep.subr.mxu0 %v4502
    %4546 = vmatpush1.msra.mxu0 %v4501
    %4547 = vmatprep.subr.mxu0 %v4500
    %4548 = vmatpush1.msra.mxu0 %v4499
    %4549 = vmatprep.subr.mxu0 %v4498
    %4550 = vmatpush1.msra.mxu0 %v4497
    %4551 = vmatprep.subr.mxu0 %v4496
    %4552 = vmatpush1.msra.mxu0 %v4495
    %4553 = vmatprep.subr.mxu0 %v4494
    %4554 = vmatpush1.msra.mxu0 %v4493
    %4555 = vmatprep.subr.mxu0 %v4492
    %4556 = vmatpush1.msra.mxu0 %v4491
    %4557 = vmatprep.subr.mxu0 %v4490
    %4558 = vmatpush1.msra.mxu0 %v4489
    %4559 = vmatprep.subr.mxu0 %v4488
    %4560 = vmatpush1.msra.mxu0 %v4487
    %4561 = vmatprep.subr.mxu0 %v4486
    %4562 = vmatpush1.msra.mxu0 %v4485
    %4563 = vmatprep.subr.mxu0 %v4484
    %4564 = vmatpush1.msra.mxu0 %v4483
    %4565 = vmatprep.subr.mxu0 %v4482
    %4566 = vmatpush1.msra.mxu0 %v4481
    %4567 = vmatprep.subr.mxu0 %v4480
    %4568 = vmatpush1.msra.mxu0 %v4479
    %4569 = vmatprep.subr.mxu0 %v4478
    %4570 = vmatpush1.msra.mxu0 %v4477
    %4571 = vmatprep.subr.mxu0 0.0
    %4572 = vmatpush2.msra.mxu0 0.0
    %4573 = vmatprep.subr.mxu0 0.0
    %4574 = vmatpush2.msra.mxu0 0.0
    %4575 = vmatprep.subr.mxu0 0.0
    %4576 = vmatpush2.msra.mxu0 0.0
    %4577 = vmatprep.subr.mxu0 0.0
    %4578 = vmatpush2.msra.mxu0 0.0
    %4579 = vmatprep.subr.mxu0 0.0
    %4580 = vmatpush2.msra.mxu0 0.0
    %4581 = vmatprep.subr.mxu0 0.0
    %4582 = vmatpush2.msra.mxu0 0.0
    %4583 = vmatprep.subr.mxu0 0.0
    %4584 = vmatpush2.msra.mxu0 0.0
    %4585 = vmatprep.subr.mxu0 0.0
    %4586 = vmatpush2.msra.mxu0 0.0
    %4587 = vmatprep.subr.mxu0 %v4524
    %4588 = vmatpush2.msra.mxu0 %v4523
    %4589 = vmatprep.subr.mxu0 %v4522
    %4590 = vmatpush2.msra.mxu0 %v4521
    %4591 = vmatprep.subr.mxu0 %v4520
    %4592 = vmatpush2.msra.mxu0 %v4519
    %4593 = vmatprep.subr.mxu0 %v4518
    %4594 = vmatpush2.msra.mxu0 %v4517
    %4595 = vmatprep.subr.mxu0 %v4516
    %4596 = vmatpush2.msra.mxu0 %v4515
    %4597 = vmatprep.subr.mxu0 %v4514
    %4598 = vmatpush2.msra.mxu0 %v4513
    %4599 = vmatprep.subr.mxu0 %v4512
    %4600 = vmatpush2.msra.mxu0 %v4511
    %4601 = vmatprep.subr.mxu0 %v4510
    %4602 = vmatpush2.msra.mxu0 %v4509
    %4603 = vmatprep.mubr.f32.mxu0 %v4537
    %4604 = vmatmul.mubr.f32.gmra.mxu0 %v4476
    %v4605 = vpop.f32.mrf.mxu0
    %v4606 = vadd.f32 %v4530, %v4605
    %v4607 = vpop.f32.mrf.mxu0
    %v4608 = vadd.f32 %v4534, %v4607
    %4609 = vdwg.mxu0
    %v4610 = vxor.u32 %v4606, 2147483648
    %v4611 = vxor.u32 %v4608, 2147483648
    %v4612 = vmul.f32 %v4610, 1.442695
    %v4613 = vpow.pop %v4612
    %v4614 = vmul.f32 %v4611, 1.442695
    %v4615 = vpow.pop %v4614
    %v4616 = vadd.f32 %v4613, 1.0
    %v4617 = vadd.f32 %v4615, 1.0
    %v4618 = vrcp.pop %v4616
    %v4619 = vmul.f32 1.0, %v4618
    %v4620 = vrcp.pop %v4617
    %v4621 = vmul.f32 1.0, %v4620
    %v4622 = vtanh.pop %v4608
    %v4623 = vmul.f32 %v4619, %v4461
    %v4624 = vmul.f32 %v4619, %v4622
    %4626 = vrot.lane.b32.xlu0 %v4624, 64
    %v4627 = vpop.permute.xlu0 %4626
    %v4629 = vadd.f32 %v4623, %v4627
    %v4630 = vtanh.pop %v4629
    %v4631 = vmul.f32 %v4621, %v4630
    %4633 = vrot.lane.b32.xlu0 %v4631, 64
    %v4634 = vpop.permute.xlu0 %4633
    %4636 = vst.msk [vmem:[%s1908] sm:$0x3] %vm194, %v4634
    %4637 = vst.msk [vmem:[%s1910] sm:$0x3] %vm197, %v4634
    %v4638 = vld [vmem:[%s711] sm:$0x3]
    %v4639 = vld [vmem:[%s713] sm:$0x3]
    %4641 = vrot.lane.b32.xlu0 %v4639, 64
    %v4642 = vpop.permute.xlu0 %4641
    %v4644 = vsel %vm32, %v4638, %v4642
    %v4645 = vld [vmem:[%s4141] sm:$0xff]
    %v4646 = vld [vmem:[%s4141 + $0x8] sm:$0xff]
    %v4647 = vld [vmem:[%s4141 + $0x10] sm:$0xff]
    %v4648 = vld [vmem:[%s4141 + $0x18] sm:$0xff]
    %v4649 = vld [vmem:[%s4141 + $0x20] sm:$0xff]
    %v4650 = vld [vmem:[%s4141 + $0x28] sm:$0xff]
    %v4651 = vld [vmem:[%s4141 + $0x30] sm:$0xff]
    %v4652 = vld [vmem:[%s4141 + $0x38] sm:$0xff]
    %v4653 = vld [vmem:[%s4141 + $0x40] sm:$0xff]
    %v4654 = vld [vmem:[%s4141 + $0x48] sm:$0xff]
    %v4655 = vld [vmem:[%s4141 + $0x50] sm:$0xff]
    %v4656 = vld [vmem:[%s4141 + $0x58] sm:$0xff]
    %v4657 = vld [vmem:[%s4141 + $0x60] sm:$0xff]
    %v4658 = vld [vmem:[%s4141 + $0x68] sm:$0xff]
    %v4659 = vld [vmem:[%s4141 + $0x70] sm:$0xff]
    %v4660 = vld [vmem:[%s4141 + $0x78] sm:$0xff]
    %v4661 = vld [vmem:[%s4141 + $0x80] sm:$0xff]
    %v4662 = vld [vmem:[%s4141 + $0x88] sm:$0xff]
    %v4663 = vld [vmem:[%s4141 + $0x90] sm:$0xff]
    %v4664 = vld [vmem:[%s4141 + $0x98] sm:$0xff]
    %v4665 = vld [vmem:[%s4141 + $0xa0] sm:$0xff]
    %v4666 = vld [vmem:[%s4141 + $0xa8] sm:$0xff]
    %v4667 = vld [vmem:[%s4141 + $0xb0] sm:$0xff]
    %v4668 = vld [vmem:[%s4141 + $0xb8] sm:$0xff]
    %v4669 = vld [vmem:[%s4141 + $0xc0] sm:$0xff]
    %v4670 = vld [vmem:[%s4141 + $0xc8] sm:$0xff]
    %v4671 = vld [vmem:[%s4141 + $0xd0] sm:$0xff]
    %v4672 = vld [vmem:[%s4141 + $0xd8] sm:$0xff]
    %v4673 = vld [vmem:[%s4141 + $0xe0] sm:$0xff]
    %v4674 = vld [vmem:[%s4141 + $0xe8] sm:$0xff]
    %v4675 = vld [vmem:[%s4141 + $0xf0] sm:$0xff]
    %v4676 = vld [vmem:[%s4141 + $0xf8] sm:$0xff]
    %v4677 = vld [vmem:[%s4141 + $0x100] sm:$0xff]
    %v4678 = vld [vmem:[%s4141 + $0x108] sm:$0xff]
    %v4679 = vld [vmem:[%s4141 + $0x110] sm:$0xff]
    %v4680 = vld [vmem:[%s4141 + $0x118] sm:$0xff]
    %v4681 = vld [vmem:[%s4141 + $0x120] sm:$0xff]
    %v4682 = vld [vmem:[%s4141 + $0x128] sm:$0xff]
    %v4683 = vld [vmem:[%s4141 + $0x130] sm:$0xff]
    %v4684 = vld [vmem:[%s4141 + $0x138] sm:$0xff]
    %v4685 = vld [vmem:[%s4141 + $0x140] sm:$0xff]
    %v4686 = vld [vmem:[%s4141 + $0x148] sm:$0xff]
    %v4687 = vld [vmem:[%s4141 + $0x150] sm:$0xff]
    %v4688 = vld [vmem:[%s4141 + $0x158] sm:$0xff]
    %v4689 = vld [vmem:[%s4141 + $0x160] sm:$0xff]
    %v4690 = vld [vmem:[%s4141 + $0x168] sm:$0xff]
    %v4691 = vld [vmem:[%s4141 + $0x170] sm:$0xff]
    %v4692 = vld [vmem:[%s4141 + $0x178] sm:$0xff]
    %v4693 = vld [vmem:[%s4190] sm:$0x3]
    %v4695 = vlaneseq
    %v4696 = vshrl.u32 %v4695, 7
    %v4697 = vsub.s32 0, %v4696
    %v4698 = vrot.slane %v4693, %v4697
    %v4699 = vlaneseq
    %v4700 = vshrl.u32 %v4699, 7
    %v4701 = vsub.s32 1, %v4700
    %v4702 = vrot.slane %v4693, %v4701
    %v4705 = vsel %vm32, %v4634, 0
    %4707 = vmatprep.subr.mxu0 %v4676
    %4708 = vmatpush1.msra.mxu0 %v4675
    %4709 = vmatprep.subr.mxu0 %v4674
    %4710 = vmatpush1.msra.mxu0 %v4673
    %4711 = vmatprep.subr.mxu0 %v4672
    %4712 = vmatpush1.msra.mxu0 %v4671
    %4713 = vmatprep.subr.mxu0 %v4670
    %4714 = vmatpush1.msra.mxu0 %v4669
    %4715 = vmatprep.subr.mxu0 %v4668
    %4716 = vmatpush1.msra.mxu0 %v4667
    %4717 = vmatprep.subr.mxu0 %v4666
    %4718 = vmatpush1.msra.mxu0 %v4665
    %4719 = vmatprep.subr.mxu0 %v4664
    %4720 = vmatpush1.msra.mxu0 %v4663
    %4721 = vmatprep.subr.mxu0 %v4662
    %4722 = vmatpush1.msra.mxu0 %v4661
    %4723 = vmatprep.subr.mxu0 %v4660
    %4724 = vmatpush1.msra.mxu0 %v4659
    %4725 = vmatprep.subr.mxu0 %v4658
    %4726 = vmatpush1.msra.mxu0 %v4657
    %4727 = vmatprep.subr.mxu0 %v4656
    %4728 = vmatpush1.msra.mxu0 %v4655
    %4729 = vmatprep.subr.mxu0 %v4654
    %4730 = vmatpush1.msra.mxu0 %v4653
    %4731 = vmatprep.subr.mxu0 %v4652
    %4732 = vmatpush1.msra.mxu0 %v4651
    %4733 = vmatprep.subr.mxu0 %v4650
    %4734 = vmatpush1.msra.mxu0 %v4649
    %4735 = vmatprep.subr.mxu0 %v4648
    %4736 = vmatpush1.msra.mxu0 %v4647
    %4737 = vmatprep.subr.mxu0 %v4646
    %4738 = vmatpush1.msra.mxu0 %v4645
    %4739 = vmatprep.subr.mxu0 0.0
    %4740 = vmatpush2.msra.mxu0 0.0
    %4741 = vmatprep.subr.mxu0 0.0
    %4742 = vmatpush2.msra.mxu0 0.0
    %4743 = vmatprep.subr.mxu0 0.0
    %4744 = vmatpush2.msra.mxu0 0.0
    %4745 = vmatprep.subr.mxu0 0.0
    %4746 = vmatpush2.msra.mxu0 0.0
    %4747 = vmatprep.subr.mxu0 0.0
    %4748 = vmatpush2.msra.mxu0 0.0
    %4749 = vmatprep.subr.mxu0 0.0
    %4750 = vmatpush2.msra.mxu0 0.0
    %4751 = vmatprep.subr.mxu0 0.0
    %4752 = vmatpush2.msra.mxu0 0.0
    %4753 = vmatprep.subr.mxu0 0.0
    %4754 = vmatpush2.msra.mxu0 0.0
    %4755 = vmatprep.subr.mxu0 %v4692
    %4756 = vmatpush2.msra.mxu0 %v4691
    %4757 = vmatprep.subr.mxu0 %v4690
    %4758 = vmatpush2.msra.mxu0 %v4689
    %4759 = vmatprep.subr.mxu0 %v4688
    %4760 = vmatpush2.msra.mxu0 %v4687
    %4761 = vmatprep.subr.mxu0 %v4686
    %4762 = vmatpush2.msra.mxu0 %v4685
    %4763 = vmatprep.subr.mxu0 %v4684
    %4764 = vmatpush2.msra.mxu0 %v4683
    %4765 = vmatprep.subr.mxu0 %v4682
    %4766 = vmatpush2.msra.mxu0 %v4681
    %4767 = vmatprep.subr.mxu0 %v4680
    %4768 = vmatpush2.msra.mxu0 %v4679
    %4769 = vmatprep.subr.mxu0 %v4678
    %4770 = vmatpush2.msra.mxu0 %v4677
    %4771 = vmatprep.mubr.f32.mxu0 %v4705
    %4772 = vmatmul.mubr.f32.gmra.mxu0 %v4644
    %v4773 = vpop.f32.mrf.mxu0
    %v4774 = vadd.f32 %v4698, %v4773
    %v4775 = vpop.f32.mrf.mxu0
    %v4776 = vadd.f32 %v4702, %v4775
    %4777 = vdwg.mxu0
    %v4778 = vxor.u32 %v4774, 2147483648
    %v4779 = vxor.u32 %v4776, 2147483648
    %v4780 = vmul.f32 %v4778, 1.442695
    %v4781 = vpow.pop %v4780
    %v4782 = vmul.f32 %v4779, 1.442695
    %v4783 = vpow.pop %v4782
    %v4784 = vadd.f32 %v4781, 1.0
    %v4785 = vadd.f32 %v4783, 1.0
    %v4786 = vrcp.pop %v4784
    %v4787 = vmul.f32 1.0, %v4786
    %v4788 = vrcp.pop %v4785
    %v4789 = vmul.f32 1.0, %v4788
    %v4790 = vtanh.pop %v4776
    %v4791 = vmul.f32 %v4787, %v4629
    %v4792 = vmul.f32 %v4787, %v4790
    %4794 = vrot.lane.b32.xlu0 %v4792, 64
    %v4795 = vpop.permute.xlu0 %4794
    %v4797 = vadd.f32 %v4791, %v4795
    %v4798 = vtanh.pop %v4797
    %v4799 = vmul.f32 %v4789, %v4798
    %4801 = vrot.lane.b32.xlu0 %v4799, 64
    %v4802 = vpop.permute.xlu0 %4801
    %4804 = vst.msk [vmem:[%s2078] sm:$0x3] %vm194, %v4802
    %4805 = vst.msk [vmem:[%s2080] sm:$0x3] %vm197, %v4802
    %v4806 = vld [vmem:[%s713] sm:$0x3]
    %v4807 = vld [vmem:[%s711] sm:$0x3]
    %4809 = vrot.lane.b32.xlu0 %v4807, 64
    %v4810 = vpop.permute.xlu0 %4809
    %v4812 = vsel %vm32, %v4806, %v4810
    %v4813 = vld [vmem:[%s4141] sm:$0xff]
    %v4814 = vld [vmem:[%s4141 + $0x8] sm:$0xff]
    %v4815 = vld [vmem:[%s4141 + $0x10] sm:$0xff]
    %v4816 = vld [vmem:[%s4141 + $0x18] sm:$0xff]
    %v4817 = vld [vmem:[%s4141 + $0x20] sm:$0xff]
    %v4818 = vld [vmem:[%s4141 + $0x28] sm:$0xff]
    %v4819 = vld [vmem:[%s4141 + $0x30] sm:$0xff]
    %v4820 = vld [vmem:[%s4141 + $0x38] sm:$0xff]
    %v4821 = vld [vmem:[%s4141 + $0x40] sm:$0xff]
    %v4822 = vld [vmem:[%s4141 + $0x48] sm:$0xff]
    %v4823 = vld [vmem:[%s4141 + $0x50] sm:$0xff]
    %v4824 = vld [vmem:[%s4141 + $0x58] sm:$0xff]
    %v4825 = vld [vmem:[%s4141 + $0x60] sm:$0xff]
    %v4826 = vld [vmem:[%s4141 + $0x68] sm:$0xff]
    %v4827 = vld [vmem:[%s4141 + $0x70] sm:$0xff]
    %v4828 = vld [vmem:[%s4141 + $0x78] sm:$0xff]
    %v4829 = vld [vmem:[%s4141 + $0x80] sm:$0xff]
    %v4830 = vld [vmem:[%s4141 + $0x88] sm:$0xff]
    %v4831 = vld [vmem:[%s4141 + $0x90] sm:$0xff]
    %v4832 = vld [vmem:[%s4141 + $0x98] sm:$0xff]
    %v4833 = vld [vmem:[%s4141 + $0xa0] sm:$0xff]
    %v4834 = vld [vmem:[%s4141 + $0xa8] sm:$0xff]
    %v4835 = vld [vmem:[%s4141 + $0xb0] sm:$0xff]
    %v4836 = vld [vmem:[%s4141 + $0xb8] sm:$0xff]
    %v4837 = vld [vmem:[%s4141 + $0xc0] sm:$0xff]
    %v4838 = vld [vmem:[%s4141 + $0xc8] sm:$0xff]
    %v4839 = vld [vmem:[%s4141 + $0xd0] sm:$0xff]
    %v4840 = vld [vmem:[%s4141 + $0xd8] sm:$0xff]
    %v4841 = vld [vmem:[%s4141 + $0xe0] sm:$0xff]
    %v4842 = vld [vmem:[%s4141 + $0xe8] sm:$0xff]
    %v4843 = vld [vmem:[%s4141 + $0xf0] sm:$0xff]
    %v4844 = vld [vmem:[%s4141 + $0xf8] sm:$0xff]
    %v4845 = vld [vmem:[%s4141 + $0x100] sm:$0xff]
    %v4846 = vld [vmem:[%s4141 + $0x108] sm:$0xff]
    %v4847 = vld [vmem:[%s4141 + $0x110] sm:$0xff]
    %v4848 = vld [vmem:[%s4141 + $0x118] sm:$0xff]
    %v4849 = vld [vmem:[%s4141 + $0x120] sm:$0xff]
    %v4850 = vld [vmem:[%s4141 + $0x128] sm:$0xff]
    %v4851 = vld [vmem:[%s4141 + $0x130] sm:$0xff]
    %v4852 = vld [vmem:[%s4141 + $0x138] sm:$0xff]
    %v4853 = vld [vmem:[%s4141 + $0x140] sm:$0xff]
    %v4854 = vld [vmem:[%s4141 + $0x148] sm:$0xff]
    %v4855 = vld [vmem:[%s4141 + $0x150] sm:$0xff]
    %v4856 = vld [vmem:[%s4141 + $0x158] sm:$0xff]
    %v4857 = vld [vmem:[%s4141 + $0x160] sm:$0xff]
    %v4858 = vld [vmem:[%s4141 + $0x168] sm:$0xff]
    %v4859 = vld [vmem:[%s4141 + $0x170] sm:$0xff]
    %v4860 = vld [vmem:[%s4141 + $0x178] sm:$0xff]
    %v4861 = vld [vmem:[%s4190] sm:$0x3]
    %v4863 = vlaneseq
    %v4864 = vshrl.u32 %v4863, 7
    %v4865 = vsub.s32 0, %v4864
    %v4866 = vrot.slane %v4861, %v4865
    %v4867 = vlaneseq
    %v4868 = vshrl.u32 %v4867, 7
    %v4869 = vsub.s32 1, %v4868
    %v4870 = vrot.slane %v4861, %v4869
    %v4873 = vsel %vm32, %v4802, 0
    %4875 = vmatprep.subr.mxu0 %v4844
    %4876 = vmatpush1.msra.mxu0 %v4843
    %4877 = vmatprep.subr.mxu0 %v4842
    %4878 = vmatpush1.msra.mxu0 %v4841
    %4879 = vmatprep.subr.mxu0 %v4840
    %4880 = vmatpush1.msra.mxu0 %v4839
    %4881 = vmatprep.subr.mxu0 %v4838
    %4882 = vmatpush1.msra.mxu0 %v4837
    %4883 = vmatprep.subr.mxu0 %v4836
    %4884 = vmatpush1.msra.mxu0 %v4835
    %4885 = vmatprep.subr.mxu0 %v4834
    %4886 = vmatpush1.msra.mxu0 %v4833
    %4887 = vmatprep.subr.mxu0 %v4832
    %4888 = vmatpush1.msra.mxu0 %v4831
    %4889 = vmatprep.subr.mxu0 %v4830
    %4890 = vmatpush1.msra.mxu0 %v4829
    %4891 = vmatprep.subr.mxu0 %v4828
    %4892 = vmatpush1.msra.mxu0 %v4827
    %4893 = vmatprep.subr.mxu0 %v4826
    %4894 = vmatpush1.msra.mxu0 %v4825
    %4895 = vmatprep.subr.mxu0 %v4824
    %4896 = vmatpush1.msra.mxu0 %v4823
    %4897 = vmatprep.subr.mxu0 %v4822
    %4898 = vmatpush1.msra.mxu0 %v4821
    %4899 = vmatprep.subr.mxu0 %v4820
    %4900 = vmatpush1.msra.mxu0 %v4819
    %4901 = vmatprep.subr.mxu0 %v4818
    %4902 = vmatpush1.msra.mxu0 %v4817
    %4903 = vmatprep.subr.mxu0 %v4816
    %4904 = vmatpush1.msra.mxu0 %v4815
    %4905 = vmatprep.subr.mxu0 %v4814
    %4906 = vmatpush1.msra.mxu0 %v4813
    %4907 = vmatprep.subr.mxu0 0.0
    %4908 = vmatpush2.msra.mxu0 0.0
    %4909 = vmatprep.subr.mxu0 0.0
    %4910 = vmatpush2.msra.mxu0 0.0
    %4911 = vmatprep.subr.mxu0 0.0
    %4912 = vmatpush2.msra.mxu0 0.0
    %4913 = vmatprep.subr.mxu0 0.0
    %4914 = vmatpush2.msra.mxu0 0.0
    %4915 = vmatprep.subr.mxu0 0.0
    %4916 = vmatpush2.msra.mxu0 0.0
    %4917 = vmatprep.subr.mxu0 0.0
    %4918 = vmatpush2.msra.mxu0 0.0
    %4919 = vmatprep.subr.mxu0 0.0
    %4920 = vmatpush2.msra.mxu0 0.0
    %4921 = vmatprep.subr.mxu0 0.0
    %4922 = vmatpush2.msra.mxu0 0.0
    %4923 = vmatprep.subr.mxu0 %v4860
    %4924 = vmatpush2.msra.mxu0 %v4859
    %4925 = vmatprep.subr.mxu0 %v4858
    %4926 = vmatpush2.msra.mxu0 %v4857
    %4927 = vmatprep.subr.mxu0 %v4856
    %4928 = vmatpush2.msra.mxu0 %v4855
    %4929 = vmatprep.subr.mxu0 %v4854
    %4930 = vmatpush2.msra.mxu0 %v4853
    %4931 = vmatprep.subr.mxu0 %v4852
    %4932 = vmatpush2.msra.mxu0 %v4851
    %4933 = vmatprep.subr.mxu0 %v4850
    %4934 = vmatpush2.msra.mxu0 %v4849
    %4935 = vmatprep.subr.mxu0 %v4848
    %4936 = vmatpush2.msra.mxu0 %v4847
    %4937 = vmatprep.subr.mxu0 %v4846
    %4938 = vmatpush2.msra.mxu0 %v4845
    %4939 = vmatprep.mubr.f32.mxu0 %v4873
    %4940 = vmatmul.mubr.f32.gmra.mxu0 %v4812
    %v4941 = vpop.f32.mrf.mxu0
    %v4942 = vadd.f32 %v4866, %v4941
    %v4943 = vpop.f32.mrf.mxu0
    %v4944 = vadd.f32 %v4870, %v4943
    %4945 = vdwg.mxu0
    %v4946 = vxor.u32 %v4942, 2147483648
    %v4947 = vxor.u32 %v4944, 2147483648
    %v4948 = vmul.f32 %v4946, 1.442695
    %v4949 = vpow.pop %v4948
    %v4950 = vmul.f32 %v4947, 1.442695
    %v4951 = vpow.pop %v4950
    %v4952 = vadd.f32 %v4949, 1.0
    %v4953 = vadd.f32 %v4951, 1.0
    %v4954 = vrcp.pop %v4952
    %v4955 = vmul.f32 1.0, %v4954
    %v4956 = vrcp.pop %v4953
    %v4957 = vmul.f32 1.0, %v4956
    %v4958 = vtanh.pop %v4944
    %v4959 = vmul.f32 %v4955, %v4797
    %v4960 = vmul.f32 %v4955, %v4958
    %4962 = vrot.lane.b32.xlu0 %v4960, 64
    %v4963 = vpop.permute.xlu0 %4962
    %v4965 = vadd.f32 %v4959, %v4963
    %v4966 = vtanh.pop %v4965
    %v4967 = vmul.f32 %v4957, %v4966
    %4969 = vrot.lane.b32.xlu0 %v4967, 64
    %v4970 = vpop.permute.xlu0 %4969
    %4972 = vst.msk [vmem:[%s2080] sm:$0x3] %vm194, %v4970
    %4973 = vst.msk [vmem:[%s2078] sm:$0x3] %vm197, %v4970
    %v4974 = vld [vmem:[%s541] sm:$0x3]
    %v4975 = vld [vmem:[%s539] sm:$0x3]
    %4977 = vrot.lane.b32.xlu0 %v4975, 64
    %v4978 = vpop.permute.xlu0 %4977
    %v4980 = vsel %vm32, %v4974, %v4978
    %v4981 = vld [vmem:[%s4141] sm:$0xff]
    %v4982 = vld [vmem:[%s4141 + $0x8] sm:$0xff]
    %v4983 = vld [vmem:[%s4141 + $0x10] sm:$0xff]
    %v4984 = vld [vmem:[%s4141 + $0x18] sm:$0xff]
    %v4985 = vld [vmem:[%s4141 + $0x20] sm:$0xff]
    %v4986 = vld [vmem:[%s4141 + $0x28] sm:$0xff]
    %v4987 = vld [vmem:[%s4141 + $0x30] sm:$0xff]
    %v4988 = vld [vmem:[%s4141 + $0x38] sm:$0xff]
    %v4989 = vld [vmem:[%s4141 + $0x40] sm:$0xff]
    %v4990 = vld [vmem:[%s4141 + $0x48] sm:$0xff]
    %v4991 = vld [vmem:[%s4141 + $0x50] sm:$0xff]
    %v4992 = vld [vmem:[%s4141 + $0x58] sm:$0xff]
    %v4993 = vld [vmem:[%s4141 + $0x60] sm:$0xff]
    %v4994 = vld [vmem:[%s4141 + $0x68] sm:$0xff]
    %v4995 = vld [vmem:[%s4141 + $0x70] sm:$0xff]
    %v4996 = vld [vmem:[%s4141 + $0x78] sm:$0xff]
    %v4997 = vld [vmem:[%s4141 + $0x80] sm:$0xff]
    %v4998 = vld [vmem:[%s4141 + $0x88] sm:$0xff]
    %v4999 = vld [vmem:[%s4141 + $0x90] sm:$0xff]
    %v5000 = vld [vmem:[%s4141 + $0x98] sm:$0xff]
    %v5001 = vld [vmem:[%s4141 + $0xa0] sm:$0xff]
    %v5002 = vld [vmem:[%s4141 + $0xa8] sm:$0xff]
    %v5003 = vld [vmem:[%s4141 + $0xb0] sm:$0xff]
    %v5004 = vld [vmem:[%s4141 + $0xb8] sm:$0xff]
    %v5005 = vld [vmem:[%s4141 + $0xc0] sm:$0xff]
    %v5006 = vld [vmem:[%s4141 + $0xc8] sm:$0xff]
    %v5007 = vld [vmem:[%s4141 + $0xd0] sm:$0xff]
    %v5008 = vld [vmem:[%s4141 + $0xd8] sm:$0xff]
    %v5009 = vld [vmem:[%s4141 + $0xe0] sm:$0xff]
    %v5010 = vld [vmem:[%s4141 + $0xe8] sm:$0xff]
    %v5011 = vld [vmem:[%s4141 + $0xf0] sm:$0xff]
    %v5012 = vld [vmem:[%s4141 + $0xf8] sm:$0xff]
    %v5013 = vld [vmem:[%s4141 + $0x100] sm:$0xff]
    %v5014 = vld [vmem:[%s4141 + $0x108] sm:$0xff]
    %v5015 = vld [vmem:[%s4141 + $0x110] sm:$0xff]
    %v5016 = vld [vmem:[%s4141 + $0x118] sm:$0xff]
    %v5017 = vld [vmem:[%s4141 + $0x120] sm:$0xff]
    %v5018 = vld [vmem:[%s4141 + $0x128] sm:$0xff]
    %v5019 = vld [vmem:[%s4141 + $0x130] sm:$0xff]
    %v5020 = vld [vmem:[%s4141 + $0x138] sm:$0xff]
    %v5021 = vld [vmem:[%s4141 + $0x140] sm:$0xff]
    %v5022 = vld [vmem:[%s4141 + $0x148] sm:$0xff]
    %v5023 = vld [vmem:[%s4141 + $0x150] sm:$0xff]
    %v5024 = vld [vmem:[%s4141 + $0x158] sm:$0xff]
    %v5025 = vld [vmem:[%s4141 + $0x160] sm:$0xff]
    %v5026 = vld [vmem:[%s4141 + $0x168] sm:$0xff]
    %v5027 = vld [vmem:[%s4141 + $0x170] sm:$0xff]
    %v5028 = vld [vmem:[%s4141 + $0x178] sm:$0xff]
    %v5029 = vld [vmem:[%s4190] sm:$0x3]
    %v5031 = vlaneseq
    %v5032 = vshrl.u32 %v5031, 7
    %v5033 = vsub.s32 0, %v5032
    %v5034 = vrot.slane %v5029, %v5033
    %v5035 = vlaneseq
    %v5036 = vshrl.u32 %v5035, 7
    %v5037 = vsub.s32 1, %v5036
    %v5038 = vrot.slane %v5029, %v5037
    %v5041 = vsel %vm32, %v4970, 0
    %5043 = vmatprep.subr.mxu0 %v5012
    %5044 = vmatpush1.msra.mxu0 %v5011
    %5045 = vmatprep.subr.mxu0 %v5010
    %5046 = vmatpush1.msra.mxu0 %v5009
    %5047 = vmatprep.subr.mxu0 %v5008
    %5048 = vmatpush1.msra.mxu0 %v5007
    %5049 = vmatprep.subr.mxu0 %v5006
    %5050 = vmatpush1.msra.mxu0 %v5005
    %5051 = vmatprep.subr.mxu0 %v5004
    %5052 = vmatpush1.msra.mxu0 %v5003
    %5053 = vmatprep.subr.mxu0 %v5002
    %5054 = vmatpush1.msra.mxu0 %v5001
    %5055 = vmatprep.subr.mxu0 %v5000
    %5056 = vmatpush1.msra.mxu0 %v4999
    %5057 = vmatprep.subr.mxu0 %v4998
    %5058 = vmatpush1.msra.mxu0 %v4997
    %5059 = vmatprep.subr.mxu0 %v4996
    %5060 = vmatpush1.msra.mxu0 %v4995
    %5061 = vmatprep.subr.mxu0 %v4994
    %5062 = vmatpush1.msra.mxu0 %v4993
    %5063 = vmatprep.subr.mxu0 %v4992
    %5064 = vmatpush1.msra.mxu0 %v4991
    %5065 = vmatprep.subr.mxu0 %v4990
    %5066 = vmatpush1.msra.mxu0 %v4989
    %5067 = vmatprep.subr.mxu0 %v4988
    %5068 = vmatpush1.msra.mxu0 %v4987
    %5069 = vmatprep.subr.mxu0 %v4986
    %5070 = vmatpush1.msra.mxu0 %v4985
    %5071 = vmatprep.subr.mxu0 %v4984
    %5072 = vmatpush1.msra.mxu0 %v4983
    %5073 = vmatprep.subr.mxu0 %v4982
    %5074 = vmatpush1.msra.mxu0 %v4981
    %5075 = vmatprep.subr.mxu0 0.0
    %5076 = vmatpush2.msra.mxu0 0.0
    %5077 = vmatprep.subr.mxu0 0.0
    %5078 = vmatpush2.msra.mxu0 0.0
    %5079 = vmatprep.subr.mxu0 0.0
    %5080 = vmatpush2.msra.mxu0 0.0
    %5081 = vmatprep.subr.mxu0 0.0
    %5082 = vmatpush2.msra.mxu0 0.0
    %5083 = vmatprep.subr.mxu0 0.0
    %5084 = vmatpush2.msra.mxu0 0.0
    %5085 = vmatprep.subr.mxu0 0.0
    %5086 = vmatpush2.msra.mxu0 0.0
    %5087 = vmatprep.subr.mxu0 0.0
    %5088 = vmatpush2.msra.mxu0 0.0
    %5089 = vmatprep.subr.mxu0 0.0
    %5090 = vmatpush2.msra.mxu0 0.0
    %5091 = vmatprep.subr.mxu0 %v5028
    %5092 = vmatpush2.msra.mxu0 %v5027
    %5093 = vmatprep.subr.mxu0 %v5026
    %5094 = vmatpush2.msra.mxu0 %v5025
    %5095 = vmatprep.subr.mxu0 %v5024
    %5096 = vmatpush2.msra.mxu0 %v5023
    %5097 = vmatprep.subr.mxu0 %v5022
    %5098 = vmatpush2.msra.mxu0 %v5021
    %5099 = vmatprep.subr.mxu0 %v5020
    %5100 = vmatpush2.msra.mxu0 %v5019
    %5101 = vmatprep.subr.mxu0 %v5018
    %5102 = vmatpush2.msra.mxu0 %v5017
    %5103 = vmatprep.subr.mxu0 %v5016
    %5104 = vmatpush2.msra.mxu0 %v5015
    %5105 = vmatprep.subr.mxu0 %v5014
    %5106 = vmatpush2.msra.mxu0 %v5013
    %5107 = vmatprep.mubr.f32.mxu0 %v5041
    %5108 = vmatmul.mubr.f32.gmra.mxu0 %v4980
    %v5109 = vpop.f32.mrf.mxu0
    %v5110 = vadd.f32 %v5034, %v5109
    %v5111 = vpop.f32.mrf.mxu0
    %v5112 = vadd.f32 %v5038, %v5111
    %5113 = vdwg.mxu0
    %v5114 = vxor.u32 %v5110, 2147483648
    %v5115 = vxor.u32 %v5112, 2147483648
    %v5116 = vmul.f32 %v5114, 1.442695
    %v5117 = vpow.pop %v5116
    %v5118 = vmul.f32 %v5115, 1.442695
    %v5119 = vpow.pop %v5118
    %v5120 = vadd.f32 %v5117, 1.0
    %v5121 = vadd.f32 %v5119, 1.0
    %v5122 = vrcp.pop %v5120
    %v5123 = vmul.f32 1.0, %v5122
    %v5124 = vrcp.pop %v5121
    %v5125 = vmul.f32 1.0, %v5124
    %v5126 = vtanh.pop %v5112
    %v5127 = vmul.f32 %v5123, %v4965
    %v5128 = vmul.f32 %v5123, %v5126
    %5130 = vrot.lane.b32.xlu0 %v5128, 64
    %v5131 = vpop.permute.xlu0 %5130
    %v5133 = vadd.f32 %v5127, %v5131
    %v5134 = vtanh.pop %v5133
    %v5135 = vmul.f32 %v5125, %v5134
    %5137 = vrot.lane.b32.xlu0 %v5135, 64
    %v5138 = vpop.permute.xlu0 %5137
    %5140 = vst.msk [vmem:[%s1910] sm:$0x3] %vm194, %v5138
    %5141 = vst.msk [vmem:[%s1908] sm:$0x3] %vm197, %v5138
    %v5142 = vld [vmem:[%s369] sm:$0x3]
    %v5143 = vld [vmem:[%s367] sm:$0x3]
    %5145 = vrot.lane.b32.xlu0 %v5143, 64
    %v5146 = vpop.permute.xlu0 %5145
    %v5148 = vsel %vm32, %v5142, %v5146
    %v5149 = vld [vmem:[%s4141] sm:$0xff]
    %v5150 = vld [vmem:[%s4141 + $0x8] sm:$0xff]
    %v5151 = vld [vmem:[%s4141 + $0x10] sm:$0xff]
    %v5152 = vld [vmem:[%s4141 + $0x18] sm:$0xff]
    %v5153 = vld [vmem:[%s4141 + $0x20] sm:$0xff]
    %v5154 = vld [vmem:[%s4141 + $0x28] sm:$0xff]
    %v5155 = vld [vmem:[%s4141 + $0x30] sm:$0xff]
    %v5156 = vld [vmem:[%s4141 + $0x38] sm:$0xff]
    %v5157 = vld [vmem:[%s4141 + $0x40] sm:$0xff]
    %v5158 = vld [vmem:[%s4141 + $0x48] sm:$0xff]
    %v5159 = vld [vmem:[%s4141 + $0x50] sm:$0xff]
    %v5160 = vld [vmem:[%s4141 + $0x58] sm:$0xff]
    %v5161 = vld [vmem:[%s4141 + $0x60] sm:$0xff]
    %v5162 = vld [vmem:[%s4141 + $0x68] sm:$0xff]
    %v5163 = vld [vmem:[%s4141 + $0x70] sm:$0xff]
    %v5164 = vld [vmem:[%s4141 + $0x78] sm:$0xff]
    %v5165 = vld [vmem:[%s4141 + $0x80] sm:$0xff]
    %v5166 = vld [vmem:[%s4141 + $0x88] sm:$0xff]
    %v5167 = vld [vmem:[%s4141 + $0x90] sm:$0xff]
    %v5168 = vld [vmem:[%s4141 + $0x98] sm:$0xff]
    %v5169 = vld [vmem:[%s4141 + $0xa0] sm:$0xff]
    %v5170 = vld [vmem:[%s4141 + $0xa8] sm:$0xff]
    %v5171 = vld [vmem:[%s4141 + $0xb0] sm:$0xff]
    %v5172 = vld [vmem:[%s4141 + $0xb8] sm:$0xff]
    %v5173 = vld [vmem:[%s4141 + $0xc0] sm:$0xff]
    %v5174 = vld [vmem:[%s4141 + $0xc8] sm:$0xff]
    %v5175 = vld [vmem:[%s4141 + $0xd0] sm:$0xff]
    %v5176 = vld [vmem:[%s4141 + $0xd8] sm:$0xff]
    %v5177 = vld [vmem:[%s4141 + $0xe0] sm:$0xff]
    %v5178 = vld [vmem:[%s4141 + $0xe8] sm:$0xff]
    %v5179 = vld [vmem:[%s4141 + $0xf0] sm:$0xff]
    %v5180 = vld [vmem:[%s4141 + $0xf8] sm:$0xff]
    %v5181 = vld [vmem:[%s4141 + $0x100] sm:$0xff]
    %v5182 = vld [vmem:[%s4141 + $0x108] sm:$0xff]
    %v5183 = vld [vmem:[%s4141 + $0x110] sm:$0xff]
    %v5184 = vld [vmem:[%s4141 + $0x118] sm:$0xff]
    %v5185 = vld [vmem:[%s4141 + $0x120] sm:$0xff]
    %v5186 = vld [vmem:[%s4141 + $0x128] sm:$0xff]
    %v5187 = vld [vmem:[%s4141 + $0x130] sm:$0xff]
    %v5188 = vld [vmem:[%s4141 + $0x138] sm:$0xff]
    %v5189 = vld [vmem:[%s4141 + $0x140] sm:$0xff]
    %v5190 = vld [vmem:[%s4141 + $0x148] sm:$0xff]
    %v5191 = vld [vmem:[%s4141 + $0x150] sm:$0xff]
    %v5192 = vld [vmem:[%s4141 + $0x158] sm:$0xff]
    %v5193 = vld [vmem:[%s4141 + $0x160] sm:$0xff]
    %v5194 = vld [vmem:[%s4141 + $0x168] sm:$0xff]
    %v5195 = vld [vmem:[%s4141 + $0x170] sm:$0xff]
    %v5196 = vld [vmem:[%s4141 + $0x178] sm:$0xff]
    %v5197 = vld [vmem:[%s4190] sm:$0x3]
    %v5199 = vlaneseq
    %v5200 = vshrl.u32 %v5199, 7
    %v5201 = vsub.s32 0, %v5200
    %v5202 = vrot.slane %v5197, %v5201
    %v5203 = vlaneseq
    %v5204 = vshrl.u32 %v5203, 7
    %v5205 = vsub.s32 1, %v5204
    %v5206 = vrot.slane %v5197, %v5205
    %v5209 = vsel %vm32, %v5138, 0
    %5211 = vmatprep.subr.mxu0 %v5180
    %5212 = vmatpush1.msra.mxu0 %v5179
    %5213 = vmatprep.subr.mxu0 %v5178
    %5214 = vmatpush1.msra.mxu0 %v5177
    %5215 = vmatprep.subr.mxu0 %v5176
    %5216 = vmatpush1.msra.mxu0 %v5175
    %5217 = vmatprep.subr.mxu0 %v5174
    %5218 = vmatpush1.msra.mxu0 %v5173
    %5219 = vmatprep.subr.mxu0 %v5172
    %5220 = vmatpush1.msra.mxu0 %v5171
    %5221 = vmatprep.subr.mxu0 %v5170
    %5222 = vmatpush1.msra.mxu0 %v5169
    %5223 = vmatprep.subr.mxu0 %v5168
    %5224 = vmatpush1.msra.mxu0 %v5167
    %5225 = vmatprep.subr.mxu0 %v5166
    %5226 = vmatpush1.msra.mxu0 %v5165
    %5227 = vmatprep.subr.mxu0 %v5164
    %5228 = vmatpush1.msra.mxu0 %v5163
    %5229 = vmatprep.subr.mxu0 %v5162
    %5230 = vmatpush1.msra.mxu0 %v5161
    %5231 = vmatprep.subr.mxu0 %v5160
    %5232 = vmatpush1.msra.mxu0 %v5159
    %5233 = vmatprep.subr.mxu0 %v5158
    %5234 = vmatpush1.msra.mxu0 %v5157
    %5235 = vmatprep.subr.mxu0 %v5156
    %5236 = vmatpush1.msra.mxu0 %v5155
    %5237 = vmatprep.subr.mxu0 %v5154
    %5238 = vmatpush1.msra.mxu0 %v5153
    %5239 = vmatprep.subr.mxu0 %v5152
    %5240 = vmatpush1.msra.mxu0 %v5151
    %5241 = vmatprep.subr.mxu0 %v5150
    %5242 = vmatpush1.msra.mxu0 %v5149
    %5243 = vmatprep.subr.mxu0 0.0
    %5244 = vmatpush2.msra.mxu0 0.0
    %5245 = vmatprep.subr.mxu0 0.0
    %5246 = vmatpush2.msra.mxu0 0.0
    %5247 = vmatprep.subr.mxu0 0.0
    %5248 = vmatpush2.msra.mxu0 0.0
    %5249 = vmatprep.subr.mxu0 0.0
    %5250 = vmatpush2.msra.mxu0 0.0
    %5251 = vmatprep.subr.mxu0 0.0
    %5252 = vmatpush2.msra.mxu0 0.0
    %5253 = vmatprep.subr.mxu0 0.0
    %5254 = vmatpush2.msra.mxu0 0.0
    %5255 = vmatprep.subr.mxu0 0.0
    %5256 = vmatpush2.msra.mxu0 0.0
    %5257 = vmatprep.subr.mxu0 0.0
    %5258 = vmatpush2.msra.mxu0 0.0
    %5259 = vmatprep.subr.mxu0 %v5196
    %5260 = vmatpush2.msra.mxu0 %v5195
    %5261 = vmatprep.subr.mxu0 %v5194
    %5262 = vmatpush2.msra.mxu0 %v5193
    %5263 = vmatprep.subr.mxu0 %v5192
    %5264 = vmatpush2.msra.mxu0 %v5191
    %5265 = vmatprep.subr.mxu0 %v5190
    %5266 = vmatpush2.msra.mxu0 %v5189
    %5267 = vmatprep.subr.mxu0 %v5188
    %5268 = vmatpush2.msra.mxu0 %v5187
    %5269 = vmatprep.subr.mxu0 %v5186
    %5270 = vmatpush2.msra.mxu0 %v5185
    %5271 = vmatprep.subr.mxu0 %v5184
    %5272 = vmatpush2.msra.mxu0 %v5183
    %5273 = vmatprep.subr.mxu0 %v5182
    %5274 = vmatpush2.msra.mxu0 %v5181
    %5275 = vmatprep.mubr.f32.mxu0 %v5209
    %5276 = vmatmul.mubr.f32.gmra.mxu0 %v5148
    %v5277 = vpop.f32.mrf.mxu0
    %v5278 = vadd.f32 %v5202, %v5277
    %v5279 = vpop.f32.mrf.mxu0
    %v5280 = vadd.f32 %v5206, %v5279
    %5281 = vdwg.mxu0
    %v5282 = vxor.u32 %v5278, 2147483648
    %v5283 = vxor.u32 %v5280, 2147483648
    %v5284 = vmul.f32 %v5282, 1.442695
    %v5285 = vpow.pop %v5284
    %v5286 = vmul.f32 %v5283, 1.442695
    %v5287 = vpow.pop %v5286
    %v5288 = vadd.f32 %v5285, 1.0
    %v5289 = vadd.f32 %v5287, 1.0
    %v5290 = vrcp.pop %v5288
    %v5291 = vmul.f32 1.0, %v5290
    %v5292 = vrcp.pop %v5289
    %v5293 = vmul.f32 1.0, %v5292
    %v5294 = vtanh.pop %v5280
    %v5295 = vmul.f32 %v5291, %v5133
    %v5296 = vmul.f32 %v5291, %v5294
    %5298 = vrot.lane.b32.xlu0 %v5296, 64
    %v5299 = vpop.permute.xlu0 %5298
    %v5301 = vadd.f32 %v5295, %v5299
    %v5302 = vtanh.pop %v5301
    %v5303 = vmul.f32 %v5293, %v5302
    %5305 = vrot.lane.b32.xlu0 %v5303, 64
    %v5306 = vpop.permute.xlu0 %5305
    %5308 = vst.msk [vmem:[%s1740] sm:$0x3] %vm194, %v5306
    %5309 = vst.msk [vmem:[%s1738] sm:$0x3] %vm197, %v5306
    %v5310 = vld [vmem:[%s196] sm:$0x3]
    %v5311 = vld [vmem:[#allocation2] sm:$0x3]
    %5313 = vrot.lane.b32.xlu0 %v5311, 64
    %v5314 = vpop.permute.xlu0 %5313
    %v5316 = vsel %vm32, %v5310, %v5314
    %v5317 = vld [vmem:[%s4141] sm:$0xff]
    %v5318 = vld [vmem:[%s4141 + $0x8] sm:$0xff]
    %v5319 = vld [vmem:[%s4141 + $0x10] sm:$0xff]
    %v5320 = vld [vmem:[%s4141 + $0x18] sm:$0xff]
    %v5321 = vld [vmem:[%s4141 + $0x20] sm:$0xff]
    %v5322 = vld [vmem:[%s4141 + $0x28] sm:$0xff]
    %v5323 = vld [vmem:[%s4141 + $0x30] sm:$0xff]
    %v5324 = vld [vmem:[%s4141 + $0x38] sm:$0xff]
    %v5325 = vld [vmem:[%s4141 + $0x40] sm:$0xff]
    %v5326 = vld [vmem:[%s4141 + $0x48] sm:$0xff]
    %v5327 = vld [vmem:[%s4141 + $0x50] sm:$0xff]
    %v5328 = vld [vmem:[%s4141 + $0x58] sm:$0xff]
    %v5329 = vld [vmem:[%s4141 + $0x60] sm:$0xff]
    %v5330 = vld [vmem:[%s4141 + $0x68] sm:$0xff]
    %v5331 = vld [vmem:[%s4141 + $0x70] sm:$0xff]
    %v5332 = vld [vmem:[%s4141 + $0x78] sm:$0xff]
    %v5333 = vld [vmem:[%s4141 + $0x80] sm:$0xff]
    %v5334 = vld [vmem:[%s4141 + $0x88] sm:$0xff]
    %v5335 = vld [vmem:[%s4141 + $0x90] sm:$0xff]
    %v5336 = vld [vmem:[%s4141 + $0x98] sm:$0xff]
    %v5337 = vld [vmem:[%s4141 + $0xa0] sm:$0xff]
    %v5338 = vld [vmem:[%s4141 + $0xa8] sm:$0xff]
    %v5339 = vld [vmem:[%s4141 + $0xb0] sm:$0xff]
    %v5340 = vld [vmem:[%s4141 + $0xb8] sm:$0xff]
    %v5341 = vld [vmem:[%s4141 + $0xc0] sm:$0xff]
    %v5342 = vld [vmem:[%s4141 + $0xc8] sm:$0xff]
    %v5343 = vld [vmem:[%s4141 + $0xd0] sm:$0xff]
    %v5344 = vld [vmem:[%s4141 + $0xd8] sm:$0xff]
    %v5345 = vld [vmem:[%s4141 + $0xe0] sm:$0xff]
    %v5346 = vld [vmem:[%s4141 + $0xe8] sm:$0xff]
    %v5347 = vld [vmem:[%s4141 + $0xf0] sm:$0xff]
    %v5348 = vld [vmem:[%s4141 + $0xf8] sm:$0xff]
    %v5349 = vld [vmem:[%s4141 + $0x100] sm:$0xff]
    %v5350 = vld [vmem:[%s4141 + $0x108] sm:$0xff]
    %v5351 = vld [vmem:[%s4141 + $0x110] sm:$0xff]
    %v5352 = vld [vmem:[%s4141 + $0x118] sm:$0xff]
    %v5353 = vld [vmem:[%s4141 + $0x120] sm:$0xff]
    %v5354 = vld [vmem:[%s4141 + $0x128] sm:$0xff]
    %v5355 = vld [vmem:[%s4141 + $0x130] sm:$0xff]
    %v5356 = vld [vmem:[%s4141 + $0x138] sm:$0xff]
    %v5357 = vld [vmem:[%s4141 + $0x140] sm:$0xff]
    %v5358 = vld [vmem:[%s4141 + $0x148] sm:$0xff]
    %v5359 = vld [vmem:[%s4141 + $0x150] sm:$0xff]
    %v5360 = vld [vmem:[%s4141 + $0x158] sm:$0xff]
    %v5361 = vld [vmem:[%s4141 + $0x160] sm:$0xff]
    %v5362 = vld [vmem:[%s4141 + $0x168] sm:$0xff]
    %v5363 = vld [vmem:[%s4141 + $0x170] sm:$0xff]
    %v5364 = vld [vmem:[%s4141 + $0x178] sm:$0xff]
    %v5365 = vld [vmem:[%s4190] sm:$0x3]
    %v5367 = vlaneseq
    %v5368 = vshrl.u32 %v5367, 7
    %v5369 = vsub.s32 0, %v5368
    %v5370 = vrot.slane %v5365, %v5369
    %v5371 = vlaneseq
    %v5372 = vshrl.u32 %v5371, 7
    %v5373 = vsub.s32 1, %v5372
    %v5374 = vrot.slane %v5365, %v5373
    %v5377 = vsel %vm32, %v5306, 0
    %5379 = vmatprep.subr.mxu0 %v5348
    %5380 = vmatpush1.msra.mxu0 %v5347
    %5381 = vmatprep.subr.mxu0 %v5346
    %5382 = vmatpush1.msra.mxu0 %v5345
    %5383 = vmatprep.subr.mxu0 %v5344
    %5384 = vmatpush1.msra.mxu0 %v5343
    %5385 = vmatprep.subr.mxu0 %v5342
    %5386 = vmatpush1.msra.mxu0 %v5341
    %5387 = vmatprep.subr.mxu0 %v5340
    %5388 = vmatpush1.msra.mxu0 %v5339
    %5389 = vmatprep.subr.mxu0 %v5338
    %5390 = vmatpush1.msra.mxu0 %v5337
    %5391 = vmatprep.subr.mxu0 %v5336
    %5392 = vmatpush1.msra.mxu0 %v5335
    %5393 = vmatprep.subr.mxu0 %v5334
    %5394 = vmatpush1.msra.mxu0 %v5333
    %5395 = vmatprep.subr.mxu0 %v5332
    %5396 = vmatpush1.msra.mxu0 %v5331
    %5397 = vmatprep.subr.mxu0 %v5330
    %5398 = vmatpush1.msra.mxu0 %v5329
    %5399 = vmatprep.subr.mxu0 %v5328
    %5400 = vmatpush1.msra.mxu0 %v5327
    %5401 = vmatprep.subr.mxu0 %v5326
    %5402 = vmatpush1.msra.mxu0 %v5325
    %5403 = vmatprep.subr.mxu0 %v5324
    %5404 = vmatpush1.msra.mxu0 %v5323
    %5405 = vmatprep.subr.mxu0 %v5322
    %5406 = vmatpush1.msra.mxu0 %v5321
    %5407 = vmatprep.subr.mxu0 %v5320
    %5408 = vmatpush1.msra.mxu0 %v5319
    %5409 = vmatprep.subr.mxu0 %v5318
    %5410 = vmatpush1.msra.mxu0 %v5317
    %5411 = vmatprep.subr.mxu0 0.0
    %5412 = vmatpush2.msra.mxu0 0.0
    %5413 = vmatprep.subr.mxu0 0.0
    %5414 = vmatpush2.msra.mxu0 0.0
    %5415 = vmatprep.subr.mxu0 0.0
    %5416 = vmatpush2.msra.mxu0 0.0
    %5417 = vmatprep.subr.mxu0 0.0
    %5418 = vmatpush2.msra.mxu0 0.0
    %5419 = vmatprep.subr.mxu0 0.0
    %5420 = vmatpush2.msra.mxu0 0.0
    %5421 = vmatprep.subr.mxu0 0.0
    %5422 = vmatpush2.msra.mxu0 0.0
    %5423 = vmatprep.subr.mxu0 0.0
    %5424 = vmatpush2.msra.mxu0 0.0
    %5425 = vmatprep.subr.mxu0 0.0
    %5426 = vmatpush2.msra.mxu0 0.0
    %5427 = vmatprep.subr.mxu0 %v5364
    %5428 = vmatpush2.msra.mxu0 %v5363
    %5429 = vmatprep.subr.mxu0 %v5362
    %5430 = vmatpush2.msra.mxu0 %v5361
    %5431 = vmatprep.subr.mxu0 %v5360
    %5432 = vmatpush2.msra.mxu0 %v5359
    %5433 = vmatprep.subr.mxu0 %v5358
    %5434 = vmatpush2.msra.mxu0 %v5357
    %5435 = vmatprep.subr.mxu0 %v5356
    %5436 = vmatpush2.msra.mxu0 %v5355
    %5437 = vmatprep.subr.mxu0 %v5354
    %5438 = vmatpush2.msra.mxu0 %v5353
    %5439 = vmatprep.subr.mxu0 %v5352
    %5440 = vmatpush2.msra.mxu0 %v5351
    %5441 = vmatprep.subr.mxu0 %v5350
    %5442 = vmatpush2.msra.mxu0 %v5349
    %5443 = vmatprep.mubr.f32.mxu0 %v5377
    %5444 = vmatmul.mubr.f32.gmra.mxu0 %v5316
    %v5445 = vpop.f32.mrf.mxu0
    %v5446 = vadd.f32 %v5370, %v5445
    %v5447 = vpop.f32.mrf.mxu0
    %v5448 = vadd.f32 %v5374, %v5447
    %5449 = vdwg.mxu0
    %v5450 = vxor.u32 %v5446, 2147483648
    %v5451 = vxor.u32 %v5448, 2147483648
    %v5452 = vmul.f32 %v5450, 1.442695
    %v5453 = vpow.pop %v5452
    %v5454 = vmul.f32 %v5451, 1.442695
    %v5455 = vpow.pop %v5454
    %v5456 = vadd.f32 %v5453, 1.0
    %v5457 = vadd.f32 %v5455, 1.0
    %v5458 = vrcp.pop %v5456
    %v5459 = vmul.f32 1.0, %v5458
    %v5460 = vrcp.pop %v5457
    %v5461 = vmul.f32 1.0, %v5460
    %v5462 = vtanh.pop %v5448
    %v5463 = vmul.f32 %v5459, %v5301
    %v5464 = vmul.f32 %v5459, %v5462
    %5466 = vrot.lane.b32.xlu0 %v5464, 64
    %v5467 = vpop.permute.xlu0 %5466
    %v5469 = vadd.f32 %v5463, %v5467
    %v5470 = vtanh.pop %v5469
    %v5471 = vmul.f32 %v5461, %v5470
    %5473 = vrot.lane.b32.xlu0 %v5471, 64
    %v5474 = vpop.permute.xlu0 %5473
    %5476 = vst.msk [vmem:[%s1570] sm:$0x3] %vm194, %v5474
    %5477 = vst.msk [vmem:[#allocation3] sm:$0x3] %vm197, %v5474
    %s5478 = scalar_lea.vmem [#allocation4], 12
    %5479 = vst.msk [vmem:[%s5478] sm:$0x3] %vm194, %v5474
    %5480 = vrot.lane.b32.xlu0 %v5471, 32
    %v5481 = vpop.permute.xlu0 %5480
    %s5483 = scalar_lea.vmem [#allocation4], 14
    %5484 = vst.msk [vmem:[%s5483] sm:$0x3] %vm194, %v5481
    %5486 = vrot.lane.b32.xlu0 %v5469, 64
    %v5487 = vpop.permute.xlu0 %5486
    %s5489 = scalar_lea.vmem [#allocation6], 12
    %5490 = vst.msk [vmem:[%s5489] sm:$0x3] %vm194, %v5487
    %5491 = vrot.lane.b32.xlu0 %v5469, 32
    %v5492 = vpop.permute.xlu0 %5491
    %s5494 = scalar_lea.vmem [#allocation6], 14
    %5495 = vst.msk [vmem:[%s5494] sm:$0x3] %vm194, %v5492
    %v5496 = vld [vmem:[%s3] sm:$0xff]
    %v5497 = vld [vmem:[%s3 + $0x8] sm:$0xff]
    %v5498 = vld [vmem:[%s3 + $0x10] sm:$0xff]
    %v5499 = vld [vmem:[%s3 + $0x18] sm:$0xff]
    %v5500 = vld [vmem:[%s3 + $0x20] sm:$0xff]
    %v5501 = vld [vmem:[%s3 + $0x28] sm:$0xff]
    %v5502 = vld [vmem:[%s3 + $0x30] sm:$0xff]
    %v5503 = vld [vmem:[%s3 + $0x38] sm:$0xff]
    %v5504 = vld [vmem:[%s4] sm:$0x1]
    %v5505 = vld [vmem:[#allocation3] sm:$0x3]
    %v5507 = vlaneseq
    %v5508 = vshrl.u32 %v5507, 7
    %v5509 = vsub.s32 0, %v5508
    %v5510 = vrot.slane %v5504, %v5509
    %v5513 = vsel %vm32, %v5505, 0
    %5515 = vmatprep.subr.mxu0 0.0
    %5516 = vmatpush1.msra.mxu0 0.0
    %5517 = vmatprep.subr.mxu0 0.0
    %5518 = vmatpush1.msra.mxu0 0.0
    %5519 = vmatprep.subr.mxu0 0.0
    %5520 = vmatpush1.msra.mxu0 0.0
    %5521 = vmatprep.subr.mxu0 0.0
    %5522 = vmatpush1.msra.mxu0 0.0
    %5523 = vmatprep.subr.mxu0 0.0
    %5524 = vmatpush1.msra.mxu0 0.0
    %5525 = vmatprep.subr.mxu0 0.0
    %5526 = vmatpush1.msra.mxu0 0.0
    %5527 = vmatprep.subr.mxu0 0.0
    %5528 = vmatpush1.msra.mxu0 0.0
    %5529 = vmatprep.subr.mxu0 0.0
    %5530 = vmatpush1.msra.mxu0 0.0
    %5531 = vmatprep.subr.mxu0 0.0
    %5532 = vmatpush1.msra.mxu0 %v5503
    %5533 = vmatprep.subr.mxu0 0.0
    %5534 = vmatpush1.msra.mxu0 %v5502
    %5535 = vmatprep.subr.mxu0 0.0
    %5536 = vmatpush1.msra.mxu0 %v5501
    %5537 = vmatprep.subr.mxu0 0.0
    %5538 = vmatpush1.msra.mxu0 %v5500
    %5539 = vmatprep.subr.mxu0 0.0
    %5540 = vmatpush1.msra.mxu0 %v5499
    %5541 = vmatprep.subr.mxu0 0.0
    %5542 = vmatpush1.msra.mxu0 %v5498
    %5543 = vmatprep.subr.mxu0 0.0
    %5544 = vmatpush1.msra.mxu0 %v5497
    %5545 = vmatprep.subr.mxu0 0.0
    %5546 = vmatpush1.msra.mxu0 %v5496
    %5547 = vmatprep.subr.mxu0 0.0
    %5548 = vmatpush2.msra.mxu0 0.0
    %5549 = vmatprep.subr.mxu0 0.0
    %5550 = vmatpush2.msra.mxu0 0.0
    %5551 = vmatprep.subr.mxu0 0.0
    %5552 = vmatpush2.msra.mxu0 0.0
    %5553 = vmatprep.subr.mxu0 0.0
    %5554 = vmatpush2.msra.mxu0 0.0
    %5555 = vmatprep.subr.mxu0 0.0
    %5556 = vmatpush2.msra.mxu0 0.0
    %5557 = vmatprep.subr.mxu0 0.0
    %5558 = vmatpush2.msra.mxu0 0.0
    %5559 = vmatprep.subr.mxu0 0.0
    %5560 = vmatpush2.msra.mxu0 0.0
    %5561 = vmatprep.subr.mxu0 0.0
    %5562 = vmatpush2.msra.mxu0 0.0
    %5563 = vmatprep.subr.mxu0 0.0
    %5564 = vmatpush2.msra.mxu0 0.0
    %5565 = vmatprep.subr.mxu0 0.0
    %5566 = vmatpush2.msra.mxu0 0.0
    %5567 = vmatprep.subr.mxu0 0.0
    %5568 = vmatpush2.msra.mxu0 0.0
    %5569 = vmatprep.subr.mxu0 0.0
    %5570 = vmatpush2.msra.mxu0 0.0
    %5571 = vmatprep.subr.mxu0 0.0
    %5572 = vmatpush2.msra.mxu0 0.0
    %5573 = vmatprep.subr.mxu0 0.0
    %5574 = vmatpush2.msra.mxu0 0.0
    %5575 = vmatprep.subr.mxu0 0.0
    %5576 = vmatpush2.msra.mxu0 0.0
    %5577 = vmatprep.subr.mxu0 0.0
    %5578 = vmatpush2.msra.mxu0 0.0
    %5579 = vmatprep.mubr.f32.mxu0 0.0
    %5580 = vmatmul.mubr.f32.gmra.mxu0 %v5513
    %v5581 = vpop.f32.mrf.mxu0
    %v5582 = vadd.f32 %v5510, %v5581
    %v5583 = vpop.f32.mrf.mxu0
    %5584 = vdwg.mxu0
    %vm5585 = vcmask 25600
    %5586 = vst.msk [vmem:[%s5] sm:$0x3] %vm5585, %v5582
    %v5587 = vld [vmem:[%s1738] sm:$0x3]
    %v5589 = vsel %vm32, %v5587, 0
    %5591 = vmatprep.subr.mxu0 0.0
    %5592 = vmatpush1.msra.mxu0 0.0
    %5593 = vmatprep.subr.mxu0 0.0
    %5594 = vmatpush1.msra.mxu0 0.0
    %5595 = vmatprep.subr.mxu0 0.0
    %5596 = vmatpush1.msra.mxu0 0.0
    %5597 = vmatprep.subr.mxu0 0.0
    %5598 = vmatpush1.msra.mxu0 0.0
    %5599 = vmatprep.subr.mxu0 0.0
    %5600 = vmatpush1.msra.mxu0 0.0
    %5601 = vmatprep.subr.mxu0 0.0
    %5602 = vmatpush1.msra.mxu0 0.0
    %5603 = vmatprep.subr.mxu0 0.0
    %5604 = vmatpush1.msra.mxu0 0.0
    %5605 = vmatprep.subr.mxu0 0.0
    %5606 = vmatpush1.msra.mxu0 0.0
    %5607 = vmatprep.subr.mxu0 0.0
    %5608 = vmatpush1.msra.mxu0 %v5503
    %5609 = vmatprep.subr.mxu0 0.0
    %5610 = vmatpush1.msra.mxu0 %v5502
    %5611 = vmatprep.subr.mxu0 0.0
    %5612 = vmatpush1.msra.mxu0 %v5501
    %5613 = vmatprep.subr.mxu0 0.0
    %5614 = vmatpush1.msra.mxu0 %v5500
    %5615 = vmatprep.subr.mxu0 0.0
    %5616 = vmatpush1.msra.mxu0 %v5499
    %5617 = vmatprep.subr.mxu0 0.0
    %5618 = vmatpush1.msra.mxu0 %v5498
    %5619 = vmatprep.subr.mxu0 0.0
    %5620 = vmatpush1.msra.mxu0 %v5497
    %5621 = vmatprep.subr.mxu0 0.0
    %5622 = vmatpush1.msra.mxu0 %v5496
    %5623 = vmatprep.subr.mxu0 0.0
    %5624 = vmatpush2.msra.mxu0 0.0
    %5625 = vmatprep.subr.mxu0 0.0
    %5626 = vmatpush2.msra.mxu0 0.0
    %5627 = vmatprep.subr.mxu0 0.0
    %5628 = vmatpush2.msra.mxu0 0.0
    %5629 = vmatprep.subr.mxu0 0.0
    %5630 = vmatpush2.msra.mxu0 0.0
    %5631 = vmatprep.subr.mxu0 0.0
    %5632 = vmatpush2.msra.mxu0 0.0
    %5633 = vmatprep.subr.mxu0 0.0
    %5634 = vmatpush2.msra.mxu0 0.0
    %5635 = vmatprep.subr.mxu0 0.0
    %5636 = vmatpush2.msra.mxu0 0.0
    %5637 = vmatprep.subr.mxu0 0.0
    %5638 = vmatpush2.msra.mxu0 0.0
    %5639 = vmatprep.subr.mxu0 0.0
    %5640 = vmatpush2.msra.mxu0 0.0
    %5641 = vmatprep.subr.mxu0 0.0
    %5642 = vmatpush2.msra.mxu0 0.0
    %5643 = vmatprep.subr.mxu0 0.0
    %5644 = vmatpush2.msra.mxu0 0.0
    %5645 = vmatprep.subr.mxu0 0.0
    %5646 = vmatpush2.msra.mxu0 0.0
    %5647 = vmatprep.subr.mxu0 0.0
    %5648 = vmatpush2.msra.mxu0 0.0
    %5649 = vmatprep.subr.mxu0 0.0
    %5650 = vmatpush2.msra.mxu0 0.0
    %5651 = vmatprep.subr.mxu0 0.0
    %5652 = vmatpush2.msra.mxu0 0.0
    %5653 = vmatprep.subr.mxu0 0.0
    %5654 = vmatpush2.msra.mxu0 0.0
    %5655 = vmatprep.mubr.f32.mxu0 0.0
    %5656 = vmatmul.mubr.f32.gmra.mxu0 %v5589
    %v5657 = vpop.f32.mrf.mxu0
    %v5658 = vadd.f32 %v5510, %v5657
    %v5659 = vpop.f32.mrf.mxu0
    %5660 = vdwg.mxu0
    %s5661 = scalar_lea.vmem %s5, 2
    %5662 = vst.msk [vmem:[%s5661] sm:$0x3] %vm5585, %v5658
    %v5663 = vld [vmem:[%s1908] sm:$0x3]
    %v5665 = vsel %vm32, %v5663, 0
    %5667 = vmatprep.subr.mxu0 0.0
    %5668 = vmatpush1.msra.mxu0 0.0
    %5669 = vmatprep.subr.mxu0 0.0
    %5670 = vmatpush1.msra.mxu0 0.0
    %5671 = vmatprep.subr.mxu0 0.0
    %5672 = vmatpush1.msra.mxu0 0.0
    %5673 = vmatprep.subr.mxu0 0.0
    %5674 = vmatpush1.msra.mxu0 0.0
    %5675 = vmatprep.subr.mxu0 0.0
    %5676 = vmatpush1.msra.mxu0 0.0
    %5677 = vmatprep.subr.mxu0 0.0
    %5678 = vmatpush1.msra.mxu0 0.0
    %5679 = vmatprep.subr.mxu0 0.0
    %5680 = vmatpush1.msra.mxu0 0.0
    %5681 = vmatprep.subr.mxu0 0.0
    %5682 = vmatpush1.msra.mxu0 0.0
    %5683 = vmatprep.subr.mxu0 0.0
    %5684 = vmatpush1.msra.mxu0 %v5503
    %5685 = vmatprep.subr.mxu0 0.0
    %5686 = vmatpush1.msra.mxu0 %v5502
    %5687 = vmatprep.subr.mxu0 0.0
    %5688 = vmatpush1.msra.mxu0 %v5501
    %5689 = vmatprep.subr.mxu0 0.0
    %5690 = vmatpush1.msra.mxu0 %v5500
    %5691 = vmatprep.subr.mxu0 0.0
    %5692 = vmatpush1.msra.mxu0 %v5499
    %5693 = vmatprep.subr.mxu0 0.0
    %5694 = vmatpush1.msra.mxu0 %v5498
    %5695 = vmatprep.subr.mxu0 0.0
    %5696 = vmatpush1.msra.mxu0 %v5497
    %5697 = vmatprep.subr.mxu0 0.0
    %5698 = vmatpush1.msra.mxu0 %v5496
    %5699 = vmatprep.subr.mxu0 0.0
    %5700 = vmatpush2.msra.mxu0 0.0
    %5701 = vmatprep.subr.mxu0 0.0
    %5702 = vmatpush2.msra.mxu0 0.0
    %5703 = vmatprep.subr.mxu0 0.0
    %5704 = vmatpush2.msra.mxu0 0.0
    %5705 = vmatprep.subr.mxu0 0.0
    %5706 = vmatpush2.msra.mxu0 0.0
    %5707 = vmatprep.subr.mxu0 0.0
    %5708 = vmatpush2.msra.mxu0 0.0
    %5709 = vmatprep.subr.mxu0 0.0
    %5710 = vmatpush2.msra.mxu0 0.0
    %5711 = vmatprep.subr.mxu0 0.0
    %5712 = vmatpush2.msra.mxu0 0.0
    %5713 = vmatprep.subr.mxu0 0.0
    %5714 = vmatpush2.msra.mxu0 0.0
    %5715 = vmatprep.subr.mxu0 0.0
    %5716 = vmatpush2.msra.mxu0 0.0
    %5717 = vmatprep.subr.mxu0 0.0
    %5718 = vmatpush2.msra.mxu0 0.0
    %5719 = vmatprep.subr.mxu0 0.0
    %5720 = vmatpush2.msra.mxu0 0.0
    %5721 = vmatprep.subr.mxu0 0.0
    %5722 = vmatpush2.msra.mxu0 0.0
    %5723 = vmatprep.subr.mxu0 0.0
    %5724 = vmatpush2.msra.mxu0 0.0
    %5725 = vmatprep.subr.mxu0 0.0
    %5726 = vmatpush2.msra.mxu0 0.0
    %5727 = vmatprep.subr.mxu0 0.0
    %5728 = vmatpush2.msra.mxu0 0.0
    %5729 = vmatprep.subr.mxu0 0.0
    %5730 = vmatpush2.msra.mxu0 0.0
    %5731 = vmatprep.mubr.f32.mxu0 0.0
    %5732 = vmatmul.mubr.f32.gmra.mxu0 %v5665
    %v5733 = vpop.f32.mrf.mxu0
    %v5734 = vadd.f32 %v5510, %v5733
    %v5735 = vpop.f32.mrf.mxu0
    %5736 = vdwg.mxu0
    %s5737 = scalar_lea.vmem %s5, 4
    %5738 = vst.msk [vmem:[%s5737] sm:$0x3] %vm5585, %v5734
    %v5739 = vld [vmem:[%s2078] sm:$0x3]
    %v5741 = vsel %vm32, %v5739, 0
    %5743 = vmatprep.subr.mxu0 0.0
    %5744 = vmatpush1.msra.mxu0 0.0
    %5745 = vmatprep.subr.mxu0 0.0
    %5746 = vmatpush1.msra.mxu0 0.0
    %5747 = vmatprep.subr.mxu0 0.0
    %5748 = vmatpush1.msra.mxu0 0.0
    %5749 = vmatprep.subr.mxu0 0.0
    %5750 = vmatpush1.msra.mxu0 0.0
    %5751 = vmatprep.subr.mxu0 0.0
    %5752 = vmatpush1.msra.mxu0 0.0
    %5753 = vmatprep.subr.mxu0 0.0
    %5754 = vmatpush1.msra.mxu0 0.0
    %5755 = vmatprep.subr.mxu0 0.0
    %5756 = vmatpush1.msra.mxu0 0.0
    %5757 = vmatprep.subr.mxu0 0.0
    %5758 = vmatpush1.msra.mxu0 0.0
    %5759 = vmatprep.subr.mxu0 0.0
    %5760 = vmatpush1.msra.mxu0 %v5503
    %5761 = vmatprep.subr.mxu0 0.0
    %5762 = vmatpush1.msra.mxu0 %v5502
    %5763 = vmatprep.subr.mxu0 0.0
    %5764 = vmatpush1.msra.mxu0 %v5501
    %5765 = vmatprep.subr.mxu0 0.0
    %5766 = vmatpush1.msra.mxu0 %v5500
    %5767 = vmatprep.subr.mxu0 0.0
    %5768 = vmatpush1.msra.mxu0 %v5499
    %5769 = vmatprep.subr.mxu0 0.0
    %5770 = vmatpush1.msra.mxu0 %v5498
    %5771 = vmatprep.subr.mxu0 0.0
    %5772 = vmatpush1.msra.mxu0 %v5497
    %5773 = vmatprep.subr.mxu0 0.0
    %5774 = vmatpush1.msra.mxu0 %v5496
    %5775 = vmatprep.subr.mxu0 0.0
    %5776 = vmatpush2.msra.mxu0 0.0
    %5777 = vmatprep.subr.mxu0 0.0
    %5778 = vmatpush2.msra.mxu0 0.0
    %5779 = vmatprep.subr.mxu0 0.0
    %5780 = vmatpush2.msra.mxu0 0.0
    %5781 = vmatprep.subr.mxu0 0.0
    %5782 = vmatpush2.msra.mxu0 0.0
    %5783 = vmatprep.subr.mxu0 0.0
    %5784 = vmatpush2.msra.mxu0 0.0
    %5785 = vmatprep.subr.mxu0 0.0
    %5786 = vmatpush2.msra.mxu0 0.0
    %5787 = vmatprep.subr.mxu0 0.0
    %5788 = vmatpush2.msra.mxu0 0.0
    %5789 = vmatprep.subr.mxu0 0.0
    %5790 = vmatpush2.msra.mxu0 0.0
    %5791 = vmatprep.subr.mxu0 0.0
    %5792 = vmatpush2.msra.mxu0 0.0
    %5793 = vmatprep.subr.mxu0 0.0
    %5794 = vmatpush2.msra.mxu0 0.0
    %5795 = vmatprep.subr.mxu0 0.0
    %5796 = vmatpush2.msra.mxu0 0.0
    %5797 = vmatprep.subr.mxu0 0.0
    %5798 = vmatpush2.msra.mxu0 0.0
    %5799 = vmatprep.subr.mxu0 0.0
    %5800 = vmatpush2.msra.mxu0 0.0
    %5801 = vmatprep.subr.mxu0 0.0
    %5802 = vmatpush2.msra.mxu0 0.0
    %5803 = vmatprep.subr.mxu0 0.0
    %5804 = vmatpush2.msra.mxu0 0.0
    %5805 = vmatprep.subr.mxu0 0.0
    %5806 = vmatpush2.msra.mxu0 0.0
    %5807 = vmatprep.mubr.f32.mxu0 0.0
    %5808 = vmatmul.mubr.f32.gmra.mxu0 %v5741
    %v5809 = vpop.f32.mrf.mxu0
    %v5810 = vadd.f32 %v5510, %v5809
    %v5811 = vpop.f32.mrf.mxu0
    %5812 = vdwg.mxu0
    %s5813 = scalar_lea.vmem %s5, 6
    %5814 = vst.msk [vmem:[%s5813] sm:$0x3] %vm5585, %v5810
    %v5815 = vld [vmem:[%s2080] sm:$0x3]
    %v5817 = vsel %vm32, %v5815, 0
    %5819 = vmatprep.subr.mxu0 0.0
    %5820 = vmatpush1.msra.mxu0 0.0
    %5821 = vmatprep.subr.mxu0 0.0
    %5822 = vmatpush1.msra.mxu0 0.0
    %5823 = vmatprep.subr.mxu0 0.0
    %5824 = vmatpush1.msra.mxu0 0.0
    %5825 = vmatprep.subr.mxu0 0.0
    %5826 = vmatpush1.msra.mxu0 0.0
    %5827 = vmatprep.subr.mxu0 0.0
    %5828 = vmatpush1.msra.mxu0 0.0
    %5829 = vmatprep.subr.mxu0 0.0
    %5830 = vmatpush1.msra.mxu0 0.0
    %5831 = vmatprep.subr.mxu0 0.0
    %5832 = vmatpush1.msra.mxu0 0.0
    %5833 = vmatprep.subr.mxu0 0.0
    %5834 = vmatpush1.msra.mxu0 0.0
    %5835 = vmatprep.subr.mxu0 0.0
    %5836 = vmatpush1.msra.mxu0 %v5503
    %5837 = vmatprep.subr.mxu0 0.0
    %5838 = vmatpush1.msra.mxu0 %v5502
    %5839 = vmatprep.subr.mxu0 0.0
    %5840 = vmatpush1.msra.mxu0 %v5501
    %5841 = vmatprep.subr.mxu0 0.0
    %5842 = vmatpush1.msra.mxu0 %v5500
    %5843 = vmatprep.subr.mxu0 0.0
    %5844 = vmatpush1.msra.mxu0 %v5499
    %5845 = vmatprep.subr.mxu0 0.0
    %5846 = vmatpush1.msra.mxu0 %v5498
    %5847 = vmatprep.subr.mxu0 0.0
    %5848 = vmatpush1.msra.mxu0 %v5497
    %5849 = vmatprep.subr.mxu0 0.0
    %5850 = vmatpush1.msra.mxu0 %v5496
    %5851 = vmatprep.subr.mxu0 0.0
    %5852 = vmatpush2.msra.mxu0 0.0
    %5853 = vmatprep.subr.mxu0 0.0
    %5854 = vmatpush2.msra.mxu0 0.0
    %5855 = vmatprep.subr.mxu0 0.0
    %5856 = vmatpush2.msra.mxu0 0.0
    %5857 = vmatprep.subr.mxu0 0.0
    %5858 = vmatpush2.msra.mxu0 0.0
    %5859 = vmatprep.subr.mxu0 0.0
    %5860 = vmatpush2.msra.mxu0 0.0
    %5861 = vmatprep.subr.mxu0 0.0
    %5862 = vmatpush2.msra.mxu0 0.0
    %5863 = vmatprep.subr.mxu0 0.0
    %5864 = vmatpush2.msra.mxu0 0.0
    %5865 = vmatprep.subr.mxu0 0.0
    %5866 = vmatpush2.msra.mxu0 0.0
    %5867 = vmatprep.subr.mxu0 0.0
    %5868 = vmatpush2.msra.mxu0 0.0
    %5869 = vmatprep.subr.mxu0 0.0
    %5870 = vmatpush2.msra.mxu0 0.0
    %5871 = vmatprep.subr.mxu0 0.0
    %5872 = vmatpush2.msra.mxu0 0.0
    %5873 = vmatprep.subr.mxu0 0.0
    %5874 = vmatpush2.msra.mxu0 0.0
    %5875 = vmatprep.subr.mxu0 0.0
    %5876 = vmatpush2.msra.mxu0 0.0
    %5877 = vmatprep.subr.mxu0 0.0
    %5878 = vmatpush2.msra.mxu0 0.0
    %5879 = vmatprep.subr.mxu0 0.0
    %5880 = vmatpush2.msra.mxu0 0.0
    %5881 = vmatprep.subr.mxu0 0.0
    %5882 = vmatpush2.msra.mxu0 0.0
    %5883 = vmatprep.mubr.f32.mxu0 0.0
    %5884 = vmatmul.mubr.f32.gmra.mxu0 %v5817
    %v5885 = vpop.f32.mrf.mxu0
    %v5886 = vadd.f32 %v5510, %v5885
    %v5887 = vpop.f32.mrf.mxu0
    %5888 = vdwg.mxu0
    %s5889 = scalar_lea.vmem %s5, 8
    %5890 = vst.msk [vmem:[%s5889] sm:$0x3] %vm5585, %v5886
    %v5891 = vld [vmem:[%s1910] sm:$0x3]
    %v5893 = vsel %vm32, %v5891, 0
    %5895 = vmatprep.subr.mxu0 0.0
    %5896 = vmatpush1.msra.mxu0 0.0
    %5897 = vmatprep.subr.mxu0 0.0
    %5898 = vmatpush1.msra.mxu0 0.0
    %5899 = vmatprep.subr.mxu0 0.0
    %5900 = vmatpush1.msra.mxu0 0.0
    %5901 = vmatprep.subr.mxu0 0.0
    %5902 = vmatpush1.msra.mxu0 0.0
    %5903 = vmatprep.subr.mxu0 0.0
    %5904 = vmatpush1.msra.mxu0 0.0
    %5905 = vmatprep.subr.mxu0 0.0
    %5906 = vmatpush1.msra.mxu0 0.0
    %5907 = vmatprep.subr.mxu0 0.0
    %5908 = vmatpush1.msra.mxu0 0.0
    %5909 = vmatprep.subr.mxu0 0.0
    %5910 = vmatpush1.msra.mxu0 0.0
    %5911 = vmatprep.subr.mxu0 0.0
    %5912 = vmatpush1.msra.mxu0 %v5503
    %5913 = vmatprep.subr.mxu0 0.0
    %5914 = vmatpush1.msra.mxu0 %v5502
    %5915 = vmatprep.subr.mxu0 0.0
    %5916 = vmatpush1.msra.mxu0 %v5501
    %5917 = vmatprep.subr.mxu0 0.0
    %5918 = vmatpush1.msra.mxu0 %v5500
    %5919 = vmatprep.subr.mxu0 0.0
    %5920 = vmatpush1.msra.mxu0 %v5499
    %5921 = vmatprep.subr.mxu0 0.0
    %5922 = vmatpush1.msra.mxu0 %v5498
    %5923 = vmatprep.subr.mxu0 0.0
    %5924 = vmatpush1.msra.mxu0 %v5497
    %5925 = vmatprep.subr.mxu0 0.0
    %5926 = vmatpush1.msra.mxu0 %v5496
    %5927 = vmatprep.subr.mxu0 0.0
    %5928 = vmatpush2.msra.mxu0 0.0
    %5929 = vmatprep.subr.mxu0 0.0
    %5930 = vmatpush2.msra.mxu0 0.0
    %5931 = vmatprep.subr.mxu0 0.0
    %5932 = vmatpush2.msra.mxu0 0.0
    %5933 = vmatprep.subr.mxu0 0.0
    %5934 = vmatpush2.msra.mxu0 0.0
    %5935 = vmatprep.subr.mxu0 0.0
    %5936 = vmatpush2.msra.mxu0 0.0
    %5937 = vmatprep.subr.mxu0 0.0
    %5938 = vmatpush2.msra.mxu0 0.0
    %5939 = vmatprep.subr.mxu0 0.0
    %5940 = vmatpush2.msra.mxu0 0.0
    %5941 = vmatprep.subr.mxu0 0.0
    %5942 = vmatpush2.msra.mxu0 0.0
    %5943 = vmatprep.subr.mxu0 0.0
    %5944 = vmatpush2.msra.mxu0 0.0
    %5945 = vmatprep.subr.mxu0 0.0
    %5946 = vmatpush2.msra.mxu0 0.0
    %5947 = vmatprep.subr.mxu0 0.0
    %5948 = vmatpush2.msra.mxu0 0.0
    %5949 = vmatprep.subr.mxu0 0.0
    %5950 = vmatpush2.msra.mxu0 0.0
    %5951 = vmatprep.subr.mxu0 0.0
    %5952 = vmatpush2.msra.mxu0 0.0
    %5953 = vmatprep.subr.mxu0 0.0
    %5954 = vmatpush2.msra.mxu0 0.0
    %5955 = vmatprep.subr.mxu0 0.0
    %5956 = vmatpush2.msra.mxu0 0.0
    %5957 = vmatprep.subr.mxu0 0.0
    %5958 = vmatpush2.msra.mxu0 0.0
    %5959 = vmatprep.mubr.f32.mxu0 0.0
    %5960 = vmatmul.mubr.f32.gmra.mxu0 %v5893
    %v5961 = vpop.f32.mrf.mxu0
    %v5962 = vadd.f32 %v5510, %v5961
    %v5963 = vpop.f32.mrf.mxu0
    %5964 = vdwg.mxu0
    %s5965 = scalar_lea.vmem %s5, 10
    %5966 = vst.msk [vmem:[%s5965] sm:$0x3] %vm5585, %v5962
    %v5967 = vld [vmem:[%s1740] sm:$0x3]
    %v5969 = vsel %vm32, %v5967, 0
    %5971 = vmatprep.subr.mxu0 0.0
    %5972 = vmatpush1.msra.mxu0 0.0
    %5973 = vmatprep.subr.mxu0 0.0
    %5974 = vmatpush1.msra.mxu0 0.0
    %5975 = vmatprep.subr.mxu0 0.0
    %5976 = vmatpush1.msra.mxu0 0.0
    %5977 = vmatprep.subr.mxu0 0.0
    %5978 = vmatpush1.msra.mxu0 0.0
    %5979 = vmatprep.subr.mxu0 0.0
    %5980 = vmatpush1.msra.mxu0 0.0
    %5981 = vmatprep.subr.mxu0 0.0
    %5982 = vmatpush1.msra.mxu0 0.0
    %5983 = vmatprep.subr.mxu0 0.0
    %5984 = vmatpush1.msra.mxu0 0.0
    %5985 = vmatprep.subr.mxu0 0.0
    %5986 = vmatpush1.msra.mxu0 0.0
    %5987 = vmatprep.subr.mxu0 0.0
    %5988 = vmatpush1.msra.mxu0 %v5503
    %5989 = vmatprep.subr.mxu0 0.0
    %5990 = vmatpush1.msra.mxu0 %v5502
    %5991 = vmatprep.subr.mxu0 0.0
    %5992 = vmatpush1.msra.mxu0 %v5501
    %5993 = vmatprep.subr.mxu0 0.0
    %5994 = vmatpush1.msra.mxu0 %v5500
    %5995 = vmatprep.subr.mxu0 0.0
    %5996 = vmatpush1.msra.mxu0 %v5499
    %5997 = vmatprep.subr.mxu0 0.0
    %5998 = vmatpush1.msra.mxu0 %v5498
    %5999 = vmatprep.subr.mxu0 0.0
    %6000 = vmatpush1.msra.mxu0 %v5497
    %6001 = vmatprep.subr.mxu0 0.0
    %6002 = vmatpush1.msra.mxu0 %v5496
    %6003 = vmatprep.subr.mxu0 0.0
    %6004 = vmatpush2.msra.mxu0 0.0
    %6005 = vmatprep.subr.mxu0 0.0
    %6006 = vmatpush2.msra.mxu0 0.0
    %6007 = vmatprep.subr.mxu0 0.0
    %6008 = vmatpush2.msra.mxu0 0.0
    %6009 = vmatprep.subr.mxu0 0.0
    %6010 = vmatpush2.msra.mxu0 0.0
    %6011 = vmatprep.subr.mxu0 0.0
    %6012 = vmatpush2.msra.mxu0 0.0
    %6013 = vmatprep.subr.mxu0 0.0
    %6014 = vmatpush2.msra.mxu0 0.0
    %6015 = vmatprep.subr.mxu0 0.0
    %6016 = vmatpush2.msra.mxu0 0.0
    %6017 = vmatprep.subr.mxu0 0.0
    %6018 = vmatpush2.msra.mxu0 0.0
    %6019 = vmatprep.subr.mxu0 0.0
    %6020 = vmatpush2.msra.mxu0 0.0
    %6021 = vmatprep.subr.mxu0 0.0
    %6022 = vmatpush2.msra.mxu0 0.0
    %6023 = vmatprep.subr.mxu0 0.0
    %6024 = vmatpush2.msra.mxu0 0.0
    %6025 = vmatprep.subr.mxu0 0.0
    %6026 = vmatpush2.msra.mxu0 0.0
    %6027 = vmatprep.subr.mxu0 0.0
    %6028 = vmatpush2.msra.mxu0 0.0
    %6029 = vmatprep.subr.mxu0 0.0
    %6030 = vmatpush2.msra.mxu0 0.0
    %6031 = vmatprep.subr.mxu0 0.0
    %6032 = vmatpush2.msra.mxu0 0.0
    %6033 = vmatprep.subr.mxu0 0.0
    %6034 = vmatpush2.msra.mxu0 0.0
    %6035 = vmatprep.mubr.f32.mxu0 0.0
    %6036 = vmatmul.mubr.f32.gmra.mxu0 %v5969
    %v6037 = vpop.f32.mrf.mxu0
    %v6038 = vadd.f32 %v5510, %v6037
    %v6039 = vpop.f32.mrf.mxu0
    %6040 = vdwg.mxu0
    %s6041 = scalar_lea.vmem %s5, 12
    %6042 = vst.msk [vmem:[%s6041] sm:$0x3] %vm5585, %v6038
    %v6043 = vld [vmem:[%s1570] sm:$0x3]
    %v6045 = vsel %vm32, %v6043, 0
    %6047 = vmatprep.subr.mxu0 0.0
    %6048 = vmatpush1.msra.mxu0 0.0
    %6049 = vmatprep.subr.mxu0 0.0
    %6050 = vmatpush1.msra.mxu0 0.0
    %6051 = vmatprep.subr.mxu0 0.0
    %6052 = vmatpush1.msra.mxu0 0.0
    %6053 = vmatprep.subr.mxu0 0.0
    %6054 = vmatpush1.msra.mxu0 0.0
    %6055 = vmatprep.subr.mxu0 0.0
    %6056 = vmatpush1.msra.mxu0 0.0
    %6057 = vmatprep.subr.mxu0 0.0
    %6058 = vmatpush1.msra.mxu0 0.0
    %6059 = vmatprep.subr.mxu0 0.0
    %6060 = vmatpush1.msra.mxu0 0.0
    %6061 = vmatprep.subr.mxu0 0.0
    %6062 = vmatpush1.msra.mxu0 0.0
    %6063 = vmatprep.subr.mxu0 0.0
    %6064 = vmatpush1.msra.mxu0 %v5503
    %6065 = vmatprep.subr.mxu0 0.0
    %6066 = vmatpush1.msra.mxu0 %v5502
    %6067 = vmatprep.subr.mxu0 0.0
    %6068 = vmatpush1.msra.mxu0 %v5501
    %6069 = vmatprep.subr.mxu0 0.0
    %6070 = vmatpush1.msra.mxu0 %v5500
    %6071 = vmatprep.subr.mxu0 0.0
    %6072 = vmatpush1.msra.mxu0 %v5499
    %6073 = vmatprep.subr.mxu0 0.0
    %6074 = vmatpush1.msra.mxu0 %v5498
    %6075 = vmatprep.subr.mxu0 0.0
    %6076 = vmatpush1.msra.mxu0 %v5497
    %6077 = vmatprep.subr.mxu0 0.0
    %6078 = vmatpush1.msra.mxu0 %v5496
    %6079 = vmatprep.subr.mxu0 0.0
    %6080 = vmatpush2.msra.mxu0 0.0
    %6081 = vmatprep.subr.mxu0 0.0
    %6082 = vmatpush2.msra.mxu0 0.0
    %6083 = vmatprep.subr.mxu0 0.0
    %6084 = vmatpush2.msra.mxu0 0.0
    %6085 = vmatprep.subr.mxu0 0.0
    %6086 = vmatpush2.msra.mxu0 0.0
    %6087 = vmatprep.subr.mxu0 0.0
    %6088 = vmatpush2.msra.mxu0 0.0
    %6089 = vmatprep.subr.mxu0 0.0
    %6090 = vmatpush2.msra.mxu0 0.0
    %6091 = vmatprep.subr.mxu0 0.0
    %6092 = vmatpush2.msra.mxu0 0.0
    %6093 = vmatprep.subr.mxu0 0.0
    %6094 = vmatpush2.msra.mxu0 0.0
    %6095 = vmatprep.subr.mxu0 0.0
    %6096 = vmatpush2.msra.mxu0 0.0
    %6097 = vmatprep.subr.mxu0 0.0
    %6098 = vmatpush2.msra.mxu0 0.0
    %6099 = vmatprep.subr.mxu0 0.0
    %6100 = vmatpush2.msra.mxu0 0.0
    %6101 = vmatprep.subr.mxu0 0.0
    %6102 = vmatpush2.msra.mxu0 0.0
    %6103 = vmatprep.subr.mxu0 0.0
    %6104 = vmatpush2.msra.mxu0 0.0
    %6105 = vmatprep.subr.mxu0 0.0
    %6106 = vmatpush2.msra.mxu0 0.0
    %6107 = vmatprep.subr.mxu0 0.0
    %6108 = vmatpush2.msra.mxu0 0.0
    %6109 = vmatprep.subr.mxu0 0.0
    %6110 = vmatpush2.msra.mxu0 0.0
    %6111 = vmatprep.mubr.f32.mxu0 0.0
    %6112 = vmatmul.mubr.f32.gmra.mxu0 %v6045
    %v6113 = vpop.f32.mrf.mxu0
    %v6114 = vadd.f32 %v5510, %v6113
    %v6115 = vpop.f32.mrf.mxu0
    %6116 = vdwg.mxu0
    %s6117 = scalar_lea.vmem %s5, 14
    %6118 = vst.msk [vmem:[%s6117] sm:$0x3] %vm5585, %v6114
    // Predicated region
    $region22: #{model_forward.1} parent=1 // pred_check
      _
    $region23: #{model_forward.1} parent=1 // pred_check_branch
      %6120 = sbr.rel (0) target = $region25
    $region24: #{model_forward.1} parent=1 // pred_region
      _
    $region25: #{model_forward.1} parent=1 // pred_fallthru
      _
    // Predicated region
    $region26: #{model_forward.1} parent=1 // pred_check
      _
    $region27: #{model_forward.1} parent=1 // pred_check_branch
      %6122 = sbr.rel (0) target = $region29
    $region28: #{model_forward.1} parent=1 // pred_region
      %s6124 = ssub.s32 256, 256
      %6125 = vsyncadd [#allocation5], %s6124
      %s6126 = sshll.u32 [#allocation4], 4
      %s6127 = int_to_ptr.vmem [resolvable:$true] %s6126
      %6132 = dma.vmem_to_hbm [thread:$0]  %s6127, 256, %s6, [#allocation5], 32, 32, 2
    $region29: #{model_forward.1} parent=1 // pred_fallthru
      _
    // Predicated region
    $region30: #{model_forward.1} parent=1 // pred_check
      _
    $region31: #{model_forward.1} parent=1 // pred_check_branch
      %6134 = sbr.rel (0) target = $region33
    $region32: #{model_forward.1} parent=1 // pred_region
      %s6136 = ssub.s32 256, 256
      %6137 = vsyncadd [#allocation7], %s6136
      %s6138 = sshll.u32 [#allocation6], 4
      %s6139 = int_to_ptr.vmem [resolvable:$true] %s6138
      %6144 = dma.vmem_to_hbm [thread:$0]  %s6139, 256, %s7, [#allocation7], 32, 32, 2
    $region33: #{model_forward.1} parent=1 // pred_fallthru
      _
    // Predicated region
    $region34: #{model_forward.1} parent=1 // pred_check
      _
    $region35: #{model_forward.1} parent=1 // pred_check_branch
      %6146 = sbr.rel (0) target = $region37
    $region36: #{model_forward.1} parent=1 // pred_region
      _
    $region37: #{model_forward.1} parent=1 // pred_fallthru
      _
    // Predicated region
    $region38: #{model_forward.1} parent=1 // pred_check
      _
    $region39: #{model_forward.1} parent=1 // pred_check_branch
      %6148 = sbr.rel (0) target = $region41
    $region40: #{model_forward.1} parent=1 // pred_region
      %6149 = dma.done [#allocation5], 256
    $region41: #{model_forward.1} parent=1 // pred_fallthru
      _
    // Predicated region
    $region42: #{model_forward.1} parent=1 // pred_check
      _
    $region43: #{model_forward.1} parent=1 // pred_check_branch
      %6151 = sbr.rel (0) target = $region45
    $region44: #{model_forward.1} parent=1 // pred_region
      %6152 = dma.done [#allocation7], 256
    $region45: #{model_forward.1} parent=1 // pred_fallthru
      _
    %6153 = vsyncpa [#allocation5], 1
    %6154 = vsyncpa [#allocation7], 1

</llo_original>
